<compile_context>
chip_gen: v7x
topology: tpu7x:2x2x1
jax: 0.10.0
libtpu: 0.0.40
codegen_flags: <defaults>
</compile_context>

<pallas_src>
import functools

import jax
import jax.numpy as jnp
from jax import lax
from jax.experimental import pallas as pl
from jax.experimental.pallas import tpu as pltpu

HIDDEN_DIM = 20
NUM_LAYERS = 3
OUTPUT_DIM = 24
QUANTILES = [0.01, 0.05, 0.1, 0.25, 0.5, 0.75, 0.9, 0.95, 0.99]
NUM_Q = len(QUANTILES)

GATE_PAD = 128                 # lanes reserved per gate block (i, f, g, o)
GATES_W = 4 * GATE_PAD         # fused gate width (both directions, padded)
PAD_IN = 128                   # padded feature width of every layer input


# ----------------------------- Fused Pallas kernel --------------------------

def _blstm_fused_kernel(x_ref, wih_ref, whh_ref, b_ref, hw_ref, hb_ref,
                        out_ref, xw_ref, hseq_ref, *, seq_len, batch_pad):
    """Whole BLSTM forward in one kernel.

    x_ref:    (T*BP, PAD_IN)  bf16   time-major input, lanes >= D zero
    wih_ref:  (L, PAD_IN, GATES_W) bf16  fused input->gate weights (+ zero pad)
    whh_ref:  (L, PAD_IN, GATES_W) bf16  fused hidden->gate weights (block layout)
    b_ref:    (L, 1, GATES_W) f32   fused biases (b_ih + b_hh per direction)
    hw_ref:   (PAD_IN, Q*O)   bf16  stacked quantile-head weights
    hb_ref:   (1, Q*O)        f32   stacked quantile-head biases
    out_ref:  (BP, Q*O)       f32
    xw_ref:   (T*BP, GATES_W) f32   scratch: hoisted projection per layer
    hseq_ref: (T*BP, GATE_PAD) f32  scratch: per-step h of the current layer
    """
    T, BP, H = seq_len, batch_pad, HIDDEN_DIM

    lane = lax.broadcasted_iota(jnp.int32, (1, GATES_W), 1)
    # lane position inside its 128-wide gate block: <H -> forward direction.
    fwd_mask = (lane & (GATE_PAD - 1)) < H                        # (1, GATES_W)
    hmask = lax.broadcasted_iota(jnp.int32, (1, GATE_PAD), 1) < H  # (1, 128)

    feat = None
    for layer in range(NUM_LAYERS):
        wih = wih_ref[layer]                                      # (128, 512) bf16
        b = b_ref[layer]                                          # (1, 512)  f32

        # ---- hoisted input projection for all timesteps & both directions ---
        if layer == 0:
            X = x_ref[...]                                        # (T*BP, 128) bf16
        else:
            # Next-layer input at time t: [fwd(t) | bwd(t)] in lanes 0:2H.
            # hseq[s] holds lanes 0:H = fwd@t=s, lanes H:2H = bwd@t=T-1-s.
            X = jnp.concatenate(
                [jnp.where(hmask,
                           hseq_ref[pl.ds(t * BP, BP), :],
                           hseq_ref[pl.ds((T - 1 - t) * BP, BP), :])
                 for t in range(T)], axis=0).astype(jnp.bfloat16)  # (T*BP, 128)

        # Park xw in VMEM scratch -> per-step loads instead of 32 live vregs.
        xw_ref[...] = jnp.dot(X, wih, preferred_element_type=jnp.float32) + b

        # Hoist the loop-invariant recurrence RHS out of the step loop.
        whh = whh_ref[layer]                                      # (128, 512) bf16

        last = layer == NUM_LAYERS - 1
        h = jnp.zeros((BP, GATE_PAD), jnp.float32)  # lanes 0:H fwd, H:2H bwd
        c = jnp.zeros((BP, GATE_PAD), jnp.float32)
        h_first = None
        for s in range(T):                          # fully unrolled recurrence
            # fwd lanes use xw at time s, bwd lanes use xw at time T-1-s.
            g_in = jnp.where(fwd_mask,
                             xw_ref[pl.ds(s * BP, BP), :],
                             xw_ref[pl.ds((T - 1 - s) * BP, BP), :])
            g = g_in + jnp.dot(h.astype(jnp.bfloat16), whh,
                               preferred_element_type=jnp.float32)
            i_g = jax.nn.sigmoid(g[:, 0:GATE_PAD])
            f_g = jax.nn.sigmoid(g[:, GATE_PAD:2 * GATE_PAD])
            g_g = jnp.tanh(g[:, 2 * GATE_PAD:3 * GATE_PAD])
            o_g = jax.nn.sigmoid(g[:, 3 * GATE_PAD:4 * GATE_PAD])
            c = f_g * c + i_g * g_g
            h = o_g * jnp.tanh(c)
            if last:
                if s == 0:
                    h_first = h       # bwd output at t=T-1 lives in step 0
            else:
                hseq_ref[pl.ds(s * BP, BP), :] = h

        if last:
            # out[:, -1, :] == [fwd @ t=T-1 | bwd @ t=T-1]
            feat = jnp.where(hmask, h, h_first)                   # (BP, 128)

    out_ref[...] = (jnp.dot(feat.astype(jnp.bfloat16), hw_ref[...],
                            preferred_element_type=jnp.float32)
                    + hb_ref[...])


# ------------------------------ Wrapper -------------------------------------

_VMEM_SPEC = pl.BlockSpec(memory_space=pltpu.MemorySpace.VMEM)


@jax.jit
def blstm_forward(packed, x):
    """x: (B, T, D) -> (B, NUM_Q, OUTPUT_DIM)."""
    B, T, D = x.shape
    BP = max(8, -(-B // 8) * 8)                     # sublane-pad batch to 8
    x_tm = jnp.transpose(x, (1, 0, 2)).astype(jnp.float32)        # (T, B, D)
    x_tm = jnp.pad(x_tm, ((0, 0), (0, BP - B), (0, PAD_IN - D)))  # (T, BP, 128)
    x_flat = x_tm.reshape(T * BP, PAD_IN).astype(jnp.bfloat16)

    flat = pl.pallas_call(
        functools.partial(_blstm_fused_kernel, seq_len=T, batch_pad=BP),
        out_shape=jax.ShapeDtypeStruct((BP, NUM_Q * OUTPUT_DIM), jnp.float32),
        in_specs=[_VMEM_SPEC] * 6,
        out_specs=_VMEM_SPEC,
        scratch_shapes=[pltpu.VMEM((T * BP, GATES_W), jnp.float32),
                        pltpu.VMEM((T * BP, GATE_PAD), jnp.float32)],
    )(x_flat, packed["wih"], packed["whh"], packed["b"],
      packed["hw"], packed["hb"])
    return flat[:B].reshape(B, NUM_Q, OUTPUT_DIM)


# --------------------- Pure-JAX references (for checking) -------------------

def _lstm_dir_ref(x_tm, wih_t, whh_t, b, cast, prec):
    T, B, _ = x_tm.shape
    H = whh_t.shape[0]
    wih_c = wih_t.astype(cast)
    whh_c = whh_t.astype(cast)

    def step(carry, x_t):
        h, c = carry
        gates = (jnp.dot(x_t.astype(cast), wih_c,
                         preferred_element_type=jnp.float32, precision=prec)
                 + jnp.dot(h.astype(cast), whh_c,
                           preferred_element_type=jnp.float32, precision=prec)
                 + b)
        i = jax.nn.sigmoid(gates[:, :H])
        f = jax.nn.sigmoid(gates[:, H:2 * H])
        g = jnp.tanh(gates[:, 2 * H:3 * H])
        o = jax.nn.sigmoid(gates[:, 3 * H:])
        c = f * c + i * g
        h = o * jnp.tanh(c)
        return (h, c), h

    init = (jnp.zeros((B, H), jnp.float32), jnp.zeros((B, H), jnp.float32))
    _, hs = lax.scan(step, init, x_tm)
    return hs


def blstm_forward_ref(params, x, cast=jnp.float32,
                      prec=lax.Precision.HIGHEST):
    x_tm = jnp.transpose(x, (1, 0, 2)).astype(jnp.float32)
    for layer in range(NUM_LAYERS):
        p_f, p_b = params["lstm"][layer]
        h_fwd = _lstm_dir_ref(x_tm, p_f["wih_t"], p_f["whh_t"], p_f["b"],
                              cast, prec)
        h_bwd = _lstm_dir_ref(x_tm[::-1], p_b["wih_t"], p_b["whh_t"],
                              p_b["b"], cast, prec)[::-1]
        x_tm = jnp.concatenate([h_fwd, h_bwd], axis=-1)
    last = x_tm[-1]
    flat = (jnp.dot(last.astype(cast), params["heads"]["w"].astype(cast),
                    preferred_element_type=jnp.float32, precision=prec)
            + params["heads"]["b"])
    return flat.reshape(last.shape[0], NUM_Q, OUTPUT_DIM)


# ------------------------------ Param init & packing ------------------------

def init_params(key, input_dim):
    """Deterministic uniform init mirroring the PyTorch module's param shapes."""
    H = HIDDEN_DIM
    k = 1.0 / float(jnp.sqrt(jnp.float32(H)))
    keys = jax.random.split(key, NUM_LAYERS * 2 * 4 + 2)
    idx = 0
    lstm_params = []
    for layer in range(NUM_LAYERS):
        d_in = input_dim if layer == 0 else 2 * H
        dir_params = []
        for _direction in range(2):
            wih = jax.random.uniform(keys[idx], (4 * H, d_in), minval=-k, maxval=k); idx += 1
            whh = jax.random.uniform(keys[idx], (4 * H, H), minval=-k, maxval=k); idx += 1
            bih = jax.random.uniform(keys[idx], (4 * H,), minval=-k, maxval=k); idx += 1
            bhh = jax.random.uniform(keys[idx], (4 * H,), minval=-k, maxval=k); idx += 1
            dir_params.append({
                "wih_t": wih.T.astype(jnp.float32),                    # (D_in, 4H)
                "whh_t": whh.T.astype(jnp.float32),                    # (H, 4H)
                "b": (bih + bhh).reshape(1, 4 * H).astype(jnp.float32),
            })
        lstm_params.append(dir_params)

    kh = 1.0 / float(jnp.sqrt(jnp.float32(2 * H)))
    w = jax.random.uniform(keys[idx], (NUM_Q, OUTPUT_DIM, 2 * H), minval=-kh, maxval=kh)
    bq = jax.random.uniform(keys[idx + 1], (NUM_Q, OUTPUT_DIM), minval=-kh, maxval=kh)
    heads = {
        # y_q = feat @ W_q.T + b_q for each head, fused as one (2H, Q*O) matmul
        "w": jnp.transpose(w, (2, 0, 1)).reshape(2 * H, NUM_Q * OUTPUT_DIM).astype(jnp.float32),
        "b": bq.reshape(1, NUM_Q * OUTPUT_DIM).astype(jnp.float32),
    }
    return {"lstm": lstm_params, "heads": heads}


def pack_params(params, input_dim):
    """Pack raw per-direction weights into the lane-aligned fused kernel layout.

    Gate block k (k in i,f,g,o order) owns lanes [k*128, (k+1)*128):
      lanes k*128 + 0:H   -> forward-direction gate k
      lanes k*128 + H:2H  -> backward-direction gate k
      remaining lanes     -> zero padding (stays zero through the recurrence)
    Hidden/cell state lanes: 0:H forward, H:2H backward, 2H:128 zero.
    Matmul weights are emitted in bf16 (MXU operands); biases stay f32.
    """
    H = HIDDEN_DIM
    assert input_dim <= PAD_IN and 2 * H <= GATE_PAD
    wih_list, whh_list, b_list = [], [], []
    for layer in range(NUM_LAYERS):
        d_in = input_dim if layer == 0 else 2 * H
        p_f, p_b = params["lstm"][layer]
        wih = jnp.zeros((PAD_IN, GATES_W), jnp.float32)
        whh = jnp.zeros((PAD_IN, GATES_W), jnp.float32)
        b = jnp.zeros((1, GATES_W), jnp.float32)
        for k in range(4):
            col = k * GATE_PAD
            gsl = slice(k * H, (k + 1) * H)
            wih = wih.at[:d_in, col:col + H].set(p_f["wih_t"][:, gsl])
            wih = wih.at[:d_in, col + H:col + 2 * H].set(p_b["wih_t"][:, gsl])
            whh = whh.at[:H, col:col + H].set(p_f["whh_t"][:, gsl])
            whh = whh.at[H:2 * H, col + H:col + 2 * H].set(p_b["whh_t"][:, gsl])
            b = b.at[:, col:col + H].set(p_f["b"][:, gsl])
            b = b.at[:, col + H:col + 2 * H].set(p_b["b"][:, gsl])
        wih_list.append(wih)
        whh_list.append(whh)
        b_list.append(b)

    hw = jnp.zeros((PAD_IN, NUM_Q * OUTPUT_DIM), jnp.float32)
    hw = hw.at[:2 * H, :].set(params["heads"]["w"])
    return {
        "wih": jnp.stack(wih_list).astype(jnp.bfloat16),   # (L, 128, 512)
        "whh": jnp.stack(whh_list).astype(jnp.bfloat16),   # (L, 128, 512)
        "b": jnp.stack(b_list),                            # (L, 1, 512) f32
        "hw": hw.astype(jnp.bfloat16),                     # (128, Q*O)
        "hb": params["heads"]["b"],                        # (1, Q*O) f32
    }


# --------------------------------- Main --------------------------------------

if __name__ == "__main__":
    key = jax.random.PRNGKey(0)
    k_param, k_x = jax.random.split(key)

    B, T, D = 2, 8, 10   # batch, seq, input_dim (small, consistent with module)
    params = init_params(k_param, D)
    packed = pack_params(params, D)
    x = jax.random.normal(k_x, (B, T, D), dtype=jnp.float32)

    out = jax.block_until_ready(blstm_forward(packed, x))

    # Tight check against a reference that mirrors the kernel's MXU precision
    # (bf16 operands, f32 accumulation) -> catches packing/indexing bugs.
    ref_bf16 = blstm_forward_ref(params, x, cast=jnp.bfloat16,
                                 prec=lax.Precision.DEFAULT)
    # Loose sanity bound against a true-f32 reference (bf16 quantization only).
    ref_f32 = blstm_forward_ref(params, x, cast=jnp.float32,
                                prec=lax.Precision.HIGHEST)

    assert out.shape == (B, NUM_Q, OUTPUT_DIM), out.shape
    assert out.dtype == jnp.float32
    err_tight = float(jnp.max(jnp.abs(out - ref_bf16)))
    err_f32 = float(jnp.max(jnp.abs(out - ref_f32)))
    assert jnp.allclose(out, ref_bf16, atol=5e-3, rtol=5e-3), err_tight
    assert jnp.allclose(out, ref_f32, atol=3e-2, rtol=3e-2), err_f32

    print("KERNEL_OK")
</pallas_src>

<mosaic_0001>
module attributes {stable_mosaic.version = 11 : i64} {
  func.func @_blstm_fused_kernel(%arg0: memref<64x128xbf16, #tpu.memory_space<vmem>>, %arg1: memref<3x128x512xbf16, #tpu.memory_space<vmem>>, %arg2: memref<3x128x512xbf16, #tpu.memory_space<vmem>>, %arg3: memref<3x1x512xf32, #tpu.memory_space<vmem>>, %arg4: memref<128x216xbf16, #tpu.memory_space<vmem>>, %arg5: memref<1x216xf32, #tpu.memory_space<vmem>>, %arg6: memref<8x216xf32, #tpu.memory_space<vmem>>, %arg7: memref<64x512xf32, #tpu.memory_space<vmem>>, %arg8: memref<64x128xf32, #tpu.memory_space<vmem>>) attributes {dimension_semantics = [], scalar_prefetch = 0 : i64, scratch_operands = 2 : i64, tpu.core_type = #tpu.core_type<tc>} {
    %0 = tpu.iota {dimensions = array<i32: 1>} : vector<1x512xi32>
    %c127_i32 = arith.constant 127 : i32
    %1 = vector.broadcast %c127_i32 : i32 to vector<1x512xi32>
    %2 = arith.andi %0, %1 : vector<1x512xi32>
    %c20_i32 = arith.constant 20 : i32
    %3 = vector.broadcast %c20_i32 : i32 to vector<1x512xi32>
    %4 = arith.cmpi slt, %2, %3 : vector<1x512xi32>
    %5 = tpu.iota {dimensions = array<i32: 1>} : vector<1x128xi32>
    %c20_i32_0 = arith.constant 20 : i32
    %6 = vector.broadcast %c20_i32_0 : i32 to vector<1x128xi32>
    %7 = arith.cmpi slt, %5, %6 : vector<1x128xi32>
    %c0 = arith.constant 0 : index
    %c0_1 = arith.constant 0 : index
    %c0_2 = arith.constant 0 : index
    %8 = vector.load %arg1[%c0, %c0_1, %c0_2] : memref<3x128x512xbf16, #tpu.memory_space<vmem>>, vector<1x128x512xbf16>
    %9 = vector.shape_cast %8 : vector<1x128x512xbf16> to vector<128x512xbf16>
    %c0_3 = arith.constant 0 : index
    %c0_4 = arith.constant 0 : index
    %c0_5 = arith.constant 0 : index
    %10 = vector.load %arg3[%c0_3, %c0_4, %c0_5] : memref<3x1x512xf32, #tpu.memory_space<vmem>>, vector<1x1x512xf32>
    %11 = vector.shape_cast %10 : vector<1x1x512xf32> to vector<1x512xf32>
    %c0_6 = arith.constant 0 : index
    %c0_7 = arith.constant 0 : index
    %12 = vector.load %arg0[%c0_6, %c0_7] : memref<64x128xbf16, #tpu.memory_space<vmem>>, vector<64x128xbf16>
    %cst = arith.constant dense<0.000000e+00> : vector<64x512xf32>
    %13 = tpu.matmul %12, %9, %cst {dimension_numbers = #tpu.dot_dimension_numbers<[1], [0], [0], [1], [0, 0, 1, 1], [], []>} : vector<64x128xbf16>, vector<128x512xbf16>, vector<64x512xf32> -> vector<64x512xf32>
    %14 = vector.broadcast %11 : vector<1x512xf32> to vector<64x512xf32>
    %15 = arith.addf %13, %14 : vector<64x512xf32>
    %c0_8 = arith.constant 0 : index
    %c0_9 = arith.constant 0 : index
    %16 = vector.load %arg7[%c0_8, %c0_9] : memref<64x512xf32, #tpu.memory_space<vmem>>, vector<64x512xf32>
    tpu.vector_store %arg7[%c0_8, %c0_9], %15 {strides = array<i32>} : memref<64x512xf32, #tpu.memory_space<vmem>>, vector<64x512xf32>,
    %c0_10 = arith.constant 0 : index
    %c0_11 = arith.constant 0 : index
    %c0_12 = arith.constant 0 : index
    %17 = vector.load %arg2[%c0_10, %c0_11, %c0_12] : memref<3x128x512xbf16, #tpu.memory_space<vmem>>, vector<1x128x512xbf16>
    %18 = vector.shape_cast %17 : vector<1x128x512xbf16> to vector<128x512xbf16>
    %cst_13 = arith.constant 0.000000e+00 : f32
    %19 = vector.broadcast %cst_13 : f32 to vector<8x128xf32>
    %cst_14 = arith.constant 0.000000e+00 : f32
    %20 = vector.broadcast %cst_14 : f32 to vector<8x128xf32>
    %c0_15 = arith.constant 0 : index
    %c0_16 = arith.constant 0 : index
    %21 = vector.load %arg7[%c0_15, %c0_16] : memref<64x512xf32, #tpu.memory_space<vmem>>, vector<8x512xf32>
    %c56 = arith.constant 56 : index
    %c0_17 = arith.constant 0 : index
    %22 = vector.load %arg7[%c56, %c0_17] : memref<64x512xf32, #tpu.memory_space<vmem>>, vector<8x512xf32>
    %23 = vector.shape_cast %4 : vector<1x512xi1> to vector<1x512xi1>
    %24 = vector.broadcast %23 : vector<1x512xi1> to vector<8x512xi1>
    %25 = arith.select %24, %21, %22 : vector<8x512xi1>, vector<8x512xf32>
    %26 = arith.truncf %19 : vector<8x128xf32> to vector<8x128xbf16>
    %cst_18 = arith.constant dense<0.000000e+00> : vector<8x512xf32>
    %27 = tpu.matmul %26, %18, %cst_18 {dimension_numbers = #tpu.dot_dimension_numbers<[1], [0], [0], [1], [0, 0, 1, 1], [], []>} : vector<8x128xbf16>, vector<128x512xbf16>, vector<8x512xf32> -> vector<8x512xf32>
    %28 = arith.addf %25, %27 : vector<8x512xf32>
    %29 = vector.extract_strided_slice %28 {offsets = [0, 0], sizes = [8, 128], strides = [1, 1]} : vector<8x512xf32> to vector<8x128xf32>
    %30 = arith.negf %29 : vector<8x128xf32>
    %31 = math.exp %30 : vector<8x128xf32>
    %cst_19 = arith.constant 1.000000e+00 : f32
    %32 = vector.broadcast %cst_19 : f32 to vector<8x128xf32>
    %33 = arith.addf %32, %31 : vector<8x128xf32>
    %34 = arith.divf %32, %33 : vector<8x128xf32>
    %35 = vector.extract_strided_slice %28 {offsets = [0, 128], sizes = [8, 128], strides = [1, 1]} : vector<8x512xf32> to vector<8x128xf32>
    %36 = arith.negf %35 : vector<8x128xf32>
    %37 = math.exp %36 : vector<8x128xf32>
    %cst_20 = arith.constant 1.000000e+00 : f32
    %38 = vector.broadcast %cst_20 : f32 to vector<8x128xf32>
    %39 = arith.addf %38, %37 : vector<8x128xf32>
    %40 = arith.divf %38, %39 : vector<8x128xf32>
    %41 = vector.extract_strided_slice %28 {offsets = [0, 256], sizes = [8, 128], strides = [1, 1]} : vector<8x512xf32> to vector<8x128xf32>
    %42 = math.tanh %41 : vector<8x128xf32>
    %43 = vector.extract_strided_slice %28 {offsets = [0, 384], sizes = [8, 128], strides = [1, 1]} : vector<8x512xf32> to vector<8x128xf32>
    %44 = arith.negf %43 : vector<8x128xf32>
    %45 = math.exp %44 : vector<8x128xf32>
    %cst_21 = arith.constant 1.000000e+00 : f32
    %46 = vector.broadcast %cst_21 : f32 to vector<8x128xf32>
    %47 = arith.addf %46, %45 : vector<8x128xf32>
    %48 = arith.divf %46, %47 : vector<8x128xf32>
    %49 = arith.mulf %40, %20 : vector<8x128xf32>
    %50 = arith.mulf %34, %42 : vector<8x128xf32>
    %51 = arith.addf %49, %50 : vector<8x128xf32>
    %52 = math.tanh %51 : vector<8x128xf32>
    %53 = arith.mulf %48, %52 : vector<8x128xf32>
    %c0_22 = arith.constant 0 : index
    %c0_23 = arith.constant 0 : index
    %54 = vector.load %arg8[%c0_22, %c0_23] : memref<64x128xf32, #tpu.memory_space<vmem>>, vector<8x128xf32>
    tpu.vector_store %arg8[%c0_22, %c0_23], %53 {strides = array<i32>} : memref<64x128xf32, #tpu.memory_space<vmem>>, vector<8x128xf32>,
    %c8 = arith.constant 8 : index
    %c0_24 = arith.constant 0 : index
    %55 = vector.load %arg7[%c8, %c0_24] : memref<64x512xf32, #tpu.memory_space<vmem>>, vector<8x512xf32>
    %c48 = arith.constant 48 : index
    %c0_25 = arith.constant 0 : index
    %56 = vector.load %arg7[%c48, %c0_25] : memref<64x512xf32, #tpu.memory_space<vmem>>, vector<8x512xf32>
    %57 = vector.shape_cast %4 : vector<1x512xi1> to vector<1x512xi1>
    %58 = vector.broadcast %57 : vector<1x512xi1> to vector<8x512xi1>
    %59 = arith.select %58, %55, %56 : vector<8x512xi1>, vector<8x512xf32>
    %60 = arith.truncf %53 : vector<8x128xf32> to vector<8x128xbf16>
    %cst_26 = arith.constant dense<0.000000e+00> : vector<8x512xf32>
    %61 = tpu.matmul %60, %18, %cst_26 {dimension_numbers = #tpu.dot_dimension_numbers<[1], [0], [0], [1], [0, 0, 1, 1], [], []>} : vector<8x128xbf16>, vector<128x512xbf16>, vector<8x512xf32> -> vector<8x512xf32>
    %62 = arith.addf %59, %61 : vector<8x512xf32>
    %63 = vector.extract_strided_slice %62 {offsets = [0, 0], sizes = [8, 128], strides = [1, 1]} : vector<8x512xf32> to vector<8x128xf32>
    %64 = arith.negf %63 : vector<8x128xf32>
    %65 = math.exp %64 : vector<8x128xf32>
    %cst_27 = arith.constant 1.000000e+00 : f32
    %66 = vector.broadcast %cst_27 : f32 to vector<8x128xf32>
    %67 = arith.addf %66, %65 : vector<8x128xf32>
    %68 = arith.divf %66, %67 : vector<8x128xf32>
    %69 = vector.extract_strided_slice %62 {offsets = [0, 128], sizes = [8, 128], strides = [1, 1]} : vector<8x512xf32> to vector<8x128xf32>
    %70 = arith.negf %69 : vector<8x128xf32>
    %71 = math.exp %70 : vector<8x128xf32>
    %cst_28 = arith.constant 1.000000e+00 : f32
    %72 = vector.broadcast %cst_28 : f32 to vector<8x128xf32>
    %73 = arith.addf %72, %71 : vector<8x128xf32>
    %74 = arith.divf %72, %73 : vector<8x128xf32>
    %75 = vector.extract_strided_slice %62 {offsets = [0, 256], sizes = [8, 128], strides = [1, 1]} : vector<8x512xf32> to vector<8x128xf32>
    %76 = math.tanh %75 : vector<8x128xf32>
    %77 = vector.extract_strided_slice %62 {offsets = [0, 384], sizes = [8, 128], strides = [1, 1]} : vector<8x512xf32> to vector<8x128xf32>
    %78 = arith.negf %77 : vector<8x128xf32>
    %79 = math.exp %78 : vector<8x128xf32>
    %cst_29 = arith.constant 1.000000e+00 : f32
    %80 = vector.broadcast %cst_29 : f32 to vector<8x128xf32>
    %81 = arith.addf %80, %79 : vector<8x128xf32>
    %82 = arith.divf %80, %81 : vector<8x128xf32>
    %83 = arith.mulf %74, %51 : vector<8x128xf32>
    %84 = arith.mulf %68, %76 : vector<8x128xf32>
    %85 = arith.addf %83, %84 : vector<8x128xf32>
    %86 = math.tanh %85 : vector<8x128xf32>
    %87 = arith.mulf %82, %86 : vector<8x128xf32>
    %c8_30 = arith.constant 8 : index
    %c0_31 = arith.constant 0 : index
    %88 = vector.load %arg8[%c8_30, %c0_31] : memref<64x128xf32, #tpu.memory_space<vmem>>, vector<8x128xf32>
    tpu.vector_store %arg8[%c8_30, %c0_31], %87 {strides = array<i32>} : memref<64x128xf32, #tpu.memory_space<vmem>>, vector<8x128xf32>,
    %c16 = arith.constant 16 : index
    %c0_32 = arith.constant 0 : index
    %89 = vector.load %arg7[%c16, %c0_32] : memref<64x512xf32, #tpu.memory_space<vmem>>, vector<8x512xf32>
    %c40 = arith.constant 40 : index
    %c0_33 = arith.constant 0 : index
    %90 = vector.load %arg7[%c40, %c0_33] : memref<64x512xf32, #tpu.memory_space<vmem>>, vector<8x512xf32>
    %91 = vector.shape_cast %4 : vector<1x512xi1> to vector<1x512xi1>
    %92 = vector.broadcast %91 : vector<1x512xi1> to vector<8x512xi1>
    %93 = arith.select %92, %89, %90 : vector<8x512xi1>, vector<8x512xf32>
    %94 = arith.truncf %87 : vector<8x128xf32> to vector<8x128xbf16>
    %cst_34 = arith.constant dense<0.000000e+00> : vector<8x512xf32>
    %95 = tpu.matmul %94, %18, %cst_34 {dimension_numbers = #tpu.dot_dimension_numbers<[1], [0], [0], [1], [0, 0, 1, 1], [], []>} : vector<8x128xbf16>, vector<128x512xbf16>, vector<8x512xf32> -> vector<8x512xf32>
    %96 = arith.addf %93, %95 : vector<8x512xf32>
    %97 = vector.extract_strided_slice %96 {offsets = [0, 0], sizes = [8, 128], strides = [1, 1]} : vector<8x512xf32> to vector<8x128xf32>
    %98 = arith.negf %97 : vector<8x128xf32>
    %99 = math.exp %98 : vector<8x128xf32>
    %cst_35 = arith.constant 1.000000e+00 : f32
    %100 = vector.broadcast %cst_35 : f32 to vector<8x128xf32>
    %101 = arith.addf %100, %99 : vector<8x128xf32>
    %102 = arith.divf %100, %101 : vector<8x128xf32>
    %103 = vector.extract_strided_slice %96 {offsets = [0, 128], sizes = [8, 128], strides = [1, 1]} : vector<8x512xf32> to vector<8x128xf32>
    %104 = arith.negf %103 : vector<8x128xf32>
    %105 = math.exp %104 : vector<8x128xf32>
    %cst_36 = arith.constant 1.000000e+00 : f32
    %106 = vector.broadcast %cst_36 : f32 to vector<8x128xf32>
    %107 = arith.addf %106, %105 : vector<8x128xf32>
    %108 = arith.divf %106, %107 : vector<8x128xf32>
    %109 = vector.extract_strided_slice %96 {offsets = [0, 256], sizes = [8, 128], strides = [1, 1]} : vector<8x512xf32> to vector<8x128xf32>
    %110 = math.tanh %109 : vector<8x128xf32>
    %111 = vector.extract_strided_slice %96 {offsets = [0, 384], sizes = [8, 128], strides = [1, 1]} : vector<8x512xf32> to vector<8x128xf32>
    %112 = arith.negf %111 : vector<8x128xf32>
    %113 = math.exp %112 : vector<8x128xf32>
    %cst_37 = arith.constant 1.000000e+00 : f32
    %114 = vector.broadcast %cst_37 : f32 to vector<8x128xf32>
    %115 = arith.addf %114, %113 : vector<8x128xf32>
    %116 = arith.divf %114, %115 : vector<8x128xf32>
    %117 = arith.mulf %108, %85 : vector<8x128xf32>
    %118 = arith.mulf %102, %110 : vector<8x128xf32>
    %119 = arith.addf %117, %118 : vector<8x128xf32>
    %120 = math.tanh %119 : vector<8x128xf32>
    %121 = arith.mulf %116, %120 : vector<8x128xf32>
    %c16_38 = arith.constant 16 : index
    %c0_39 = arith.constant 0 : index
    %122 = vector.load %arg8[%c16_38, %c0_39] : memref<64x128xf32, #tpu.memory_space<vmem>>, vector<8x128xf32>
    tpu.vector_store %arg8[%c16_38, %c0_39], %121 {strides = array<i32>} : memref<64x128xf32, #tpu.memory_space<vmem>>, vector<8x128xf32>,
    %c24 = arith.constant 24 : index
    %c0_40 = arith.constant 0 : index
    %123 = vector.load %arg7[%c24, %c0_40] : memref<64x512xf32, #tpu.memory_space<vmem>>, vector<8x512xf32>
    %c32 = arith.constant 32 : index
    %c0_41 = arith.constant 0 : index
    %124 = vector.load %arg7[%c32, %c0_41] : memref<64x512xf32, #tpu.memory_space<vmem>>, vector<8x512xf32>
    %125 = vector.shape_cast %4 : vector<1x512xi1> to vector<1x512xi1>
    %126 = vector.broadcast %125 : vector<1x512xi1> to vector<8x512xi1>
    %127 = arith.select %126, %123, %124 : vector<8x512xi1>, vector<8x512xf32>
    %128 = arith.truncf %121 : vector<8x128xf32> to vector<8x128xbf16>
    %cst_42 = arith.constant dense<0.000000e+00> : vector<8x512xf32>
    %129 = tpu.matmul %128, %18, %cst_42 {dimension_numbers = #tpu.dot_dimension_numbers<[1], [0], [0], [1], [0, 0, 1, 1], [], []>} : vector<8x128xbf16>, vector<128x512xbf16>, vector<8x512xf32> -> vector<8x512xf32>
    %130 = arith.addf %127, %129 : vector<8x512xf32>
    %131 = vector.extract_strided_slice %130 {offsets = [0, 0], sizes = [8, 128], strides = [1, 1]} : vector<8x512xf32> to vector<8x128xf32>
    %132 = arith.negf %131 : vector<8x128xf32>
    %133 = math.exp %132 : vector<8x128xf32>
    %cst_43 = arith.constant 1.000000e+00 : f32
    %134 = vector.broadcast %cst_43 : f32 to vector<8x128xf32>
    %135 = arith.addf %134, %133 : vector<8x128xf32>
    %136 = arith.divf %134, %135 : vector<8x128xf32>
    %137 = vector.extract_strided_slice %130 {offsets = [0, 128], sizes = [8, 128], strides = [1, 1]} : vector<8x512xf32> to vector<8x128xf32>
    %138 = arith.negf %137 : vector<8x128xf32>
    %139 = math.exp %138 : vector<8x128xf32>
    %cst_44 = arith.constant 1.000000e+00 : f32
    %140 = vector.broadcast %cst_44 : f32 to vector<8x128xf32>
    %141 = arith.addf %140, %139 : vector<8x128xf32>
    %142 = arith.divf %140, %141 : vector<8x128xf32>
    %143 = vector.extract_strided_slice %130 {offsets = [0, 256], sizes = [8, 128], strides = [1, 1]} : vector<8x512xf32> to vector<8x128xf32>
    %144 = math.tanh %143 : vector<8x128xf32>
    %145 = vector.extract_strided_slice %130 {offsets = [0, 384], sizes = [8, 128], strides = [1, 1]} : vector<8x512xf32> to vector<8x128xf32>
    %146 = arith.negf %145 : vector<8x128xf32>
    %147 = math.exp %146 : vector<8x128xf32>
    %cst_45 = arith.constant 1.000000e+00 : f32
    %148 = vector.broadcast %cst_45 : f32 to vector<8x128xf32>
    %149 = arith.addf %148, %147 : vector<8x128xf32>
    %150 = arith.divf %148, %149 : vector<8x128xf32>
    %151 = arith.mulf %142, %119 : vector<8x128xf32>
    %152 = arith.mulf %136, %144 : vector<8x128xf32>
    %153 = arith.addf %151, %152 : vector<8x128xf32>
    %154 = math.tanh %153 : vector<8x128xf32>
    %155 = arith.mulf %150, %154 : vector<8x128xf32>
    %c24_46 = arith.constant 24 : index
    %c0_47 = arith.constant 0 : index
    %156 = vector.load %arg8[%c24_46, %c0_47] : memref<64x128xf32, #tpu.memory_space<vmem>>, vector<8x128xf32>
    tpu.vector_store %arg8[%c24_46, %c0_47], %155 {strides = array<i32>} : memref<64x128xf32, #tpu.memory_space<vmem>>, vector<8x128xf32>,
    %c32_48 = arith.constant 32 : index
    %c0_49 = arith.constant 0 : index
    %157 = vector.load %arg7[%c32_48, %c0_49] : memref<64x512xf32, #tpu.memory_space<vmem>>, vector<8x512xf32>
    %c24_50 = arith.constant 24 : index
    %c0_51 = arith.constant 0 : index
    %158 = vector.load %arg7[%c24_50, %c0_51] : memref<64x512xf32, #tpu.memory_space<vmem>>, vector<8x512xf32>
    %159 = vector.shape_cast %4 : vector<1x512xi1> to vector<1x512xi1>
    %160 = vector.broadcast %159 : vector<1x512xi1> to vector<8x512xi1>
    %161 = arith.select %160, %157, %158 : vector<8x512xi1>, vector<8x512xf32>
    %162 = arith.truncf %155 : vector<8x128xf32> to vector<8x128xbf16>
    %cst_52 = arith.constant dense<0.000000e+00> : vector<8x512xf32>
    %163 = tpu.matmul %162, %18, %cst_52 {dimension_numbers = #tpu.dot_dimension_numbers<[1], [0], [0], [1], [0, 0, 1, 1], [], []>} : vector<8x128xbf16>, vector<128x512xbf16>, vector<8x512xf32> -> vector<8x512xf32>
    %164 = arith.addf %161, %163 : vector<8x512xf32>
    %165 = vector.extract_strided_slice %164 {offsets = [0, 0], sizes = [8, 128], strides = [1, 1]} : vector<8x512xf32> to vector<8x128xf32>
    %166 = arith.negf %165 : vector<8x128xf32>
    %167 = math.exp %166 : vector<8x128xf32>
    %cst_53 = arith.constant 1.000000e+00 : f32
    %168 = vector.broadcast %cst_53 : f32 to vector<8x128xf32>
    %169 = arith.addf %168, %167 : vector<8x128xf32>
    %170 = arith.divf %168, %169 : vector<8x128xf32>
    %171 = vector.extract_strided_slice %164 {offsets = [0, 128], sizes = [8, 128], strides = [1, 1]} : vector<8x512xf32> to vector<8x128xf32>
    %172 = arith.negf %171 : vector<8x128xf32>
    %173 = math.exp %172 : vector<8x128xf32>
    %cst_54 = arith.constant 1.000000e+00 : f32
    %174 = vector.broadcast %cst_54 : f32 to vector<8x128xf32>
    %175 = arith.addf %174, %173 : vector<8x128xf32>
    %176 = arith.divf %174, %175 : vector<8x128xf32>
    %177 = vector.extract_strided_slice %164 {offsets = [0, 256], sizes = [8, 128], strides = [1, 1]} : vector<8x512xf32> to vector<8x128xf32>
    %178 = math.tanh %177 : vector<8x128xf32>
    %179 = vector.extract_strided_slice %164 {offsets = [0, 384], sizes = [8, 128], strides = [1, 1]} : vector<8x512xf32> to vector<8x128xf32>
    %180 = arith.negf %179 : vector<8x128xf32>
    %181 = math.exp %180 : vector<8x128xf32>
    %cst_55 = arith.constant 1.000000e+00 : f32
    %182 = vector.broadcast %cst_55 : f32 to vector<8x128xf32>
    %183 = arith.addf %182, %181 : vector<8x128xf32>
    %184 = arith.divf %182, %183 : vector<8x128xf32>
    %185 = arith.mulf %176, %153 : vector<8x128xf32>
    %186 = arith.mulf %170, %178 : vector<8x128xf32>
    %187 = arith.addf %185, %186 : vector<8x128xf32>
    %188 = math.tanh %187 : vector<8x128xf32>
    %189 = arith.mulf %184, %188 : vector<8x128xf32>
    %c32_56 = arith.constant 32 : index
    %c0_57 = arith.constant 0 : index
    %190 = vector.load %arg8[%c32_56, %c0_57] : memref<64x128xf32, #tpu.memory_space<vmem>>, vector<8x128xf32>
    tpu.vector_store %arg8[%c32_56, %c0_57], %189 {strides = array<i32>} : memref<64x128xf32, #tpu.memory_space<vmem>>, vector<8x128xf32>,
    %c40_58 = arith.constant 40 : index
    %c0_59 = arith.constant 0 : index
    %191 = vector.load %arg7[%c40_58, %c0_59] : memref<64x512xf32, #tpu.memory_space<vmem>>, vector<8x512xf32>
    %c16_60 = arith.constant 16 : index
    %c0_61 = arith.constant 0 : index
    %192 = vector.load %arg7[%c16_60, %c0_61] : memref<64x512xf32, #tpu.memory_space<vmem>>, vector<8x512xf32>
    %193 = vector.shape_cast %4 : vector<1x512xi1> to vector<1x512xi1>
    %194 = vector.broadcast %193 : vector<1x512xi1> to vector<8x512xi1>
    %195 = arith.select %194, %191, %192 : vector<8x512xi1>, vector<8x512xf32>
    %196 = arith.truncf %189 : vector<8x128xf32> to vector<8x128xbf16>
    %cst_62 = arith.constant dense<0.000000e+00> : vector<8x512xf32>
    %197 = tpu.matmul %196, %18, %cst_62 {dimension_numbers = #tpu.dot_dimension_numbers<[1], [0], [0], [1], [0, 0, 1, 1], [], []>} : vector<8x128xbf16>, vector<128x512xbf16>, vector<8x512xf32> -> vector<8x512xf32>
    %198 = arith.addf %195, %197 : vector<8x512xf32>
    %199 = vector.extract_strided_slice %198 {offsets = [0, 0], sizes = [8, 128], strides = [1, 1]} : vector<8x512xf32> to vector<8x128xf32>
    %200 = arith.negf %199 : vector<8x128xf32>
    %201 = math.exp %200 : vector<8x128xf32>
    %cst_63 = arith.constant 1.000000e+00 : f32
    %202 = vector.broadcast %cst_63 : f32 to vector<8x128xf32>
    %203 = arith.addf %202, %201 : vector<8x128xf32>
    %204 = arith.divf %202, %203 : vector<8x128xf32>
    %205 = vector.extract_strided_slice %198 {offsets = [0, 128], sizes = [8, 128], strides = [1, 1]} : vector<8x512xf32> to vector<8x128xf32>
    %206 = arith.negf %205 : vector<8x128xf32>
    %207 = math.exp %206 : vector<8x128xf32>
    %cst_64 = arith.constant 1.000000e+00 : f32
    %208 = vector.broadcast %cst_64 : f32 to vector<8x128xf32>
    %209 = arith.addf %208, %207 : vector<8x128xf32>
    %210 = arith.divf %208, %209 : vector<8x128xf32>
    %211 = vector.extract_strided_slice %198 {offsets = [0, 256], sizes = [8, 128], strides = [1, 1]} : vector<8x512xf32> to vector<8x128xf32>
    %212 = math.tanh %211 : vector<8x128xf32>
    %213 = vector.extract_strided_slice %198 {offsets = [0, 384], sizes = [8, 128], strides = [1, 1]} : vector<8x512xf32> to vector<8x128xf32>
    %214 = arith.negf %213 : vector<8x128xf32>
    %215 = math.exp %214 : vector<8x128xf32>
    %cst_65 = arith.constant 1.000000e+00 : f32
    %216 = vector.broadcast %cst_65 : f32 to vector<8x128xf32>
    %217 = arith.addf %216, %215 : vector<8x128xf32>
    %218 = arith.divf %216, %217 : vector<8x128xf32>
    %219 = arith.mulf %210, %187 : vector<8x128xf32>
    %220 = arith.mulf %204, %212 : vector<8x128xf32>
    %221 = arith.addf %219, %220 : vector<8x128xf32>
    %222 = math.tanh %221 : vector<8x128xf32>
    %223 = arith.mulf %218, %222 : vector<8x128xf32>
    %c40_66 = arith.constant 40 : index
    %c0_67 = arith.constant 0 : index
    %224 = vector.load %arg8[%c40_66, %c0_67] : memref<64x128xf32, #tpu.memory_space<vmem>>, vector<8x128xf32>
    tpu.vector_store %arg8[%c40_66, %c0_67], %223 {strides = array<i32>} : memref<64x128xf32, #tpu.memory_space<vmem>>, vector<8x128xf32>,
    %c48_68 = arith.constant 48 : index
    %c0_69 = arith.constant 0 : index
    %225 = vector.load %arg7[%c48_68, %c0_69] : memref<64x512xf32, #tpu.memory_space<vmem>>, vector<8x512xf32>
    %c8_70 = arith.constant 8 : index
    %c0_71 = arith.constant 0 : index
    %226 = vector.load %arg7[%c8_70, %c0_71] : memref<64x512xf32, #tpu.memory_space<vmem>>, vector<8x512xf32>
    %227 = vector.shape_cast %4 : vector<1x512xi1> to vector<1x512xi1>
    %228 = vector.broadcast %227 : vector<1x512xi1> to vector<8x512xi1>
    %229 = arith.select %228, %225, %226 : vector<8x512xi1>, vector<8x512xf32>
    %230 = arith.truncf %223 : vector<8x128xf32> to vector<8x128xbf16>
    %cst_72 = arith.constant dense<0.000000e+00> : vector<8x512xf32>
    %231 = tpu.matmul %230, %18, %cst_72 {dimension_numbers = #tpu.dot_dimension_numbers<[1], [0], [0], [1], [0, 0, 1, 1], [], []>} : vector<8x128xbf16>, vector<128x512xbf16>, vector<8x512xf32> -> vector<8x512xf32>
    %232 = arith.addf %229, %231 : vector<8x512xf32>
    %233 = vector.extract_strided_slice %232 {offsets = [0, 0], sizes = [8, 128], strides = [1, 1]} : vector<8x512xf32> to vector<8x128xf32>
    %234 = arith.negf %233 : vector<8x128xf32>
    %235 = math.exp %234 : vector<8x128xf32>
    %cst_73 = arith.constant 1.000000e+00 : f32
    %236 = vector.broadcast %cst_73 : f32 to vector<8x128xf32>
    %237 = arith.addf %236, %235 : vector<8x128xf32>
    %238 = arith.divf %236, %237 : vector<8x128xf32>
    %239 = vector.extract_strided_slice %232 {offsets = [0, 128], sizes = [8, 128], strides = [1, 1]} : vector<8x512xf32> to vector<8x128xf32>
    %240 = arith.negf %239 : vector<8x128xf32>
    %241 = math.exp %240 : vector<8x128xf32>
    %cst_74 = arith.constant 1.000000e+00 : f32
    %242 = vector.broadcast %cst_74 : f32 to vector<8x128xf32>
    %243 = arith.addf %242, %241 : vector<8x128xf32>
    %244 = arith.divf %242, %243 : vector<8x128xf32>
    %245 = vector.extract_strided_slice %232 {offsets = [0, 256], sizes = [8, 128], strides = [1, 1]} : vector<8x512xf32> to vector<8x128xf32>
    %246 = math.tanh %245 : vector<8x128xf32>
    %247 = vector.extract_strided_slice %232 {offsets = [0, 384], sizes = [8, 128], strides = [1, 1]} : vector<8x512xf32> to vector<8x128xf32>
    %248 = arith.negf %247 : vector<8x128xf32>
    %249 = math.exp %248 : vector<8x128xf32>
    %cst_75 = arith.constant 1.000000e+00 : f32
    %250 = vector.broadcast %cst_75 : f32 to vector<8x128xf32>
    %251 = arith.addf %250, %249 : vector<8x128xf32>
    %252 = arith.divf %250, %251 : vector<8x128xf32>
    %253 = arith.mulf %244, %221 : vector<8x128xf32>
    %254 = arith.mulf %238, %246 : vector<8x128xf32>
    %255 = arith.addf %253, %254 : vector<8x128xf32>
    %256 = math.tanh %255 : vector<8x128xf32>
    %257 = arith.mulf %252, %256 : vector<8x128xf32>
    %c48_76 = arith.constant 48 : index
    %c0_77 = arith.constant 0 : index
    %258 = vector.load %arg8[%c48_76, %c0_77] : memref<64x128xf32, #tpu.memory_space<vmem>>, vector<8x128xf32>
    tpu.vector_store %arg8[%c48_76, %c0_77], %257 {strides = array<i32>} : memref<64x128xf32, #tpu.memory_space<vmem>>, vector<8x128xf32>,
    %c56_78 = arith.constant 56 : index
    %c0_79 = arith.constant 0 : index
    %259 = vector.load %arg7[%c56_78, %c0_79] : memref<64x512xf32, #tpu.memory_space<vmem>>, vector<8x512xf32>
    %c0_80 = arith.constant 0 : index
    %c0_81 = arith.constant 0 : index
    %260 = vector.load %arg7[%c0_80, %c0_81] : memref<64x512xf32, #tpu.memory_space<vmem>>, vector<8x512xf32>
    %261 = vector.shape_cast %4 : vector<1x512xi1> to vector<1x512xi1>
    %262 = vector.broadcast %261 : vector<1x512xi1> to vector<8x512xi1>
    %263 = arith.select %262, %259, %260 : vector<8x512xi1>, vector<8x512xf32>
    %264 = arith.truncf %257 : vector<8x128xf32> to vector<8x128xbf16>
    %cst_82 = arith.constant dense<0.000000e+00> : vector<8x512xf32>
    %265 = tpu.matmul %264, %18, %cst_82 {dimension_numbers = #tpu.dot_dimension_numbers<[1], [0], [0], [1], [0, 0, 1, 1], [], []>} : vector<8x128xbf16>, vector<128x512xbf16>, vector<8x512xf32> -> vector<8x512xf32>
    %266 = arith.addf %263, %265 : vector<8x512xf32>
    %267 = vector.extract_strided_slice %266 {offsets = [0, 0], sizes = [8, 128], strides = [1, 1]} : vector<8x512xf32> to vector<8x128xf32>
    %268 = arith.negf %267 : vector<8x128xf32>
    %269 = math.exp %268 : vector<8x128xf32>
    %cst_83 = arith.constant 1.000000e+00 : f32
    %270 = vector.broadcast %cst_83 : f32 to vector<8x128xf32>
    %271 = arith.addf %270, %269 : vector<8x128xf32>
    %272 = arith.divf %270, %271 : vector<8x128xf32>
    %273 = vector.extract_strided_slice %266 {offsets = [0, 128], sizes = [8, 128], strides = [1, 1]} : vector<8x512xf32> to vector<8x128xf32>
    %274 = arith.negf %273 : vector<8x128xf32>
    %275 = math.exp %274 : vector<8x128xf32>
    %cst_84 = arith.constant 1.000000e+00 : f32
    %276 = vector.broadcast %cst_84 : f32 to vector<8x128xf32>
    %277 = arith.addf %276, %275 : vector<8x128xf32>
    %278 = arith.divf %276, %277 : vector<8x128xf32>
    %279 = vector.extract_strided_slice %266 {offsets = [0, 256], sizes = [8, 128], strides = [1, 1]} : vector<8x512xf32> to vector<8x128xf32>
    %280 = math.tanh %279 : vector<8x128xf32>
    %281 = vector.extract_strided_slice %266 {offsets = [0, 384], sizes = [8, 128], strides = [1, 1]} : vector<8x512xf32> to vector<8x128xf32>
    %282 = arith.negf %281 : vector<8x128xf32>
    %283 = math.exp %282 : vector<8x128xf32>
    %cst_85 = arith.constant 1.000000e+00 : f32
    %284 = vector.broadcast %cst_85 : f32 to vector<8x128xf32>
    %285 = arith.addf %284, %283 : vector<8x128xf32>
    %286 = arith.divf %284, %285 : vector<8x128xf32>
    %287 = arith.mulf %278, %255 : vector<8x128xf32>
    %288 = arith.mulf %272, %280 : vector<8x128xf32>
    %289 = arith.addf %287, %288 : vector<8x128xf32>
    %290 = math.tanh %289 : vector<8x128xf32>
    %291 = arith.mulf %286, %290 : vector<8x128xf32>
    %c56_86 = arith.constant 56 : index
    %c0_87 = arith.constant 0 : index
    %292 = vector.load %arg8[%c56_86, %c0_87] : memref<64x128xf32, #tpu.memory_space<vmem>>, vector<8x128xf32>
    tpu.vector_store %arg8[%c56_86, %c0_87], %291 {strides = array<i32>} : memref<64x128xf32, #tpu.memory_space<vmem>>, vector<8x128xf32>,
    %c1 = arith.constant 1 : index
    %c0_88 = arith.constant 0 : index
    %c0_89 = arith.constant 0 : index
    %293 = vector.load %arg1[%c1, %c0_88, %c0_89] : memref<3x128x512xbf16, #tpu.memory_space<vmem>>, vector<1x128x512xbf16>
    %294 = vector.shape_cast %293 : vector<1x128x512xbf16> to vector<128x512xbf16>
    %c1_90 = arith.constant 1 : index
    %c0_91 = arith.constant 0 : index
    %c0_92 = arith.constant 0 : index
    %295 = vector.load %arg3[%c1_90, %c0_91, %c0_92] : memref<3x1x512xf32, #tpu.memory_space<vmem>>, vector<1x1x512xf32>
    %296 = vector.shape_cast %295 : vector<1x1x512xf32> to vector<1x512xf32>
    %c0_93 = arith.constant 0 : index
    %c0_94 = arith.constant 0 : index
    %297 = vector.load %arg8[%c0_93, %c0_94] : memref<64x128xf32, #tpu.memory_space<vmem>>, vector<8x128xf32>
    %c56_95 = arith.constant 56 : index
    %c0_96 = arith.constant 0 : index
    %298 = vector.load %arg8[%c56_95, %c0_96] : memref<64x128xf32, #tpu.memory_space<vmem>>, vector<8x128xf32>
    %299 = vector.shape_cast %7 : vector<1x128xi1> to vector<1x128xi1>
    %300 = vector.broadcast %299 : vector<1x128xi1> to vector<8x128xi1>
    %301 = arith.select %300, %297, %298 : vector<8x128xi1>, vector<8x128xf32>
    %c8_97 = arith.constant 8 : index
    %c0_98 = arith.constant 0 : index
    %302 = vector.load %arg8[%c8_97, %c0_98] : memref<64x128xf32, #tpu.memory_space<vmem>>, vector<8x128xf32>
    %c48_99 = arith.constant 48 : index
    %c0_100 = arith.constant 0 : index
    %303 = vector.load %arg8[%c48_99, %c0_100] : memref<64x128xf32, #tpu.memory_space<vmem>>, vector<8x128xf32>
    %304 = vector.shape_cast %7 : vector<1x128xi1> to vector<1x128xi1>
    %305 = vector.broadcast %304 : vector<1x128xi1> to vector<8x128xi1>
    %306 = arith.select %305, %302, %303 : vector<8x128xi1>, vector<8x128xf32>
    %c16_101 = arith.constant 16 : index
    %c0_102 = arith.constant 0 : index
    %307 = vector.load %arg8[%c16_101, %c0_102] : memref<64x128xf32, #tpu.memory_space<vmem>>, vector<8x128xf32>
    %c40_103 = arith.constant 40 : index
    %c0_104 = arith.constant 0 : index
    %308 = vector.load %arg8[%c40_103, %c0_104] : memref<64x128xf32, #tpu.memory_space<vmem>>, vector<8x128xf32>
    %309 = vector.shape_cast %7 : vector<1x128xi1> to vector<1x128xi1>
    %310 = vector.broadcast %309 : vector<1x128xi1> to vector<8x128xi1>
    %311 = arith.select %310, %307, %308 : vector<8x128xi1>, vector<8x128xf32>
    %c24_105 = arith.constant 24 : index
    %c0_106 = arith.constant 0 : index
    %312 = vector.load %arg8[%c24_105, %c0_106] : memref<64x128xf32, #tpu.memory_space<vmem>>, vector<8x128xf32>
    %c32_107 = arith.constant 32 : index
    %c0_108 = arith.constant 0 : index
    %313 = vector.load %arg8[%c32_107, %c0_108] : memref<64x128xf32, #tpu.memory_space<vmem>>, vector<8x128xf32>
    %314 = vector.shape_cast %7 : vector<1x128xi1> to vector<1x128xi1>
    %315 = vector.broadcast %314 : vector<1x128xi1> to vector<8x128xi1>
    %316 = arith.select %315, %312, %313 : vector<8x128xi1>, vector<8x128xf32>
    %c32_109 = arith.constant 32 : index
    %c0_110 = arith.constant 0 : index
    %317 = vector.load %arg8[%c32_109, %c0_110] : memref<64x128xf32, #tpu.memory_space<vmem>>, vector<8x128xf32>
    %c24_111 = arith.constant 24 : index
    %c0_112 = arith.constant 0 : index
    %318 = vector.load %arg8[%c24_111, %c0_112] : memref<64x128xf32, #tpu.memory_space<vmem>>, vector<8x128xf32>
    %319 = vector.shape_cast %7 : vector<1x128xi1> to vector<1x128xi1>
    %320 = vector.broadcast %319 : vector<1x128xi1> to vector<8x128xi1>
    %321 = arith.select %320, %317, %318 : vector<8x128xi1>, vector<8x128xf32>
    %c40_113 = arith.constant 40 : index
    %c0_114 = arith.constant 0 : index
    %322 = vector.load %arg8[%c40_113, %c0_114] : memref<64x128xf32, #tpu.memory_space<vmem>>, vector<8x128xf32>
    %c16_115 = arith.constant 16 : index
    %c0_116 = arith.constant 0 : index
    %323 = vector.load %arg8[%c16_115, %c0_116] : memref<64x128xf32, #tpu.memory_space<vmem>>, vector<8x128xf32>
    %324 = vector.shape_cast %7 : vector<1x128xi1> to vector<1x128xi1>
    %325 = vector.broadcast %324 : vector<1x128xi1> to vector<8x128xi1>
    %326 = arith.select %325, %322, %323 : vector<8x128xi1>, vector<8x128xf32>
    %c48_117 = arith.constant 48 : index
    %c0_118 = arith.constant 0 : index
    %327 = vector.load %arg8[%c48_117, %c0_118] : memref<64x128xf32, #tpu.memory_space<vmem>>, vector<8x128xf32>
    %c8_119 = arith.constant 8 : index
    %c0_120 = arith.constant 0 : index
    %328 = vector.load %arg8[%c8_119, %c0_120] : memref<64x128xf32, #tpu.memory_space<vmem>>, vector<8x128xf32>
    %329 = vector.shape_cast %7 : vector<1x128xi1> to vector<1x128xi1>
    %330 = vector.broadcast %329 : vector<1x128xi1> to vector<8x128xi1>
    %331 = arith.select %330, %327, %328 : vector<8x128xi1>, vector<8x128xf32>
    %c56_121 = arith.constant 56 : index
    %c0_122 = arith.constant 0 : index
    %332 = vector.load %arg8[%c56_121, %c0_122] : memref<64x128xf32, #tpu.memory_space<vmem>>, vector<8x128xf32>
    %c0_123 = arith.constant 0 : index
    %c0_124 = arith.constant 0 : index
    %333 = vector.load %arg8[%c0_123, %c0_124] : memref<64x128xf32, #tpu.memory_space<vmem>>, vector<8x128xf32>
    %334 = vector.shape_cast %7 : vector<1x128xi1> to vector<1x128xi1>
    %335 = vector.broadcast %334 : vector<1x128xi1> to vector<8x128xi1>
    %336 = arith.select %335, %332, %333 : vector<8x128xi1>, vector<8x128xf32>
    %337 = tpu.concatenate %301, %306, %311, %316, %321, %326, %331, %336 in 0 : vector<8x128xf32>, vector<8x128xf32>, vector<8x128xf32>, vector<8x128xf32>, vector<8x128xf32>, vector<8x128xf32>, vector<8x128xf32>, vector<8x128xf32> -> vector<64x128xf32>
    %338 = arith.truncf %337 : vector<64x128xf32> to vector<64x128xbf16>
    %cst_125 = arith.constant dense<0.000000e+00> : vector<64x512xf32>
    %339 = tpu.matmul %338, %294, %cst_125 {dimension_numbers = #tpu.dot_dimension_numbers<[1], [0], [0], [1], [0, 0, 1, 1], [], []>} : vector<64x128xbf16>, vector<128x512xbf16>, vector<64x512xf32> -> vector<64x512xf32>
    %340 = vector.broadcast %296 : vector<1x512xf32> to vector<64x512xf32>
    %341 = arith.addf %339, %340 : vector<64x512xf32>
    %c0_126 = arith.constant 0 : index
    %c0_127 = arith.constant 0 : index
    %342 = vector.load %arg7[%c0_126, %c0_127] : memref<64x512xf32, #tpu.memory_space<vmem>>, vector<64x512xf32>
    tpu.vector_store %arg7[%c0_126, %c0_127], %341 {strides = array<i32>} : memref<64x512xf32, #tpu.memory_space<vmem>>, vector<64x512xf32>,
    %c1_128 = arith.constant 1 : index
    %c0_129 = arith.constant 0 : index
    %c0_130 = arith.constant 0 : index
    %343 = vector.load %arg2[%c1_128, %c0_129, %c0_130] : memref<3x128x512xbf16, #tpu.memory_space<vmem>>, vector<1x128x512xbf16>
    %344 = vector.shape_cast %343 : vector<1x128x512xbf16> to vector<128x512xbf16>
    %cst_131 = arith.constant 0.000000e+00 : f32
    %345 = vector.broadcast %cst_131 : f32 to vector<8x128xf32>
    %cst_132 = arith.constant 0.000000e+00 : f32
    %346 = vector.broadcast %cst_132 : f32 to vector<8x128xf32>
    %c0_133 = arith.constant 0 : index
    %c0_134 = arith.constant 0 : index
    %347 = vector.load %arg7[%c0_133, %c0_134] : memref<64x512xf32, #tpu.memory_space<vmem>>, vector<8x512xf32>
    %c56_135 = arith.constant 56 : index
    %c0_136 = arith.constant 0 : index
    %348 = vector.load %arg7[%c56_135, %c0_136] : memref<64x512xf32, #tpu.memory_space<vmem>>, vector<8x512xf32>
    %349 = vector.shape_cast %4 : vector<1x512xi1> to vector<1x512xi1>
    %350 = vector.broadcast %349 : vector<1x512xi1> to vector<8x512xi1>
    %351 = arith.select %350, %347, %348 : vector<8x512xi1>, vector<8x512xf32>
    %352 = arith.truncf %345 : vector<8x128xf32> to vector<8x128xbf16>
    %cst_137 = arith.constant dense<0.000000e+00> : vector<8x512xf32>
    %353 = tpu.matmul %352, %344, %cst_137 {dimension_numbers = #tpu.dot_dimension_numbers<[1], [0], [0], [1], [0, 0, 1, 1], [], []>} : vector<8x128xbf16>, vector<128x512xbf16>, vector<8x512xf32> -> vector<8x512xf32>
    %354 = arith.addf %351, %353 : vector<8x512xf32>
    %355 = vector.extract_strided_slice %354 {offsets = [0, 0], sizes = [8, 128], strides = [1, 1]} : vector<8x512xf32> to vector<8x128xf32>
    %356 = arith.negf %355 : vector<8x128xf32>
    %357 = math.exp %356 : vector<8x128xf32>
    %cst_138 = arith.constant 1.000000e+00 : f32
    %358 = vector.broadcast %cst_138 : f32 to vector<8x128xf32>
    %359 = arith.addf %358, %357 : vector<8x128xf32>
    %360 = arith.divf %358, %359 : vector<8x128xf32>
    %361 = vector.extract_strided_slice %354 {offsets = [0, 128], sizes = [8, 128], strides = [1, 1]} : vector<8x512xf32> to vector<8x128xf32>
    %362 = arith.negf %361 : vector<8x128xf32>
    %363 = math.exp %362 : vector<8x128xf32>
    %cst_139 = arith.constant 1.000000e+00 : f32
    %364 = vector.broadcast %cst_139 : f32 to vector<8x128xf32>
    %365 = arith.addf %364, %363 : vector<8x128xf32>
    %366 = arith.divf %364, %365 : vector<8x128xf32>
    %367 = vector.extract_strided_slice %354 {offsets = [0, 256], sizes = [8, 128], strides = [1, 1]} : vector<8x512xf32> to vector<8x128xf32>
    %368 = math.tanh %367 : vector<8x128xf32>
    %369 = vector.extract_strided_slice %354 {offsets = [0, 384], sizes = [8, 128], strides = [1, 1]} : vector<8x512xf32> to vector<8x128xf32>
    %370 = arith.negf %369 : vector<8x128xf32>
    %371 = math.exp %370 : vector<8x128xf32>
    %cst_140 = arith.constant 1.000000e+00 : f32
    %372 = vector.broadcast %cst_140 : f32 to vector<8x128xf32>
    %373 = arith.addf %372, %371 : vector<8x128xf32>
    %374 = arith.divf %372, %373 : vector<8x128xf32>
    %375 = arith.mulf %366, %346 : vector<8x128xf32>
    %376 = arith.mulf %360, %368 : vector<8x128xf32>
    %377 = arith.addf %375, %376 : vector<8x128xf32>
    %378 = math.tanh %377 : vector<8x128xf32>
    %379 = arith.mulf %374, %378 : vector<8x128xf32>
    %c0_141 = arith.constant 0 : index
    %c0_142 = arith.constant 0 : index
    %380 = vector.load %arg8[%c0_141, %c0_142] : memref<64x128xf32, #tpu.memory_space<vmem>>, vector<8x128xf32>
    tpu.vector_store %arg8[%c0_141, %c0_142], %379 {strides = array<i32>} : memref<64x128xf32, #tpu.memory_space<vmem>>, vector<8x128xf32>,
    %c8_143 = arith.constant 8 : index
    %c0_144 = arith.constant 0 : index
    %381 = vector.load %arg7[%c8_143, %c0_144] : memref<64x512xf32, #tpu.memory_space<vmem>>, vector<8x512xf32>
    %c48_145 = arith.constant 48 : index
    %c0_146 = arith.constant 0 : index
    %382 = vector.load %arg7[%c48_145, %c0_146] : memref<64x512xf32, #tpu.memory_space<vmem>>, vector<8x512xf32>
    %383 = vector.shape_cast %4 : vector<1x512xi1> to vector<1x512xi1>
    %384 = vector.broadcast %383 : vector<1x512xi1> to vector<8x512xi1>
    %385 = arith.select %384, %381, %382 : vector<8x512xi1>, vector<8x512xf32>
    %386 = arith.truncf %379 : vector<8x128xf32> to vector<8x128xbf16>
    %cst_147 = arith.constant dense<0.000000e+00> : vector<8x512xf32>
    %387 = tpu.matmul %386, %344, %cst_147 {dimension_numbers = #tpu.dot_dimension_numbers<[1], [0], [0], [1], [0, 0, 1, 1], [], []>} : vector<8x128xbf16>, vector<128x512xbf16>, vector<8x512xf32> -> vector<8x512xf32>
    %388 = arith.addf %385, %387 : vector<8x512xf32>
    %389 = vector.extract_strided_slice %388 {offsets = [0, 0], sizes = [8, 128], strides = [1, 1]} : vector<8x512xf32> to vector<8x128xf32>
    %390 = arith.negf %389 : vector<8x128xf32>
    %391 = math.exp %390 : vector<8x128xf32>
    %cst_148 = arith.constant 1.000000e+00 : f32
    %392 = vector.broadcast %cst_148 : f32 to vector<8x128xf32>
    %393 = arith.addf %392, %391 : vector<8x128xf32>
    %394 = arith.divf %392, %393 : vector<8x128xf32>
    %395 = vector.extract_strided_slice %388 {offsets = [0, 128], sizes = [8, 128], strides = [1, 1]} : vector<8x512xf32> to vector<8x128xf32>
    %396 = arith.negf %395 : vector<8x128xf32>
    %397 = math.exp %396 : vector<8x128xf32>
    %cst_149 = arith.constant 1.000000e+00 : f32
    %398 = vector.broadcast %cst_149 : f32 to vector<8x128xf32>
    %399 = arith.addf %398, %397 : vector<8x128xf32>
    %400 = arith.divf %398, %399 : vector<8x128xf32>
    %401 = vector.extract_strided_slice %388 {offsets = [0, 256], sizes = [8, 128], strides = [1, 1]} : vector<8x512xf32> to vector<8x128xf32>
    %402 = math.tanh %401 : vector<8x128xf32>
    %403 = vector.extract_strided_slice %388 {offsets = [0, 384], sizes = [8, 128], strides = [1, 1]} : vector<8x512xf32> to vector<8x128xf32>
    %404 = arith.negf %403 : vector<8x128xf32>
    %405 = math.exp %404 : vector<8x128xf32>
    %cst_150 = arith.constant 1.000000e+00 : f32
    %406 = vector.broadcast %cst_150 : f32 to vector<8x128xf32>
    %407 = arith.addf %406, %405 : vector<8x128xf32>
    %408 = arith.divf %406, %407 : vector<8x128xf32>
    %409 = arith.mulf %400, %377 : vector<8x128xf32>
    %410 = arith.mulf %394, %402 : vector<8x128xf32>
    %411 = arith.addf %409, %410 : vector<8x128xf32>
    %412 = math.tanh %411 : vector<8x128xf32>
    %413 = arith.mulf %408, %412 : vector<8x128xf32>
    %c8_151 = arith.constant 8 : index
    %c0_152 = arith.constant 0 : index
    %414 = vector.load %arg8[%c8_151, %c0_152] : memref<64x128xf32, #tpu.memory_space<vmem>>, vector<8x128xf32>
    tpu.vector_store %arg8[%c8_151, %c0_152], %413 {strides = array<i32>} : memref<64x128xf32, #tpu.memory_space<vmem>>, vector<8x128xf32>,
    %c16_153 = arith.constant 16 : index
    %c0_154 = arith.constant 0 : index
    %415 = vector.load %arg7[%c16_153, %c0_154] : memref<64x512xf32, #tpu.memory_space<vmem>>, vector<8x512xf32>
    %c40_155 = arith.constant 40 : index
    %c0_156 = arith.constant 0 : index
    %416 = vector.load %arg7[%c40_155, %c0_156] : memref<64x512xf32, #tpu.memory_space<vmem>>, vector<8x512xf32>
    %417 = vector.shape_cast %4 : vector<1x512xi1> to vector<1x512xi1>
    %418 = vector.broadcast %417 : vector<1x512xi1> to vector<8x512xi1>
    %419 = arith.select %418, %415, %416 : vector<8x512xi1>, vector<8x512xf32>
    %420 = arith.truncf %413 : vector<8x128xf32> to vector<8x128xbf16>
    %cst_157 = arith.constant dense<0.000000e+00> : vector<8x512xf32>
    %421 = tpu.matmul %420, %344, %cst_157 {dimension_numbers = #tpu.dot_dimension_numbers<[1], [0], [0], [1], [0, 0, 1, 1], [], []>} : vector<8x128xbf16>, vector<128x512xbf16>, vector<8x512xf32> -> vector<8x512xf32>
    %422 = arith.addf %419, %421 : vector<8x512xf32>
    %423 = vector.extract_strided_slice %422 {offsets = [0, 0], sizes = [8, 128], strides = [1, 1]} : vector<8x512xf32> to vector<8x128xf32>
    %424 = arith.negf %423 : vector<8x128xf32>
    %425 = math.exp %424 : vector<8x128xf32>
    %cst_158 = arith.constant 1.000000e+00 : f32
    %426 = vector.broadcast %cst_158 : f32 to vector<8x128xf32>
    %427 = arith.addf %426, %425 : vector<8x128xf32>
    %428 = arith.divf %426, %427 : vector<8x128xf32>
    %429 = vector.extract_strided_slice %422 {offsets = [0, 128], sizes = [8, 128], strides = [1, 1]} : vector<8x512xf32> to vector<8x128xf32>
    %430 = arith.negf %429 : vector<8x128xf32>
    %431 = math.exp %430 : vector<8x128xf32>
    %cst_159 = arith.constant 1.000000e+00 : f32
    %432 = vector.broadcast %cst_159 : f32 to vector<8x128xf32>
    %433 = arith.addf %432, %431 : vector<8x128xf32>
    %434 = arith.divf %432, %433 : vector<8x128xf32>
    %435 = vector.extract_strided_slice %422 {offsets = [0, 256], sizes = [8, 128], strides = [1, 1]} : vector<8x512xf32> to vector<8x128xf32>
    %436 = math.tanh %435 : vector<8x128xf32>
    %437 = vector.extract_strided_slice %422 {offsets = [0, 384], sizes = [8, 128], strides = [1, 1]} : vector<8x512xf32> to vector<8x128xf32>
    %438 = arith.negf %437 : vector<8x128xf32>
    %439 = math.exp %438 : vector<8x128xf32>
    %cst_160 = arith.constant 1.000000e+00 : f32
    %440 = vector.broadcast %cst_160 : f32 to vector<8x128xf32>
    %441 = arith.addf %440, %439 : vector<8x128xf32>
    %442 = arith.divf %440, %441 : vector<8x128xf32>
    %443 = arith.mulf %434, %411 : vector<8x128xf32>
    %444 = arith.mulf %428, %436 : vector<8x128xf32>
    %445 = arith.addf %443, %444 : vector<8x128xf32>
    %446 = math.tanh %445 : vector<8x128xf32>
    %447 = arith.mulf %442, %446 : vector<8x128xf32>
    %c16_161 = arith.constant 16 : index
    %c0_162 = arith.constant 0 : index
    %448 = vector.load %arg8[%c16_161, %c0_162] : memref<64x128xf32, #tpu.memory_space<vmem>>, vector<8x128xf32>
    tpu.vector_store %arg8[%c16_161, %c0_162], %447 {strides = array<i32>} : memref<64x128xf32, #tpu.memory_space<vmem>>, vector<8x128xf32>,
    %c24_163 = arith.constant 24 : index
    %c0_164 = arith.constant 0 : index
    %449 = vector.load %arg7[%c24_163, %c0_164] : memref<64x512xf32, #tpu.memory_space<vmem>>, vector<8x512xf32>
    %c32_165 = arith.constant 32 : index
    %c0_166 = arith.constant 0 : index
    %450 = vector.load %arg7[%c32_165, %c0_166] : memref<64x512xf32, #tpu.memory_space<vmem>>, vector<8x512xf32>
    %451 = vector.shape_cast %4 : vector<1x512xi1> to vector<1x512xi1>
    %452 = vector.broadcast %451 : vector<1x512xi1> to vector<8x512xi1>
    %453 = arith.select %452, %449, %450 : vector<8x512xi1>, vector<8x512xf32>
    %454 = arith.truncf %447 : vector<8x128xf32> to vector<8x128xbf16>
    %cst_167 = arith.constant dense<0.000000e+00> : vector<8x512xf32>
    %455 = tpu.matmul %454, %344, %cst_167 {dimension_numbers = #tpu.dot_dimension_numbers<[1], [0], [0], [1], [0, 0, 1, 1], [], []>} : vector<8x128xbf16>, vector<128x512xbf16>, vector<8x512xf32> -> vector<8x512xf32>
    %456 = arith.addf %453, %455 : vector<8x512xf32>
    %457 = vector.extract_strided_slice %456 {offsets = [0, 0], sizes = [8, 128], strides = [1, 1]} : vector<8x512xf32> to vector<8x128xf32>
    %458 = arith.negf %457 : vector<8x128xf32>
    %459 = math.exp %458 : vector<8x128xf32>
    %cst_168 = arith.constant 1.000000e+00 : f32
    %460 = vector.broadcast %cst_168 : f32 to vector<8x128xf32>
    %461 = arith.addf %460, %459 : vector<8x128xf32>
    %462 = arith.divf %460, %461 : vector<8x128xf32>
    %463 = vector.extract_strided_slice %456 {offsets = [0, 128], sizes = [8, 128], strides = [1, 1]} : vector<8x512xf32> to vector<8x128xf32>
    %464 = arith.negf %463 : vector<8x128xf32>
    %465 = math.exp %464 : vector<8x128xf32>
    %cst_169 = arith.constant 1.000000e+00 : f32
    %466 = vector.broadcast %cst_169 : f32 to vector<8x128xf32>
    %467 = arith.addf %466, %465 : vector<8x128xf32>
    %468 = arith.divf %466, %467 : vector<8x128xf32>
    %469 = vector.extract_strided_slice %456 {offsets = [0, 256], sizes = [8, 128], strides = [1, 1]} : vector<8x512xf32> to vector<8x128xf32>
    %470 = math.tanh %469 : vector<8x128xf32>
    %471 = vector.extract_strided_slice %456 {offsets = [0, 384], sizes = [8, 128], strides = [1, 1]} : vector<8x512xf32> to vector<8x128xf32>
    %472 = arith.negf %471 : vector<8x128xf32>
    %473 = math.exp %472 : vector<8x128xf32>
    %cst_170 = arith.constant 1.000000e+00 : f32
    %474 = vector.broadcast %cst_170 : f32 to vector<8x128xf32>
    %475 = arith.addf %474, %473 : vector<8x128xf32>
    %476 = arith.divf %474, %475 : vector<8x128xf32>
    %477 = arith.mulf %468, %445 : vector<8x128xf32>
    %478 = arith.mulf %462, %470 : vector<8x128xf32>
    %479 = arith.addf %477, %478 : vector<8x128xf32>
    %480 = math.tanh %479 : vector<8x128xf32>
    %481 = arith.mulf %476, %480 : vector<8x128xf32>
    %c24_171 = arith.constant 24 : index
    %c0_172 = arith.constant 0 : index
    %482 = vector.load %arg8[%c24_171, %c0_172] : memref<64x128xf32, #tpu.memory_space<vmem>>, vector<8x128xf32>
    tpu.vector_store %arg8[%c24_171, %c0_172], %481 {strides = array<i32>} : memref<64x128xf32, #tpu.memory_space<vmem>>, vector<8x128xf32>,
    %c32_173 = arith.constant 32 : index
    %c0_174 = arith.constant 0 : index
    %483 = vector.load %arg7[%c32_173, %c0_174] : memref<64x512xf32, #tpu.memory_space<vmem>>, vector<8x512xf32>
    %c24_175 = arith.constant 24 : index
    %c0_176 = arith.constant 0 : index
    %484 = vector.load %arg7[%c24_175, %c0_176] : memref<64x512xf32, #tpu.memory_space<vmem>>, vector<8x512xf32>
    %485 = vector.shape_cast %4 : vector<1x512xi1> to vector<1x512xi1>
    %486 = vector.broadcast %485 : vector<1x512xi1> to vector<8x512xi1>
    %487 = arith.select %486, %483, %484 : vector<8x512xi1>, vector<8x512xf32>
    %488 = arith.truncf %481 : vector<8x128xf32> to vector<8x128xbf16>
    %cst_177 = arith.constant dense<0.000000e+00> : vector<8x512xf32>
    %489 = tpu.matmul %488, %344, %cst_177 {dimension_numbers = #tpu.dot_dimension_numbers<[1], [0], [0], [1], [0, 0, 1, 1], [], []>} : vector<8x128xbf16>, vector<128x512xbf16>, vector<8x512xf32> -> vector<8x512xf32>
    %490 = arith.addf %487, %489 : vector<8x512xf32>
    %491 = vector.extract_strided_slice %490 {offsets = [0, 0], sizes = [8, 128], strides = [1, 1]} : vector<8x512xf32> to vector<8x128xf32>
    %492 = arith.negf %491 : vector<8x128xf32>
    %493 = math.exp %492 : vector<8x128xf32>
    %cst_178 = arith.constant 1.000000e+00 : f32
    %494 = vector.broadcast %cst_178 : f32 to vector<8x128xf32>
    %495 = arith.addf %494, %493 : vector<8x128xf32>
    %496 = arith.divf %494, %495 : vector<8x128xf32>
    %497 = vector.extract_strided_slice %490 {offsets = [0, 128], sizes = [8, 128], strides = [1, 1]} : vector<8x512xf32> to vector<8x128xf32>
    %498 = arith.negf %497 : vector<8x128xf32>
    %499 = math.exp %498 : vector<8x128xf32>
    %cst_179 = arith.constant 1.000000e+00 : f32
    %500 = vector.broadcast %cst_179 : f32 to vector<8x128xf32>
    %501 = arith.addf %500, %499 : vector<8x128xf32>
    %502 = arith.divf %500, %501 : vector<8x128xf32>
    %503 = vector.extract_strided_slice %490 {offsets = [0, 256], sizes = [8, 128], strides = [1, 1]} : vector<8x512xf32> to vector<8x128xf32>
    %504 = math.tanh %503 : vector<8x128xf32>
    %505 = vector.extract_strided_slice %490 {offsets = [0, 384], sizes = [8, 128], strides = [1, 1]} : vector<8x512xf32> to vector<8x128xf32>
    %506 = arith.negf %505 : vector<8x128xf32>
    %507 = math.exp %506 : vector<8x128xf32>
    %cst_180 = arith.constant 1.000000e+00 : f32
    %508 = vector.broadcast %cst_180 : f32 to vector<8x128xf32>
    %509 = arith.addf %508, %507 : vector<8x128xf32>
    %510 = arith.divf %508, %509 : vector<8x128xf32>
    %511 = arith.mulf %502, %479 : vector<8x128xf32>
    %512 = arith.mulf %496, %504 : vector<8x128xf32>
    %513 = arith.addf %511, %512 : vector<8x128xf32>
    %514 = math.tanh %513 : vector<8x128xf32>
    %515 = arith.mulf %510, %514 : vector<8x128xf32>
    %c32_181 = arith.constant 32 : index
    %c0_182 = arith.constant 0 : index
    %516 = vector.load %arg8[%c32_181, %c0_182] : memref<64x128xf32, #tpu.memory_space<vmem>>, vector<8x128xf32>
    tpu.vector_store %arg8[%c32_181, %c0_182], %515 {strides = array<i32>} : memref<64x128xf32, #tpu.memory_space<vmem>>, vector<8x128xf32>,
    %c40_183 = arith.constant 40 : index
    %c0_184 = arith.constant 0 : index
    %517 = vector.load %arg7[%c40_183, %c0_184] : memref<64x512xf32, #tpu.memory_space<vmem>>, vector<8x512xf32>
    %c16_185 = arith.constant 16 : index
    %c0_186 = arith.constant 0 : index
    %518 = vector.load %arg7[%c16_185, %c0_186] : memref<64x512xf32, #tpu.memory_space<vmem>>, vector<8x512xf32>
    %519 = vector.shape_cast %4 : vector<1x512xi1> to vector<1x512xi1>
    %520 = vector.broadcast %519 : vector<1x512xi1> to vector<8x512xi1>
    %521 = arith.select %520, %517, %518 : vector<8x512xi1>, vector<8x512xf32>
    %522 = arith.truncf %515 : vector<8x128xf32> to vector<8x128xbf16>
    %cst_187 = arith.constant dense<0.000000e+00> : vector<8x512xf32>
    %523 = tpu.matmul %522, %344, %cst_187 {dimension_numbers = #tpu.dot_dimension_numbers<[1], [0], [0], [1], [0, 0, 1, 1], [], []>} : vector<8x128xbf16>, vector<128x512xbf16>, vector<8x512xf32> -> vector<8x512xf32>
    %524 = arith.addf %521, %523 : vector<8x512xf32>
    %525 = vector.extract_strided_slice %524 {offsets = [0, 0], sizes = [8, 128], strides = [1, 1]} : vector<8x512xf32> to vector<8x128xf32>
    %526 = arith.negf %525 : vector<8x128xf32>
    %527 = math.exp %526 : vector<8x128xf32>
    %cst_188 = arith.constant 1.000000e+00 : f32
    %528 = vector.broadcast %cst_188 : f32 to vector<8x128xf32>
    %529 = arith.addf %528, %527 : vector<8x128xf32>
    %530 = arith.divf %528, %529 : vector<8x128xf32>
    %531 = vector.extract_strided_slice %524 {offsets = [0, 128], sizes = [8, 128], strides = [1, 1]} : vector<8x512xf32> to vector<8x128xf32>
    %532 = arith.negf %531 : vector<8x128xf32>
    %533 = math.exp %532 : vector<8x128xf32>
    %cst_189 = arith.constant 1.000000e+00 : f32
    %534 = vector.broadcast %cst_189 : f32 to vector<8x128xf32>
    %535 = arith.addf %534, %533 : vector<8x128xf32>
    %536 = arith.divf %534, %535 : vector<8x128xf32>
    %537 = vector.extract_strided_slice %524 {offsets = [0, 256], sizes = [8, 128], strides = [1, 1]} : vector<8x512xf32> to vector<8x128xf32>
    %538 = math.tanh %537 : vector<8x128xf32>
    %539 = vector.extract_strided_slice %524 {offsets = [0, 384], sizes = [8, 128], strides = [1, 1]} : vector<8x512xf32> to vector<8x128xf32>
    %540 = arith.negf %539 : vector<8x128xf32>
    %541 = math.exp %540 : vector<8x128xf32>
    %cst_190 = arith.constant 1.000000e+00 : f32
    %542 = vector.broadcast %cst_190 : f32 to vector<8x128xf32>
    %543 = arith.addf %542, %541 : vector<8x128xf32>
    %544 = arith.divf %542, %543 : vector<8x128xf32>
    %545 = arith.mulf %536, %513 : vector<8x128xf32>
    %546 = arith.mulf %530, %538 : vector<8x128xf32>
    %547 = arith.addf %545, %546 : vector<8x128xf32>
    %548 = math.tanh %547 : vector<8x128xf32>
    %549 = arith.mulf %544, %548 : vector<8x128xf32>
    %c40_191 = arith.constant 40 : index
    %c0_192 = arith.constant 0 : index
    %550 = vector.load %arg8[%c40_191, %c0_192] : memref<64x128xf32, #tpu.memory_space<vmem>>, vector<8x128xf32>
    tpu.vector_store %arg8[%c40_191, %c0_192], %549 {strides = array<i32>} : memref<64x128xf32, #tpu.memory_space<vmem>>, vector<8x128xf32>,
    %c48_193 = arith.constant 48 : index
    %c0_194 = arith.constant 0 : index
    %551 = vector.load %arg7[%c48_193, %c0_194] : memref<64x512xf32, #tpu.memory_space<vmem>>, vector<8x512xf32>
    %c8_195 = arith.constant 8 : index
    %c0_196 = arith.constant 0 : index
    %552 = vector.load %arg7[%c8_195, %c0_196] : memref<64x512xf32, #tpu.memory_space<vmem>>, vector<8x512xf32>
    %553 = vector.shape_cast %4 : vector<1x512xi1> to vector<1x512xi1>
    %554 = vector.broadcast %553 : vector<1x512xi1> to vector<8x512xi1>
    %555 = arith.select %554, %551, %552 : vector<8x512xi1>, vector<8x512xf32>
    %556 = arith.truncf %549 : vector<8x128xf32> to vector<8x128xbf16>
    %cst_197 = arith.constant dense<0.000000e+00> : vector<8x512xf32>
    %557 = tpu.matmul %556, %344, %cst_197 {dimension_numbers = #tpu.dot_dimension_numbers<[1], [0], [0], [1], [0, 0, 1, 1], [], []>} : vector<8x128xbf16>, vector<128x512xbf16>, vector<8x512xf32> -> vector<8x512xf32>
    %558 = arith.addf %555, %557 : vector<8x512xf32>
    %559 = vector.extract_strided_slice %558 {offsets = [0, 0], sizes = [8, 128], strides = [1, 1]} : vector<8x512xf32> to vector<8x128xf32>
    %560 = arith.negf %559 : vector<8x128xf32>
    %561 = math.exp %560 : vector<8x128xf32>
    %cst_198 = arith.constant 1.000000e+00 : f32
    %562 = vector.broadcast %cst_198 : f32 to vector<8x128xf32>
    %563 = arith.addf %562, %561 : vector<8x128xf32>
    %564 = arith.divf %562, %563 : vector<8x128xf32>
    %565 = vector.extract_strided_slice %558 {offsets = [0, 128], sizes = [8, 128], strides = [1, 1]} : vector<8x512xf32> to vector<8x128xf32>
    %566 = arith.negf %565 : vector<8x128xf32>
    %567 = math.exp %566 : vector<8x128xf32>
    %cst_199 = arith.constant 1.000000e+00 : f32
    %568 = vector.broadcast %cst_199 : f32 to vector<8x128xf32>
    %569 = arith.addf %568, %567 : vector<8x128xf32>
    %570 = arith.divf %568, %569 : vector<8x128xf32>
    %571 = vector.extract_strided_slice %558 {offsets = [0, 256], sizes = [8, 128], strides = [1, 1]} : vector<8x512xf32> to vector<8x128xf32>
    %572 = math.tanh %571 : vector<8x128xf32>
    %573 = vector.extract_strided_slice %558 {offsets = [0, 384], sizes = [8, 128], strides = [1, 1]} : vector<8x512xf32> to vector<8x128xf32>
    %574 = arith.negf %573 : vector<8x128xf32>
    %575 = math.exp %574 : vector<8x128xf32>
    %cst_200 = arith.constant 1.000000e+00 : f32
    %576 = vector.broadcast %cst_200 : f32 to vector<8x128xf32>
    %577 = arith.addf %576, %575 : vector<8x128xf32>
    %578 = arith.divf %576, %577 : vector<8x128xf32>
    %579 = arith.mulf %570, %547 : vector<8x128xf32>
    %580 = arith.mulf %564, %572 : vector<8x128xf32>
    %581 = arith.addf %579, %580 : vector<8x128xf32>
    %582 = math.tanh %581 : vector<8x128xf32>
    %583 = arith.mulf %578, %582 : vector<8x128xf32>
    %c48_201 = arith.constant 48 : index
    %c0_202 = arith.constant 0 : index
    %584 = vector.load %arg8[%c48_201, %c0_202] : memref<64x128xf32, #tpu.memory_space<vmem>>, vector<8x128xf32>
    tpu.vector_store %arg8[%c48_201, %c0_202], %583 {strides = array<i32>} : memref<64x128xf32, #tpu.memory_space<vmem>>, vector<8x128xf32>,
    %c56_203 = arith.constant 56 : index
    %c0_204 = arith.constant 0 : index
    %585 = vector.load %arg7[%c56_203, %c0_204] : memref<64x512xf32, #tpu.memory_space<vmem>>, vector<8x512xf32>
    %c0_205 = arith.constant 0 : index
    %c0_206 = arith.constant 0 : index
    %586 = vector.load %arg7[%c0_205, %c0_206] : memref<64x512xf32, #tpu.memory_space<vmem>>, vector<8x512xf32>
    %587 = vector.shape_cast %4 : vector<1x512xi1> to vector<1x512xi1>
    %588 = vector.broadcast %587 : vector<1x512xi1> to vector<8x512xi1>
    %589 = arith.select %588, %585, %586 : vector<8x512xi1>, vector<8x512xf32>
    %590 = arith.truncf %583 : vector<8x128xf32> to vector<8x128xbf16>
    %cst_207 = arith.constant dense<0.000000e+00> : vector<8x512xf32>
    %591 = tpu.matmul %590, %344, %cst_207 {dimension_numbers = #tpu.dot_dimension_numbers<[1], [0], [0], [1], [0, 0, 1, 1], [], []>} : vector<8x128xbf16>, vector<128x512xbf16>, vector<8x512xf32> -> vector<8x512xf32>
    %592 = arith.addf %589, %591 : vector<8x512xf32>
    %593 = vector.extract_strided_slice %592 {offsets = [0, 0], sizes = [8, 128], strides = [1, 1]} : vector<8x512xf32> to vector<8x128xf32>
    %594 = arith.negf %593 : vector<8x128xf32>
    %595 = math.exp %594 : vector<8x128xf32>
    %cst_208 = arith.constant 1.000000e+00 : f32
    %596 = vector.broadcast %cst_208 : f32 to vector<8x128xf32>
    %597 = arith.addf %596, %595 : vector<8x128xf32>
    %598 = arith.divf %596, %597 : vector<8x128xf32>
    %599 = vector.extract_strided_slice %592 {offsets = [0, 128], sizes = [8, 128], strides = [1, 1]} : vector<8x512xf32> to vector<8x128xf32>
    %600 = arith.negf %599 : vector<8x128xf32>
    %601 = math.exp %600 : vector<8x128xf32>
    %cst_209 = arith.constant 1.000000e+00 : f32
    %602 = vector.broadcast %cst_209 : f32 to vector<8x128xf32>
    %603 = arith.addf %602, %601 : vector<8x128xf32>
    %604 = arith.divf %602, %603 : vector<8x128xf32>
    %605 = vector.extract_strided_slice %592 {offsets = [0, 256], sizes = [8, 128], strides = [1, 1]} : vector<8x512xf32> to vector<8x128xf32>
    %606 = math.tanh %605 : vector<8x128xf32>
    %607 = vector.extract_strided_slice %592 {offsets = [0, 384], sizes = [8, 128], strides = [1, 1]} : vector<8x512xf32> to vector<8x128xf32>
    %608 = arith.negf %607 : vector<8x128xf32>
    %609 = math.exp %608 : vector<8x128xf32>
    %cst_210 = arith.constant 1.000000e+00 : f32
    %610 = vector.broadcast %cst_210 : f32 to vector<8x128xf32>
    %611 = arith.addf %610, %609 : vector<8x128xf32>
    %612 = arith.divf %610, %611 : vector<8x128xf32>
    %613 = arith.mulf %604, %581 : vector<8x128xf32>
    %614 = arith.mulf %598, %606 : vector<8x128xf32>
    %615 = arith.addf %613, %614 : vector<8x128xf32>
    %616 = math.tanh %615 : vector<8x128xf32>
    %617 = arith.mulf %612, %616 : vector<8x128xf32>
    %c56_211 = arith.constant 56 : index
    %c0_212 = arith.constant 0 : index
    %618 = vector.load %arg8[%c56_211, %c0_212] : memref<64x128xf32, #tpu.memory_space<vmem>>, vector<8x128xf32>
    tpu.vector_store %arg8[%c56_211, %c0_212], %617 {strides = array<i32>} : memref<64x128xf32, #tpu.memory_space<vmem>>, vector<8x128xf32>,
    %c2 = arith.constant 2 : index
    %c0_213 = arith.constant 0 : index
    %c0_214 = arith.constant 0 : index
    %619 = vector.load %arg1[%c2, %c0_213, %c0_214] : memref<3x128x512xbf16, #tpu.memory_space<vmem>>, vector<1x128x512xbf16>
    %620 = vector.shape_cast %619 : vector<1x128x512xbf16> to vector<128x512xbf16>
    %c2_215 = arith.constant 2 : index
    %c0_216 = arith.constant 0 : index
    %c0_217 = arith.constant 0 : index
    %621 = vector.load %arg3[%c2_215, %c0_216, %c0_217] : memref<3x1x512xf32, #tpu.memory_space<vmem>>, vector<1x1x512xf32>
    %622 = vector.shape_cast %621 : vector<1x1x512xf32> to vector<1x512xf32>
    %c0_218 = arith.constant 0 : index
    %c0_219 = arith.constant 0 : index
    %623 = vector.load %arg8[%c0_218, %c0_219] : memref<64x128xf32, #tpu.memory_space<vmem>>, vector<8x128xf32>
    %c56_220 = arith.constant 56 : index
    %c0_221 = arith.constant 0 : index
    %624 = vector.load %arg8[%c56_220, %c0_221] : memref<64x128xf32, #tpu.memory_space<vmem>>, vector<8x128xf32>
    %625 = vector.shape_cast %7 : vector<1x128xi1> to vector<1x128xi1>
    %626 = vector.broadcast %625 : vector<1x128xi1> to vector<8x128xi1>
    %627 = arith.select %626, %623, %624 : vector<8x128xi1>, vector<8x128xf32>
    %c8_222 = arith.constant 8 : index
    %c0_223 = arith.constant 0 : index
    %628 = vector.load %arg8[%c8_222, %c0_223] : memref<64x128xf32, #tpu.memory_space<vmem>>, vector<8x128xf32>
    %c48_224 = arith.constant 48 : index
    %c0_225 = arith.constant 0 : index
    %629 = vector.load %arg8[%c48_224, %c0_225] : memref<64x128xf32, #tpu.memory_space<vmem>>, vector<8x128xf32>
    %630 = vector.shape_cast %7 : vector<1x128xi1> to vector<1x128xi1>
    %631 = vector.broadcast %630 : vector<1x128xi1> to vector<8x128xi1>
    %632 = arith.select %631, %628, %629 : vector<8x128xi1>, vector<8x128xf32>
    %c16_226 = arith.constant 16 : index
    %c0_227 = arith.constant 0 : index
    %633 = vector.load %arg8[%c16_226, %c0_227] : memref<64x128xf32, #tpu.memory_space<vmem>>, vector<8x128xf32>
    %c40_228 = arith.constant 40 : index
    %c0_229 = arith.constant 0 : index
    %634 = vector.load %arg8[%c40_228, %c0_229] : memref<64x128xf32, #tpu.memory_space<vmem>>, vector<8x128xf32>
    %635 = vector.shape_cast %7 : vector<1x128xi1> to vector<1x128xi1>
    %636 = vector.broadcast %635 : vector<1x128xi1> to vector<8x128xi1>
    %637 = arith.select %636, %633, %634 : vector<8x128xi1>, vector<8x128xf32>
    %c24_230 = arith.constant 24 : index
    %c0_231 = arith.constant 0 : index
    %638 = vector.load %arg8[%c24_230, %c0_231] : memref<64x128xf32, #tpu.memory_space<vmem>>, vector<8x128xf32>
    %c32_232 = arith.constant 32 : index
    %c0_233 = arith.constant 0 : index
    %639 = vector.load %arg8[%c32_232, %c0_233] : memref<64x128xf32, #tpu.memory_space<vmem>>, vector<8x128xf32>
    %640 = vector.shape_cast %7 : vector<1x128xi1> to vector<1x128xi1>
    %641 = vector.broadcast %640 : vector<1x128xi1> to vector<8x128xi1>
    %642 = arith.select %641, %638, %639 : vector<8x128xi1>, vector<8x128xf32>
    %c32_234 = arith.constant 32 : index
    %c0_235 = arith.constant 0 : index
    %643 = vector.load %arg8[%c32_234, %c0_235] : memref<64x128xf32, #tpu.memory_space<vmem>>, vector<8x128xf32>
    %c24_236 = arith.constant 24 : index
    %c0_237 = arith.constant 0 : index
    %644 = vector.load %arg8[%c24_236, %c0_237] : memref<64x128xf32, #tpu.memory_space<vmem>>, vector<8x128xf32>
    %645 = vector.shape_cast %7 : vector<1x128xi1> to vector<1x128xi1>
    %646 = vector.broadcast %645 : vector<1x128xi1> to vector<8x128xi1>
    %647 = arith.select %646, %643, %644 : vector<8x128xi1>, vector<8x128xf32>
    %c40_238 = arith.constant 40 : index
    %c0_239 = arith.constant 0 : index
    %648 = vector.load %arg8[%c40_238, %c0_239] : memref<64x128xf32, #tpu.memory_space<vmem>>, vector<8x128xf32>
    %c16_240 = arith.constant 16 : index
    %c0_241 = arith.constant 0 : index
    %649 = vector.load %arg8[%c16_240, %c0_241] : memref<64x128xf32, #tpu.memory_space<vmem>>, vector<8x128xf32>
    %650 = vector.shape_cast %7 : vector<1x128xi1> to vector<1x128xi1>
    %651 = vector.broadcast %650 : vector<1x128xi1> to vector<8x128xi1>
    %652 = arith.select %651, %648, %649 : vector<8x128xi1>, vector<8x128xf32>
    %c48_242 = arith.constant 48 : index
    %c0_243 = arith.constant 0 : index
    %653 = vector.load %arg8[%c48_242, %c0_243] : memref<64x128xf32, #tpu.memory_space<vmem>>, vector<8x128xf32>
    %c8_244 = arith.constant 8 : index
    %c0_245 = arith.constant 0 : index
    %654 = vector.load %arg8[%c8_244, %c0_245] : memref<64x128xf32, #tpu.memory_space<vmem>>, vector<8x128xf32>
    %655 = vector.shape_cast %7 : vector<1x128xi1> to vector<1x128xi1>
    %656 = vector.broadcast %655 : vector<1x128xi1> to vector<8x128xi1>
    %657 = arith.select %656, %653, %654 : vector<8x128xi1>, vector<8x128xf32>
    %c56_246 = arith.constant 56 : index
    %c0_247 = arith.constant 0 : index
    %658 = vector.load %arg8[%c56_246, %c0_247] : memref<64x128xf32, #tpu.memory_space<vmem>>, vector<8x128xf32>
    %c0_248 = arith.constant 0 : index
    %c0_249 = arith.constant 0 : index
    %659 = vector.load %arg8[%c0_248, %c0_249] : memref<64x128xf32, #tpu.memory_space<vmem>>, vector<8x128xf32>
    %660 = vector.shape_cast %7 : vector<1x128xi1> to vector<1x128xi1>
    %661 = vector.broadcast %660 : vector<1x128xi1> to vector<8x128xi1>
    %662 = arith.select %661, %658, %659 : vector<8x128xi1>, vector<8x128xf32>
    %663 = tpu.concatenate %627, %632, %637, %642, %647, %652, %657, %662 in 0 : vector<8x128xf32>, vector<8x128xf32>, vector<8x128xf32>, vector<8x128xf32>, vector<8x128xf32>, vector<8x128xf32>, vector<8x128xf32>, vector<8x128xf32> -> vector<64x128xf32>
    %664 = arith.truncf %663 : vector<64x128xf32> to vector<64x128xbf16>
    %cst_250 = arith.constant dense<0.000000e+00> : vector<64x512xf32>
    %665 = tpu.matmul %664, %620, %cst_250 {dimension_numbers = #tpu.dot_dimension_numbers<[1], [0], [0], [1], [0, 0, 1, 1], [], []>} : vector<64x128xbf16>, vector<128x512xbf16>, vector<64x512xf32> -> vector<64x512xf32>
    %666 = vector.broadcast %622 : vector<1x512xf32> to vector<64x512xf32>
    %667 = arith.addf %665, %666 : vector<64x512xf32>
    %c0_251 = arith.constant 0 : index
    %c0_252 = arith.constant 0 : index
    %668 = vector.load %arg7[%c0_251, %c0_252] : memref<64x512xf32, #tpu.memory_space<vmem>>, vector<64x512xf32>
    tpu.vector_store %arg7[%c0_251, %c0_252], %667 {strides = array<i32>} : memref<64x512xf32, #tpu.memory_space<vmem>>, vector<64x512xf32>,
    %c2_253 = arith.constant 2 : index
    %c0_254 = arith.constant 0 : index
    %c0_255 = arith.constant 0 : index
    %669 = vector.load %arg2[%c2_253, %c0_254, %c0_255] : memref<3x128x512xbf16, #tpu.memory_space<vmem>>, vector<1x128x512xbf16>
    %670 = vector.shape_cast %669 : vector<1x128x512xbf16> to vector<128x512xbf16>
    %cst_256 = arith.constant 0.000000e+00 : f32
    %671 = vector.broadcast %cst_256 : f32 to vector<8x128xf32>
    %cst_257 = arith.constant 0.000000e+00 : f32
    %672 = vector.broadcast %cst_257 : f32 to vector<8x128xf32>
    %c0_258 = arith.constant 0 : index
    %c0_259 = arith.constant 0 : index
    %673 = vector.load %arg7[%c0_258, %c0_259] : memref<64x512xf32, #tpu.memory_space<vmem>>, vector<8x512xf32>
    %c56_260 = arith.constant 56 : index
    %c0_261 = arith.constant 0 : index
    %674 = vector.load %arg7[%c56_260, %c0_261] : memref<64x512xf32, #tpu.memory_space<vmem>>, vector<8x512xf32>
    %675 = vector.shape_cast %4 : vector<1x512xi1> to vector<1x512xi1>
    %676 = vector.broadcast %675 : vector<1x512xi1> to vector<8x512xi1>
    %677 = arith.select %676, %673, %674 : vector<8x512xi1>, vector<8x512xf32>
    %678 = arith.truncf %671 : vector<8x128xf32> to vector<8x128xbf16>
    %cst_262 = arith.constant dense<0.000000e+00> : vector<8x512xf32>
    %679 = tpu.matmul %678, %670, %cst_262 {dimension_numbers = #tpu.dot_dimension_numbers<[1], [0], [0], [1], [0, 0, 1, 1], [], []>} : vector<8x128xbf16>, vector<128x512xbf16>, vector<8x512xf32> -> vector<8x512xf32>
    %680 = arith.addf %677, %679 : vector<8x512xf32>
    %681 = vector.extract_strided_slice %680 {offsets = [0, 0], sizes = [8, 128], strides = [1, 1]} : vector<8x512xf32> to vector<8x128xf32>
    %682 = arith.negf %681 : vector<8x128xf32>
    %683 = math.exp %682 : vector<8x128xf32>
    %cst_263 = arith.constant 1.000000e+00 : f32
    %684 = vector.broadcast %cst_263 : f32 to vector<8x128xf32>
    %685 = arith.addf %684, %683 : vector<8x128xf32>
    %686 = arith.divf %684, %685 : vector<8x128xf32>
    %687 = vector.extract_strided_slice %680 {offsets = [0, 128], sizes = [8, 128], strides = [1, 1]} : vector<8x512xf32> to vector<8x128xf32>
    %688 = arith.negf %687 : vector<8x128xf32>
    %689 = math.exp %688 : vector<8x128xf32>
    %cst_264 = arith.constant 1.000000e+00 : f32
    %690 = vector.broadcast %cst_264 : f32 to vector<8x128xf32>
    %691 = arith.addf %690, %689 : vector<8x128xf32>
    %692 = arith.divf %690, %691 : vector<8x128xf32>
    %693 = vector.extract_strided_slice %680 {offsets = [0, 256], sizes = [8, 128], strides = [1, 1]} : vector<8x512xf32> to vector<8x128xf32>
    %694 = math.tanh %693 : vector<8x128xf32>
    %695 = vector.extract_strided_slice %680 {offsets = [0, 384], sizes = [8, 128], strides = [1, 1]} : vector<8x512xf32> to vector<8x128xf32>
    %696 = arith.negf %695 : vector<8x128xf32>
    %697 = math.exp %696 : vector<8x128xf32>
    %cst_265 = arith.constant 1.000000e+00 : f32
    %698 = vector.broadcast %cst_265 : f32 to vector<8x128xf32>
    %699 = arith.addf %698, %697 : vector<8x128xf32>
    %700 = arith.divf %698, %699 : vector<8x128xf32>
    %701 = arith.mulf %692, %672 : vector<8x128xf32>
    %702 = arith.mulf %686, %694 : vector<8x128xf32>
    %703 = arith.addf %701, %702 : vector<8x128xf32>
    %704 = math.tanh %703 : vector<8x128xf32>
    %705 = arith.mulf %700, %704 : vector<8x128xf32>
    %c8_266 = arith.constant 8 : index
    %c0_267 = arith.constant 0 : index
    %706 = vector.load %arg7[%c8_266, %c0_267] : memref<64x512xf32, #tpu.memory_space<vmem>>, vector<8x512xf32>
    %c48_268 = arith.constant 48 : index
    %c0_269 = arith.constant 0 : index
    %707 = vector.load %arg7[%c48_268, %c0_269] : memref<64x512xf32, #tpu.memory_space<vmem>>, vector<8x512xf32>
    %708 = vector.shape_cast %4 : vector<1x512xi1> to vector<1x512xi1>
    %709 = vector.broadcast %708 : vector<1x512xi1> to vector<8x512xi1>
    %710 = arith.select %709, %706, %707 : vector<8x512xi1>, vector<8x512xf32>
    %711 = arith.truncf %705 : vector<8x128xf32> to vector<8x128xbf16>
    %cst_270 = arith.constant dense<0.000000e+00> : vector<8x512xf32>
    %712 = tpu.matmul %711, %670, %cst_270 {dimension_numbers = #tpu.dot_dimension_numbers<[1], [0], [0], [1], [0, 0, 1, 1], [], []>} : vector<8x128xbf16>, vector<128x512xbf16>, vector<8x512xf32> -> vector<8x512xf32>
    %713 = arith.addf %710, %712 : vector<8x512xf32>
    %714 = vector.extract_strided_slice %713 {offsets = [0, 0], sizes = [8, 128], strides = [1, 1]} : vector<8x512xf32> to vector<8x128xf32>
    %715 = arith.negf %714 : vector<8x128xf32>
    %716 = math.exp %715 : vector<8x128xf32>
    %cst_271 = arith.constant 1.000000e+00 : f32
    %717 = vector.broadcast %cst_271 : f32 to vector<8x128xf32>
    %718 = arith.addf %717, %716 : vector<8x128xf32>
    %719 = arith.divf %717, %718 : vector<8x128xf32>
    %720 = vector.extract_strided_slice %713 {offsets = [0, 128], sizes = [8, 128], strides = [1, 1]} : vector<8x512xf32> to vector<8x128xf32>
    %721 = arith.negf %720 : vector<8x128xf32>
    %722 = math.exp %721 : vector<8x128xf32>
    %cst_272 = arith.constant 1.000000e+00 : f32
    %723 = vector.broadcast %cst_272 : f32 to vector<8x128xf32>
    %724 = arith.addf %723, %722 : vector<8x128xf32>
    %725 = arith.divf %723, %724 : vector<8x128xf32>
    %726 = vector.extract_strided_slice %713 {offsets = [0, 256], sizes = [8, 128], strides = [1, 1]} : vector<8x512xf32> to vector<8x128xf32>
    %727 = math.tanh %726 : vector<8x128xf32>
    %728 = vector.extract_strided_slice %713 {offsets = [0, 384], sizes = [8, 128], strides = [1, 1]} : vector<8x512xf32> to vector<8x128xf32>
    %729 = arith.negf %728 : vector<8x128xf32>
    %730 = math.exp %729 : vector<8x128xf32>
    %cst_273 = arith.constant 1.000000e+00 : f32
    %731 = vector.broadcast %cst_273 : f32 to vector<8x128xf32>
    %732 = arith.addf %731, %730 : vector<8x128xf32>
    %733 = arith.divf %731, %732 : vector<8x128xf32>
    %734 = arith.mulf %725, %703 : vector<8x128xf32>
    %735 = arith.mulf %719, %727 : vector<8x128xf32>
    %736 = arith.addf %734, %735 : vector<8x128xf32>
    %737 = math.tanh %736 : vector<8x128xf32>
    %738 = arith.mulf %733, %737 : vector<8x128xf32>
    %c16_274 = arith.constant 16 : index
    %c0_275 = arith.constant 0 : index
    %739 = vector.load %arg7[%c16_274, %c0_275] : memref<64x512xf32, #tpu.memory_space<vmem>>, vector<8x512xf32>
    %c40_276 = arith.constant 40 : index
    %c0_277 = arith.constant 0 : index
    %740 = vector.load %arg7[%c40_276, %c0_277] : memref<64x512xf32, #tpu.memory_space<vmem>>, vector<8x512xf32>
    %741 = vector.shape_cast %4 : vector<1x512xi1> to vector<1x512xi1>
    %742 = vector.broadcast %741 : vector<1x512xi1> to vector<8x512xi1>
    %743 = arith.select %742, %739, %740 : vector<8x512xi1>, vector<8x512xf32>
    %744 = arith.truncf %738 : vector<8x128xf32> to vector<8x128xbf16>
    %cst_278 = arith.constant dense<0.000000e+00> : vector<8x512xf32>
    %745 = tpu.matmul %744, %670, %cst_278 {dimension_numbers = #tpu.dot_dimension_numbers<[1], [0], [0], [1], [0, 0, 1, 1], [], []>} : vector<8x128xbf16>, vector<128x512xbf16>, vector<8x512xf32> -> vector<8x512xf32>
    %746 = arith.addf %743, %745 : vector<8x512xf32>
    %747 = vector.extract_strided_slice %746 {offsets = [0, 0], sizes = [8, 128], strides = [1, 1]} : vector<8x512xf32> to vector<8x128xf32>
    %748 = arith.negf %747 : vector<8x128xf32>
    %749 = math.exp %748 : vector<8x128xf32>
    %cst_279 = arith.constant 1.000000e+00 : f32
    %750 = vector.broadcast %cst_279 : f32 to vector<8x128xf32>
    %751 = arith.addf %750, %749 : vector<8x128xf32>
    %752 = arith.divf %750, %751 : vector<8x128xf32>
    %753 = vector.extract_strided_slice %746 {offsets = [0, 128], sizes = [8, 128], strides = [1, 1]} : vector<8x512xf32> to vector<8x128xf32>
    %754 = arith.negf %753 : vector<8x128xf32>
    %755 = math.exp %754 : vector<8x128xf32>
    %cst_280 = arith.constant 1.000000e+00 : f32
    %756 = vector.broadcast %cst_280 : f32 to vector<8x128xf32>
    %757 = arith.addf %756, %755 : vector<8x128xf32>
    %758 = arith.divf %756, %757 : vector<8x128xf32>
    %759 = vector.extract_strided_slice %746 {offsets = [0, 256], sizes = [8, 128], strides = [1, 1]} : vector<8x512xf32> to vector<8x128xf32>
    %760 = math.tanh %759 : vector<8x128xf32>
    %761 = vector.extract_strided_slice %746 {offsets = [0, 384], sizes = [8, 128], strides = [1, 1]} : vector<8x512xf32> to vector<8x128xf32>
    %762 = arith.negf %761 : vector<8x128xf32>
    %763 = math.exp %762 : vector<8x128xf32>
    %cst_281 = arith.constant 1.000000e+00 : f32
    %764 = vector.broadcast %cst_281 : f32 to vector<8x128xf32>
    %765 = arith.addf %764, %763 : vector<8x128xf32>
    %766 = arith.divf %764, %765 : vector<8x128xf32>
    %767 = arith.mulf %758, %736 : vector<8x128xf32>
    %768 = arith.mulf %752, %760 : vector<8x128xf32>
    %769 = arith.addf %767, %768 : vector<8x128xf32>
    %770 = math.tanh %769 : vector<8x128xf32>
    %771 = arith.mulf %766, %770 : vector<8x128xf32>
    %c24_282 = arith.constant 24 : index
    %c0_283 = arith.constant 0 : index
    %772 = vector.load %arg7[%c24_282, %c0_283] : memref<64x512xf32, #tpu.memory_space<vmem>>, vector<8x512xf32>
    %c32_284 = arith.constant 32 : index
    %c0_285 = arith.constant 0 : index
    %773 = vector.load %arg7[%c32_284, %c0_285] : memref<64x512xf32, #tpu.memory_space<vmem>>, vector<8x512xf32>
    %774 = vector.shape_cast %4 : vector<1x512xi1> to vector<1x512xi1>
    %775 = vector.broadcast %774 : vector<1x512xi1> to vector<8x512xi1>
    %776 = arith.select %775, %772, %773 : vector<8x512xi1>, vector<8x512xf32>
    %777 = arith.truncf %771 : vector<8x128xf32> to vector<8x128xbf16>
    %cst_286 = arith.constant dense<0.000000e+00> : vector<8x512xf32>
    %778 = tpu.matmul %777, %670, %cst_286 {dimension_numbers = #tpu.dot_dimension_numbers<[1], [0], [0], [1], [0, 0, 1, 1], [], []>} : vector<8x128xbf16>, vector<128x512xbf16>, vector<8x512xf32> -> vector<8x512xf32>
    %779 = arith.addf %776, %778 : vector<8x512xf32>
    %780 = vector.extract_strided_slice %779 {offsets = [0, 0], sizes = [8, 128], strides = [1, 1]} : vector<8x512xf32> to vector<8x128xf32>
    %781 = arith.negf %780 : vector<8x128xf32>
    %782 = math.exp %781 : vector<8x128xf32>
    %cst_287 = arith.constant 1.000000e+00 : f32
    %783 = vector.broadcast %cst_287 : f32 to vector<8x128xf32>
    %784 = arith.addf %783, %782 : vector<8x128xf32>
    %785 = arith.divf %783, %784 : vector<8x128xf32>
    %786 = vector.extract_strided_slice %779 {offsets = [0, 128], sizes = [8, 128], strides = [1, 1]} : vector<8x512xf32> to vector<8x128xf32>
    %787 = arith.negf %786 : vector<8x128xf32>
    %788 = math.exp %787 : vector<8x128xf32>
    %cst_288 = arith.constant 1.000000e+00 : f32
    %789 = vector.broadcast %cst_288 : f32 to vector<8x128xf32>
    %790 = arith.addf %789, %788 : vector<8x128xf32>
    %791 = arith.divf %789, %790 : vector<8x128xf32>
    %792 = vector.extract_strided_slice %779 {offsets = [0, 256], sizes = [8, 128], strides = [1, 1]} : vector<8x512xf32> to vector<8x128xf32>
    %793 = math.tanh %792 : vector<8x128xf32>
    %794 = vector.extract_strided_slice %779 {offsets = [0, 384], sizes = [8, 128], strides = [1, 1]} : vector<8x512xf32> to vector<8x128xf32>
    %795 = arith.negf %794 : vector<8x128xf32>
    %796 = math.exp %795 : vector<8x128xf32>
    %cst_289 = arith.constant 1.000000e+00 : f32
    %797 = vector.broadcast %cst_289 : f32 to vector<8x128xf32>
    %798 = arith.addf %797, %796 : vector<8x128xf32>
    %799 = arith.divf %797, %798 : vector<8x128xf32>
    %800 = arith.mulf %791, %769 : vector<8x128xf32>
    %801 = arith.mulf %785, %793 : vector<8x128xf32>
    %802 = arith.addf %800, %801 : vector<8x128xf32>
    %803 = math.tanh %802 : vector<8x128xf32>
    %804 = arith.mulf %799, %803 : vector<8x128xf32>
    %c32_290 = arith.constant 32 : index
    %c0_291 = arith.constant 0 : index
    %805 = vector.load %arg7[%c32_290, %c0_291] : memref<64x512xf32, #tpu.memory_space<vmem>>, vector<8x512xf32>
    %c24_292 = arith.constant 24 : index
    %c0_293 = arith.constant 0 : index
    %806 = vector.load %arg7[%c24_292, %c0_293] : memref<64x512xf32, #tpu.memory_space<vmem>>, vector<8x512xf32>
    %807 = vector.shape_cast %4 : vector<1x512xi1> to vector<1x512xi1>
    %808 = vector.broadcast %807 : vector<1x512xi1> to vector<8x512xi1>
    %809 = arith.select %808, %805, %806 : vector<8x512xi1>, vector<8x512xf32>
    %810 = arith.truncf %804 : vector<8x128xf32> to vector<8x128xbf16>
    %cst_294 = arith.constant dense<0.000000e+00> : vector<8x512xf32>
    %811 = tpu.matmul %810, %670, %cst_294 {dimension_numbers = #tpu.dot_dimension_numbers<[1], [0], [0], [1], [0, 0, 1, 1], [], []>} : vector<8x128xbf16>, vector<128x512xbf16>, vector<8x512xf32> -> vector<8x512xf32>
    %812 = arith.addf %809, %811 : vector<8x512xf32>
    %813 = vector.extract_strided_slice %812 {offsets = [0, 0], sizes = [8, 128], strides = [1, 1]} : vector<8x512xf32> to vector<8x128xf32>
    %814 = arith.negf %813 : vector<8x128xf32>
    %815 = math.exp %814 : vector<8x128xf32>
    %cst_295 = arith.constant 1.000000e+00 : f32
    %816 = vector.broadcast %cst_295 : f32 to vector<8x128xf32>
    %817 = arith.addf %816, %815 : vector<8x128xf32>
    %818 = arith.divf %816, %817 : vector<8x128xf32>
    %819 = vector.extract_strided_slice %812 {offsets = [0, 128], sizes = [8, 128], strides = [1, 1]} : vector<8x512xf32> to vector<8x128xf32>
    %820 = arith.negf %819 : vector<8x128xf32>
    %821 = math.exp %820 : vector<8x128xf32>
    %cst_296 = arith.constant 1.000000e+00 : f32
    %822 = vector.broadcast %cst_296 : f32 to vector<8x128xf32>
    %823 = arith.addf %822, %821 : vector<8x128xf32>
    %824 = arith.divf %822, %823 : vector<8x128xf32>
    %825 = vector.extract_strided_slice %812 {offsets = [0, 256], sizes = [8, 128], strides = [1, 1]} : vector<8x512xf32> to vector<8x128xf32>
    %826 = math.tanh %825 : vector<8x128xf32>
    %827 = vector.extract_strided_slice %812 {offsets = [0, 384], sizes = [8, 128], strides = [1, 1]} : vector<8x512xf32> to vector<8x128xf32>
    %828 = arith.negf %827 : vector<8x128xf32>
    %829 = math.exp %828 : vector<8x128xf32>
    %cst_297 = arith.constant 1.000000e+00 : f32
    %830 = vector.broadcast %cst_297 : f32 to vector<8x128xf32>
    %831 = arith.addf %830, %829 : vector<8x128xf32>
    %832 = arith.divf %830, %831 : vector<8x128xf32>
    %833 = arith.mulf %824, %802 : vector<8x128xf32>
    %834 = arith.mulf %818, %826 : vector<8x128xf32>
    %835 = arith.addf %833, %834 : vector<8x128xf32>
    %836 = math.tanh %835 : vector<8x128xf32>
    %837 = arith.mulf %832, %836 : vector<8x128xf32>
    %c40_298 = arith.constant 40 : index
    %c0_299 = arith.constant 0 : index
    %838 = vector.load %arg7[%c40_298, %c0_299] : memref<64x512xf32, #tpu.memory_space<vmem>>, vector<8x512xf32>
    %c16_300 = arith.constant 16 : index
    %c0_301 = arith.constant 0 : index
    %839 = vector.load %arg7[%c16_300, %c0_301] : memref<64x512xf32, #tpu.memory_space<vmem>>, vector<8x512xf32>
    %840 = vector.shape_cast %4 : vector<1x512xi1> to vector<1x512xi1>
    %841 = vector.broadcast %840 : vector<1x512xi1> to vector<8x512xi1>
    %842 = arith.select %841, %838, %839 : vector<8x512xi1>, vector<8x512xf32>
    %843 = arith.truncf %837 : vector<8x128xf32> to vector<8x128xbf16>
    %cst_302 = arith.constant dense<0.000000e+00> : vector<8x512xf32>
    %844 = tpu.matmul %843, %670, %cst_302 {dimension_numbers = #tpu.dot_dimension_numbers<[1], [0], [0], [1], [0, 0, 1, 1], [], []>} : vector<8x128xbf16>, vector<128x512xbf16>, vector<8x512xf32> -> vector<8x512xf32>
    %845 = arith.addf %842, %844 : vector<8x512xf32>
    %846 = vector.extract_strided_slice %845 {offsets = [0, 0], sizes = [8, 128], strides = [1, 1]} : vector<8x512xf32> to vector<8x128xf32>
    %847 = arith.negf %846 : vector<8x128xf32>
    %848 = math.exp %847 : vector<8x128xf32>
    %cst_303 = arith.constant 1.000000e+00 : f32
    %849 = vector.broadcast %cst_303 : f32 to vector<8x128xf32>
    %850 = arith.addf %849, %848 : vector<8x128xf32>
    %851 = arith.divf %849, %850 : vector<8x128xf32>
    %852 = vector.extract_strided_slice %845 {offsets = [0, 128], sizes = [8, 128], strides = [1, 1]} : vector<8x512xf32> to vector<8x128xf32>
    %853 = arith.negf %852 : vector<8x128xf32>
    %854 = math.exp %853 : vector<8x128xf32>
    %cst_304 = arith.constant 1.000000e+00 : f32
    %855 = vector.broadcast %cst_304 : f32 to vector<8x128xf32>
    %856 = arith.addf %855, %854 : vector<8x128xf32>
    %857 = arith.divf %855, %856 : vector<8x128xf32>
    %858 = vector.extract_strided_slice %845 {offsets = [0, 256], sizes = [8, 128], strides = [1, 1]} : vector<8x512xf32> to vector<8x128xf32>
    %859 = math.tanh %858 : vector<8x128xf32>
    %860 = vector.extract_strided_slice %845 {offsets = [0, 384], sizes = [8, 128], strides = [1, 1]} : vector<8x512xf32> to vector<8x128xf32>
    %861 = arith.negf %860 : vector<8x128xf32>
    %862 = math.exp %861 : vector<8x128xf32>
    %cst_305 = arith.constant 1.000000e+00 : f32
    %863 = vector.broadcast %cst_305 : f32 to vector<8x128xf32>
    %864 = arith.addf %863, %862 : vector<8x128xf32>
    %865 = arith.divf %863, %864 : vector<8x128xf32>
    %866 = arith.mulf %857, %835 : vector<8x128xf32>
    %867 = arith.mulf %851, %859 : vector<8x128xf32>
    %868 = arith.addf %866, %867 : vector<8x128xf32>
    %869 = math.tanh %868 : vector<8x128xf32>
    %870 = arith.mulf %865, %869 : vector<8x128xf32>
    %c48_306 = arith.constant 48 : index
    %c0_307 = arith.constant 0 : index
    %871 = vector.load %arg7[%c48_306, %c0_307] : memref<64x512xf32, #tpu.memory_space<vmem>>, vector<8x512xf32>
    %c8_308 = arith.constant 8 : index
    %c0_309 = arith.constant 0 : index
    %872 = vector.load %arg7[%c8_308, %c0_309] : memref<64x512xf32, #tpu.memory_space<vmem>>, vector<8x512xf32>
    %873 = vector.shape_cast %4 : vector<1x512xi1> to vector<1x512xi1>
    %874 = vector.broadcast %873 : vector<1x512xi1> to vector<8x512xi1>
    %875 = arith.select %874, %871, %872 : vector<8x512xi1>, vector<8x512xf32>
    %876 = arith.truncf %870 : vector<8x128xf32> to vector<8x128xbf16>
    %cst_310 = arith.constant dense<0.000000e+00> : vector<8x512xf32>
    %877 = tpu.matmul %876, %670, %cst_310 {dimension_numbers = #tpu.dot_dimension_numbers<[1], [0], [0], [1], [0, 0, 1, 1], [], []>} : vector<8x128xbf16>, vector<128x512xbf16>, vector<8x512xf32> -> vector<8x512xf32>
    %878 = arith.addf %875, %877 : vector<8x512xf32>
    %879 = vector.extract_strided_slice %878 {offsets = [0, 0], sizes = [8, 128], strides = [1, 1]} : vector<8x512xf32> to vector<8x128xf32>
    %880 = arith.negf %879 : vector<8x128xf32>
    %881 = math.exp %880 : vector<8x128xf32>
    %cst_311 = arith.constant 1.000000e+00 : f32
    %882 = vector.broadcast %cst_311 : f32 to vector<8x128xf32>
    %883 = arith.addf %882, %881 : vector<8x128xf32>
    %884 = arith.divf %882, %883 : vector<8x128xf32>
    %885 = vector.extract_strided_slice %878 {offsets = [0, 128], sizes = [8, 128], strides = [1, 1]} : vector<8x512xf32> to vector<8x128xf32>
    %886 = arith.negf %885 : vector<8x128xf32>
    %887 = math.exp %886 : vector<8x128xf32>
    %cst_312 = arith.constant 1.000000e+00 : f32
    %888 = vector.broadcast %cst_312 : f32 to vector<8x128xf32>
    %889 = arith.addf %888, %887 : vector<8x128xf32>
    %890 = arith.divf %888, %889 : vector<8x128xf32>
    %891 = vector.extract_strided_slice %878 {offsets = [0, 256], sizes = [8, 128], strides = [1, 1]} : vector<8x512xf32> to vector<8x128xf32>
    %892 = math.tanh %891 : vector<8x128xf32>
    %893 = vector.extract_strided_slice %878 {offsets = [0, 384], sizes = [8, 128], strides = [1, 1]} : vector<8x512xf32> to vector<8x128xf32>
    %894 = arith.negf %893 : vector<8x128xf32>
    %895 = math.exp %894 : vector<8x128xf32>
    %cst_313 = arith.constant 1.000000e+00 : f32
    %896 = vector.broadcast %cst_313 : f32 to vector<8x128xf32>
    %897 = arith.addf %896, %895 : vector<8x128xf32>
    %898 = arith.divf %896, %897 : vector<8x128xf32>
    %899 = arith.mulf %890, %868 : vector<8x128xf32>
    %900 = arith.mulf %884, %892 : vector<8x128xf32>
    %901 = arith.addf %899, %900 : vector<8x128xf32>
    %902 = math.tanh %901 : vector<8x128xf32>
    %903 = arith.mulf %898, %902 : vector<8x128xf32>
    %c56_314 = arith.constant 56 : index
    %c0_315 = arith.constant 0 : index
    %904 = vector.load %arg7[%c56_314, %c0_315] : memref<64x512xf32, #tpu.memory_space<vmem>>, vector<8x512xf32>
    %c0_316 = arith.constant 0 : index
    %c0_317 = arith.constant 0 : index
    %905 = vector.load %arg7[%c0_316, %c0_317] : memref<64x512xf32, #tpu.memory_space<vmem>>, vector<8x512xf32>
    %906 = vector.shape_cast %4 : vector<1x512xi1> to vector<1x512xi1>
    %907 = vector.broadcast %906 : vector<1x512xi1> to vector<8x512xi1>
    %908 = arith.select %907, %904, %905 : vector<8x512xi1>, vector<8x512xf32>
    %909 = arith.truncf %903 : vector<8x128xf32> to vector<8x128xbf16>
    %cst_318 = arith.constant dense<0.000000e+00> : vector<8x512xf32>
    %910 = tpu.matmul %909, %670, %cst_318 {dimension_numbers = #tpu.dot_dimension_numbers<[1], [0], [0], [1], [0, 0, 1, 1], [], []>} : vector<8x128xbf16>, vector<128x512xbf16>, vector<8x512xf32> -> vector<8x512xf32>
    %911 = arith.addf %908, %910 : vector<8x512xf32>
    %912 = vector.extract_strided_slice %911 {offsets = [0, 0], sizes = [8, 128], strides = [1, 1]} : vector<8x512xf32> to vector<8x128xf32>
    %913 = arith.negf %912 : vector<8x128xf32>
    %914 = math.exp %913 : vector<8x128xf32>
    %cst_319 = arith.constant 1.000000e+00 : f32
    %915 = vector.broadcast %cst_319 : f32 to vector<8x128xf32>
    %916 = arith.addf %915, %914 : vector<8x128xf32>
    %917 = arith.divf %915, %916 : vector<8x128xf32>
    %918 = vector.extract_strided_slice %911 {offsets = [0, 128], sizes = [8, 128], strides = [1, 1]} : vector<8x512xf32> to vector<8x128xf32>
    %919 = arith.negf %918 : vector<8x128xf32>
    %920 = math.exp %919 : vector<8x128xf32>
    %cst_320 = arith.constant 1.000000e+00 : f32
    %921 = vector.broadcast %cst_320 : f32 to vector<8x128xf32>
    %922 = arith.addf %921, %920 : vector<8x128xf32>
    %923 = arith.divf %921, %922 : vector<8x128xf32>
    %924 = vector.extract_strided_slice %911 {offsets = [0, 256], sizes = [8, 128], strides = [1, 1]} : vector<8x512xf32> to vector<8x128xf32>
    %925 = math.tanh %924 : vector<8x128xf32>
    %926 = vector.extract_strided_slice %911 {offsets = [0, 384], sizes = [8, 128], strides = [1, 1]} : vector<8x512xf32> to vector<8x128xf32>
    %927 = arith.negf %926 : vector<8x128xf32>
    %928 = math.exp %927 : vector<8x128xf32>
    %cst_321 = arith.constant 1.000000e+00 : f32
    %929 = vector.broadcast %cst_321 : f32 to vector<8x128xf32>
    %930 = arith.addf %929, %928 : vector<8x128xf32>
    %931 = arith.divf %929, %930 : vector<8x128xf32>
    %932 = arith.mulf %923, %901 : vector<8x128xf32>
    %933 = arith.mulf %917, %925 : vector<8x128xf32>
    %934 = arith.addf %932, %933 : vector<8x128xf32>
    %935 = math.tanh %934 : vector<8x128xf32>
    %936 = arith.mulf %931, %935 : vector<8x128xf32>
    %937 = vector.shape_cast %7 : vector<1x128xi1> to vector<1x128xi1>
    %938 = vector.broadcast %937 : vector<1x128xi1> to vector<8x128xi1>
    %939 = arith.select %938, %936, %705 : vector<8x128xi1>, vector<8x128xf32>
    %940 = arith.truncf %939 : vector<8x128xf32> to vector<8x128xbf16>
    %c0_322 = arith.constant 0 : index
    %c0_323 = arith.constant 0 : index
    %941 = vector.load %arg4[%c0_322, %c0_323] : memref<128x216xbf16, #tpu.memory_space<vmem>>, vector<128x216xbf16>
    %cst_324 = arith.constant dense<0.000000e+00> : vector<8x216xf32>
    %942 = tpu.matmul %940, %941, %cst_324 {dimension_numbers = #tpu.dot_dimension_numbers<[1], [0], [0], [1], [0, 0, 1, 1], [], []>} : vector<8x128xbf16>, vector<128x216xbf16>, vector<8x216xf32> -> vector<8x216xf32>
    %c0_325 = arith.constant 0 : index
    %c0_326 = arith.constant 0 : index
    %943 = vector.load %arg5[%c0_325, %c0_326] : memref<1x216xf32, #tpu.memory_space<vmem>>, vector<1x216xf32>
    %944 = vector.broadcast %943 : vector<1x216xf32> to vector<8x216xf32>
    %945 = arith.addf %942, %944 : vector<8x216xf32>
    %c0_327 = arith.constant 0 : index
    %c0_328 = arith.constant 0 : index
    %946 = vector.load %arg6[%c0_327, %c0_328] : memref<8x216xf32, #tpu.memory_space<vmem>>, vector<8x216xf32>
    tpu.vector_store %arg6[%c0_327, %c0_328], %945 {strides = array<i32>} : memref<8x216xf32, #tpu.memory_space<vmem>>, vector<8x216xf32>,
    return
  }
}

</mosaic_0001>

<llo_original>
// kernel: blstm_forward.1
$region0: #{blstm_forward.1}
  #allocation0 [shape = 'u32[]', space=smem, size = 0x4, offset = 0x4, fixed_abs, tag = 'smem constant byte address 0x4 - core index']
  #allocation1 [shape = 'u32[144,128]{1,0:T(1,128)}', space=vmem, size = 0x12000, scoped, tag = 'internal scratch']
  #allocation2 [shape = 'f32[64,512]{1,0:T(8,128)}', space=vmem, size = 0x20000, scoped, tag = 'scratch operand']
  #allocation3 [shape = 'f32[64,128]{1,0:T(8,128)}', space=vmem, size = 0x8000, scoped, tag = 'scratch operand']
  %s0 = inlined_call_operand.vmem [shape: bf16[64,128], index: 0, kind: input, shape index: {}]
  %s1 = inlined_call_operand.hbm [shape: bf16[3,128,512], index: 1, kind: input, shape index: {}]
  %s2 = inlined_call_operand.hbm [shape: bf16[3,128,512], index: 2, kind: input, shape index: {}]
  %s3 = inlined_call_operand.vmem [shape: f32[3,1,512], index: 3, kind: input, shape index: {}]
  %s4 = inlined_call_operand.vmem [shape: bf16[128,216], index: 4, kind: input, shape index: {}]
  %s5 = inlined_call_operand.vmem [shape: f32[1,216], index: 5, kind: input, shape index: {}]
  %s6 = inlined_call_operand.vmem [shape: f32[8,216], index: 6, kind: output, shape index: {}]
  %s7 = sld [smem:[#allocation0]]
  $region42: #{blstm_forward.1} parent=0
    _
  %s9 = ssub.s32 1, %s7
  %s10 = scalar_select 0, %s9, %s7
  $region1: #{blstm_forward.1} parent=0
    #allocation4 [shape = 'u8[393216]{0}', space=vmem, size = 0x60000, scoped, tag = 'input window, operand 1, single buffered']
    #allocation5 [shape = 's32[1]{0}', space=sflag, size = 0x4, scoped, tag = 'scoped memory for blstm_forward.1']
    #allocation6 [shape = 'u8[393216]{0}', space=vmem, size = 0x60000, scoped, tag = 'input window, operand 2, single buffered']
    #allocation7 [shape = 's32[1]{0}', space=sflag, size = 0x4, scoped, tag = 'scoped memory for blstm_forward.1']
    %11 = vsyncpa [#allocation5], 0
    %12 = vsyncpa [#allocation7], 0
    // Predicated region
    $region2: #{blstm_forward.1} parent=1 // pred_check
      _
    $region3: #{blstm_forward.1} parent=1 // pred_check_branch
      %14 = sbr.rel (0) target = $region5
    $region4: #{blstm_forward.1} parent=1 // pred_region
      _
    $region5: #{blstm_forward.1} parent=1 // pred_fallthru
      _
    // Predicated region
    $region6: #{blstm_forward.1} parent=1 // pred_check
      _
    $region7: #{blstm_forward.1} parent=1 // pred_check_branch
      %16 = sbr.rel (0) target = $region9
    $region8: #{blstm_forward.1} parent=1 // pred_region
      %s18 = ssub.s32 12288, 12288
      %19 = vsyncadd [#allocation5], %s18
      %s20 = sshll.u32 [#allocation4], 4
      %s21 = int_to_ptr.vmem [resolvable:$true] %s20
      %26 = dma.hbm_to_vmem [thread:$0]  %s1, 12288, %s21, [#allocation5], 256, 256, 16
    $region9: #{blstm_forward.1} parent=1 // pred_fallthru
      _
    // Predicated region
    $region10: #{blstm_forward.1} parent=1 // pred_check
      _
    $region11: #{blstm_forward.1} parent=1 // pred_check_branch
      %28 = sbr.rel (0) target = $region13
    $region12: #{blstm_forward.1} parent=1 // pred_region
      %s30 = ssub.s32 12288, 12288
      %31 = vsyncadd [#allocation7], %s30
      %s32 = sshll.u32 [#allocation6], 4
      %s33 = int_to_ptr.vmem [resolvable:$true] %s32
      %38 = dma.hbm_to_vmem [thread:$0]  %s2, 12288, %s33, [#allocation7], 256, 256, 16
    $region13: #{blstm_forward.1} parent=1 // pred_fallthru
      _
    // Predicated region
    $region14: #{blstm_forward.1} parent=1 // pred_check
      _
    $region15: #{blstm_forward.1} parent=1 // pred_check_branch
      %40 = sbr.rel (0) target = $region17
    $region16: #{blstm_forward.1} parent=1 // pred_region
      _
    $region17: #{blstm_forward.1} parent=1 // pred_fallthru
      _
    // Predicated region
    $region18: #{blstm_forward.1} parent=1 // pred_check
      _
    $region19: #{blstm_forward.1} parent=1 // pred_check_branch
      %42 = sbr.rel (0) target = $region21
    $region20: #{blstm_forward.1} parent=1 // pred_region
      _
    $region21: #{blstm_forward.1} parent=1 // pred_fallthru
      _
    // Predicated region
    $region22: #{blstm_forward.1} parent=1 // pred_check
      _
    $region23: #{blstm_forward.1} parent=1 // pred_check_branch
      %44 = sbr.rel (0) target = $region25
    $region24: #{blstm_forward.1} parent=1 // pred_region
      _
    $region25: #{blstm_forward.1} parent=1 // pred_fallthru
      _
    // Predicated region
    $region26: #{blstm_forward.1} parent=1 // pred_check
      _
    $region27: #{blstm_forward.1} parent=1 // pred_check_branch
      %46 = sbr.rel (0) target = $region29
    $region28: #{blstm_forward.1} parent=1 // pred_region
      %47 = dma.done [#allocation5], 12288
    $region29: #{blstm_forward.1} parent=1 // pred_fallthru
      _
    // Predicated region
    $region30: #{blstm_forward.1} parent=1 // pred_check
      _
    $region31: #{blstm_forward.1} parent=1 // pred_check_branch
      %49 = sbr.rel (0) target = $region33
    $region32: #{blstm_forward.1} parent=1 // pred_region
      %50 = dma.done [#allocation7], 12288
    $region33: #{blstm_forward.1} parent=1 // pred_fallthru
      _
    %v52 = vlaneseq
    %v53 = vand.u32 %v52, 127
    %v54 = vadd.s32 %v53, 128
    %v55 = vadd.s32 %v53, 256
    %v56 = vadd.s32 %v53, 384
    %v57 = vand.u32 %v53, 127
    %v58 = vand.u32 %v54, 127
    %v59 = vand.u32 %v55, 127
    %v60 = vand.u32 %v56, 127
    %vm61 = vcmp.lt.s32.totalorder %v57, 20
    %vm62 = vcmp.lt.s32.totalorder %v58, 20
    %vm63 = vcmp.lt.s32.totalorder %v59, 20
    %vm64 = vcmp.lt.s32.totalorder %v60, 20
    %vm65 = vcmp.lt.s32.totalorder %v53, 20
    %v66 = vld [vmem:[#allocation4] sm:$0xff]
    %v67 = vld [vmem:[#allocation4 + $0x8] sm:$0xff]
    %v68 = vld [vmem:[#allocation4 + $0x10] sm:$0xff]
    %v69 = vld [vmem:[#allocation4 + $0x18] sm:$0xff]
    %v70 = vld [vmem:[#allocation4 + $0x20] sm:$0xff]
    %v71 = vld [vmem:[#allocation4 + $0x28] sm:$0xff]
    %v72 = vld [vmem:[#allocation4 + $0x30] sm:$0xff]
    %v73 = vld [vmem:[#allocation4 + $0x38] sm:$0xff]
    %v74 = vld [vmem:[#allocation4 + $0x40] sm:$0xff]
    %v75 = vld [vmem:[#allocation4 + $0x48] sm:$0xff]
    %v76 = vld [vmem:[#allocation4 + $0x50] sm:$0xff]
    %v77 = vld [vmem:[#allocation4 + $0x58] sm:$0xff]
    %v78 = vld [vmem:[#allocation4 + $0x60] sm:$0xff]
    %v79 = vld [vmem:[#allocation4 + $0x68] sm:$0xff]
    %v80 = vld [vmem:[#allocation4 + $0x70] sm:$0xff]
    %v81 = vld [vmem:[#allocation4 + $0x78] sm:$0xff]
    %v82 = vld [vmem:[#allocation4 + $0x80] sm:$0xff]
    %v83 = vld [vmem:[#allocation4 + $0x88] sm:$0xff]
    %v84 = vld [vmem:[#allocation4 + $0x90] sm:$0xff]
    %v85 = vld [vmem:[#allocation4 + $0x98] sm:$0xff]
    %v86 = vld [vmem:[#allocation4 + $0xa0] sm:$0xff]
    %v87 = vld [vmem:[#allocation4 + $0xa8] sm:$0xff]
    %v88 = vld [vmem:[#allocation4 + $0xb0] sm:$0xff]
    %v89 = vld [vmem:[#allocation4 + $0xb8] sm:$0xff]
    %v90 = vld [vmem:[#allocation4 + $0xc0] sm:$0xff]
    %v91 = vld [vmem:[#allocation4 + $0xc8] sm:$0xff]
    %v92 = vld [vmem:[#allocation4 + $0xd0] sm:$0xff]
    %v93 = vld [vmem:[#allocation4 + $0xd8] sm:$0xff]
    %v94 = vld [vmem:[#allocation4 + $0xe0] sm:$0xff]
    %v95 = vld [vmem:[#allocation4 + $0xe8] sm:$0xff]
    %v96 = vld [vmem:[#allocation4 + $0xf0] sm:$0xff]
    %v97 = vld [vmem:[#allocation4 + $0xf8] sm:$0xff]
    %v98 = vld [vmem:[%s3] sm:$0xf]
    %v99 = vld [vmem:[%s0] sm:$0xf]
    %v100 = vld [vmem:[%s0 + $0x4] sm:$0xf]
    %v101 = vld [vmem:[%s0 + $0x8] sm:$0xf]
    %v102 = vld [vmem:[%s0 + $0xc] sm:$0xf]
    %v103 = vld [vmem:[%s0 + $0x10] sm:$0xf]
    %v104 = vld [vmem:[%s0 + $0x14] sm:$0xf]
    %v105 = vld [vmem:[%s0 + $0x18] sm:$0xf]
    %v106 = vld [vmem:[%s0 + $0x1c] sm:$0xf]
    %v108 = vlaneseq
    %v109 = vshrl.u32 %v108, 7
    %v110 = vsub.s32 0, %v109
    %v111 = vrot.slane %v98, %v110
    %v112 = vlaneseq
    %v113 = vshrl.u32 %v112, 7
    %v114 = vsub.s32 1, %v113
    %v115 = vrot.slane %v98, %v114
    %v116 = vlaneseq
    %v117 = vshrl.u32 %v116, 7
    %v118 = vsub.s32 2, %v117
    %v119 = vrot.slane %v98, %v118
    %v120 = vlaneseq
    %v121 = vshrl.u32 %v120, 7
    %v122 = vsub.s32 3, %v121
    %v123 = vrot.slane %v98, %v122
    %v136 = vunpack.c.l.b16 %v99
    %v137 = vunpack.c.l.b16 %v100
    %v138 = vunpack.c.l.b16 %v101
    %v139 = vunpack.c.l.b16 %v102
    %v140 = vunpack.c.l.b16 %v103
    %v141 = vunpack.c.l.b16 %v104
    %v142 = vunpack.c.l.b16 %v105
    %v143 = vunpack.c.l.b16 %v106
    %v144 = vpack.c.b16 %v137, %v136
    %v145 = vpack.c.b16 %v139, %v138
    %v146 = vpack.c.b16 %v141, %v140
    %v147 = vpack.c.b16 %v143, %v142
    %v184 = vunpack.c.l.b16 %v66
    %v185 = vunpack.c.h.b16 %v66
    %v186 = vunpack.c.l.b16 %v67
    %v187 = vunpack.c.h.b16 %v67
    %v188 = vunpack.c.l.b16 %v68
    %v189 = vunpack.c.h.b16 %v68
    %v190 = vunpack.c.l.b16 %v69
    %v191 = vunpack.c.h.b16 %v69
    %v192 = vunpack.c.l.b16 %v70
    %v193 = vunpack.c.h.b16 %v70
    %v194 = vunpack.c.l.b16 %v71
    %v195 = vunpack.c.h.b16 %v71
    %v196 = vunpack.c.l.b16 %v72
    %v197 = vunpack.c.h.b16 %v72
    %v198 = vunpack.c.l.b16 %v73
    %v199 = vunpack.c.h.b16 %v73
    %v200 = vunpack.c.l.b16 %v74
    %v201 = vunpack.c.h.b16 %v74
    %v202 = vunpack.c.l.b16 %v75
    %v203 = vunpack.c.h.b16 %v75
    %v204 = vunpack.c.l.b16 %v76
    %v205 = vunpack.c.h.b16 %v76
    %v206 = vunpack.c.l.b16 %v77
    %v207 = vunpack.c.h.b16 %v77
    %v208 = vunpack.c.l.b16 %v78
    %v209 = vunpack.c.h.b16 %v78
    %v210 = vunpack.c.l.b16 %v79
    %v211 = vunpack.c.h.b16 %v79
    %v212 = vunpack.c.l.b16 %v80
    %v213 = vunpack.c.h.b16 %v80
    %v214 = vunpack.c.l.b16 %v81
    %v215 = vunpack.c.h.b16 %v81
    %v216 = vunpack.c.l.b16 %v82
    %v217 = vunpack.c.h.b16 %v82
    %v218 = vunpack.c.l.b16 %v83
    %v219 = vunpack.c.h.b16 %v83
    %v220 = vunpack.c.l.b16 %v84
    %v221 = vunpack.c.h.b16 %v84
    %v222 = vunpack.c.l.b16 %v85
    %v223 = vunpack.c.h.b16 %v85
    %v224 = vunpack.c.l.b16 %v86
    %v225 = vunpack.c.h.b16 %v86
    %v226 = vunpack.c.l.b16 %v87
    %v227 = vunpack.c.h.b16 %v87
    %v228 = vunpack.c.l.b16 %v88
    %v229 = vunpack.c.h.b16 %v88
    %v230 = vunpack.c.l.b16 %v89
    %v231 = vunpack.c.h.b16 %v89
    %v232 = vunpack.c.l.b16 %v90
    %v233 = vunpack.c.h.b16 %v90
    %v234 = vunpack.c.l.b16 %v91
    %v235 = vunpack.c.h.b16 %v91
    %v236 = vunpack.c.l.b16 %v92
    %v237 = vunpack.c.h.b16 %v92
    %v238 = vunpack.c.l.b16 %v93
    %v239 = vunpack.c.h.b16 %v93
    %v240 = vunpack.c.l.b16 %v94
    %v241 = vunpack.c.h.b16 %v94
    %v242 = vunpack.c.l.b16 %v95
    %v243 = vunpack.c.h.b16 %v95
    %v244 = vunpack.c.l.b16 %v96
    %v245 = vunpack.c.h.b16 %v96
    %v246 = vunpack.c.l.b16 %v97
    %v247 = vunpack.c.h.b16 %v97
    %v248 = vpack.c.b16 %v188, %v184
    %v249 = vpack.c.b16 %v189, %v185
    %v250 = vpack.c.b16 %v190, %v186
    %v251 = vpack.c.b16 %v191, %v187
    %v252 = vpack.c.b16 %v196, %v192
    %v253 = vpack.c.b16 %v197, %v193
    %v254 = vpack.c.b16 %v198, %v194
    %v255 = vpack.c.b16 %v199, %v195
    %v256 = vpack.c.b16 %v204, %v200
    %v257 = vpack.c.b16 %v205, %v201
    %v258 = vpack.c.b16 %v206, %v202
    %v259 = vpack.c.b16 %v207, %v203
    %v260 = vpack.c.b16 %v212, %v208
    %v261 = vpack.c.b16 %v213, %v209
    %v262 = vpack.c.b16 %v214, %v210
    %v263 = vpack.c.b16 %v215, %v211
    %v264 = vpack.c.b16 %v220, %v216
    %v265 = vpack.c.b16 %v221, %v217
    %v266 = vpack.c.b16 %v222, %v218
    %v267 = vpack.c.b16 %v223, %v219
    %v268 = vpack.c.b16 %v228, %v224
    %v269 = vpack.c.b16 %v229, %v225
    %v270 = vpack.c.b16 %v230, %v226
    %v271 = vpack.c.b16 %v231, %v227
    %v272 = vpack.c.b16 %v236, %v232
    %v273 = vpack.c.b16 %v237, %v233
    %v274 = vpack.c.b16 %v238, %v234
    %v275 = vpack.c.b16 %v239, %v235
    %v276 = vpack.c.b16 %v244, %v240
    %v277 = vpack.c.b16 %v245, %v241
    %v278 = vpack.c.b16 %v246, %v242
    %v279 = vpack.c.b16 %v247, %v243
    %312 = vmatprep.subr.bf16.mxu0 %v249
    %313 = vmatpush1.bf16.msra.mxu0 %v248
    %314 = vmatprep.subr.bf16.mxu0 %v253
    %315 = vmatpush1.bf16.msra.mxu0 %v252
    %316 = vmatprep.subr.bf16.mxu0 %v257
    %317 = vmatpush1.bf16.msra.mxu0 %v256
    %318 = vmatprep.subr.bf16.mxu0 %v261
    %319 = vmatpush1.bf16.msra.mxu0 %v260
    %320 = vmatprep.subr.bf16.mxu0 %v265
    %321 = vmatpush1.bf16.msra.mxu0 %v264
    %322 = vmatprep.subr.bf16.mxu0 %v269
    %323 = vmatpush1.bf16.msra.mxu0 %v268
    %324 = vmatprep.subr.bf16.mxu0 %v273
    %325 = vmatpush1.bf16.msra.mxu0 %v272
    %326 = vmatprep.subr.bf16.mxu0 %v277
    %327 = vmatpush1.bf16.msra.mxu0 %v276
    %328 = vmatprep.subr.bf16.mxu0 0
    %329 = vmatpush1.bf16.msra.mxu0 0
    %330 = vmatprep.subr.bf16.mxu0 0
    %331 = vmatpush1.bf16.msra.mxu0 0
    %332 = vmatprep.subr.bf16.mxu0 0
    %333 = vmatpush1.bf16.msra.mxu0 0
    %334 = vmatprep.subr.bf16.mxu0 0
    %335 = vmatpush1.bf16.msra.mxu0 0
    %336 = vmatprep.subr.bf16.mxu0 0
    %337 = vmatpush1.bf16.msra.mxu0 0
    %338 = vmatprep.subr.bf16.mxu0 0
    %339 = vmatpush1.bf16.msra.mxu0 0
    %340 = vmatprep.subr.bf16.mxu0 0
    %341 = vmatpush1.bf16.msra.mxu0 0
    %342 = vmatprep.subr.bf16.mxu0 0
    %343 = vmatpush1.bf16.msra.mxu0 0
    %344 = vmatprep.mubr.bf16.mxu0 0
    %345 = vmatmul.mubr.bf16.gmra.mrb[0].mxu0 %v144
    %v346 = vpop.f32.mrb[0].mxu0
    %v347 = vadd.f32 %v111, %v346
    %v348 = vpop.f32.mrb[0].mxu0
    %v349 = vadd.f32 %v115, %v348
    %v350 = vpop.f32.mrb[0].mxu0
    %v351 = vadd.f32 %v111, %v350
    %v352 = vpop.f32.mrb[0].mxu0
    %v353 = vadd.f32 %v115, %v352
    %354 = vmatprep.mubr.bf16.mxu0 0
    %355 = vmatmul.mubr.bf16.gmra.mrb[0].mxu0 %v145
    %v356 = vpop.f32.mrb[0].mxu0
    %v357 = vadd.f32 %v111, %v356
    %v358 = vpop.f32.mrb[0].mxu0
    %v359 = vadd.f32 %v115, %v358
    %v360 = vpop.f32.mrb[0].mxu0
    %v361 = vadd.f32 %v111, %v360
    %v362 = vpop.f32.mrb[0].mxu0
    %v363 = vadd.f32 %v115, %v362
    %364 = vmatprep.mubr.bf16.mxu0 0
    %365 = vmatmul.mubr.bf16.gmra.mrb[0].mxu0 %v146
    %v366 = vpop.f32.mrb[0].mxu0
    %v367 = vadd.f32 %v111, %v366
    %v368 = vpop.f32.mrb[0].mxu0
    %v369 = vadd.f32 %v115, %v368
    %v370 = vpop.f32.mrb[0].mxu0
    %v371 = vadd.f32 %v111, %v370
    %v372 = vpop.f32.mrb[0].mxu0
    %v373 = vadd.f32 %v115, %v372
    %374 = vmatprep.mubr.bf16.mxu0 0
    %375 = vmatmul.mubr.bf16.gmra.mrb[0].mxu0 %v147
    %v376 = vpop.f32.mrb[0].mxu0
    %v377 = vadd.f32 %v111, %v376
    %v378 = vpop.f32.mrb[0].mxu0
    %v379 = vadd.f32 %v115, %v378
    %v380 = vpop.f32.mrb[0].mxu0
    %v381 = vadd.f32 %v111, %v380
    %v382 = vpop.f32.mrb[0].mxu0
    %v383 = vadd.f32 %v115, %v382
    %384 = vdwg.mxu0
    %385 = vmatprep.subr.bf16.mxu0 %v251
    %386 = vmatpush1.bf16.msra.mxu0 %v250
    %387 = vmatprep.subr.bf16.mxu0 %v255
    %388 = vmatpush1.bf16.msra.mxu0 %v254
    %389 = vmatprep.subr.bf16.mxu0 %v259
    %390 = vmatpush1.bf16.msra.mxu0 %v258
    %391 = vmatprep.subr.bf16.mxu0 %v263
    %392 = vmatpush1.bf16.msra.mxu0 %v262
    %393 = vmatprep.subr.bf16.mxu0 %v267
    %394 = vmatpush1.bf16.msra.mxu0 %v266
    %395 = vmatprep.subr.bf16.mxu0 %v271
    %396 = vmatpush1.bf16.msra.mxu0 %v270
    %397 = vmatprep.subr.bf16.mxu0 %v275
    %398 = vmatpush1.bf16.msra.mxu0 %v274
    %399 = vmatprep.subr.bf16.mxu0 %v279
    %400 = vmatpush1.bf16.msra.mxu0 %v278
    %401 = vmatprep.subr.bf16.mxu0 0
    %402 = vmatpush1.bf16.msra.mxu0 0
    %403 = vmatprep.subr.bf16.mxu0 0
    %404 = vmatpush1.bf16.msra.mxu0 0
    %405 = vmatprep.subr.bf16.mxu0 0
    %406 = vmatpush1.bf16.msra.mxu0 0
    %407 = vmatprep.subr.bf16.mxu0 0
    %408 = vmatpush1.bf16.msra.mxu0 0
    %409 = vmatprep.subr.bf16.mxu0 0
    %410 = vmatpush1.bf16.msra.mxu0 0
    %411 = vmatprep.subr.bf16.mxu0 0
    %412 = vmatpush1.bf16.msra.mxu0 0
    %413 = vmatprep.subr.bf16.mxu0 0
    %414 = vmatpush1.bf16.msra.mxu0 0
    %415 = vmatprep.subr.bf16.mxu0 0
    %416 = vmatpush1.bf16.msra.mxu0 0
    %417 = vmatprep.mubr.bf16.mxu0 0
    %418 = vmatmul.mubr.bf16.gmra.mrb[0].mxu0 %v144
    %v419 = vpop.f32.mrb[0].mxu0
    %v420 = vadd.f32 %v119, %v419
    %v421 = vpop.f32.mrb[0].mxu0
    %v422 = vadd.f32 %v123, %v421
    %v423 = vpop.f32.mrb[0].mxu0
    %v424 = vadd.f32 %v119, %v423
    %v425 = vpop.f32.mrb[0].mxu0
    %v426 = vadd.f32 %v123, %v425
    %427 = vmatprep.mubr.bf16.mxu0 0
    %428 = vmatmul.mubr.bf16.gmra.mrb[0].mxu0 %v145
    %v429 = vpop.f32.mrb[0].mxu0
    %v430 = vadd.f32 %v119, %v429
    %v431 = vpop.f32.mrb[0].mxu0
    %v432 = vadd.f32 %v123, %v431
    %v433 = vpop.f32.mrb[0].mxu0
    %v434 = vadd.f32 %v119, %v433
    %v435 = vpop.f32.mrb[0].mxu0
    %v436 = vadd.f32 %v123, %v435
    %437 = vmatprep.mubr.bf16.mxu0 0
    %438 = vmatmul.mubr.bf16.gmra.mrb[0].mxu0 %v146
    %v439 = vpop.f32.mrb[0].mxu0
    %v440 = vadd.f32 %v119, %v439
    %v441 = vpop.f32.mrb[0].mxu0
    %v442 = vadd.f32 %v123, %v441
    %v443 = vpop.f32.mrb[0].mxu0
    %v444 = vadd.f32 %v119, %v443
    %v445 = vpop.f32.mrb[0].mxu0
    %v446 = vadd.f32 %v123, %v445
    %447 = vmatprep.mubr.bf16.mxu0 0
    %448 = vmatmul.mubr.bf16.gmra.mrb[0].mxu0 %v147
    %v449 = vpop.f32.mrb[0].mxu0
    %v450 = vadd.f32 %v119, %v449
    %v451 = vpop.f32.mrb[0].mxu0
    %v452 = vadd.f32 %v123, %v451
    %v453 = vpop.f32.mrb[0].mxu0
    %v454 = vadd.f32 %v119, %v453
    %v455 = vpop.f32.mrb[0].mxu0
    %v456 = vadd.f32 %v123, %v455
    %457 = vdwg.mxu0
    %458 = vst [vmem:[#allocation2] sm:$0xff] %v347
    %459 = vst [vmem:[#allocation2 + $0x8] sm:$0xff] %v349
    %460 = vst [vmem:[#allocation2 + $0x10] sm:$0xff] %v420
    %461 = vst [vmem:[#allocation2 + $0x18] sm:$0xff] %v422
    %462 = vst [vmem:[#allocation2 + $0x20] sm:$0xff] %v351
    %463 = vst [vmem:[#allocation2 + $0x28] sm:$0xff] %v353
    %464 = vst [vmem:[#allocation2 + $0x30] sm:$0xff] %v424
    %465 = vst [vmem:[#allocation2 + $0x38] sm:$0xff] %v426
    %466 = vst [vmem:[#allocation2 + $0x40] sm:$0xff] %v357
    %467 = vst [vmem:[#allocation2 + $0x48] sm:$0xff] %v359
    %468 = vst [vmem:[#allocation2 + $0x50] sm:$0xff] %v430
    %469 = vst [vmem:[#allocation2 + $0x58] sm:$0xff] %v432
    %470 = vst [vmem:[#allocation2 + $0x60] sm:$0xff] %v361
    %471 = vst [vmem:[#allocation2 + $0x68] sm:$0xff] %v363
    %472 = vst [vmem:[#allocation2 + $0x70] sm:$0xff] %v434
    %473 = vst [vmem:[#allocation2 + $0x78] sm:$0xff] %v436
    %474 = vst [vmem:[#allocation2 + $0x80] sm:$0xff] %v367
    %475 = vst [vmem:[#allocation2 + $0x88] sm:$0xff] %v369
    %476 = vst [vmem:[#allocation2 + $0x90] sm:$0xff] %v440
    %477 = vst [vmem:[#allocation2 + $0x98] sm:$0xff] %v442
    %478 = vst [vmem:[#allocation2 + $0xa0] sm:$0xff] %v371
    %479 = vst [vmem:[#allocation2 + $0xa8] sm:$0xff] %v373
    %480 = vst [vmem:[#allocation2 + $0xb0] sm:$0xff] %v444
    %481 = vst [vmem:[#allocation2 + $0xb8] sm:$0xff] %v446
    %482 = vst [vmem:[#allocation2 + $0xc0] sm:$0xff] %v377
    %483 = vst [vmem:[#allocation2 + $0xc8] sm:$0xff] %v379
    %484 = vst [vmem:[#allocation2 + $0xd0] sm:$0xff] %v450
    %485 = vst [vmem:[#allocation2 + $0xd8] sm:$0xff] %v452
    %486 = vst [vmem:[#allocation2 + $0xe0] sm:$0xff] %v381
    %487 = vst [vmem:[#allocation2 + $0xe8] sm:$0xff] %v383
    %488 = vst [vmem:[#allocation2 + $0xf0] sm:$0xff] %v454
    %489 = vst [vmem:[#allocation2 + $0xf8] sm:$0xff] %v456
    %v490 = vld [vmem:[#allocation6] sm:$0xff]
    %v491 = vld [vmem:[#allocation6 + $0x8] sm:$0xff]
    %v492 = vld [vmem:[#allocation6 + $0x10] sm:$0xff]
    %v493 = vld [vmem:[#allocation6 + $0x18] sm:$0xff]
    %v494 = vld [vmem:[#allocation6 + $0x20] sm:$0xff]
    %v495 = vld [vmem:[#allocation6 + $0x28] sm:$0xff]
    %v496 = vld [vmem:[#allocation6 + $0x30] sm:$0xff]
    %v497 = vld [vmem:[#allocation6 + $0x38] sm:$0xff]
    %v498 = vld [vmem:[#allocation6 + $0x40] sm:$0xff]
    %v499 = vld [vmem:[#allocation6 + $0x48] sm:$0xff]
    %v500 = vld [vmem:[#allocation6 + $0x50] sm:$0xff]
    %v501 = vld [vmem:[#allocation6 + $0x58] sm:$0xff]
    %v502 = vld [vmem:[#allocation6 + $0x60] sm:$0xff]
    %v503 = vld [vmem:[#allocation6 + $0x68] sm:$0xff]
    %v504 = vld [vmem:[#allocation6 + $0x70] sm:$0xff]
    %v505 = vld [vmem:[#allocation6 + $0x78] sm:$0xff]
    %v506 = vld [vmem:[#allocation6 + $0x80] sm:$0xff]
    %v507 = vld [vmem:[#allocation6 + $0x88] sm:$0xff]
    %v508 = vld [vmem:[#allocation6 + $0x90] sm:$0xff]
    %v509 = vld [vmem:[#allocation6 + $0x98] sm:$0xff]
    %v510 = vld [vmem:[#allocation6 + $0xa0] sm:$0xff]
    %v511 = vld [vmem:[#allocation6 + $0xa8] sm:$0xff]
    %v512 = vld [vmem:[#allocation6 + $0xb0] sm:$0xff]
    %v513 = vld [vmem:[#allocation6 + $0xb8] sm:$0xff]
    %v514 = vld [vmem:[#allocation6 + $0xc0] sm:$0xff]
    %v515 = vld [vmem:[#allocation6 + $0xc8] sm:$0xff]
    %v516 = vld [vmem:[#allocation6 + $0xd0] sm:$0xff]
    %v517 = vld [vmem:[#allocation6 + $0xd8] sm:$0xff]
    %v518 = vld [vmem:[#allocation6 + $0xe0] sm:$0xff]
    %v519 = vld [vmem:[#allocation6 + $0xe8] sm:$0xff]
    %v520 = vld [vmem:[#allocation6 + $0xf0] sm:$0xff]
    %v521 = vld [vmem:[#allocation6 + $0xf8] sm:$0xff]
    %v522 = vld [vmem:[#allocation2] sm:$0xff]
    %v523 = vld [vmem:[#allocation2 + $0x8] sm:$0xff]
    %v524 = vld [vmem:[#allocation2 + $0x10] sm:$0xff]
    %v525 = vld [vmem:[#allocation2 + $0x18] sm:$0xff]
    %v526 = vld [vmem:[#allocation2 + $0xe0] sm:$0xff]
    %v527 = vld [vmem:[#allocation2 + $0xe8] sm:$0xff]
    %v528 = vld [vmem:[#allocation2 + $0xf0] sm:$0xff]
    %v529 = vld [vmem:[#allocation2 + $0xf8] sm:$0xff]
    %v530 = vsel %vm61, 1, 0
    %v531 = vsel %vm62, 1, 0
    %v532 = vsel %vm63, 1, 0
    %v533 = vsel %vm64, 1, 0
    %vm534 = vcmp.eq.s32.totalorder %v530, 1
    %vm535 = vcmp.eq.s32.totalorder %v531, 1
    %vm536 = vcmp.eq.s32.totalorder %v532, 1
    %vm537 = vcmp.eq.s32.totalorder %v533, 1
    %v538 = vsel %vm534, %v522, %v526
    %v539 = vsel %vm535, %v523, %v527
    %v540 = vsel %vm536, %v524, %v528
    %v541 = vsel %vm537, %v525, %v529
    %v574 = vunpack.c.l.b16 %v490
    %v575 = vunpack.c.h.b16 %v490
    %v576 = vunpack.c.l.b16 %v491
    %v577 = vunpack.c.h.b16 %v491
    %v578 = vunpack.c.l.b16 %v492
    %v579 = vunpack.c.h.b16 %v492
    %v580 = vunpack.c.l.b16 %v493
    %v581 = vunpack.c.h.b16 %v493
    %v582 = vunpack.c.l.b16 %v494
    %v583 = vunpack.c.h.b16 %v494
    %v584 = vunpack.c.l.b16 %v495
    %v585 = vunpack.c.h.b16 %v495
    %v586 = vunpack.c.l.b16 %v496
    %v587 = vunpack.c.h.b16 %v496
    %v588 = vunpack.c.l.b16 %v497
    %v589 = vunpack.c.h.b16 %v497
    %v590 = vunpack.c.l.b16 %v498
    %v591 = vunpack.c.h.b16 %v498
    %v592 = vunpack.c.l.b16 %v499
    %v593 = vunpack.c.h.b16 %v499
    %v594 = vunpack.c.l.b16 %v500
    %v595 = vunpack.c.h.b16 %v500
    %v596 = vunpack.c.l.b16 %v501
    %v597 = vunpack.c.h.b16 %v501
    %v598 = vunpack.c.l.b16 %v502
    %v599 = vunpack.c.h.b16 %v502
    %v600 = vunpack.c.l.b16 %v503
    %v601 = vunpack.c.h.b16 %v503
    %v602 = vunpack.c.l.b16 %v504
    %v603 = vunpack.c.h.b16 %v504
    %v604 = vunpack.c.l.b16 %v505
    %v605 = vunpack.c.h.b16 %v505
    %v606 = vunpack.c.l.b16 %v506
    %v607 = vunpack.c.h.b16 %v506
    %v608 = vunpack.c.l.b16 %v507
    %v609 = vunpack.c.h.b16 %v507
    %v610 = vunpack.c.l.b16 %v508
    %v611 = vunpack.c.h.b16 %v508
    %v612 = vunpack.c.l.b16 %v509
    %v613 = vunpack.c.h.b16 %v509
    %v614 = vunpack.c.l.b16 %v510
    %v615 = vunpack.c.h.b16 %v510
    %v616 = vunpack.c.l.b16 %v511
    %v617 = vunpack.c.h.b16 %v511
    %v618 = vunpack.c.l.b16 %v512
    %v619 = vunpack.c.h.b16 %v512
    %v620 = vunpack.c.l.b16 %v513
    %v621 = vunpack.c.h.b16 %v513
    %v622 = vunpack.c.l.b16 %v514
    %v623 = vunpack.c.h.b16 %v514
    %v624 = vunpack.c.l.b16 %v515
    %v625 = vunpack.c.h.b16 %v515
    %v626 = vunpack.c.l.b16 %v516
    %v627 = vunpack.c.h.b16 %v516
    %v628 = vunpack.c.l.b16 %v517
    %v629 = vunpack.c.h.b16 %v517
    %v630 = vunpack.c.l.b16 %v518
    %v631 = vunpack.c.h.b16 %v518
    %v632 = vunpack.c.l.b16 %v519
    %v633 = vunpack.c.h.b16 %v519
    %v634 = vunpack.c.l.b16 %v520
    %v635 = vunpack.c.h.b16 %v520
    %v636 = vunpack.c.l.b16 %v521
    %v637 = vunpack.c.h.b16 %v521
    %v638 = vpack.c.b16 %v578, %v574
    %v639 = vpack.c.b16 %v579, %v575
    %v640 = vpack.c.b16 %v580, %v576
    %v641 = vpack.c.b16 %v581, %v577
    %v642 = vpack.c.b16 %v586, %v582
    %v643 = vpack.c.b16 %v587, %v583
    %v644 = vpack.c.b16 %v588, %v584
    %v645 = vpack.c.b16 %v589, %v585
    %v646 = vpack.c.b16 %v594, %v590
    %v647 = vpack.c.b16 %v595, %v591
    %v648 = vpack.c.b16 %v596, %v592
    %v649 = vpack.c.b16 %v597, %v593
    %v650 = vpack.c.b16 %v602, %v598
    %v651 = vpack.c.b16 %v603, %v599
    %v652 = vpack.c.b16 %v604, %v600
    %v653 = vpack.c.b16 %v605, %v601
    %v654 = vpack.c.b16 %v610, %v606
    %v655 = vpack.c.b16 %v611, %v607
    %v656 = vpack.c.b16 %v612, %v608
    %v657 = vpack.c.b16 %v613, %v609
    %v658 = vpack.c.b16 %v618, %v614
    %v659 = vpack.c.b16 %v619, %v615
    %v660 = vpack.c.b16 %v620, %v616
    %v661 = vpack.c.b16 %v621, %v617
    %v662 = vpack.c.b16 %v626, %v622
    %v663 = vpack.c.b16 %v627, %v623
    %v664 = vpack.c.b16 %v628, %v624
    %v665 = vpack.c.b16 %v629, %v625
    %v666 = vpack.c.b16 %v634, %v630
    %v667 = vpack.c.b16 %v635, %v631
    %v668 = vpack.c.b16 %v636, %v632
    %v669 = vpack.c.b16 %v637, %v633
    %702 = vmatprep.subr.bf16.mxu0 %v639
    %703 = vmatpush1.bf16.msra.mxu0 %v638
    %704 = vmatprep.subr.bf16.mxu0 %v643
    %705 = vmatpush1.bf16.msra.mxu0 %v642
    %706 = vmatprep.subr.bf16.mxu0 %v647
    %707 = vmatpush1.bf16.msra.mxu0 %v646
    %708 = vmatprep.subr.bf16.mxu0 %v651
    %709 = vmatpush1.bf16.msra.mxu0 %v650
    %710 = vmatprep.subr.bf16.mxu0 %v655
    %711 = vmatpush1.bf16.msra.mxu0 %v654
    %712 = vmatprep.subr.bf16.mxu0 %v659
    %713 = vmatpush1.bf16.msra.mxu0 %v658
    %714 = vmatprep.subr.bf16.mxu0 %v663
    %715 = vmatpush1.bf16.msra.mxu0 %v662
    %716 = vmatprep.subr.bf16.mxu0 %v667
    %717 = vmatpush1.bf16.msra.mxu0 %v666
    %718 = vmatprep.subr.bf16.mxu0 0
    %719 = vmatpush1.bf16.msra.mxu0 0
    %720 = vmatprep.subr.bf16.mxu0 0
    %721 = vmatpush1.bf16.msra.mxu0 0
    %722 = vmatprep.subr.bf16.mxu0 0
    %723 = vmatpush1.bf16.msra.mxu0 0
    %724 = vmatprep.subr.bf16.mxu0 0
    %725 = vmatpush1.bf16.msra.mxu0 0
    %726 = vmatprep.subr.bf16.mxu0 0
    %727 = vmatpush1.bf16.msra.mxu0 0
    %728 = vmatprep.subr.bf16.mxu0 0
    %729 = vmatpush1.bf16.msra.mxu0 0
    %730 = vmatprep.subr.bf16.mxu0 0
    %731 = vmatpush1.bf16.msra.mxu0 0
    %732 = vmatprep.subr.bf16.mxu0 0
    %733 = vmatpush1.bf16.msra.mxu0 0
    %734 = vmatprep.mubr.bf16.mxu0 0
    %735 = vmatmul.mubr.bf16.gmra.mrb[0].mxu0 0
    %v736 = vpop.f32.mrb[0].mxu0
    %v737 = vadd.f32 0.0, %v736
    %v738 = vpop.f32.mrb[0].mxu0
    %v739 = vadd.f32 0.0, %v738
    %v740 = vpop.f32.mrb[0].mxu0
    %v741 = vpop.f32.mrb[0].mxu0
    %742 = vdwg.mxu0
    %743 = vmatprep.subr.bf16.mxu0 %v641
    %744 = vmatpush1.bf16.msra.mxu0 %v640
    %745 = vmatprep.subr.bf16.mxu0 %v645
    %746 = vmatpush1.bf16.msra.mxu0 %v644
    %747 = vmatprep.subr.bf16.mxu0 %v649
    %748 = vmatpush1.bf16.msra.mxu0 %v648
    %749 = vmatprep.subr.bf16.mxu0 %v653
    %750 = vmatpush1.bf16.msra.mxu0 %v652
    %751 = vmatprep.subr.bf16.mxu0 %v657
    %752 = vmatpush1.bf16.msra.mxu0 %v656
    %753 = vmatprep.subr.bf16.mxu0 %v661
    %754 = vmatpush1.bf16.msra.mxu0 %v660
    %755 = vmatprep.subr.bf16.mxu0 %v665
    %756 = vmatpush1.bf16.msra.mxu0 %v664
    %757 = vmatprep.subr.bf16.mxu0 %v669
    %758 = vmatpush1.bf16.msra.mxu0 %v668
    %759 = vmatprep.subr.bf16.mxu0 0
    %760 = vmatpush1.bf16.msra.mxu0 0
    %761 = vmatprep.subr.bf16.mxu0 0
    %762 = vmatpush1.bf16.msra.mxu0 0
    %763 = vmatprep.subr.bf16.mxu0 0
    %764 = vmatpush1.bf16.msra.mxu0 0
    %765 = vmatprep.subr.bf16.mxu0 0
    %766 = vmatpush1.bf16.msra.mxu0 0
    %767 = vmatprep.subr.bf16.mxu0 0
    %768 = vmatpush1.bf16.msra.mxu0 0
    %769 = vmatprep.subr.bf16.mxu0 0
    %770 = vmatpush1.bf16.msra.mxu0 0
    %771 = vmatprep.subr.bf16.mxu0 0
    %772 = vmatpush1.bf16.msra.mxu0 0
    %773 = vmatprep.subr.bf16.mxu0 0
    %774 = vmatpush1.bf16.msra.mxu0 0
    %775 = vmatprep.mubr.bf16.mxu0 0
    %776 = vmatmul.mubr.bf16.gmra.mrb[0].mxu0 0
    %v777 = vpop.f32.mrb[0].mxu0
    %v778 = vadd.f32 0.0, %v777
    %v779 = vpop.f32.mrb[0].mxu0
    %v780 = vadd.f32 0.0, %v779
    %v781 = vpop.f32.mrb[0].mxu0
    %v782 = vpop.f32.mrb[0].mxu0
    %783 = vdwg.mxu0
    %v784 = vadd.f32 %v538, %v737
    %v785 = vadd.f32 %v539, %v739
    %v786 = vadd.f32 %v540, %v778
    %v787 = vadd.f32 %v541, %v780
    %v788 = vxor.u32 %v784, 2147483648
    %v789 = vmul.f32 %v788, 1.442695
    %v790 = vpow.pop %v789
    %v791 = vadd.f32 %v790, 1.0
    %v792 = vrcp.pop %v791
    %v793 = vmul.f32 1.0, %v792
    %v794 = vxor.u32 %v785, 2147483648
    %v795 = vmul.f32 %v794, 1.442695
    %v796 = vpow.pop %v795
    %v797 = vadd.f32 %v796, 1.0
    %v798 = vrcp.pop %v797
    %v799 = vmul.f32 1.0, %v798
    %v800 = vtanh.pop %v786
    %v801 = vxor.u32 %v787, 2147483648
    %v802 = vmul.f32 %v801, 1.442695
    %v803 = vpow.pop %v802
    %v804 = vadd.f32 %v803, 1.0
    %v805 = vrcp.pop %v804
    %v806 = vmul.f32 1.0, %v805
    %v807 = vmul.f32 %v799, 0.0
    %v808 = vmul.f32 %v793, %v800
    %v809 = vadd.f32 %v807, %v808
    %v810 = vtanh.pop %v809
    %v811 = vmul.f32 %v806, %v810
    %812 = vst [vmem:[#allocation3] sm:$0xff] %v811
    %v813 = vld [vmem:[#allocation2 + $0x20] sm:$0xff]
    %v814 = vld [vmem:[#allocation2 + $0x28] sm:$0xff]
    %v815 = vld [vmem:[#allocation2 + $0x30] sm:$0xff]
    %v816 = vld [vmem:[#allocation2 + $0x38] sm:$0xff]
    %v817 = vld [vmem:[#allocation2 + $0xc0] sm:$0xff]
    %v818 = vld [vmem:[#allocation2 + $0xc8] sm:$0xff]
    %v819 = vld [vmem:[#allocation2 + $0xd0] sm:$0xff]
    %v820 = vld [vmem:[#allocation2 + $0xd8] sm:$0xff]
    %v821 = vsel %vm534, %v813, %v817
    %v822 = vsel %vm535, %v814, %v818
    %v823 = vsel %vm536, %v815, %v819
    %v824 = vsel %vm537, %v816, %v820
    %v825 = vpack.c.bf16 %v811, %v811
    %826 = vmatprep.subr.bf16.mxu0 %v639
    %827 = vmatpush1.bf16.msra.mxu0 %v638
    %828 = vmatprep.subr.bf16.mxu0 %v643
    %829 = vmatpush1.bf16.msra.mxu0 %v642
    %830 = vmatprep.subr.bf16.mxu0 %v647
    %831 = vmatpush1.bf16.msra.mxu0 %v646
    %832 = vmatprep.subr.bf16.mxu0 %v651
    %833 = vmatpush1.bf16.msra.mxu0 %v650
    %834 = vmatprep.subr.bf16.mxu0 %v655
    %835 = vmatpush1.bf16.msra.mxu0 %v654
    %836 = vmatprep.subr.bf16.mxu0 %v659
    %837 = vmatpush1.bf16.msra.mxu0 %v658
    %838 = vmatprep.subr.bf16.mxu0 %v663
    %839 = vmatpush1.bf16.msra.mxu0 %v662
    %840 = vmatprep.subr.bf16.mxu0 %v667
    %841 = vmatpush1.bf16.msra.mxu0 %v666
    %842 = vmatprep.subr.bf16.mxu0 0
    %843 = vmatpush1.bf16.msra.mxu0 0
    %844 = vmatprep.subr.bf16.mxu0 0
    %845 = vmatpush1.bf16.msra.mxu0 0
    %846 = vmatprep.subr.bf16.mxu0 0
    %847 = vmatpush1.bf16.msra.mxu0 0
    %848 = vmatprep.subr.bf16.mxu0 0
    %849 = vmatpush1.bf16.msra.mxu0 0
    %850 = vmatprep.subr.bf16.mxu0 0
    %851 = vmatpush1.bf16.msra.mxu0 0
    %852 = vmatprep.subr.bf16.mxu0 0
    %853 = vmatpush1.bf16.msra.mxu0 0
    %854 = vmatprep.subr.bf16.mxu0 0
    %855 = vmatpush1.bf16.msra.mxu0 0
    %856 = vmatprep.subr.bf16.mxu0 0
    %857 = vmatpush1.bf16.msra.mxu0 0
    %858 = vmatprep.mubr.bf16.mxu0 0
    %859 = vmatmul.mubr.bf16.gmra.mrb[0].mxu0 %v825
    %v860 = vpop.f32.mrb[0].mxu0
    %v861 = vadd.f32 0.0, %v860
    %v862 = vpop.f32.mrb[0].mxu0
    %v863 = vadd.f32 0.0, %v862
    %v864 = vpop.f32.mrb[0].mxu0
    %v865 = vpop.f32.mrb[0].mxu0
    %866 = vdwg.mxu0
    %867 = vmatprep.subr.bf16.mxu0 %v641
    %868 = vmatpush1.bf16.msra.mxu0 %v640
    %869 = vmatprep.subr.bf16.mxu0 %v645
    %870 = vmatpush1.bf16.msra.mxu0 %v644
    %871 = vmatprep.subr.bf16.mxu0 %v649
    %872 = vmatpush1.bf16.msra.mxu0 %v648
    %873 = vmatprep.subr.bf16.mxu0 %v653
    %874 = vmatpush1.bf16.msra.mxu0 %v652
    %875 = vmatprep.subr.bf16.mxu0 %v657
    %876 = vmatpush1.bf16.msra.mxu0 %v656
    %877 = vmatprep.subr.bf16.mxu0 %v661
    %878 = vmatpush1.bf16.msra.mxu0 %v660
    %879 = vmatprep.subr.bf16.mxu0 %v665
    %880 = vmatpush1.bf16.msra.mxu0 %v664
    %881 = vmatprep.subr.bf16.mxu0 %v669
    %882 = vmatpush1.bf16.msra.mxu0 %v668
    %883 = vmatprep.subr.bf16.mxu0 0
    %884 = vmatpush1.bf16.msra.mxu0 0
    %885 = vmatprep.subr.bf16.mxu0 0
    %886 = vmatpush1.bf16.msra.mxu0 0
    %887 = vmatprep.subr.bf16.mxu0 0
    %888 = vmatpush1.bf16.msra.mxu0 0
    %889 = vmatprep.subr.bf16.mxu0 0
    %890 = vmatpush1.bf16.msra.mxu0 0
    %891 = vmatprep.subr.bf16.mxu0 0
    %892 = vmatpush1.bf16.msra.mxu0 0
    %893 = vmatprep.subr.bf16.mxu0 0
    %894 = vmatpush1.bf16.msra.mxu0 0
    %895 = vmatprep.subr.bf16.mxu0 0
    %896 = vmatpush1.bf16.msra.mxu0 0
    %897 = vmatprep.subr.bf16.mxu0 0
    %898 = vmatpush1.bf16.msra.mxu0 0
    %899 = vmatprep.mubr.bf16.mxu0 0
    %900 = vmatmul.mubr.bf16.gmra.mrb[0].mxu0 %v825
    %v901 = vpop.f32.mrb[0].mxu0
    %v902 = vadd.f32 0.0, %v901
    %v903 = vpop.f32.mrb[0].mxu0
    %v904 = vadd.f32 0.0, %v903
    %v905 = vpop.f32.mrb[0].mxu0
    %v906 = vpop.f32.mrb[0].mxu0
    %907 = vdwg.mxu0
    %v908 = vadd.f32 %v821, %v861
    %v909 = vadd.f32 %v822, %v863
    %v910 = vadd.f32 %v823, %v902
    %v911 = vadd.f32 %v824, %v904
    %v912 = vxor.u32 %v908, 2147483648
    %v913 = vmul.f32 %v912, 1.442695
    %v914 = vpow.pop %v913
    %v915 = vadd.f32 %v914, 1.0
    %v916 = vrcp.pop %v915
    %v917 = vmul.f32 1.0, %v916
    %v918 = vxor.u32 %v909, 2147483648
    %v919 = vmul.f32 %v918, 1.442695
    %v920 = vpow.pop %v919
    %v921 = vadd.f32 %v920, 1.0
    %v922 = vrcp.pop %v921
    %v923 = vmul.f32 1.0, %v922
    %v924 = vtanh.pop %v910
    %v925 = vxor.u32 %v911, 2147483648
    %v926 = vmul.f32 %v925, 1.442695
    %v927 = vpow.pop %v926
    %v928 = vadd.f32 %v927, 1.0
    %v929 = vrcp.pop %v928
    %v930 = vmul.f32 1.0, %v929
    %v931 = vmul.f32 %v923, %v809
    %v932 = vmul.f32 %v917, %v924
    %v933 = vadd.f32 %v931, %v932
    %v934 = vtanh.pop %v933
    %v935 = vmul.f32 %v930, %v934
    %936 = vst [vmem:[#allocation3 + $0x8] sm:$0xff] %v935
    %v937 = vld [vmem:[#allocation2 + $0x40] sm:$0xff]
    %v938 = vld [vmem:[#allocation2 + $0x48] sm:$0xff]
    %v939 = vld [vmem:[#allocation2 + $0x50] sm:$0xff]
    %v940 = vld [vmem:[#allocation2 + $0x58] sm:$0xff]
    %v941 = vld [vmem:[#allocation2 + $0xa0] sm:$0xff]
    %v942 = vld [vmem:[#allocation2 + $0xa8] sm:$0xff]
    %v943 = vld [vmem:[#allocation2 + $0xb0] sm:$0xff]
    %v944 = vld [vmem:[#allocation2 + $0xb8] sm:$0xff]
    %v945 = vsel %vm534, %v937, %v941
    %v946 = vsel %vm535, %v938, %v942
    %v947 = vsel %vm536, %v939, %v943
    %v948 = vsel %vm537, %v940, %v944
    %v949 = vpack.c.bf16 %v935, %v935
    %950 = vmatprep.subr.bf16.mxu0 %v639
    %951 = vmatpush1.bf16.msra.mxu0 %v638
    %952 = vmatprep.subr.bf16.mxu0 %v643
    %953 = vmatpush1.bf16.msra.mxu0 %v642
    %954 = vmatprep.subr.bf16.mxu0 %v647
    %955 = vmatpush1.bf16.msra.mxu0 %v646
    %956 = vmatprep.subr.bf16.mxu0 %v651
    %957 = vmatpush1.bf16.msra.mxu0 %v650
    %958 = vmatprep.subr.bf16.mxu0 %v655
    %959 = vmatpush1.bf16.msra.mxu0 %v654
    %960 = vmatprep.subr.bf16.mxu0 %v659
    %961 = vmatpush1.bf16.msra.mxu0 %v658
    %962 = vmatprep.subr.bf16.mxu0 %v663
    %963 = vmatpush1.bf16.msra.mxu0 %v662
    %964 = vmatprep.subr.bf16.mxu0 %v667
    %965 = vmatpush1.bf16.msra.mxu0 %v666
    %966 = vmatprep.subr.bf16.mxu0 0
    %967 = vmatpush1.bf16.msra.mxu0 0
    %968 = vmatprep.subr.bf16.mxu0 0
    %969 = vmatpush1.bf16.msra.mxu0 0
    %970 = vmatprep.subr.bf16.mxu0 0
    %971 = vmatpush1.bf16.msra.mxu0 0
    %972 = vmatprep.subr.bf16.mxu0 0
    %973 = vmatpush1.bf16.msra.mxu0 0
    %974 = vmatprep.subr.bf16.mxu0 0
    %975 = vmatpush1.bf16.msra.mxu0 0
    %976 = vmatprep.subr.bf16.mxu0 0
    %977 = vmatpush1.bf16.msra.mxu0 0
    %978 = vmatprep.subr.bf16.mxu0 0
    %979 = vmatpush1.bf16.msra.mxu0 0
    %980 = vmatprep.subr.bf16.mxu0 0
    %981 = vmatpush1.bf16.msra.mxu0 0
    %982 = vmatprep.mubr.bf16.mxu0 0
    %983 = vmatmul.mubr.bf16.gmra.mrb[0].mxu0 %v949
    %v984 = vpop.f32.mrb[0].mxu0
    %v985 = vadd.f32 0.0, %v984
    %v986 = vpop.f32.mrb[0].mxu0
    %v987 = vadd.f32 0.0, %v986
    %v988 = vpop.f32.mrb[0].mxu0
    %v989 = vpop.f32.mrb[0].mxu0
    %990 = vdwg.mxu0
    %991 = vmatprep.subr.bf16.mxu0 %v641
    %992 = vmatpush1.bf16.msra.mxu0 %v640
    %993 = vmatprep.subr.bf16.mxu0 %v645
    %994 = vmatpush1.bf16.msra.mxu0 %v644
    %995 = vmatprep.subr.bf16.mxu0 %v649
    %996 = vmatpush1.bf16.msra.mxu0 %v648
    %997 = vmatprep.subr.bf16.mxu0 %v653
    %998 = vmatpush1.bf16.msra.mxu0 %v652
    %999 = vmatprep.subr.bf16.mxu0 %v657
    %1000 = vmatpush1.bf16.msra.mxu0 %v656
    %1001 = vmatprep.subr.bf16.mxu0 %v661
    %1002 = vmatpush1.bf16.msra.mxu0 %v660
    %1003 = vmatprep.subr.bf16.mxu0 %v665
    %1004 = vmatpush1.bf16.msra.mxu0 %v664
    %1005 = vmatprep.subr.bf16.mxu0 %v669
    %1006 = vmatpush1.bf16.msra.mxu0 %v668
    %1007 = vmatprep.subr.bf16.mxu0 0
    %1008 = vmatpush1.bf16.msra.mxu0 0
    %1009 = vmatprep.subr.bf16.mxu0 0
    %1010 = vmatpush1.bf16.msra.mxu0 0
    %1011 = vmatprep.subr.bf16.mxu0 0
    %1012 = vmatpush1.bf16.msra.mxu0 0
    %1013 = vmatprep.subr.bf16.mxu0 0
    %1014 = vmatpush1.bf16.msra.mxu0 0
    %1015 = vmatprep.subr.bf16.mxu0 0
    %1016 = vmatpush1.bf16.msra.mxu0 0
    %1017 = vmatprep.subr.bf16.mxu0 0
    %1018 = vmatpush1.bf16.msra.mxu0 0
    %1019 = vmatprep.subr.bf16.mxu0 0
    %1020 = vmatpush1.bf16.msra.mxu0 0
    %1021 = vmatprep.subr.bf16.mxu0 0
    %1022 = vmatpush1.bf16.msra.mxu0 0
    %1023 = vmatprep.mubr.bf16.mxu0 0
    %1024 = vmatmul.mubr.bf16.gmra.mrb[0].mxu0 %v949
    %v1025 = vpop.f32.mrb[0].mxu0
    %v1026 = vadd.f32 0.0, %v1025
    %v1027 = vpop.f32.mrb[0].mxu0
    %v1028 = vadd.f32 0.0, %v1027
    %v1029 = vpop.f32.mrb[0].mxu0
    %v1030 = vpop.f32.mrb[0].mxu0
    %1031 = vdwg.mxu0
    %v1032 = vadd.f32 %v945, %v985
    %v1033 = vadd.f32 %v946, %v987
    %v1034 = vadd.f32 %v947, %v1026
    %v1035 = vadd.f32 %v948, %v1028
    %v1036 = vxor.u32 %v1032, 2147483648
    %v1037 = vmul.f32 %v1036, 1.442695
    %v1038 = vpow.pop %v1037
    %v1039 = vadd.f32 %v1038, 1.0
    %v1040 = vrcp.pop %v1039
    %v1041 = vmul.f32 1.0, %v1040
    %v1042 = vxor.u32 %v1033, 2147483648
    %v1043 = vmul.f32 %v1042, 1.442695
    %v1044 = vpow.pop %v1043
    %v1045 = vadd.f32 %v1044, 1.0
    %v1046 = vrcp.pop %v1045
    %v1047 = vmul.f32 1.0, %v1046
    %v1048 = vtanh.pop %v1034
    %v1049 = vxor.u32 %v1035, 2147483648
    %v1050 = vmul.f32 %v1049, 1.442695
    %v1051 = vpow.pop %v1050
    %v1052 = vadd.f32 %v1051, 1.0
    %v1053 = vrcp.pop %v1052
    %v1054 = vmul.f32 1.0, %v1053
    %v1055 = vmul.f32 %v1047, %v933
    %v1056 = vmul.f32 %v1041, %v1048
    %v1057 = vadd.f32 %v1055, %v1056
    %v1058 = vtanh.pop %v1057
    %v1059 = vmul.f32 %v1054, %v1058
    %1060 = vst [vmem:[#allocation3 + $0x10] sm:$0xff] %v1059
    %v1061 = vld [vmem:[#allocation2 + $0x60] sm:$0xff]
    %v1062 = vld [vmem:[#allocation2 + $0x68] sm:$0xff]
    %v1063 = vld [vmem:[#allocation2 + $0x70] sm:$0xff]
    %v1064 = vld [vmem:[#allocation2 + $0x78] sm:$0xff]
    %v1065 = vld [vmem:[#allocation2 + $0x80] sm:$0xff]
    %v1066 = vld [vmem:[#allocation2 + $0x88] sm:$0xff]
    %v1067 = vld [vmem:[#allocation2 + $0x90] sm:$0xff]
    %v1068 = vld [vmem:[#allocation2 + $0x98] sm:$0xff]
    %v1069 = vsel %vm534, %v1061, %v1065
    %v1070 = vsel %vm535, %v1062, %v1066
    %v1071 = vsel %vm536, %v1063, %v1067
    %v1072 = vsel %vm537, %v1064, %v1068
    %v1073 = vpack.c.bf16 %v1059, %v1059
    %1074 = vmatprep.subr.bf16.mxu0 %v639
    %1075 = vmatpush1.bf16.msra.mxu0 %v638
    %1076 = vmatprep.subr.bf16.mxu0 %v643
    %1077 = vmatpush1.bf16.msra.mxu0 %v642
    %1078 = vmatprep.subr.bf16.mxu0 %v647
    %1079 = vmatpush1.bf16.msra.mxu0 %v646
    %1080 = vmatprep.subr.bf16.mxu0 %v651
    %1081 = vmatpush1.bf16.msra.mxu0 %v650
    %1082 = vmatprep.subr.bf16.mxu0 %v655
    %1083 = vmatpush1.bf16.msra.mxu0 %v654
    %1084 = vmatprep.subr.bf16.mxu0 %v659
    %1085 = vmatpush1.bf16.msra.mxu0 %v658
    %1086 = vmatprep.subr.bf16.mxu0 %v663
    %1087 = vmatpush1.bf16.msra.mxu0 %v662
    %1088 = vmatprep.subr.bf16.mxu0 %v667
    %1089 = vmatpush1.bf16.msra.mxu0 %v666
    %1090 = vmatprep.subr.bf16.mxu0 0
    %1091 = vmatpush1.bf16.msra.mxu0 0
    %1092 = vmatprep.subr.bf16.mxu0 0
    %1093 = vmatpush1.bf16.msra.mxu0 0
    %1094 = vmatprep.subr.bf16.mxu0 0
    %1095 = vmatpush1.bf16.msra.mxu0 0
    %1096 = vmatprep.subr.bf16.mxu0 0
    %1097 = vmatpush1.bf16.msra.mxu0 0
    %1098 = vmatprep.subr.bf16.mxu0 0
    %1099 = vmatpush1.bf16.msra.mxu0 0
    %1100 = vmatprep.subr.bf16.mxu0 0
    %1101 = vmatpush1.bf16.msra.mxu0 0
    %1102 = vmatprep.subr.bf16.mxu0 0
    %1103 = vmatpush1.bf16.msra.mxu0 0
    %1104 = vmatprep.subr.bf16.mxu0 0
    %1105 = vmatpush1.bf16.msra.mxu0 0
    %1106 = vmatprep.mubr.bf16.mxu0 0
    %1107 = vmatmul.mubr.bf16.gmra.mrb[0].mxu0 %v1073
    %v1108 = vpop.f32.mrb[0].mxu0
    %v1109 = vadd.f32 0.0, %v1108
    %v1110 = vpop.f32.mrb[0].mxu0
    %v1111 = vadd.f32 0.0, %v1110
    %v1112 = vpop.f32.mrb[0].mxu0
    %v1113 = vpop.f32.mrb[0].mxu0
    %1114 = vdwg.mxu0
    %1115 = vmatprep.subr.bf16.mxu0 %v641
    %1116 = vmatpush1.bf16.msra.mxu0 %v640
    %1117 = vmatprep.subr.bf16.mxu0 %v645
    %1118 = vmatpush1.bf16.msra.mxu0 %v644
    %1119 = vmatprep.subr.bf16.mxu0 %v649
    %1120 = vmatpush1.bf16.msra.mxu0 %v648
    %1121 = vmatprep.subr.bf16.mxu0 %v653
    %1122 = vmatpush1.bf16.msra.mxu0 %v652
    %1123 = vmatprep.subr.bf16.mxu0 %v657
    %1124 = vmatpush1.bf16.msra.mxu0 %v656
    %1125 = vmatprep.subr.bf16.mxu0 %v661
    %1126 = vmatpush1.bf16.msra.mxu0 %v660
    %1127 = vmatprep.subr.bf16.mxu0 %v665
    %1128 = vmatpush1.bf16.msra.mxu0 %v664
    %1129 = vmatprep.subr.bf16.mxu0 %v669
    %1130 = vmatpush1.bf16.msra.mxu0 %v668
    %1131 = vmatprep.subr.bf16.mxu0 0
    %1132 = vmatpush1.bf16.msra.mxu0 0
    %1133 = vmatprep.subr.bf16.mxu0 0
    %1134 = vmatpush1.bf16.msra.mxu0 0
    %1135 = vmatprep.subr.bf16.mxu0 0
    %1136 = vmatpush1.bf16.msra.mxu0 0
    %1137 = vmatprep.subr.bf16.mxu0 0
    %1138 = vmatpush1.bf16.msra.mxu0 0
    %1139 = vmatprep.subr.bf16.mxu0 0
    %1140 = vmatpush1.bf16.msra.mxu0 0
    %1141 = vmatprep.subr.bf16.mxu0 0
    %1142 = vmatpush1.bf16.msra.mxu0 0
    %1143 = vmatprep.subr.bf16.mxu0 0
    %1144 = vmatpush1.bf16.msra.mxu0 0
    %1145 = vmatprep.subr.bf16.mxu0 0
    %1146 = vmatpush1.bf16.msra.mxu0 0
    %1147 = vmatprep.mubr.bf16.mxu0 0
    %1148 = vmatmul.mubr.bf16.gmra.mrb[0].mxu0 %v1073
    %v1149 = vpop.f32.mrb[0].mxu0
    %v1150 = vadd.f32 0.0, %v1149
    %v1151 = vpop.f32.mrb[0].mxu0
    %v1152 = vadd.f32 0.0, %v1151
    %v1153 = vpop.f32.mrb[0].mxu0
    %v1154 = vpop.f32.mrb[0].mxu0
    %1155 = vdwg.mxu0
    %v1156 = vadd.f32 %v1069, %v1109
    %v1157 = vadd.f32 %v1070, %v1111
    %v1158 = vadd.f32 %v1071, %v1150
    %v1159 = vadd.f32 %v1072, %v1152
    %v1160 = vxor.u32 %v1156, 2147483648
    %v1161 = vmul.f32 %v1160, 1.442695
    %v1162 = vpow.pop %v1161
    %v1163 = vadd.f32 %v1162, 1.0
    %v1164 = vrcp.pop %v1163
    %v1165 = vmul.f32 1.0, %v1164
    %v1166 = vxor.u32 %v1157, 2147483648
    %v1167 = vmul.f32 %v1166, 1.442695
    %v1168 = vpow.pop %v1167
    %v1169 = vadd.f32 %v1168, 1.0
    %v1170 = vrcp.pop %v1169
    %v1171 = vmul.f32 1.0, %v1170
    %v1172 = vtanh.pop %v1158
    %v1173 = vxor.u32 %v1159, 2147483648
    %v1174 = vmul.f32 %v1173, 1.442695
    %v1175 = vpow.pop %v1174
    %v1176 = vadd.f32 %v1175, 1.0
    %v1177 = vrcp.pop %v1176
    %v1178 = vmul.f32 1.0, %v1177
    %v1179 = vmul.f32 %v1171, %v1057
    %v1180 = vmul.f32 %v1165, %v1172
    %v1181 = vadd.f32 %v1179, %v1180
    %v1182 = vtanh.pop %v1181
    %v1183 = vmul.f32 %v1178, %v1182
    %1184 = vst [vmem:[#allocation3 + $0x18] sm:$0xff] %v1183
    %v1185 = vld [vmem:[#allocation2 + $0x80] sm:$0xff]
    %v1186 = vld [vmem:[#allocation2 + $0x88] sm:$0xff]
    %v1187 = vld [vmem:[#allocation2 + $0x90] sm:$0xff]
    %v1188 = vld [vmem:[#allocation2 + $0x98] sm:$0xff]
    %v1189 = vld [vmem:[#allocation2 + $0x60] sm:$0xff]
    %v1190 = vld [vmem:[#allocation2 + $0x68] sm:$0xff]
    %v1191 = vld [vmem:[#allocation2 + $0x70] sm:$0xff]
    %v1192 = vld [vmem:[#allocation2 + $0x78] sm:$0xff]
    %v1193 = vsel %vm534, %v1185, %v1189
    %v1194 = vsel %vm535, %v1186, %v1190
    %v1195 = vsel %vm536, %v1187, %v1191
    %v1196 = vsel %vm537, %v1188, %v1192
    %v1197 = vpack.c.bf16 %v1183, %v1183
    %1198 = vmatprep.subr.bf16.mxu0 %v639
    %1199 = vmatpush1.bf16.msra.mxu0 %v638
    %1200 = vmatprep.subr.bf16.mxu0 %v643
    %1201 = vmatpush1.bf16.msra.mxu0 %v642
    %1202 = vmatprep.subr.bf16.mxu0 %v647
    %1203 = vmatpush1.bf16.msra.mxu0 %v646
    %1204 = vmatprep.subr.bf16.mxu0 %v651
    %1205 = vmatpush1.bf16.msra.mxu0 %v650
    %1206 = vmatprep.subr.bf16.mxu0 %v655
    %1207 = vmatpush1.bf16.msra.mxu0 %v654
    %1208 = vmatprep.subr.bf16.mxu0 %v659
    %1209 = vmatpush1.bf16.msra.mxu0 %v658
    %1210 = vmatprep.subr.bf16.mxu0 %v663
    %1211 = vmatpush1.bf16.msra.mxu0 %v662
    %1212 = vmatprep.subr.bf16.mxu0 %v667
    %1213 = vmatpush1.bf16.msra.mxu0 %v666
    %1214 = vmatprep.subr.bf16.mxu0 0
    %1215 = vmatpush1.bf16.msra.mxu0 0
    %1216 = vmatprep.subr.bf16.mxu0 0
    %1217 = vmatpush1.bf16.msra.mxu0 0
    %1218 = vmatprep.subr.bf16.mxu0 0
    %1219 = vmatpush1.bf16.msra.mxu0 0
    %1220 = vmatprep.subr.bf16.mxu0 0
    %1221 = vmatpush1.bf16.msra.mxu0 0
    %1222 = vmatprep.subr.bf16.mxu0 0
    %1223 = vmatpush1.bf16.msra.mxu0 0
    %1224 = vmatprep.subr.bf16.mxu0 0
    %1225 = vmatpush1.bf16.msra.mxu0 0
    %1226 = vmatprep.subr.bf16.mxu0 0
    %1227 = vmatpush1.bf16.msra.mxu0 0
    %1228 = vmatprep.subr.bf16.mxu0 0
    %1229 = vmatpush1.bf16.msra.mxu0 0
    %1230 = vmatprep.mubr.bf16.mxu0 0
    %1231 = vmatmul.mubr.bf16.gmra.mrb[0].mxu0 %v1197
    %v1232 = vpop.f32.mrb[0].mxu0
    %v1233 = vadd.f32 0.0, %v1232
    %v1234 = vpop.f32.mrb[0].mxu0
    %v1235 = vadd.f32 0.0, %v1234
    %v1236 = vpop.f32.mrb[0].mxu0
    %v1237 = vpop.f32.mrb[0].mxu0
    %1238 = vdwg.mxu0
    %1239 = vmatprep.subr.bf16.mxu0 %v641
    %1240 = vmatpush1.bf16.msra.mxu0 %v640
    %1241 = vmatprep.subr.bf16.mxu0 %v645
    %1242 = vmatpush1.bf16.msra.mxu0 %v644
    %1243 = vmatprep.subr.bf16.mxu0 %v649
    %1244 = vmatpush1.bf16.msra.mxu0 %v648
    %1245 = vmatprep.subr.bf16.mxu0 %v653
    %1246 = vmatpush1.bf16.msra.mxu0 %v652
    %1247 = vmatprep.subr.bf16.mxu0 %v657
    %1248 = vmatpush1.bf16.msra.mxu0 %v656
    %1249 = vmatprep.subr.bf16.mxu0 %v661
    %1250 = vmatpush1.bf16.msra.mxu0 %v660
    %1251 = vmatprep.subr.bf16.mxu0 %v665
    %1252 = vmatpush1.bf16.msra.mxu0 %v664
    %1253 = vmatprep.subr.bf16.mxu0 %v669
    %1254 = vmatpush1.bf16.msra.mxu0 %v668
    %1255 = vmatprep.subr.bf16.mxu0 0
    %1256 = vmatpush1.bf16.msra.mxu0 0
    %1257 = vmatprep.subr.bf16.mxu0 0
    %1258 = vmatpush1.bf16.msra.mxu0 0
    %1259 = vmatprep.subr.bf16.mxu0 0
    %1260 = vmatpush1.bf16.msra.mxu0 0
    %1261 = vmatprep.subr.bf16.mxu0 0
    %1262 = vmatpush1.bf16.msra.mxu0 0
    %1263 = vmatprep.subr.bf16.mxu0 0
    %1264 = vmatpush1.bf16.msra.mxu0 0
    %1265 = vmatprep.subr.bf16.mxu0 0
    %1266 = vmatpush1.bf16.msra.mxu0 0
    %1267 = vmatprep.subr.bf16.mxu0 0
    %1268 = vmatpush1.bf16.msra.mxu0 0
    %1269 = vmatprep.subr.bf16.mxu0 0
    %1270 = vmatpush1.bf16.msra.mxu0 0
    %1271 = vmatprep.mubr.bf16.mxu0 0
    %1272 = vmatmul.mubr.bf16.gmra.mrb[0].mxu0 %v1197
    %v1273 = vpop.f32.mrb[0].mxu0
    %v1274 = vadd.f32 0.0, %v1273
    %v1275 = vpop.f32.mrb[0].mxu0
    %v1276 = vadd.f32 0.0, %v1275
    %v1277 = vpop.f32.mrb[0].mxu0
    %v1278 = vpop.f32.mrb[0].mxu0
    %1279 = vdwg.mxu0
    %v1280 = vadd.f32 %v1193, %v1233
    %v1281 = vadd.f32 %v1194, %v1235
    %v1282 = vadd.f32 %v1195, %v1274
    %v1283 = vadd.f32 %v1196, %v1276
    %v1284 = vxor.u32 %v1280, 2147483648
    %v1285 = vmul.f32 %v1284, 1.442695
    %v1286 = vpow.pop %v1285
    %v1287 = vadd.f32 %v1286, 1.0
    %v1288 = vrcp.pop %v1287
    %v1289 = vmul.f32 1.0, %v1288
    %v1290 = vxor.u32 %v1281, 2147483648
    %v1291 = vmul.f32 %v1290, 1.442695
    %v1292 = vpow.pop %v1291
    %v1293 = vadd.f32 %v1292, 1.0
    %v1294 = vrcp.pop %v1293
    %v1295 = vmul.f32 1.0, %v1294
    %v1296 = vtanh.pop %v1282
    %v1297 = vxor.u32 %v1283, 2147483648
    %v1298 = vmul.f32 %v1297, 1.442695
    %v1299 = vpow.pop %v1298
    %v1300 = vadd.f32 %v1299, 1.0
    %v1301 = vrcp.pop %v1300
    %v1302 = vmul.f32 1.0, %v1301
    %v1303 = vmul.f32 %v1295, %v1181
    %v1304 = vmul.f32 %v1289, %v1296
    %v1305 = vadd.f32 %v1303, %v1304
    %v1306 = vtanh.pop %v1305
    %v1307 = vmul.f32 %v1302, %v1306
    %1308 = vst [vmem:[#allocation3 + $0x20] sm:$0xff] %v1307
    %v1309 = vld [vmem:[#allocation2 + $0xa0] sm:$0xff]
    %v1310 = vld [vmem:[#allocation2 + $0xa8] sm:$0xff]
    %v1311 = vld [vmem:[#allocation2 + $0xb0] sm:$0xff]
    %v1312 = vld [vmem:[#allocation2 + $0xb8] sm:$0xff]
    %v1313 = vld [vmem:[#allocation2 + $0x40] sm:$0xff]
    %v1314 = vld [vmem:[#allocation2 + $0x48] sm:$0xff]
    %v1315 = vld [vmem:[#allocation2 + $0x50] sm:$0xff]
    %v1316 = vld [vmem:[#allocation2 + $0x58] sm:$0xff]
    %v1317 = vsel %vm534, %v1309, %v1313
    %v1318 = vsel %vm535, %v1310, %v1314
    %v1319 = vsel %vm536, %v1311, %v1315
    %v1320 = vsel %vm537, %v1312, %v1316
    %v1321 = vpack.c.bf16 %v1307, %v1307
    %1322 = vmatprep.subr.bf16.mxu0 %v639
    %1323 = vmatpush1.bf16.msra.mxu0 %v638
    %1324 = vmatprep.subr.bf16.mxu0 %v643
    %1325 = vmatpush1.bf16.msra.mxu0 %v642
    %1326 = vmatprep.subr.bf16.mxu0 %v647
    %1327 = vmatpush1.bf16.msra.mxu0 %v646
    %1328 = vmatprep.subr.bf16.mxu0 %v651
    %1329 = vmatpush1.bf16.msra.mxu0 %v650
    %1330 = vmatprep.subr.bf16.mxu0 %v655
    %1331 = vmatpush1.bf16.msra.mxu0 %v654
    %1332 = vmatprep.subr.bf16.mxu0 %v659
    %1333 = vmatpush1.bf16.msra.mxu0 %v658
    %1334 = vmatprep.subr.bf16.mxu0 %v663
    %1335 = vmatpush1.bf16.msra.mxu0 %v662
    %1336 = vmatprep.subr.bf16.mxu0 %v667
    %1337 = vmatpush1.bf16.msra.mxu0 %v666
    %1338 = vmatprep.subr.bf16.mxu0 0
    %1339 = vmatpush1.bf16.msra.mxu0 0
    %1340 = vmatprep.subr.bf16.mxu0 0
    %1341 = vmatpush1.bf16.msra.mxu0 0
    %1342 = vmatprep.subr.bf16.mxu0 0
    %1343 = vmatpush1.bf16.msra.mxu0 0
    %1344 = vmatprep.subr.bf16.mxu0 0
    %1345 = vmatpush1.bf16.msra.mxu0 0
    %1346 = vmatprep.subr.bf16.mxu0 0
    %1347 = vmatpush1.bf16.msra.mxu0 0
    %1348 = vmatprep.subr.bf16.mxu0 0
    %1349 = vmatpush1.bf16.msra.mxu0 0
    %1350 = vmatprep.subr.bf16.mxu0 0
    %1351 = vmatpush1.bf16.msra.mxu0 0
    %1352 = vmatprep.subr.bf16.mxu0 0
    %1353 = vmatpush1.bf16.msra.mxu0 0
    %1354 = vmatprep.mubr.bf16.mxu0 0
    %1355 = vmatmul.mubr.bf16.gmra.mrb[0].mxu0 %v1321
    %v1356 = vpop.f32.mrb[0].mxu0
    %v1357 = vadd.f32 0.0, %v1356
    %v1358 = vpop.f32.mrb[0].mxu0
    %v1359 = vadd.f32 0.0, %v1358
    %v1360 = vpop.f32.mrb[0].mxu0
    %v1361 = vpop.f32.mrb[0].mxu0
    %1362 = vdwg.mxu0
    %1363 = vmatprep.subr.bf16.mxu0 %v641
    %1364 = vmatpush1.bf16.msra.mxu0 %v640
    %1365 = vmatprep.subr.bf16.mxu0 %v645
    %1366 = vmatpush1.bf16.msra.mxu0 %v644
    %1367 = vmatprep.subr.bf16.mxu0 %v649
    %1368 = vmatpush1.bf16.msra.mxu0 %v648
    %1369 = vmatprep.subr.bf16.mxu0 %v653
    %1370 = vmatpush1.bf16.msra.mxu0 %v652
    %1371 = vmatprep.subr.bf16.mxu0 %v657
    %1372 = vmatpush1.bf16.msra.mxu0 %v656
    %1373 = vmatprep.subr.bf16.mxu0 %v661
    %1374 = vmatpush1.bf16.msra.mxu0 %v660
    %1375 = vmatprep.subr.bf16.mxu0 %v665
    %1376 = vmatpush1.bf16.msra.mxu0 %v664
    %1377 = vmatprep.subr.bf16.mxu0 %v669
    %1378 = vmatpush1.bf16.msra.mxu0 %v668
    %1379 = vmatprep.subr.bf16.mxu0 0
    %1380 = vmatpush1.bf16.msra.mxu0 0
    %1381 = vmatprep.subr.bf16.mxu0 0
    %1382 = vmatpush1.bf16.msra.mxu0 0
    %1383 = vmatprep.subr.bf16.mxu0 0
    %1384 = vmatpush1.bf16.msra.mxu0 0
    %1385 = vmatprep.subr.bf16.mxu0 0
    %1386 = vmatpush1.bf16.msra.mxu0 0
    %1387 = vmatprep.subr.bf16.mxu0 0
    %1388 = vmatpush1.bf16.msra.mxu0 0
    %1389 = vmatprep.subr.bf16.mxu0 0
    %1390 = vmatpush1.bf16.msra.mxu0 0
    %1391 = vmatprep.subr.bf16.mxu0 0
    %1392 = vmatpush1.bf16.msra.mxu0 0
    %1393 = vmatprep.subr.bf16.mxu0 0
    %1394 = vmatpush1.bf16.msra.mxu0 0
    %1395 = vmatprep.mubr.bf16.mxu0 0
    %1396 = vmatmul.mubr.bf16.gmra.mrb[0].mxu0 %v1321
    %v1397 = vpop.f32.mrb[0].mxu0
    %v1398 = vadd.f32 0.0, %v1397
    %v1399 = vpop.f32.mrb[0].mxu0
    %v1400 = vadd.f32 0.0, %v1399
    %v1401 = vpop.f32.mrb[0].mxu0
    %v1402 = vpop.f32.mrb[0].mxu0
    %1403 = vdwg.mxu0
    %v1404 = vadd.f32 %v1317, %v1357
    %v1405 = vadd.f32 %v1318, %v1359
    %v1406 = vadd.f32 %v1319, %v1398
    %v1407 = vadd.f32 %v1320, %v1400
    %v1408 = vxor.u32 %v1404, 2147483648
    %v1409 = vmul.f32 %v1408, 1.442695
    %v1410 = vpow.pop %v1409
    %v1411 = vadd.f32 %v1410, 1.0
    %v1412 = vrcp.pop %v1411
    %v1413 = vmul.f32 1.0, %v1412
    %v1414 = vxor.u32 %v1405, 2147483648
    %v1415 = vmul.f32 %v1414, 1.442695
    %v1416 = vpow.pop %v1415
    %v1417 = vadd.f32 %v1416, 1.0
    %v1418 = vrcp.pop %v1417
    %v1419 = vmul.f32 1.0, %v1418
    %v1420 = vtanh.pop %v1406
    %v1421 = vxor.u32 %v1407, 2147483648
    %v1422 = vmul.f32 %v1421, 1.442695
    %v1423 = vpow.pop %v1422
    %v1424 = vadd.f32 %v1423, 1.0
    %v1425 = vrcp.pop %v1424
    %v1426 = vmul.f32 1.0, %v1425
    %v1427 = vmul.f32 %v1419, %v1305
    %v1428 = vmul.f32 %v1413, %v1420
    %v1429 = vadd.f32 %v1427, %v1428
    %v1430 = vtanh.pop %v1429
    %v1431 = vmul.f32 %v1426, %v1430
    %1432 = vst [vmem:[#allocation3 + $0x28] sm:$0xff] %v1431
    %v1433 = vld [vmem:[#allocation2 + $0xc0] sm:$0xff]
    %v1434 = vld [vmem:[#allocation2 + $0xc8] sm:$0xff]
    %v1435 = vld [vmem:[#allocation2 + $0xd0] sm:$0xff]
    %v1436 = vld [vmem:[#allocation2 + $0xd8] sm:$0xff]
    %v1437 = vld [vmem:[#allocation2 + $0x20] sm:$0xff]
    %v1438 = vld [vmem:[#allocation2 + $0x28] sm:$0xff]
    %v1439 = vld [vmem:[#allocation2 + $0x30] sm:$0xff]
    %v1440 = vld [vmem:[#allocation2 + $0x38] sm:$0xff]
    %v1441 = vsel %vm534, %v1433, %v1437
    %v1442 = vsel %vm535, %v1434, %v1438
    %v1443 = vsel %vm536, %v1435, %v1439
    %v1444 = vsel %vm537, %v1436, %v1440
    %v1445 = vpack.c.bf16 %v1431, %v1431
    %1446 = vmatprep.subr.bf16.mxu0 %v639
    %1447 = vmatpush1.bf16.msra.mxu0 %v638
    %1448 = vmatprep.subr.bf16.mxu0 %v643
    %1449 = vmatpush1.bf16.msra.mxu0 %v642
    %1450 = vmatprep.subr.bf16.mxu0 %v647
    %1451 = vmatpush1.bf16.msra.mxu0 %v646
    %1452 = vmatprep.subr.bf16.mxu0 %v651
    %1453 = vmatpush1.bf16.msra.mxu0 %v650
    %1454 = vmatprep.subr.bf16.mxu0 %v655
    %1455 = vmatpush1.bf16.msra.mxu0 %v654
    %1456 = vmatprep.subr.bf16.mxu0 %v659
    %1457 = vmatpush1.bf16.msra.mxu0 %v658
    %1458 = vmatprep.subr.bf16.mxu0 %v663
    %1459 = vmatpush1.bf16.msra.mxu0 %v662
    %1460 = vmatprep.subr.bf16.mxu0 %v667
    %1461 = vmatpush1.bf16.msra.mxu0 %v666
    %1462 = vmatprep.subr.bf16.mxu0 0
    %1463 = vmatpush1.bf16.msra.mxu0 0
    %1464 = vmatprep.subr.bf16.mxu0 0
    %1465 = vmatpush1.bf16.msra.mxu0 0
    %1466 = vmatprep.subr.bf16.mxu0 0
    %1467 = vmatpush1.bf16.msra.mxu0 0
    %1468 = vmatprep.subr.bf16.mxu0 0
    %1469 = vmatpush1.bf16.msra.mxu0 0
    %1470 = vmatprep.subr.bf16.mxu0 0
    %1471 = vmatpush1.bf16.msra.mxu0 0
    %1472 = vmatprep.subr.bf16.mxu0 0
    %1473 = vmatpush1.bf16.msra.mxu0 0
    %1474 = vmatprep.subr.bf16.mxu0 0
    %1475 = vmatpush1.bf16.msra.mxu0 0
    %1476 = vmatprep.subr.bf16.mxu0 0
    %1477 = vmatpush1.bf16.msra.mxu0 0
    %1478 = vmatprep.mubr.bf16.mxu0 0
    %1479 = vmatmul.mubr.bf16.gmra.mrb[0].mxu0 %v1445
    %v1480 = vpop.f32.mrb[0].mxu0
    %v1481 = vadd.f32 0.0, %v1480
    %v1482 = vpop.f32.mrb[0].mxu0
    %v1483 = vadd.f32 0.0, %v1482
    %v1484 = vpop.f32.mrb[0].mxu0
    %v1485 = vpop.f32.mrb[0].mxu0
    %1486 = vdwg.mxu0
    %1487 = vmatprep.subr.bf16.mxu0 %v641
    %1488 = vmatpush1.bf16.msra.mxu0 %v640
    %1489 = vmatprep.subr.bf16.mxu0 %v645
    %1490 = vmatpush1.bf16.msra.mxu0 %v644
    %1491 = vmatprep.subr.bf16.mxu0 %v649
    %1492 = vmatpush1.bf16.msra.mxu0 %v648
    %1493 = vmatprep.subr.bf16.mxu0 %v653
    %1494 = vmatpush1.bf16.msra.mxu0 %v652
    %1495 = vmatprep.subr.bf16.mxu0 %v657
    %1496 = vmatpush1.bf16.msra.mxu0 %v656
    %1497 = vmatprep.subr.bf16.mxu0 %v661
    %1498 = vmatpush1.bf16.msra.mxu0 %v660
    %1499 = vmatprep.subr.bf16.mxu0 %v665
    %1500 = vmatpush1.bf16.msra.mxu0 %v664
    %1501 = vmatprep.subr.bf16.mxu0 %v669
    %1502 = vmatpush1.bf16.msra.mxu0 %v668
    %1503 = vmatprep.subr.bf16.mxu0 0
    %1504 = vmatpush1.bf16.msra.mxu0 0
    %1505 = vmatprep.subr.bf16.mxu0 0
    %1506 = vmatpush1.bf16.msra.mxu0 0
    %1507 = vmatprep.subr.bf16.mxu0 0
    %1508 = vmatpush1.bf16.msra.mxu0 0
    %1509 = vmatprep.subr.bf16.mxu0 0
    %1510 = vmatpush1.bf16.msra.mxu0 0
    %1511 = vmatprep.subr.bf16.mxu0 0
    %1512 = vmatpush1.bf16.msra.mxu0 0
    %1513 = vmatprep.subr.bf16.mxu0 0
    %1514 = vmatpush1.bf16.msra.mxu0 0
    %1515 = vmatprep.subr.bf16.mxu0 0
    %1516 = vmatpush1.bf16.msra.mxu0 0
    %1517 = vmatprep.subr.bf16.mxu0 0
    %1518 = vmatpush1.bf16.msra.mxu0 0
    %1519 = vmatprep.mubr.bf16.mxu0 0
    %1520 = vmatmul.mubr.bf16.gmra.mrb[0].mxu0 %v1445
    %v1521 = vpop.f32.mrb[0].mxu0
    %v1522 = vadd.f32 0.0, %v1521
    %v1523 = vpop.f32.mrb[0].mxu0
    %v1524 = vadd.f32 0.0, %v1523
    %v1525 = vpop.f32.mrb[0].mxu0
    %v1526 = vpop.f32.mrb[0].mxu0
    %1527 = vdwg.mxu0
    %v1528 = vadd.f32 %v1441, %v1481
    %v1529 = vadd.f32 %v1442, %v1483
    %v1530 = vadd.f32 %v1443, %v1522
    %v1531 = vadd.f32 %v1444, %v1524
    %v1532 = vxor.u32 %v1528, 2147483648
    %v1533 = vmul.f32 %v1532, 1.442695
    %v1534 = vpow.pop %v1533
    %v1535 = vadd.f32 %v1534, 1.0
    %v1536 = vrcp.pop %v1535
    %v1537 = vmul.f32 1.0, %v1536
    %v1538 = vxor.u32 %v1529, 2147483648
    %v1539 = vmul.f32 %v1538, 1.442695
    %v1540 = vpow.pop %v1539
    %v1541 = vadd.f32 %v1540, 1.0
    %v1542 = vrcp.pop %v1541
    %v1543 = vmul.f32 1.0, %v1542
    %v1544 = vtanh.pop %v1530
    %v1545 = vxor.u32 %v1531, 2147483648
    %v1546 = vmul.f32 %v1545, 1.442695
    %v1547 = vpow.pop %v1546
    %v1548 = vadd.f32 %v1547, 1.0
    %v1549 = vrcp.pop %v1548
    %v1550 = vmul.f32 1.0, %v1549
    %v1551 = vmul.f32 %v1543, %v1429
    %v1552 = vmul.f32 %v1537, %v1544
    %v1553 = vadd.f32 %v1551, %v1552
    %v1554 = vtanh.pop %v1553
    %v1555 = vmul.f32 %v1550, %v1554
    %1556 = vst [vmem:[#allocation3 + $0x30] sm:$0xff] %v1555
    %v1557 = vld [vmem:[#allocation2 + $0xe0] sm:$0xff]
    %v1558 = vld [vmem:[#allocation2 + $0xe8] sm:$0xff]
    %v1559 = vld [vmem:[#allocation2 + $0xf0] sm:$0xff]
    %v1560 = vld [vmem:[#allocation2 + $0xf8] sm:$0xff]
    %v1561 = vld [vmem:[#allocation2] sm:$0xff]
    %v1562 = vld [vmem:[#allocation2 + $0x8] sm:$0xff]
    %v1563 = vld [vmem:[#allocation2 + $0x10] sm:$0xff]
    %v1564 = vld [vmem:[#allocation2 + $0x18] sm:$0xff]
    %v1565 = vsel %vm534, %v1557, %v1561
    %v1566 = vsel %vm535, %v1558, %v1562
    %v1567 = vsel %vm536, %v1559, %v1563
    %v1568 = vsel %vm537, %v1560, %v1564
    %v1569 = vpack.c.bf16 %v1555, %v1555
    %1570 = vmatprep.subr.bf16.mxu0 %v639
    %1571 = vmatpush1.bf16.msra.mxu0 %v638
    %1572 = vmatprep.subr.bf16.mxu0 %v643
    %1573 = vmatpush1.bf16.msra.mxu0 %v642
    %1574 = vmatprep.subr.bf16.mxu0 %v647
    %1575 = vmatpush1.bf16.msra.mxu0 %v646
    %1576 = vmatprep.subr.bf16.mxu0 %v651
    %1577 = vmatpush1.bf16.msra.mxu0 %v650
    %1578 = vmatprep.subr.bf16.mxu0 %v655
    %1579 = vmatpush1.bf16.msra.mxu0 %v654
    %1580 = vmatprep.subr.bf16.mxu0 %v659
    %1581 = vmatpush1.bf16.msra.mxu0 %v658
    %1582 = vmatprep.subr.bf16.mxu0 %v663
    %1583 = vmatpush1.bf16.msra.mxu0 %v662
    %1584 = vmatprep.subr.bf16.mxu0 %v667
    %1585 = vmatpush1.bf16.msra.mxu0 %v666
    %1586 = vmatprep.subr.bf16.mxu0 0
    %1587 = vmatpush1.bf16.msra.mxu0 0
    %1588 = vmatprep.subr.bf16.mxu0 0
    %1589 = vmatpush1.bf16.msra.mxu0 0
    %1590 = vmatprep.subr.bf16.mxu0 0
    %1591 = vmatpush1.bf16.msra.mxu0 0
    %1592 = vmatprep.subr.bf16.mxu0 0
    %1593 = vmatpush1.bf16.msra.mxu0 0
    %1594 = vmatprep.subr.bf16.mxu0 0
    %1595 = vmatpush1.bf16.msra.mxu0 0
    %1596 = vmatprep.subr.bf16.mxu0 0
    %1597 = vmatpush1.bf16.msra.mxu0 0
    %1598 = vmatprep.subr.bf16.mxu0 0
    %1599 = vmatpush1.bf16.msra.mxu0 0
    %1600 = vmatprep.subr.bf16.mxu0 0
    %1601 = vmatpush1.bf16.msra.mxu0 0
    %1602 = vmatprep.mubr.bf16.mxu0 0
    %1603 = vmatmul.mubr.bf16.gmra.mrb[0].mxu0 %v1569
    %v1604 = vpop.f32.mrb[0].mxu0
    %v1605 = vadd.f32 0.0, %v1604
    %v1606 = vpop.f32.mrb[0].mxu0
    %v1607 = vadd.f32 0.0, %v1606
    %v1608 = vpop.f32.mrb[0].mxu0
    %v1609 = vpop.f32.mrb[0].mxu0
    %1610 = vdwg.mxu0
    %1611 = vmatprep.subr.bf16.mxu0 %v641
    %1612 = vmatpush1.bf16.msra.mxu0 %v640
    %1613 = vmatprep.subr.bf16.mxu0 %v645
    %1614 = vmatpush1.bf16.msra.mxu0 %v644
    %1615 = vmatprep.subr.bf16.mxu0 %v649
    %1616 = vmatpush1.bf16.msra.mxu0 %v648
    %1617 = vmatprep.subr.bf16.mxu0 %v653
    %1618 = vmatpush1.bf16.msra.mxu0 %v652
    %1619 = vmatprep.subr.bf16.mxu0 %v657
    %1620 = vmatpush1.bf16.msra.mxu0 %v656
    %1621 = vmatprep.subr.bf16.mxu0 %v661
    %1622 = vmatpush1.bf16.msra.mxu0 %v660
    %1623 = vmatprep.subr.bf16.mxu0 %v665
    %1624 = vmatpush1.bf16.msra.mxu0 %v664
    %1625 = vmatprep.subr.bf16.mxu0 %v669
    %1626 = vmatpush1.bf16.msra.mxu0 %v668
    %1627 = vmatprep.subr.bf16.mxu0 0
    %1628 = vmatpush1.bf16.msra.mxu0 0
    %1629 = vmatprep.subr.bf16.mxu0 0
    %1630 = vmatpush1.bf16.msra.mxu0 0
    %1631 = vmatprep.subr.bf16.mxu0 0
    %1632 = vmatpush1.bf16.msra.mxu0 0
    %1633 = vmatprep.subr.bf16.mxu0 0
    %1634 = vmatpush1.bf16.msra.mxu0 0
    %1635 = vmatprep.subr.bf16.mxu0 0
    %1636 = vmatpush1.bf16.msra.mxu0 0
    %1637 = vmatprep.subr.bf16.mxu0 0
    %1638 = vmatpush1.bf16.msra.mxu0 0
    %1639 = vmatprep.subr.bf16.mxu0 0
    %1640 = vmatpush1.bf16.msra.mxu0 0
    %1641 = vmatprep.subr.bf16.mxu0 0
    %1642 = vmatpush1.bf16.msra.mxu0 0
    %1643 = vmatprep.mubr.bf16.mxu0 0
    %1644 = vmatmul.mubr.bf16.gmra.mrb[0].mxu0 %v1569
    %v1645 = vpop.f32.mrb[0].mxu0
    %v1646 = vadd.f32 0.0, %v1645
    %v1647 = vpop.f32.mrb[0].mxu0
    %v1648 = vadd.f32 0.0, %v1647
    %v1649 = vpop.f32.mrb[0].mxu0
    %v1650 = vpop.f32.mrb[0].mxu0
    %1651 = vdwg.mxu0
    %v1652 = vadd.f32 %v1565, %v1605
    %v1653 = vadd.f32 %v1566, %v1607
    %v1654 = vadd.f32 %v1567, %v1646
    %v1655 = vadd.f32 %v1568, %v1648
    %v1656 = vxor.u32 %v1652, 2147483648
    %v1657 = vmul.f32 %v1656, 1.442695
    %v1658 = vpow.pop %v1657
    %v1659 = vadd.f32 %v1658, 1.0
    %v1660 = vrcp.pop %v1659
    %v1661 = vmul.f32 1.0, %v1660
    %v1662 = vxor.u32 %v1653, 2147483648
    %v1663 = vmul.f32 %v1662, 1.442695
    %v1664 = vpow.pop %v1663
    %v1665 = vadd.f32 %v1664, 1.0
    %v1666 = vrcp.pop %v1665
    %v1667 = vmul.f32 1.0, %v1666
    %v1668 = vtanh.pop %v1654
    %v1669 = vxor.u32 %v1655, 2147483648
    %v1670 = vmul.f32 %v1669, 1.442695
    %v1671 = vpow.pop %v1670
    %v1672 = vadd.f32 %v1671, 1.0
    %v1673 = vrcp.pop %v1672
    %v1674 = vmul.f32 1.0, %v1673
    %v1675 = vmul.f32 %v1667, %v1553
    %v1676 = vmul.f32 %v1661, %v1668
    %v1677 = vadd.f32 %v1675, %v1676
    %v1678 = vtanh.pop %v1677
    %v1679 = vmul.f32 %v1674, %v1678
    %1680 = vst [vmem:[#allocation3 + $0x38] sm:$0xff] %v1679
    %s1681 = scalar_lea.vmem [#allocation4], 256
    %v1682 = vld [vmem:[%s1681] sm:$0xff]
    %v1683 = vld [vmem:[%s1681 + $0x8] sm:$0xff]
    %v1684 = vld [vmem:[%s1681 + $0x10] sm:$0xff]
    %v1685 = vld [vmem:[%s1681 + $0x18] sm:$0xff]
    %v1686 = vld [vmem:[%s1681 + $0x20] sm:$0xff]
    %v1687 = vld [vmem:[%s1681 + $0x28] sm:$0xff]
    %v1688 = vld [vmem:[%s1681 + $0x30] sm:$0xff]
    %v1689 = vld [vmem:[%s1681 + $0x38] sm:$0xff]
    %v1690 = vld [vmem:[%s1681 + $0x40] sm:$0xff]
    %v1691 = vld [vmem:[%s1681 + $0x48] sm:$0xff]
    %v1692 = vld [vmem:[%s1681 + $0x50] sm:$0xff]
    %v1693 = vld [vmem:[%s1681 + $0x58] sm:$0xff]
    %v1694 = vld [vmem:[%s1681 + $0x60] sm:$0xff]
    %v1695 = vld [vmem:[%s1681 + $0x68] sm:$0xff]
    %v1696 = vld [vmem:[%s1681 + $0x70] sm:$0xff]
    %v1697 = vld [vmem:[%s1681 + $0x78] sm:$0xff]
    %v1698 = vld [vmem:[%s1681 + $0x80] sm:$0xff]
    %v1699 = vld [vmem:[%s1681 + $0x88] sm:$0xff]
    %v1700 = vld [vmem:[%s1681 + $0x90] sm:$0xff]
    %v1701 = vld [vmem:[%s1681 + $0x98] sm:$0xff]
    %v1702 = vld [vmem:[%s1681 + $0xa0] sm:$0xff]
    %v1703 = vld [vmem:[%s1681 + $0xa8] sm:$0xff]
    %v1704 = vld [vmem:[%s1681 + $0xb0] sm:$0xff]
    %v1705 = vld [vmem:[%s1681 + $0xb8] sm:$0xff]
    %v1706 = vld [vmem:[%s1681 + $0xc0] sm:$0xff]
    %v1707 = vld [vmem:[%s1681 + $0xc8] sm:$0xff]
    %v1708 = vld [vmem:[%s1681 + $0xd0] sm:$0xff]
    %v1709 = vld [vmem:[%s1681 + $0xd8] sm:$0xff]
    %v1710 = vld [vmem:[%s1681 + $0xe0] sm:$0xff]
    %v1711 = vld [vmem:[%s1681 + $0xe8] sm:$0xff]
    %v1712 = vld [vmem:[%s1681 + $0xf0] sm:$0xff]
    %v1713 = vld [vmem:[%s1681 + $0xf8] sm:$0xff]
    %s1714 = scalar_lea.vmem %s3, 4
    %v1715 = vld [vmem:[%s1714] sm:$0xf]
    %v1716 = vld [vmem:[#allocation3] sm:$0xff]
    %v1717 = vld [vmem:[#allocation3 + $0x38] sm:$0xff]
    %v1718 = vsel %vm65, 1, 0
    %vm1719 = vcmp.eq.s32.totalorder %v1718, 1
    %v1720 = vsel %vm1719, %v1716, %v1717
    %v1721 = vld [vmem:[#allocation3 + $0x8] sm:$0xff]
    %v1722 = vld [vmem:[#allocation3 + $0x30] sm:$0xff]
    %v1723 = vsel %vm1719, %v1721, %v1722
    %v1724 = vld [vmem:[#allocation3 + $0x10] sm:$0xff]
    %v1725 = vld [vmem:[#allocation3 + $0x28] sm:$0xff]
    %v1726 = vsel %vm1719, %v1724, %v1725
    %v1727 = vld [vmem:[#allocation3 + $0x18] sm:$0xff]
    %v1728 = vld [vmem:[#allocation3 + $0x20] sm:$0xff]
    %v1729 = vsel %vm1719, %v1727, %v1728
    %v1730 = vsel %vm1719, %v1728, %v1727
    %v1731 = vsel %vm1719, %v1725, %v1724
    %v1732 = vsel %vm1719, %v1722, %v1721
    %v1733 = vsel %vm1719, %v1717, %v1716
    %v1734 = vpack.c.bf16 %v1723, %v1720
    %v1735 = vpack.c.bf16 %v1729, %v1726
    %v1736 = vpack.c.bf16 %v1731, %v1730
    %v1737 = vpack.c.bf16 %v1733, %v1732
    %v1739 = vlaneseq
    %v1740 = vshrl.u32 %v1739, 7
    %v1741 = vsub.s32 0, %v1740
    %v1742 = vrot.slane %v1715, %v1741
    %v1743 = vlaneseq
    %v1744 = vshrl.u32 %v1743, 7
    %v1745 = vsub.s32 1, %v1744
    %v1746 = vrot.slane %v1715, %v1745
    %v1747 = vlaneseq
    %v1748 = vshrl.u32 %v1747, 7
    %v1749 = vsub.s32 2, %v1748
    %v1750 = vrot.slane %v1715, %v1749
    %v1751 = vlaneseq
    %v1752 = vshrl.u32 %v1751, 7
    %v1753 = vsub.s32 3, %v1752
    %v1754 = vrot.slane %v1715, %v1753
    %v1791 = vunpack.c.l.b16 %v1682
    %v1792 = vunpack.c.h.b16 %v1682
    %v1793 = vunpack.c.l.b16 %v1683
    %v1794 = vunpack.c.h.b16 %v1683
    %v1795 = vunpack.c.l.b16 %v1684
    %v1796 = vunpack.c.h.b16 %v1684
    %v1797 = vunpack.c.l.b16 %v1685
    %v1798 = vunpack.c.h.b16 %v1685
    %v1799 = vunpack.c.l.b16 %v1686
    %v1800 = vunpack.c.h.b16 %v1686
    %v1801 = vunpack.c.l.b16 %v1687
    %v1802 = vunpack.c.h.b16 %v1687
    %v1803 = vunpack.c.l.b16 %v1688
    %v1804 = vunpack.c.h.b16 %v1688
    %v1805 = vunpack.c.l.b16 %v1689
    %v1806 = vunpack.c.h.b16 %v1689
    %v1807 = vunpack.c.l.b16 %v1690
    %v1808 = vunpack.c.h.b16 %v1690
    %v1809 = vunpack.c.l.b16 %v1691
    %v1810 = vunpack.c.h.b16 %v1691
    %v1811 = vunpack.c.l.b16 %v1692
    %v1812 = vunpack.c.h.b16 %v1692
    %v1813 = vunpack.c.l.b16 %v1693
    %v1814 = vunpack.c.h.b16 %v1693
    %v1815 = vunpack.c.l.b16 %v1694
    %v1816 = vunpack.c.h.b16 %v1694
    %v1817 = vunpack.c.l.b16 %v1695
    %v1818 = vunpack.c.h.b16 %v1695
    %v1819 = vunpack.c.l.b16 %v1696
    %v1820 = vunpack.c.h.b16 %v1696
    %v1821 = vunpack.c.l.b16 %v1697
    %v1822 = vunpack.c.h.b16 %v1697
    %v1823 = vunpack.c.l.b16 %v1698
    %v1824 = vunpack.c.h.b16 %v1698
    %v1825 = vunpack.c.l.b16 %v1699
    %v1826 = vunpack.c.h.b16 %v1699
    %v1827 = vunpack.c.l.b16 %v1700
    %v1828 = vunpack.c.h.b16 %v1700
    %v1829 = vunpack.c.l.b16 %v1701
    %v1830 = vunpack.c.h.b16 %v1701
    %v1831 = vunpack.c.l.b16 %v1702
    %v1832 = vunpack.c.h.b16 %v1702
    %v1833 = vunpack.c.l.b16 %v1703
    %v1834 = vunpack.c.h.b16 %v1703
    %v1835 = vunpack.c.l.b16 %v1704
    %v1836 = vunpack.c.h.b16 %v1704
    %v1837 = vunpack.c.l.b16 %v1705
    %v1838 = vunpack.c.h.b16 %v1705
    %v1839 = vunpack.c.l.b16 %v1706
    %v1840 = vunpack.c.h.b16 %v1706
    %v1841 = vunpack.c.l.b16 %v1707
    %v1842 = vunpack.c.h.b16 %v1707
    %v1843 = vunpack.c.l.b16 %v1708
    %v1844 = vunpack.c.h.b16 %v1708
    %v1845 = vunpack.c.l.b16 %v1709
    %v1846 = vunpack.c.h.b16 %v1709
    %v1847 = vunpack.c.l.b16 %v1710
    %v1848 = vunpack.c.h.b16 %v1710
    %v1849 = vunpack.c.l.b16 %v1711
    %v1850 = vunpack.c.h.b16 %v1711
    %v1851 = vunpack.c.l.b16 %v1712
    %v1852 = vunpack.c.h.b16 %v1712
    %v1853 = vunpack.c.l.b16 %v1713
    %v1854 = vunpack.c.h.b16 %v1713
    %v1855 = vpack.c.b16 %v1795, %v1791
    %v1856 = vpack.c.b16 %v1796, %v1792
    %v1857 = vpack.c.b16 %v1797, %v1793
    %v1858 = vpack.c.b16 %v1798, %v1794
    %v1859 = vpack.c.b16 %v1803, %v1799
    %v1860 = vpack.c.b16 %v1804, %v1800
    %v1861 = vpack.c.b16 %v1805, %v1801
    %v1862 = vpack.c.b16 %v1806, %v1802
    %v1863 = vpack.c.b16 %v1811, %v1807
    %v1864 = vpack.c.b16 %v1812, %v1808
    %v1865 = vpack.c.b16 %v1813, %v1809
    %v1866 = vpack.c.b16 %v1814, %v1810
    %v1867 = vpack.c.b16 %v1819, %v1815
    %v1868 = vpack.c.b16 %v1820, %v1816
    %v1869 = vpack.c.b16 %v1821, %v1817
    %v1870 = vpack.c.b16 %v1822, %v1818
    %v1871 = vpack.c.b16 %v1827, %v1823
    %v1872 = vpack.c.b16 %v1828, %v1824
    %v1873 = vpack.c.b16 %v1829, %v1825
    %v1874 = vpack.c.b16 %v1830, %v1826
    %v1875 = vpack.c.b16 %v1835, %v1831
    %v1876 = vpack.c.b16 %v1836, %v1832
    %v1877 = vpack.c.b16 %v1837, %v1833
    %v1878 = vpack.c.b16 %v1838, %v1834
    %v1879 = vpack.c.b16 %v1843, %v1839
    %v1880 = vpack.c.b16 %v1844, %v1840
    %v1881 = vpack.c.b16 %v1845, %v1841
    %v1882 = vpack.c.b16 %v1846, %v1842
    %v1883 = vpack.c.b16 %v1851, %v1847
    %v1884 = vpack.c.b16 %v1852, %v1848
    %v1885 = vpack.c.b16 %v1853, %v1849
    %v1886 = vpack.c.b16 %v1854, %v1850
    %1919 = vmatprep.subr.bf16.mxu0 %v1856
    %1920 = vmatpush1.bf16.msra.mxu0 %v1855
    %1921 = vmatprep.subr.bf16.mxu0 %v1860
    %1922 = vmatpush1.bf16.msra.mxu0 %v1859
    %1923 = vmatprep.subr.bf16.mxu0 %v1864
    %1924 = vmatpush1.bf16.msra.mxu0 %v1863
    %1925 = vmatprep.subr.bf16.mxu0 %v1868
    %1926 = vmatpush1.bf16.msra.mxu0 %v1867
    %1927 = vmatprep.subr.bf16.mxu0 %v1872
    %1928 = vmatpush1.bf16.msra.mxu0 %v1871
    %1929 = vmatprep.subr.bf16.mxu0 %v1876
    %1930 = vmatpush1.bf16.msra.mxu0 %v1875
    %1931 = vmatprep.subr.bf16.mxu0 %v1880
    %1932 = vmatpush1.bf16.msra.mxu0 %v1879
    %1933 = vmatprep.subr.bf16.mxu0 %v1884
    %1934 = vmatpush1.bf16.msra.mxu0 %v1883
    %1935 = vmatprep.subr.bf16.mxu0 0
    %1936 = vmatpush1.bf16.msra.mxu0 0
    %1937 = vmatprep.subr.bf16.mxu0 0
    %1938 = vmatpush1.bf16.msra.mxu0 0
    %1939 = vmatprep.subr.bf16.mxu0 0
    %1940 = vmatpush1.bf16.msra.mxu0 0
    %1941 = vmatprep.subr.bf16.mxu0 0
    %1942 = vmatpush1.bf16.msra.mxu0 0
    %1943 = vmatprep.subr.bf16.mxu0 0
    %1944 = vmatpush1.bf16.msra.mxu0 0
    %1945 = vmatprep.subr.bf16.mxu0 0
    %1946 = vmatpush1.bf16.msra.mxu0 0
    %1947 = vmatprep.subr.bf16.mxu0 0
    %1948 = vmatpush1.bf16.msra.mxu0 0
    %1949 = vmatprep.subr.bf16.mxu0 0
    %1950 = vmatpush1.bf16.msra.mxu0 0
    %1951 = vmatprep.mubr.bf16.mxu0 0
    %1952 = vmatmul.mubr.bf16.gmra.mrb[0].mxu0 %v1734
    %v1953 = vpop.f32.mrb[0].mxu0
    %v1954 = vadd.f32 %v1742, %v1953
    %v1955 = vpop.f32.mrb[0].mxu0
    %v1956 = vadd.f32 %v1746, %v1955
    %v1957 = vpop.f32.mrb[0].mxu0
    %v1958 = vadd.f32 %v1742, %v1957
    %v1959 = vpop.f32.mrb[0].mxu0
    %v1960 = vadd.f32 %v1746, %v1959
    %1961 = vmatprep.mubr.bf16.mxu0 0
    %1962 = vmatmul.mubr.bf16.gmra.mrb[0].mxu0 %v1735
    %v1963 = vpop.f32.mrb[0].mxu0
    %v1964 = vadd.f32 %v1742, %v1963
    %v1965 = vpop.f32.mrb[0].mxu0
    %v1966 = vadd.f32 %v1746, %v1965
    %v1967 = vpop.f32.mrb[0].mxu0
    %v1968 = vadd.f32 %v1742, %v1967
    %v1969 = vpop.f32.mrb[0].mxu0
    %v1970 = vadd.f32 %v1746, %v1969
    %1971 = vmatprep.mubr.bf16.mxu0 0
    %1972 = vmatmul.mubr.bf16.gmra.mrb[0].mxu0 %v1736
    %v1973 = vpop.f32.mrb[0].mxu0
    %v1974 = vadd.f32 %v1742, %v1973
    %v1975 = vpop.f32.mrb[0].mxu0
    %v1976 = vadd.f32 %v1746, %v1975
    %v1977 = vpop.f32.mrb[0].mxu0
    %v1978 = vadd.f32 %v1742, %v1977
    %v1979 = vpop.f32.mrb[0].mxu0
    %v1980 = vadd.f32 %v1746, %v1979
    %1981 = vmatprep.mubr.bf16.mxu0 0
    %1982 = vmatmul.mubr.bf16.gmra.mrb[0].mxu0 %v1737
    %v1983 = vpop.f32.mrb[0].mxu0
    %v1984 = vadd.f32 %v1742, %v1983
    %v1985 = vpop.f32.mrb[0].mxu0
    %v1986 = vadd.f32 %v1746, %v1985
    %v1987 = vpop.f32.mrb[0].mxu0
    %v1988 = vadd.f32 %v1742, %v1987
    %v1989 = vpop.f32.mrb[0].mxu0
    %v1990 = vadd.f32 %v1746, %v1989
    %1991 = vdwg.mxu0
    %1992 = vmatprep.subr.bf16.mxu0 %v1858
    %1993 = vmatpush1.bf16.msra.mxu0 %v1857
    %1994 = vmatprep.subr.bf16.mxu0 %v1862
    %1995 = vmatpush1.bf16.msra.mxu0 %v1861
    %1996 = vmatprep.subr.bf16.mxu0 %v1866
    %1997 = vmatpush1.bf16.msra.mxu0 %v1865
    %1998 = vmatprep.subr.bf16.mxu0 %v1870
    %1999 = vmatpush1.bf16.msra.mxu0 %v1869
    %2000 = vmatprep.subr.bf16.mxu0 %v1874
    %2001 = vmatpush1.bf16.msra.mxu0 %v1873
    %2002 = vmatprep.subr.bf16.mxu0 %v1878
    %2003 = vmatpush1.bf16.msra.mxu0 %v1877
    %2004 = vmatprep.subr.bf16.mxu0 %v1882
    %2005 = vmatpush1.bf16.msra.mxu0 %v1881
    %2006 = vmatprep.subr.bf16.mxu0 %v1886
    %2007 = vmatpush1.bf16.msra.mxu0 %v1885
    %2008 = vmatprep.subr.bf16.mxu0 0
    %2009 = vmatpush1.bf16.msra.mxu0 0
    %2010 = vmatprep.subr.bf16.mxu0 0
    %2011 = vmatpush1.bf16.msra.mxu0 0
    %2012 = vmatprep.subr.bf16.mxu0 0
    %2013 = vmatpush1.bf16.msra.mxu0 0
    %2014 = vmatprep.subr.bf16.mxu0 0
    %2015 = vmatpush1.bf16.msra.mxu0 0
    %2016 = vmatprep.subr.bf16.mxu0 0
    %2017 = vmatpush1.bf16.msra.mxu0 0
    %2018 = vmatprep.subr.bf16.mxu0 0
    %2019 = vmatpush1.bf16.msra.mxu0 0
    %2020 = vmatprep.subr.bf16.mxu0 0
    %2021 = vmatpush1.bf16.msra.mxu0 0
    %2022 = vmatprep.subr.bf16.mxu0 0
    %2023 = vmatpush1.bf16.msra.mxu0 0
    %2024 = vmatprep.mubr.bf16.mxu0 0
    %2025 = vmatmul.mubr.bf16.gmra.mrb[0].mxu0 %v1734
    %v2026 = vpop.f32.mrb[0].mxu0
    %v2027 = vadd.f32 %v1750, %v2026
    %v2028 = vpop.f32.mrb[0].mxu0
    %v2029 = vadd.f32 %v1754, %v2028
    %v2030 = vpop.f32.mrb[0].mxu0
    %v2031 = vadd.f32 %v1750, %v2030
    %v2032 = vpop.f32.mrb[0].mxu0
    %v2033 = vadd.f32 %v1754, %v2032
    %2034 = vmatprep.mubr.bf16.mxu0 0
    %2035 = vmatmul.mubr.bf16.gmra.mrb[0].mxu0 %v1735
    %v2036 = vpop.f32.mrb[0].mxu0
    %v2037 = vadd.f32 %v1750, %v2036
    %v2038 = vpop.f32.mrb[0].mxu0
    %v2039 = vadd.f32 %v1754, %v2038
    %v2040 = vpop.f32.mrb[0].mxu0
    %v2041 = vadd.f32 %v1750, %v2040
    %v2042 = vpop.f32.mrb[0].mxu0
    %v2043 = vadd.f32 %v1754, %v2042
    %2044 = vmatprep.mubr.bf16.mxu0 0
    %2045 = vmatmul.mubr.bf16.gmra.mrb[0].mxu0 %v1736
    %v2046 = vpop.f32.mrb[0].mxu0
    %v2047 = vadd.f32 %v1750, %v2046
    %v2048 = vpop.f32.mrb[0].mxu0
    %v2049 = vadd.f32 %v1754, %v2048
    %v2050 = vpop.f32.mrb[0].mxu0
    %v2051 = vadd.f32 %v1750, %v2050
    %v2052 = vpop.f32.mrb[0].mxu0
    %v2053 = vadd.f32 %v1754, %v2052
    %2054 = vmatprep.mubr.bf16.mxu0 0
    %2055 = vmatmul.mubr.bf16.gmra.mrb[0].mxu0 %v1737
    %v2056 = vpop.f32.mrb[0].mxu0
    %v2057 = vadd.f32 %v1750, %v2056
    %v2058 = vpop.f32.mrb[0].mxu0
    %v2059 = vadd.f32 %v1754, %v2058
    %v2060 = vpop.f32.mrb[0].mxu0
    %v2061 = vadd.f32 %v1750, %v2060
    %v2062 = vpop.f32.mrb[0].mxu0
    %v2063 = vadd.f32 %v1754, %v2062
    %2064 = vdwg.mxu0
    %2065 = vst [vmem:[#allocation2] sm:$0xff] %v1954
    %2066 = vst [vmem:[#allocation2 + $0x8] sm:$0xff] %v1956
    %2067 = vst [vmem:[#allocation2 + $0x10] sm:$0xff] %v2027
    %2068 = vst [vmem:[#allocation2 + $0x18] sm:$0xff] %v2029
    %2069 = vst [vmem:[#allocation2 + $0x20] sm:$0xff] %v1958
    %2070 = vst [vmem:[#allocation2 + $0x28] sm:$0xff] %v1960
    %2071 = vst [vmem:[#allocation2 + $0x30] sm:$0xff] %v2031
    %2072 = vst [vmem:[#allocation2 + $0x38] sm:$0xff] %v2033
    %2073 = vst [vmem:[#allocation2 + $0x40] sm:$0xff] %v1964
    %2074 = vst [vmem:[#allocation2 + $0x48] sm:$0xff] %v1966
    %2075 = vst [vmem:[#allocation2 + $0x50] sm:$0xff] %v2037
    %2076 = vst [vmem:[#allocation2 + $0x58] sm:$0xff] %v2039
    %2077 = vst [vmem:[#allocation2 + $0x60] sm:$0xff] %v1968
    %2078 = vst [vmem:[#allocation2 + $0x68] sm:$0xff] %v1970
    %2079 = vst [vmem:[#allocation2 + $0x70] sm:$0xff] %v2041
    %2080 = vst [vmem:[#allocation2 + $0x78] sm:$0xff] %v2043
    %2081 = vst [vmem:[#allocation2 + $0x80] sm:$0xff] %v1974
    %2082 = vst [vmem:[#allocation2 + $0x88] sm:$0xff] %v1976
    %2083 = vst [vmem:[#allocation2 + $0x90] sm:$0xff] %v2047
    %2084 = vst [vmem:[#allocation2 + $0x98] sm:$0xff] %v2049
    %2085 = vst [vmem:[#allocation2 + $0xa0] sm:$0xff] %v1978
    %2086 = vst [vmem:[#allocation2 + $0xa8] sm:$0xff] %v1980
    %2087 = vst [vmem:[#allocation2 + $0xb0] sm:$0xff] %v2051
    %2088 = vst [vmem:[#allocation2 + $0xb8] sm:$0xff] %v2053
    %2089 = vst [vmem:[#allocation2 + $0xc0] sm:$0xff] %v1984
    %2090 = vst [vmem:[#allocation2 + $0xc8] sm:$0xff] %v1986
    %2091 = vst [vmem:[#allocation2 + $0xd0] sm:$0xff] %v2057
    %2092 = vst [vmem:[#allocation2 + $0xd8] sm:$0xff] %v2059
    %2093 = vst [vmem:[#allocation2 + $0xe0] sm:$0xff] %v1988
    %2094 = vst [vmem:[#allocation2 + $0xe8] sm:$0xff] %v1990
    %2095 = vst [vmem:[#allocation2 + $0xf0] sm:$0xff] %v2061
    %2096 = vst [vmem:[#allocation2 + $0xf8] sm:$0xff] %v2063
    %s2097 = scalar_lea.vmem [#allocation6], 256
    %v2098 = vld [vmem:[%s2097] sm:$0xff]
    %v2099 = vld [vmem:[%s2097 + $0x8] sm:$0xff]
    %v2100 = vld [vmem:[%s2097 + $0x10] sm:$0xff]
    %v2101 = vld [vmem:[%s2097 + $0x18] sm:$0xff]
    %v2102 = vld [vmem:[%s2097 + $0x20] sm:$0xff]
    %v2103 = vld [vmem:[%s2097 + $0x28] sm:$0xff]
    %v2104 = vld [vmem:[%s2097 + $0x30] sm:$0xff]
    %v2105 = vld [vmem:[%s2097 + $0x38] sm:$0xff]
    %v2106 = vld [vmem:[%s2097 + $0x40] sm:$0xff]
    %v2107 = vld [vmem:[%s2097 + $0x48] sm:$0xff]
    %v2108 = vld [vmem:[%s2097 + $0x50] sm:$0xff]
    %v2109 = vld [vmem:[%s2097 + $0x58] sm:$0xff]
    %v2110 = vld [vmem:[%s2097 + $0x60] sm:$0xff]
    %v2111 = vld [vmem:[%s2097 + $0x68] sm:$0xff]
    %v2112 = vld [vmem:[%s2097 + $0x70] sm:$0xff]
    %v2113 = vld [vmem:[%s2097 + $0x78] sm:$0xff]
    %v2114 = vld [vmem:[%s2097 + $0x80] sm:$0xff]
    %v2115 = vld [vmem:[%s2097 + $0x88] sm:$0xff]
    %v2116 = vld [vmem:[%s2097 + $0x90] sm:$0xff]
    %v2117 = vld [vmem:[%s2097 + $0x98] sm:$0xff]
    %v2118 = vld [vmem:[%s2097 + $0xa0] sm:$0xff]
    %v2119 = vld [vmem:[%s2097 + $0xa8] sm:$0xff]
    %v2120 = vld [vmem:[%s2097 + $0xb0] sm:$0xff]
    %v2121 = vld [vmem:[%s2097 + $0xb8] sm:$0xff]
    %v2122 = vld [vmem:[%s2097 + $0xc0] sm:$0xff]
    %v2123 = vld [vmem:[%s2097 + $0xc8] sm:$0xff]
    %v2124 = vld [vmem:[%s2097 + $0xd0] sm:$0xff]
    %v2125 = vld [vmem:[%s2097 + $0xd8] sm:$0xff]
    %v2126 = vld [vmem:[%s2097 + $0xe0] sm:$0xff]
    %v2127 = vld [vmem:[%s2097 + $0xe8] sm:$0xff]
    %v2128 = vld [vmem:[%s2097 + $0xf0] sm:$0xff]
    %v2129 = vld [vmem:[%s2097 + $0xf8] sm:$0xff]
    %v2130 = vld [vmem:[#allocation2] sm:$0xff]
    %v2131 = vld [vmem:[#allocation2 + $0x8] sm:$0xff]
    %v2132 = vld [vmem:[#allocation2 + $0x10] sm:$0xff]
    %v2133 = vld [vmem:[#allocation2 + $0x18] sm:$0xff]
    %v2134 = vld [vmem:[#allocation2 + $0xe0] sm:$0xff]
    %v2135 = vld [vmem:[#allocation2 + $0xe8] sm:$0xff]
    %v2136 = vld [vmem:[#allocation2 + $0xf0] sm:$0xff]
    %v2137 = vld [vmem:[#allocation2 + $0xf8] sm:$0xff]
    %v2138 = vsel %vm534, %v2130, %v2134
    %v2139 = vsel %vm535, %v2131, %v2135
    %v2140 = vsel %vm536, %v2132, %v2136
    %v2141 = vsel %vm537, %v2133, %v2137
    %v2174 = vunpack.c.l.b16 %v2098
    %v2175 = vunpack.c.h.b16 %v2098
    %v2176 = vunpack.c.l.b16 %v2099
    %v2177 = vunpack.c.h.b16 %v2099
    %v2178 = vunpack.c.l.b16 %v2100
    %v2179 = vunpack.c.h.b16 %v2100
    %v2180 = vunpack.c.l.b16 %v2101
    %v2181 = vunpack.c.h.b16 %v2101
    %v2182 = vunpack.c.l.b16 %v2102
    %v2183 = vunpack.c.h.b16 %v2102
    %v2184 = vunpack.c.l.b16 %v2103
    %v2185 = vunpack.c.h.b16 %v2103
    %v2186 = vunpack.c.l.b16 %v2104
    %v2187 = vunpack.c.h.b16 %v2104
    %v2188 = vunpack.c.l.b16 %v2105
    %v2189 = vunpack.c.h.b16 %v2105
    %v2190 = vunpack.c.l.b16 %v2106
    %v2191 = vunpack.c.h.b16 %v2106
    %v2192 = vunpack.c.l.b16 %v2107
    %v2193 = vunpack.c.h.b16 %v2107
    %v2194 = vunpack.c.l.b16 %v2108
    %v2195 = vunpack.c.h.b16 %v2108
    %v2196 = vunpack.c.l.b16 %v2109
    %v2197 = vunpack.c.h.b16 %v2109
    %v2198 = vunpack.c.l.b16 %v2110
    %v2199 = vunpack.c.h.b16 %v2110
    %v2200 = vunpack.c.l.b16 %v2111
    %v2201 = vunpack.c.h.b16 %v2111
    %v2202 = vunpack.c.l.b16 %v2112
    %v2203 = vunpack.c.h.b16 %v2112
    %v2204 = vunpack.c.l.b16 %v2113
    %v2205 = vunpack.c.h.b16 %v2113
    %v2206 = vunpack.c.l.b16 %v2114
    %v2207 = vunpack.c.h.b16 %v2114
    %v2208 = vunpack.c.l.b16 %v2115
    %v2209 = vunpack.c.h.b16 %v2115
    %v2210 = vunpack.c.l.b16 %v2116
    %v2211 = vunpack.c.h.b16 %v2116
    %v2212 = vunpack.c.l.b16 %v2117
    %v2213 = vunpack.c.h.b16 %v2117
    %v2214 = vunpack.c.l.b16 %v2118
    %v2215 = vunpack.c.h.b16 %v2118
    %v2216 = vunpack.c.l.b16 %v2119
    %v2217 = vunpack.c.h.b16 %v2119
    %v2218 = vunpack.c.l.b16 %v2120
    %v2219 = vunpack.c.h.b16 %v2120
    %v2220 = vunpack.c.l.b16 %v2121
    %v2221 = vunpack.c.h.b16 %v2121
    %v2222 = vunpack.c.l.b16 %v2122
    %v2223 = vunpack.c.h.b16 %v2122
    %v2224 = vunpack.c.l.b16 %v2123
    %v2225 = vunpack.c.h.b16 %v2123
    %v2226 = vunpack.c.l.b16 %v2124
    %v2227 = vunpack.c.h.b16 %v2124
    %v2228 = vunpack.c.l.b16 %v2125
    %v2229 = vunpack.c.h.b16 %v2125
    %v2230 = vunpack.c.l.b16 %v2126
    %v2231 = vunpack.c.h.b16 %v2126
    %v2232 = vunpack.c.l.b16 %v2127
    %v2233 = vunpack.c.h.b16 %v2127
    %v2234 = vunpack.c.l.b16 %v2128
    %v2235 = vunpack.c.h.b16 %v2128
    %v2236 = vunpack.c.l.b16 %v2129
    %v2237 = vunpack.c.h.b16 %v2129
    %v2238 = vpack.c.b16 %v2178, %v2174
    %v2239 = vpack.c.b16 %v2179, %v2175
    %v2240 = vpack.c.b16 %v2180, %v2176
    %v2241 = vpack.c.b16 %v2181, %v2177
    %v2242 = vpack.c.b16 %v2186, %v2182
    %v2243 = vpack.c.b16 %v2187, %v2183
    %v2244 = vpack.c.b16 %v2188, %v2184
    %v2245 = vpack.c.b16 %v2189, %v2185
    %v2246 = vpack.c.b16 %v2194, %v2190
    %v2247 = vpack.c.b16 %v2195, %v2191
    %v2248 = vpack.c.b16 %v2196, %v2192
    %v2249 = vpack.c.b16 %v2197, %v2193
    %v2250 = vpack.c.b16 %v2202, %v2198
    %v2251 = vpack.c.b16 %v2203, %v2199
    %v2252 = vpack.c.b16 %v2204, %v2200
    %v2253 = vpack.c.b16 %v2205, %v2201
    %v2254 = vpack.c.b16 %v2210, %v2206
    %v2255 = vpack.c.b16 %v2211, %v2207
    %v2256 = vpack.c.b16 %v2212, %v2208
    %v2257 = vpack.c.b16 %v2213, %v2209
    %v2258 = vpack.c.b16 %v2218, %v2214
    %v2259 = vpack.c.b16 %v2219, %v2215
    %v2260 = vpack.c.b16 %v2220, %v2216
    %v2261 = vpack.c.b16 %v2221, %v2217
    %v2262 = vpack.c.b16 %v2226, %v2222
    %v2263 = vpack.c.b16 %v2227, %v2223
    %v2264 = vpack.c.b16 %v2228, %v2224
    %v2265 = vpack.c.b16 %v2229, %v2225
    %v2266 = vpack.c.b16 %v2234, %v2230
    %v2267 = vpack.c.b16 %v2235, %v2231
    %v2268 = vpack.c.b16 %v2236, %v2232
    %v2269 = vpack.c.b16 %v2237, %v2233
    %2302 = vmatprep.subr.bf16.mxu0 %v2239
    %2303 = vmatpush1.bf16.msra.mxu0 %v2238
    %2304 = vmatprep.subr.bf16.mxu0 %v2243
    %2305 = vmatpush1.bf16.msra.mxu0 %v2242
    %2306 = vmatprep.subr.bf16.mxu0 %v2247
    %2307 = vmatpush1.bf16.msra.mxu0 %v2246
    %2308 = vmatprep.subr.bf16.mxu0 %v2251
    %2309 = vmatpush1.bf16.msra.mxu0 %v2250
    %2310 = vmatprep.subr.bf16.mxu0 %v2255
    %2311 = vmatpush1.bf16.msra.mxu0 %v2254
    %2312 = vmatprep.subr.bf16.mxu0 %v2259
    %2313 = vmatpush1.bf16.msra.mxu0 %v2258
    %2314 = vmatprep.subr.bf16.mxu0 %v2263
    %2315 = vmatpush1.bf16.msra.mxu0 %v2262
    %2316 = vmatprep.subr.bf16.mxu0 %v2267
    %2317 = vmatpush1.bf16.msra.mxu0 %v2266
    %2318 = vmatprep.subr.bf16.mxu0 0
    %2319 = vmatpush1.bf16.msra.mxu0 0
    %2320 = vmatprep.subr.bf16.mxu0 0
    %2321 = vmatpush1.bf16.msra.mxu0 0
    %2322 = vmatprep.subr.bf16.mxu0 0
    %2323 = vmatpush1.bf16.msra.mxu0 0
    %2324 = vmatprep.subr.bf16.mxu0 0
    %2325 = vmatpush1.bf16.msra.mxu0 0
    %2326 = vmatprep.subr.bf16.mxu0 0
    %2327 = vmatpush1.bf16.msra.mxu0 0
    %2328 = vmatprep.subr.bf16.mxu0 0
    %2329 = vmatpush1.bf16.msra.mxu0 0
    %2330 = vmatprep.subr.bf16.mxu0 0
    %2331 = vmatpush1.bf16.msra.mxu0 0
    %2332 = vmatprep.subr.bf16.mxu0 0
    %2333 = vmatpush1.bf16.msra.mxu0 0
    %2334 = vmatprep.mubr.bf16.mxu0 0
    %2335 = vmatmul.mubr.bf16.gmra.mrb[0].mxu0 0
    %v2336 = vpop.f32.mrb[0].mxu0
    %v2337 = vadd.f32 0.0, %v2336
    %v2338 = vpop.f32.mrb[0].mxu0
    %v2339 = vadd.f32 0.0, %v2338
    %v2340 = vpop.f32.mrb[0].mxu0
    %v2341 = vpop.f32.mrb[0].mxu0
    %2342 = vdwg.mxu0
    %2343 = vmatprep.subr.bf16.mxu0 %v2241
    %2344 = vmatpush1.bf16.msra.mxu0 %v2240
    %2345 = vmatprep.subr.bf16.mxu0 %v2245
    %2346 = vmatpush1.bf16.msra.mxu0 %v2244
    %2347 = vmatprep.subr.bf16.mxu0 %v2249
    %2348 = vmatpush1.bf16.msra.mxu0 %v2248
    %2349 = vmatprep.subr.bf16.mxu0 %v2253
    %2350 = vmatpush1.bf16.msra.mxu0 %v2252
    %2351 = vmatprep.subr.bf16.mxu0 %v2257
    %2352 = vmatpush1.bf16.msra.mxu0 %v2256
    %2353 = vmatprep.subr.bf16.mxu0 %v2261
    %2354 = vmatpush1.bf16.msra.mxu0 %v2260
    %2355 = vmatprep.subr.bf16.mxu0 %v2265
    %2356 = vmatpush1.bf16.msra.mxu0 %v2264
    %2357 = vmatprep.subr.bf16.mxu0 %v2269
    %2358 = vmatpush1.bf16.msra.mxu0 %v2268
    %2359 = vmatprep.subr.bf16.mxu0 0
    %2360 = vmatpush1.bf16.msra.mxu0 0
    %2361 = vmatprep.subr.bf16.mxu0 0
    %2362 = vmatpush1.bf16.msra.mxu0 0
    %2363 = vmatprep.subr.bf16.mxu0 0
    %2364 = vmatpush1.bf16.msra.mxu0 0
    %2365 = vmatprep.subr.bf16.mxu0 0
    %2366 = vmatpush1.bf16.msra.mxu0 0
    %2367 = vmatprep.subr.bf16.mxu0 0
    %2368 = vmatpush1.bf16.msra.mxu0 0
    %2369 = vmatprep.subr.bf16.mxu0 0
    %2370 = vmatpush1.bf16.msra.mxu0 0
    %2371 = vmatprep.subr.bf16.mxu0 0
    %2372 = vmatpush1.bf16.msra.mxu0 0
    %2373 = vmatprep.subr.bf16.mxu0 0
    %2374 = vmatpush1.bf16.msra.mxu0 0
    %2375 = vmatprep.mubr.bf16.mxu0 0
    %2376 = vmatmul.mubr.bf16.gmra.mrb[0].mxu0 0
    %v2377 = vpop.f32.mrb[0].mxu0
    %v2378 = vadd.f32 0.0, %v2377
    %v2379 = vpop.f32.mrb[0].mxu0
    %v2380 = vadd.f32 0.0, %v2379
    %v2381 = vpop.f32.mrb[0].mxu0
    %v2382 = vpop.f32.mrb[0].mxu0
    %2383 = vdwg.mxu0
    %v2384 = vadd.f32 %v2138, %v2337
    %v2385 = vadd.f32 %v2139, %v2339
    %v2386 = vadd.f32 %v2140, %v2378
    %v2387 = vadd.f32 %v2141, %v2380
    %v2388 = vxor.u32 %v2384, 2147483648
    %v2389 = vmul.f32 %v2388, 1.442695
    %v2390 = vpow.pop %v2389
    %v2391 = vadd.f32 %v2390, 1.0
    %v2392 = vrcp.pop %v2391
    %v2393 = vmul.f32 1.0, %v2392
    %v2394 = vxor.u32 %v2385, 2147483648
    %v2395 = vmul.f32 %v2394, 1.442695
    %v2396 = vpow.pop %v2395
    %v2397 = vadd.f32 %v2396, 1.0
    %v2398 = vrcp.pop %v2397
    %v2399 = vmul.f32 1.0, %v2398
    %v2400 = vtanh.pop %v2386
    %v2401 = vxor.u32 %v2387, 2147483648
    %v2402 = vmul.f32 %v2401, 1.442695
    %v2403 = vpow.pop %v2402
    %v2404 = vadd.f32 %v2403, 1.0
    %v2405 = vrcp.pop %v2404
    %v2406 = vmul.f32 1.0, %v2405
    %v2407 = vmul.f32 %v2399, 0.0
    %v2408 = vmul.f32 %v2393, %v2400
    %v2409 = vadd.f32 %v2407, %v2408
    %v2410 = vtanh.pop %v2409
    %v2411 = vmul.f32 %v2406, %v2410
    %2412 = vst [vmem:[#allocation3] sm:$0xff] %v2411
    %v2413 = vld [vmem:[#allocation2 + $0x20] sm:$0xff]
    %v2414 = vld [vmem:[#allocation2 + $0x28] sm:$0xff]
    %v2415 = vld [vmem:[#allocation2 + $0x30] sm:$0xff]
    %v2416 = vld [vmem:[#allocation2 + $0x38] sm:$0xff]
    %v2417 = vld [vmem:[#allocation2 + $0xc0] sm:$0xff]
    %v2418 = vld [vmem:[#allocation2 + $0xc8] sm:$0xff]
    %v2419 = vld [vmem:[#allocation2 + $0xd0] sm:$0xff]
    %v2420 = vld [vmem:[#allocation2 + $0xd8] sm:$0xff]
    %v2421 = vsel %vm534, %v2413, %v2417
    %v2422 = vsel %vm535, %v2414, %v2418
    %v2423 = vsel %vm536, %v2415, %v2419
    %v2424 = vsel %vm537, %v2416, %v2420
    %v2425 = vpack.c.bf16 %v2411, %v2411
    %2426 = vmatprep.subr.bf16.mxu0 %v2239
    %2427 = vmatpush1.bf16.msra.mxu0 %v2238
    %2428 = vmatprep.subr.bf16.mxu0 %v2243
    %2429 = vmatpush1.bf16.msra.mxu0 %v2242
    %2430 = vmatprep.subr.bf16.mxu0 %v2247
    %2431 = vmatpush1.bf16.msra.mxu0 %v2246
    %2432 = vmatprep.subr.bf16.mxu0 %v2251
    %2433 = vmatpush1.bf16.msra.mxu0 %v2250
    %2434 = vmatprep.subr.bf16.mxu0 %v2255
    %2435 = vmatpush1.bf16.msra.mxu0 %v2254
    %2436 = vmatprep.subr.bf16.mxu0 %v2259
    %2437 = vmatpush1.bf16.msra.mxu0 %v2258
    %2438 = vmatprep.subr.bf16.mxu0 %v2263
    %2439 = vmatpush1.bf16.msra.mxu0 %v2262
    %2440 = vmatprep.subr.bf16.mxu0 %v2267
    %2441 = vmatpush1.bf16.msra.mxu0 %v2266
    %2442 = vmatprep.subr.bf16.mxu0 0
    %2443 = vmatpush1.bf16.msra.mxu0 0
    %2444 = vmatprep.subr.bf16.mxu0 0
    %2445 = vmatpush1.bf16.msra.mxu0 0
    %2446 = vmatprep.subr.bf16.mxu0 0
    %2447 = vmatpush1.bf16.msra.mxu0 0
    %2448 = vmatprep.subr.bf16.mxu0 0
    %2449 = vmatpush1.bf16.msra.mxu0 0
    %2450 = vmatprep.subr.bf16.mxu0 0
    %2451 = vmatpush1.bf16.msra.mxu0 0
    %2452 = vmatprep.subr.bf16.mxu0 0
    %2453 = vmatpush1.bf16.msra.mxu0 0
    %2454 = vmatprep.subr.bf16.mxu0 0
    %2455 = vmatpush1.bf16.msra.mxu0 0
    %2456 = vmatprep.subr.bf16.mxu0 0
    %2457 = vmatpush1.bf16.msra.mxu0 0
    %2458 = vmatprep.mubr.bf16.mxu0 0
    %2459 = vmatmul.mubr.bf16.gmra.mrb[0].mxu0 %v2425
    %v2460 = vpop.f32.mrb[0].mxu0
    %v2461 = vadd.f32 0.0, %v2460
    %v2462 = vpop.f32.mrb[0].mxu0
    %v2463 = vadd.f32 0.0, %v2462
    %v2464 = vpop.f32.mrb[0].mxu0
    %v2465 = vpop.f32.mrb[0].mxu0
    %2466 = vdwg.mxu0
    %2467 = vmatprep.subr.bf16.mxu0 %v2241
    %2468 = vmatpush1.bf16.msra.mxu0 %v2240
    %2469 = vmatprep.subr.bf16.mxu0 %v2245
    %2470 = vmatpush1.bf16.msra.mxu0 %v2244
    %2471 = vmatprep.subr.bf16.mxu0 %v2249
    %2472 = vmatpush1.bf16.msra.mxu0 %v2248
    %2473 = vmatprep.subr.bf16.mxu0 %v2253
    %2474 = vmatpush1.bf16.msra.mxu0 %v2252
    %2475 = vmatprep.subr.bf16.mxu0 %v2257
    %2476 = vmatpush1.bf16.msra.mxu0 %v2256
    %2477 = vmatprep.subr.bf16.mxu0 %v2261
    %2478 = vmatpush1.bf16.msra.mxu0 %v2260
    %2479 = vmatprep.subr.bf16.mxu0 %v2265
    %2480 = vmatpush1.bf16.msra.mxu0 %v2264
    %2481 = vmatprep.subr.bf16.mxu0 %v2269
    %2482 = vmatpush1.bf16.msra.mxu0 %v2268
    %2483 = vmatprep.subr.bf16.mxu0 0
    %2484 = vmatpush1.bf16.msra.mxu0 0
    %2485 = vmatprep.subr.bf16.mxu0 0
    %2486 = vmatpush1.bf16.msra.mxu0 0
    %2487 = vmatprep.subr.bf16.mxu0 0
    %2488 = vmatpush1.bf16.msra.mxu0 0
    %2489 = vmatprep.subr.bf16.mxu0 0
    %2490 = vmatpush1.bf16.msra.mxu0 0
    %2491 = vmatprep.subr.bf16.mxu0 0
    %2492 = vmatpush1.bf16.msra.mxu0 0
    %2493 = vmatprep.subr.bf16.mxu0 0
    %2494 = vmatpush1.bf16.msra.mxu0 0
    %2495 = vmatprep.subr.bf16.mxu0 0
    %2496 = vmatpush1.bf16.msra.mxu0 0
    %2497 = vmatprep.subr.bf16.mxu0 0
    %2498 = vmatpush1.bf16.msra.mxu0 0
    %2499 = vmatprep.mubr.bf16.mxu0 0
    %2500 = vmatmul.mubr.bf16.gmra.mrb[0].mxu0 %v2425
    %v2501 = vpop.f32.mrb[0].mxu0
    %v2502 = vadd.f32 0.0, %v2501
    %v2503 = vpop.f32.mrb[0].mxu0
    %v2504 = vadd.f32 0.0, %v2503
    %v2505 = vpop.f32.mrb[0].mxu0
    %v2506 = vpop.f32.mrb[0].mxu0
    %2507 = vdwg.mxu0
    %v2508 = vadd.f32 %v2421, %v2461
    %v2509 = vadd.f32 %v2422, %v2463
    %v2510 = vadd.f32 %v2423, %v2502
    %v2511 = vadd.f32 %v2424, %v2504
    %v2512 = vxor.u32 %v2508, 2147483648
    %v2513 = vmul.f32 %v2512, 1.442695
    %v2514 = vpow.pop %v2513
    %v2515 = vadd.f32 %v2514, 1.0
    %v2516 = vrcp.pop %v2515
    %v2517 = vmul.f32 1.0, %v2516
    %v2518 = vxor.u32 %v2509, 2147483648
    %v2519 = vmul.f32 %v2518, 1.442695
    %v2520 = vpow.pop %v2519
    %v2521 = vadd.f32 %v2520, 1.0
    %v2522 = vrcp.pop %v2521
    %v2523 = vmul.f32 1.0, %v2522
    %v2524 = vtanh.pop %v2510
    %v2525 = vxor.u32 %v2511, 2147483648
    %v2526 = vmul.f32 %v2525, 1.442695
    %v2527 = vpow.pop %v2526
    %v2528 = vadd.f32 %v2527, 1.0
    %v2529 = vrcp.pop %v2528
    %v2530 = vmul.f32 1.0, %v2529
    %v2531 = vmul.f32 %v2523, %v2409
    %v2532 = vmul.f32 %v2517, %v2524
    %v2533 = vadd.f32 %v2531, %v2532
    %v2534 = vtanh.pop %v2533
    %v2535 = vmul.f32 %v2530, %v2534
    %2536 = vst [vmem:[#allocation3 + $0x8] sm:$0xff] %v2535
    %v2537 = vld [vmem:[#allocation2 + $0x40] sm:$0xff]
    %v2538 = vld [vmem:[#allocation2 + $0x48] sm:$0xff]
    %v2539 = vld [vmem:[#allocation2 + $0x50] sm:$0xff]
    %v2540 = vld [vmem:[#allocation2 + $0x58] sm:$0xff]
    %v2541 = vld [vmem:[#allocation2 + $0xa0] sm:$0xff]
    %v2542 = vld [vmem:[#allocation2 + $0xa8] sm:$0xff]
    %v2543 = vld [vmem:[#allocation2 + $0xb0] sm:$0xff]
    %v2544 = vld [vmem:[#allocation2 + $0xb8] sm:$0xff]
    %v2545 = vsel %vm534, %v2537, %v2541
    %v2546 = vsel %vm535, %v2538, %v2542
    %v2547 = vsel %vm536, %v2539, %v2543
    %v2548 = vsel %vm537, %v2540, %v2544
    %v2549 = vpack.c.bf16 %v2535, %v2535
    %2550 = vmatprep.subr.bf16.mxu0 %v2239
    %2551 = vmatpush1.bf16.msra.mxu0 %v2238
    %2552 = vmatprep.subr.bf16.mxu0 %v2243
    %2553 = vmatpush1.bf16.msra.mxu0 %v2242
    %2554 = vmatprep.subr.bf16.mxu0 %v2247
    %2555 = vmatpush1.bf16.msra.mxu0 %v2246
    %2556 = vmatprep.subr.bf16.mxu0 %v2251
    %2557 = vmatpush1.bf16.msra.mxu0 %v2250
    %2558 = vmatprep.subr.bf16.mxu0 %v2255
    %2559 = vmatpush1.bf16.msra.mxu0 %v2254
    %2560 = vmatprep.subr.bf16.mxu0 %v2259
    %2561 = vmatpush1.bf16.msra.mxu0 %v2258
    %2562 = vmatprep.subr.bf16.mxu0 %v2263
    %2563 = vmatpush1.bf16.msra.mxu0 %v2262
    %2564 = vmatprep.subr.bf16.mxu0 %v2267
    %2565 = vmatpush1.bf16.msra.mxu0 %v2266
    %2566 = vmatprep.subr.bf16.mxu0 0
    %2567 = vmatpush1.bf16.msra.mxu0 0
    %2568 = vmatprep.subr.bf16.mxu0 0
    %2569 = vmatpush1.bf16.msra.mxu0 0
    %2570 = vmatprep.subr.bf16.mxu0 0
    %2571 = vmatpush1.bf16.msra.mxu0 0
    %2572 = vmatprep.subr.bf16.mxu0 0
    %2573 = vmatpush1.bf16.msra.mxu0 0
    %2574 = vmatprep.subr.bf16.mxu0 0
    %2575 = vmatpush1.bf16.msra.mxu0 0
    %2576 = vmatprep.subr.bf16.mxu0 0
    %2577 = vmatpush1.bf16.msra.mxu0 0
    %2578 = vmatprep.subr.bf16.mxu0 0
    %2579 = vmatpush1.bf16.msra.mxu0 0
    %2580 = vmatprep.subr.bf16.mxu0 0
    %2581 = vmatpush1.bf16.msra.mxu0 0
    %2582 = vmatprep.mubr.bf16.mxu0 0
    %2583 = vmatmul.mubr.bf16.gmra.mrb[0].mxu0 %v2549
    %v2584 = vpop.f32.mrb[0].mxu0
    %v2585 = vadd.f32 0.0, %v2584
    %v2586 = vpop.f32.mrb[0].mxu0
    %v2587 = vadd.f32 0.0, %v2586
    %v2588 = vpop.f32.mrb[0].mxu0
    %v2589 = vpop.f32.mrb[0].mxu0
    %2590 = vdwg.mxu0
    %2591 = vmatprep.subr.bf16.mxu0 %v2241
    %2592 = vmatpush1.bf16.msra.mxu0 %v2240
    %2593 = vmatprep.subr.bf16.mxu0 %v2245
    %2594 = vmatpush1.bf16.msra.mxu0 %v2244
    %2595 = vmatprep.subr.bf16.mxu0 %v2249
    %2596 = vmatpush1.bf16.msra.mxu0 %v2248
    %2597 = vmatprep.subr.bf16.mxu0 %v2253
    %2598 = vmatpush1.bf16.msra.mxu0 %v2252
    %2599 = vmatprep.subr.bf16.mxu0 %v2257
    %2600 = vmatpush1.bf16.msra.mxu0 %v2256
    %2601 = vmatprep.subr.bf16.mxu0 %v2261
    %2602 = vmatpush1.bf16.msra.mxu0 %v2260
    %2603 = vmatprep.subr.bf16.mxu0 %v2265
    %2604 = vmatpush1.bf16.msra.mxu0 %v2264
    %2605 = vmatprep.subr.bf16.mxu0 %v2269
    %2606 = vmatpush1.bf16.msra.mxu0 %v2268
    %2607 = vmatprep.subr.bf16.mxu0 0
    %2608 = vmatpush1.bf16.msra.mxu0 0
    %2609 = vmatprep.subr.bf16.mxu0 0
    %2610 = vmatpush1.bf16.msra.mxu0 0
    %2611 = vmatprep.subr.bf16.mxu0 0
    %2612 = vmatpush1.bf16.msra.mxu0 0
    %2613 = vmatprep.subr.bf16.mxu0 0
    %2614 = vmatpush1.bf16.msra.mxu0 0
    %2615 = vmatprep.subr.bf16.mxu0 0
    %2616 = vmatpush1.bf16.msra.mxu0 0
    %2617 = vmatprep.subr.bf16.mxu0 0
    %2618 = vmatpush1.bf16.msra.mxu0 0
    %2619 = vmatprep.subr.bf16.mxu0 0
    %2620 = vmatpush1.bf16.msra.mxu0 0
    %2621 = vmatprep.subr.bf16.mxu0 0
    %2622 = vmatpush1.bf16.msra.mxu0 0
    %2623 = vmatprep.mubr.bf16.mxu0 0
    %2624 = vmatmul.mubr.bf16.gmra.mrb[0].mxu0 %v2549
    %v2625 = vpop.f32.mrb[0].mxu0
    %v2626 = vadd.f32 0.0, %v2625
    %v2627 = vpop.f32.mrb[0].mxu0
    %v2628 = vadd.f32 0.0, %v2627
    %v2629 = vpop.f32.mrb[0].mxu0
    %v2630 = vpop.f32.mrb[0].mxu0
    %2631 = vdwg.mxu0
    %v2632 = vadd.f32 %v2545, %v2585
    %v2633 = vadd.f32 %v2546, %v2587
    %v2634 = vadd.f32 %v2547, %v2626
    %v2635 = vadd.f32 %v2548, %v2628
    %v2636 = vxor.u32 %v2632, 2147483648
    %v2637 = vmul.f32 %v2636, 1.442695
    %v2638 = vpow.pop %v2637
    %v2639 = vadd.f32 %v2638, 1.0
    %v2640 = vrcp.pop %v2639
    %v2641 = vmul.f32 1.0, %v2640
    %v2642 = vxor.u32 %v2633, 2147483648
    %v2643 = vmul.f32 %v2642, 1.442695
    %v2644 = vpow.pop %v2643
    %v2645 = vadd.f32 %v2644, 1.0
    %v2646 = vrcp.pop %v2645
    %v2647 = vmul.f32 1.0, %v2646
    %v2648 = vtanh.pop %v2634
    %v2649 = vxor.u32 %v2635, 2147483648
    %v2650 = vmul.f32 %v2649, 1.442695
    %v2651 = vpow.pop %v2650
    %v2652 = vadd.f32 %v2651, 1.0
    %v2653 = vrcp.pop %v2652
    %v2654 = vmul.f32 1.0, %v2653
    %v2655 = vmul.f32 %v2647, %v2533
    %v2656 = vmul.f32 %v2641, %v2648
    %v2657 = vadd.f32 %v2655, %v2656
    %v2658 = vtanh.pop %v2657
    %v2659 = vmul.f32 %v2654, %v2658
    %2660 = vst [vmem:[#allocation3 + $0x10] sm:$0xff] %v2659
    %v2661 = vld [vmem:[#allocation2 + $0x60] sm:$0xff]
    %v2662 = vld [vmem:[#allocation2 + $0x68] sm:$0xff]
    %v2663 = vld [vmem:[#allocation2 + $0x70] sm:$0xff]
    %v2664 = vld [vmem:[#allocation2 + $0x78] sm:$0xff]
    %v2665 = vld [vmem:[#allocation2 + $0x80] sm:$0xff]
    %v2666 = vld [vmem:[#allocation2 + $0x88] sm:$0xff]
    %v2667 = vld [vmem:[#allocation2 + $0x90] sm:$0xff]
    %v2668 = vld [vmem:[#allocation2 + $0x98] sm:$0xff]
    %v2669 = vsel %vm534, %v2661, %v2665
    %v2670 = vsel %vm535, %v2662, %v2666
    %v2671 = vsel %vm536, %v2663, %v2667
    %v2672 = vsel %vm537, %v2664, %v2668
    %v2673 = vpack.c.bf16 %v2659, %v2659
    %2674 = vmatprep.subr.bf16.mxu0 %v2239
    %2675 = vmatpush1.bf16.msra.mxu0 %v2238
    %2676 = vmatprep.subr.bf16.mxu0 %v2243
    %2677 = vmatpush1.bf16.msra.mxu0 %v2242
    %2678 = vmatprep.subr.bf16.mxu0 %v2247
    %2679 = vmatpush1.bf16.msra.mxu0 %v2246
    %2680 = vmatprep.subr.bf16.mxu0 %v2251
    %2681 = vmatpush1.bf16.msra.mxu0 %v2250
    %2682 = vmatprep.subr.bf16.mxu0 %v2255
    %2683 = vmatpush1.bf16.msra.mxu0 %v2254
    %2684 = vmatprep.subr.bf16.mxu0 %v2259
    %2685 = vmatpush1.bf16.msra.mxu0 %v2258
    %2686 = vmatprep.subr.bf16.mxu0 %v2263
    %2687 = vmatpush1.bf16.msra.mxu0 %v2262
    %2688 = vmatprep.subr.bf16.mxu0 %v2267
    %2689 = vmatpush1.bf16.msra.mxu0 %v2266
    %2690 = vmatprep.subr.bf16.mxu0 0
    %2691 = vmatpush1.bf16.msra.mxu0 0
    %2692 = vmatprep.subr.bf16.mxu0 0
    %2693 = vmatpush1.bf16.msra.mxu0 0
    %2694 = vmatprep.subr.bf16.mxu0 0
    %2695 = vmatpush1.bf16.msra.mxu0 0
    %2696 = vmatprep.subr.bf16.mxu0 0
    %2697 = vmatpush1.bf16.msra.mxu0 0
    %2698 = vmatprep.subr.bf16.mxu0 0
    %2699 = vmatpush1.bf16.msra.mxu0 0
    %2700 = vmatprep.subr.bf16.mxu0 0
    %2701 = vmatpush1.bf16.msra.mxu0 0
    %2702 = vmatprep.subr.bf16.mxu0 0
    %2703 = vmatpush1.bf16.msra.mxu0 0
    %2704 = vmatprep.subr.bf16.mxu0 0
    %2705 = vmatpush1.bf16.msra.mxu0 0
    %2706 = vmatprep.mubr.bf16.mxu0 0
    %2707 = vmatmul.mubr.bf16.gmra.mrb[0].mxu0 %v2673
    %v2708 = vpop.f32.mrb[0].mxu0
    %v2709 = vadd.f32 0.0, %v2708
    %v2710 = vpop.f32.mrb[0].mxu0
    %v2711 = vadd.f32 0.0, %v2710
    %v2712 = vpop.f32.mrb[0].mxu0
    %v2713 = vpop.f32.mrb[0].mxu0
    %2714 = vdwg.mxu0
    %2715 = vmatprep.subr.bf16.mxu0 %v2241
    %2716 = vmatpush1.bf16.msra.mxu0 %v2240
    %2717 = vmatprep.subr.bf16.mxu0 %v2245
    %2718 = vmatpush1.bf16.msra.mxu0 %v2244
    %2719 = vmatprep.subr.bf16.mxu0 %v2249
    %2720 = vmatpush1.bf16.msra.mxu0 %v2248
    %2721 = vmatprep.subr.bf16.mxu0 %v2253
    %2722 = vmatpush1.bf16.msra.mxu0 %v2252
    %2723 = vmatprep.subr.bf16.mxu0 %v2257
    %2724 = vmatpush1.bf16.msra.mxu0 %v2256
    %2725 = vmatprep.subr.bf16.mxu0 %v2261
    %2726 = vmatpush1.bf16.msra.mxu0 %v2260
    %2727 = vmatprep.subr.bf16.mxu0 %v2265
    %2728 = vmatpush1.bf16.msra.mxu0 %v2264
    %2729 = vmatprep.subr.bf16.mxu0 %v2269
    %2730 = vmatpush1.bf16.msra.mxu0 %v2268
    %2731 = vmatprep.subr.bf16.mxu0 0
    %2732 = vmatpush1.bf16.msra.mxu0 0
    %2733 = vmatprep.subr.bf16.mxu0 0
    %2734 = vmatpush1.bf16.msra.mxu0 0
    %2735 = vmatprep.subr.bf16.mxu0 0
    %2736 = vmatpush1.bf16.msra.mxu0 0
    %2737 = vmatprep.subr.bf16.mxu0 0
    %2738 = vmatpush1.bf16.msra.mxu0 0
    %2739 = vmatprep.subr.bf16.mxu0 0
    %2740 = vmatpush1.bf16.msra.mxu0 0
    %2741 = vmatprep.subr.bf16.mxu0 0
    %2742 = vmatpush1.bf16.msra.mxu0 0
    %2743 = vmatprep.subr.bf16.mxu0 0
    %2744 = vmatpush1.bf16.msra.mxu0 0
    %2745 = vmatprep.subr.bf16.mxu0 0
    %2746 = vmatpush1.bf16.msra.mxu0 0
    %2747 = vmatprep.mubr.bf16.mxu0 0
    %2748 = vmatmul.mubr.bf16.gmra.mrb[0].mxu0 %v2673
    %v2749 = vpop.f32.mrb[0].mxu0
    %v2750 = vadd.f32 0.0, %v2749
    %v2751 = vpop.f32.mrb[0].mxu0
    %v2752 = vadd.f32 0.0, %v2751
    %v2753 = vpop.f32.mrb[0].mxu0
    %v2754 = vpop.f32.mrb[0].mxu0
    %2755 = vdwg.mxu0
    %v2756 = vadd.f32 %v2669, %v2709
    %v2757 = vadd.f32 %v2670, %v2711
    %v2758 = vadd.f32 %v2671, %v2750
    %v2759 = vadd.f32 %v2672, %v2752
    %v2760 = vxor.u32 %v2756, 2147483648
    %v2761 = vmul.f32 %v2760, 1.442695
    %v2762 = vpow.pop %v2761
    %v2763 = vadd.f32 %v2762, 1.0
    %v2764 = vrcp.pop %v2763
    %v2765 = vmul.f32 1.0, %v2764
    %v2766 = vxor.u32 %v2757, 2147483648
    %v2767 = vmul.f32 %v2766, 1.442695
    %v2768 = vpow.pop %v2767
    %v2769 = vadd.f32 %v2768, 1.0
    %v2770 = vrcp.pop %v2769
    %v2771 = vmul.f32 1.0, %v2770
    %v2772 = vtanh.pop %v2758
    %v2773 = vxor.u32 %v2759, 2147483648
    %v2774 = vmul.f32 %v2773, 1.442695
    %v2775 = vpow.pop %v2774
    %v2776 = vadd.f32 %v2775, 1.0
    %v2777 = vrcp.pop %v2776
    %v2778 = vmul.f32 1.0, %v2777
    %v2779 = vmul.f32 %v2771, %v2657
    %v2780 = vmul.f32 %v2765, %v2772
    %v2781 = vadd.f32 %v2779, %v2780
    %v2782 = vtanh.pop %v2781
    %v2783 = vmul.f32 %v2778, %v2782
    %2784 = vst [vmem:[#allocation3 + $0x18] sm:$0xff] %v2783
    %v2785 = vld [vmem:[#allocation2 + $0x80] sm:$0xff]
    %v2786 = vld [vmem:[#allocation2 + $0x88] sm:$0xff]
    %v2787 = vld [vmem:[#allocation2 + $0x90] sm:$0xff]
    %v2788 = vld [vmem:[#allocation2 + $0x98] sm:$0xff]
    %v2789 = vld [vmem:[#allocation2 + $0x60] sm:$0xff]
    %v2790 = vld [vmem:[#allocation2 + $0x68] sm:$0xff]
    %v2791 = vld [vmem:[#allocation2 + $0x70] sm:$0xff]
    %v2792 = vld [vmem:[#allocation2 + $0x78] sm:$0xff]
    %v2793 = vsel %vm534, %v2785, %v2789
    %v2794 = vsel %vm535, %v2786, %v2790
    %v2795 = vsel %vm536, %v2787, %v2791
    %v2796 = vsel %vm537, %v2788, %v2792
    %v2797 = vpack.c.bf16 %v2783, %v2783
    %2798 = vmatprep.subr.bf16.mxu0 %v2239
    %2799 = vmatpush1.bf16.msra.mxu0 %v2238
    %2800 = vmatprep.subr.bf16.mxu0 %v2243
    %2801 = vmatpush1.bf16.msra.mxu0 %v2242
    %2802 = vmatprep.subr.bf16.mxu0 %v2247
    %2803 = vmatpush1.bf16.msra.mxu0 %v2246
    %2804 = vmatprep.subr.bf16.mxu0 %v2251
    %2805 = vmatpush1.bf16.msra.mxu0 %v2250
    %2806 = vmatprep.subr.bf16.mxu0 %v2255
    %2807 = vmatpush1.bf16.msra.mxu0 %v2254
    %2808 = vmatprep.subr.bf16.mxu0 %v2259
    %2809 = vmatpush1.bf16.msra.mxu0 %v2258
    %2810 = vmatprep.subr.bf16.mxu0 %v2263
    %2811 = vmatpush1.bf16.msra.mxu0 %v2262
    %2812 = vmatprep.subr.bf16.mxu0 %v2267
    %2813 = vmatpush1.bf16.msra.mxu0 %v2266
    %2814 = vmatprep.subr.bf16.mxu0 0
    %2815 = vmatpush1.bf16.msra.mxu0 0
    %2816 = vmatprep.subr.bf16.mxu0 0
    %2817 = vmatpush1.bf16.msra.mxu0 0
    %2818 = vmatprep.subr.bf16.mxu0 0
    %2819 = vmatpush1.bf16.msra.mxu0 0
    %2820 = vmatprep.subr.bf16.mxu0 0
    %2821 = vmatpush1.bf16.msra.mxu0 0
    %2822 = vmatprep.subr.bf16.mxu0 0
    %2823 = vmatpush1.bf16.msra.mxu0 0
    %2824 = vmatprep.subr.bf16.mxu0 0
    %2825 = vmatpush1.bf16.msra.mxu0 0
    %2826 = vmatprep.subr.bf16.mxu0 0
    %2827 = vmatpush1.bf16.msra.mxu0 0
    %2828 = vmatprep.subr.bf16.mxu0 0
    %2829 = vmatpush1.bf16.msra.mxu0 0
    %2830 = vmatprep.mubr.bf16.mxu0 0
    %2831 = vmatmul.mubr.bf16.gmra.mrb[0].mxu0 %v2797
    %v2832 = vpop.f32.mrb[0].mxu0
    %v2833 = vadd.f32 0.0, %v2832
    %v2834 = vpop.f32.mrb[0].mxu0
    %v2835 = vadd.f32 0.0, %v2834
    %v2836 = vpop.f32.mrb[0].mxu0
    %v2837 = vpop.f32.mrb[0].mxu0
    %2838 = vdwg.mxu0
    %2839 = vmatprep.subr.bf16.mxu0 %v2241
    %2840 = vmatpush1.bf16.msra.mxu0 %v2240
    %2841 = vmatprep.subr.bf16.mxu0 %v2245
    %2842 = vmatpush1.bf16.msra.mxu0 %v2244
    %2843 = vmatprep.subr.bf16.mxu0 %v2249
    %2844 = vmatpush1.bf16.msra.mxu0 %v2248
    %2845 = vmatprep.subr.bf16.mxu0 %v2253
    %2846 = vmatpush1.bf16.msra.mxu0 %v2252
    %2847 = vmatprep.subr.bf16.mxu0 %v2257
    %2848 = vmatpush1.bf16.msra.mxu0 %v2256
    %2849 = vmatprep.subr.bf16.mxu0 %v2261
    %2850 = vmatpush1.bf16.msra.mxu0 %v2260
    %2851 = vmatprep.subr.bf16.mxu0 %v2265
    %2852 = vmatpush1.bf16.msra.mxu0 %v2264
    %2853 = vmatprep.subr.bf16.mxu0 %v2269
    %2854 = vmatpush1.bf16.msra.mxu0 %v2268
    %2855 = vmatprep.subr.bf16.mxu0 0
    %2856 = vmatpush1.bf16.msra.mxu0 0
    %2857 = vmatprep.subr.bf16.mxu0 0
    %2858 = vmatpush1.bf16.msra.mxu0 0
    %2859 = vmatprep.subr.bf16.mxu0 0
    %2860 = vmatpush1.bf16.msra.mxu0 0
    %2861 = vmatprep.subr.bf16.mxu0 0
    %2862 = vmatpush1.bf16.msra.mxu0 0
    %2863 = vmatprep.subr.bf16.mxu0 0
    %2864 = vmatpush1.bf16.msra.mxu0 0
    %2865 = vmatprep.subr.bf16.mxu0 0
    %2866 = vmatpush1.bf16.msra.mxu0 0
    %2867 = vmatprep.subr.bf16.mxu0 0
    %2868 = vmatpush1.bf16.msra.mxu0 0
    %2869 = vmatprep.subr.bf16.mxu0 0
    %2870 = vmatpush1.bf16.msra.mxu0 0
    %2871 = vmatprep.mubr.bf16.mxu0 0
    %2872 = vmatmul.mubr.bf16.gmra.mrb[0].mxu0 %v2797
    %v2873 = vpop.f32.mrb[0].mxu0
    %v2874 = vadd.f32 0.0, %v2873
    %v2875 = vpop.f32.mrb[0].mxu0
    %v2876 = vadd.f32 0.0, %v2875
    %v2877 = vpop.f32.mrb[0].mxu0
    %v2878 = vpop.f32.mrb[0].mxu0
    %2879 = vdwg.mxu0
    %v2880 = vadd.f32 %v2793, %v2833
    %v2881 = vadd.f32 %v2794, %v2835
    %v2882 = vadd.f32 %v2795, %v2874
    %v2883 = vadd.f32 %v2796, %v2876
    %v2884 = vxor.u32 %v2880, 2147483648
    %v2885 = vmul.f32 %v2884, 1.442695
    %v2886 = vpow.pop %v2885
    %v2887 = vadd.f32 %v2886, 1.0
    %v2888 = vrcp.pop %v2887
    %v2889 = vmul.f32 1.0, %v2888
    %v2890 = vxor.u32 %v2881, 2147483648
    %v2891 = vmul.f32 %v2890, 1.442695
    %v2892 = vpow.pop %v2891
    %v2893 = vadd.f32 %v2892, 1.0
    %v2894 = vrcp.pop %v2893
    %v2895 = vmul.f32 1.0, %v2894
    %v2896 = vtanh.pop %v2882
    %v2897 = vxor.u32 %v2883, 2147483648
    %v2898 = vmul.f32 %v2897, 1.442695
    %v2899 = vpow.pop %v2898
    %v2900 = vadd.f32 %v2899, 1.0
    %v2901 = vrcp.pop %v2900
    %v2902 = vmul.f32 1.0, %v2901
    %v2903 = vmul.f32 %v2895, %v2781
    %v2904 = vmul.f32 %v2889, %v2896
    %v2905 = vadd.f32 %v2903, %v2904
    %v2906 = vtanh.pop %v2905
    %v2907 = vmul.f32 %v2902, %v2906
    %2908 = vst [vmem:[#allocation3 + $0x20] sm:$0xff] %v2907
    %v2909 = vld [vmem:[#allocation2 + $0xa0] sm:$0xff]
    %v2910 = vld [vmem:[#allocation2 + $0xa8] sm:$0xff]
    %v2911 = vld [vmem:[#allocation2 + $0xb0] sm:$0xff]
    %v2912 = vld [vmem:[#allocation2 + $0xb8] sm:$0xff]
    %v2913 = vld [vmem:[#allocation2 + $0x40] sm:$0xff]
    %v2914 = vld [vmem:[#allocation2 + $0x48] sm:$0xff]
    %v2915 = vld [vmem:[#allocation2 + $0x50] sm:$0xff]
    %v2916 = vld [vmem:[#allocation2 + $0x58] sm:$0xff]
    %v2917 = vsel %vm534, %v2909, %v2913
    %v2918 = vsel %vm535, %v2910, %v2914
    %v2919 = vsel %vm536, %v2911, %v2915
    %v2920 = vsel %vm537, %v2912, %v2916
    %v2921 = vpack.c.bf16 %v2907, %v2907
    %2922 = vmatprep.subr.bf16.mxu0 %v2239
    %2923 = vmatpush1.bf16.msra.mxu0 %v2238
    %2924 = vmatprep.subr.bf16.mxu0 %v2243
    %2925 = vmatpush1.bf16.msra.mxu0 %v2242
    %2926 = vmatprep.subr.bf16.mxu0 %v2247
    %2927 = vmatpush1.bf16.msra.mxu0 %v2246
    %2928 = vmatprep.subr.bf16.mxu0 %v2251
    %2929 = vmatpush1.bf16.msra.mxu0 %v2250
    %2930 = vmatprep.subr.bf16.mxu0 %v2255
    %2931 = vmatpush1.bf16.msra.mxu0 %v2254
    %2932 = vmatprep.subr.bf16.mxu0 %v2259
    %2933 = vmatpush1.bf16.msra.mxu0 %v2258
    %2934 = vmatprep.subr.bf16.mxu0 %v2263
    %2935 = vmatpush1.bf16.msra.mxu0 %v2262
    %2936 = vmatprep.subr.bf16.mxu0 %v2267
    %2937 = vmatpush1.bf16.msra.mxu0 %v2266
    %2938 = vmatprep.subr.bf16.mxu0 0
    %2939 = vmatpush1.bf16.msra.mxu0 0
    %2940 = vmatprep.subr.bf16.mxu0 0
    %2941 = vmatpush1.bf16.msra.mxu0 0
    %2942 = vmatprep.subr.bf16.mxu0 0
    %2943 = vmatpush1.bf16.msra.mxu0 0
    %2944 = vmatprep.subr.bf16.mxu0 0
    %2945 = vmatpush1.bf16.msra.mxu0 0
    %2946 = vmatprep.subr.bf16.mxu0 0
    %2947 = vmatpush1.bf16.msra.mxu0 0
    %2948 = vmatprep.subr.bf16.mxu0 0
    %2949 = vmatpush1.bf16.msra.mxu0 0
    %2950 = vmatprep.subr.bf16.mxu0 0
    %2951 = vmatpush1.bf16.msra.mxu0 0
    %2952 = vmatprep.subr.bf16.mxu0 0
    %2953 = vmatpush1.bf16.msra.mxu0 0
    %2954 = vmatprep.mubr.bf16.mxu0 0
    %2955 = vmatmul.mubr.bf16.gmra.mrb[0].mxu0 %v2921
    %v2956 = vpop.f32.mrb[0].mxu0
    %v2957 = vadd.f32 0.0, %v2956
    %v2958 = vpop.f32.mrb[0].mxu0
    %v2959 = vadd.f32 0.0, %v2958
    %v2960 = vpop.f32.mrb[0].mxu0
    %v2961 = vpop.f32.mrb[0].mxu0
    %2962 = vdwg.mxu0
    %2963 = vmatprep.subr.bf16.mxu0 %v2241
    %2964 = vmatpush1.bf16.msra.mxu0 %v2240
    %2965 = vmatprep.subr.bf16.mxu0 %v2245
    %2966 = vmatpush1.bf16.msra.mxu0 %v2244
    %2967 = vmatprep.subr.bf16.mxu0 %v2249
    %2968 = vmatpush1.bf16.msra.mxu0 %v2248
    %2969 = vmatprep.subr.bf16.mxu0 %v2253
    %2970 = vmatpush1.bf16.msra.mxu0 %v2252
    %2971 = vmatprep.subr.bf16.mxu0 %v2257
    %2972 = vmatpush1.bf16.msra.mxu0 %v2256
    %2973 = vmatprep.subr.bf16.mxu0 %v2261
    %2974 = vmatpush1.bf16.msra.mxu0 %v2260
    %2975 = vmatprep.subr.bf16.mxu0 %v2265
    %2976 = vmatpush1.bf16.msra.mxu0 %v2264
    %2977 = vmatprep.subr.bf16.mxu0 %v2269
    %2978 = vmatpush1.bf16.msra.mxu0 %v2268
    %2979 = vmatprep.subr.bf16.mxu0 0
    %2980 = vmatpush1.bf16.msra.mxu0 0
    %2981 = vmatprep.subr.bf16.mxu0 0
    %2982 = vmatpush1.bf16.msra.mxu0 0
    %2983 = vmatprep.subr.bf16.mxu0 0
    %2984 = vmatpush1.bf16.msra.mxu0 0
    %2985 = vmatprep.subr.bf16.mxu0 0
    %2986 = vmatpush1.bf16.msra.mxu0 0
    %2987 = vmatprep.subr.bf16.mxu0 0
    %2988 = vmatpush1.bf16.msra.mxu0 0
    %2989 = vmatprep.subr.bf16.mxu0 0
    %2990 = vmatpush1.bf16.msra.mxu0 0
    %2991 = vmatprep.subr.bf16.mxu0 0
    %2992 = vmatpush1.bf16.msra.mxu0 0
    %2993 = vmatprep.subr.bf16.mxu0 0
    %2994 = vmatpush1.bf16.msra.mxu0 0
    %2995 = vmatprep.mubr.bf16.mxu0 0
    %2996 = vmatmul.mubr.bf16.gmra.mrb[0].mxu0 %v2921
    %v2997 = vpop.f32.mrb[0].mxu0
    %v2998 = vadd.f32 0.0, %v2997
    %v2999 = vpop.f32.mrb[0].mxu0
    %v3000 = vadd.f32 0.0, %v2999
    %v3001 = vpop.f32.mrb[0].mxu0
    %v3002 = vpop.f32.mrb[0].mxu0
    %3003 = vdwg.mxu0
    %v3004 = vadd.f32 %v2917, %v2957
    %v3005 = vadd.f32 %v2918, %v2959
    %v3006 = vadd.f32 %v2919, %v2998
    %v3007 = vadd.f32 %v2920, %v3000
    %v3008 = vxor.u32 %v3004, 2147483648
    %v3009 = vmul.f32 %v3008, 1.442695
    %v3010 = vpow.pop %v3009
    %v3011 = vadd.f32 %v3010, 1.0
    %v3012 = vrcp.pop %v3011
    %v3013 = vmul.f32 1.0, %v3012
    %v3014 = vxor.u32 %v3005, 2147483648
    %v3015 = vmul.f32 %v3014, 1.442695
    %v3016 = vpow.pop %v3015
    %v3017 = vadd.f32 %v3016, 1.0
    %v3018 = vrcp.pop %v3017
    %v3019 = vmul.f32 1.0, %v3018
    %v3020 = vtanh.pop %v3006
    %v3021 = vxor.u32 %v3007, 2147483648
    %v3022 = vmul.f32 %v3021, 1.442695
    %v3023 = vpow.pop %v3022
    %v3024 = vadd.f32 %v3023, 1.0
    %v3025 = vrcp.pop %v3024
    %v3026 = vmul.f32 1.0, %v3025
    %v3027 = vmul.f32 %v3019, %v2905
    %v3028 = vmul.f32 %v3013, %v3020
    %v3029 = vadd.f32 %v3027, %v3028
    %v3030 = vtanh.pop %v3029
    %v3031 = vmul.f32 %v3026, %v3030
    %3032 = vst [vmem:[#allocation3 + $0x28] sm:$0xff] %v3031
    %v3033 = vld [vmem:[#allocation2 + $0xc0] sm:$0xff]
    %v3034 = vld [vmem:[#allocation2 + $0xc8] sm:$0xff]
    %v3035 = vld [vmem:[#allocation2 + $0xd0] sm:$0xff]
    %v3036 = vld [vmem:[#allocation2 + $0xd8] sm:$0xff]
    %v3037 = vld [vmem:[#allocation2 + $0x20] sm:$0xff]
    %v3038 = vld [vmem:[#allocation2 + $0x28] sm:$0xff]
    %v3039 = vld [vmem:[#allocation2 + $0x30] sm:$0xff]
    %v3040 = vld [vmem:[#allocation2 + $0x38] sm:$0xff]
    %v3041 = vsel %vm534, %v3033, %v3037
    %v3042 = vsel %vm535, %v3034, %v3038
    %v3043 = vsel %vm536, %v3035, %v3039
    %v3044 = vsel %vm537, %v3036, %v3040
    %v3045 = vpack.c.bf16 %v3031, %v3031
    %3046 = vmatprep.subr.bf16.mxu0 %v2239
    %3047 = vmatpush1.bf16.msra.mxu0 %v2238
    %3048 = vmatprep.subr.bf16.mxu0 %v2243
    %3049 = vmatpush1.bf16.msra.mxu0 %v2242
    %3050 = vmatprep.subr.bf16.mxu0 %v2247
    %3051 = vmatpush1.bf16.msra.mxu0 %v2246
    %3052 = vmatprep.subr.bf16.mxu0 %v2251
    %3053 = vmatpush1.bf16.msra.mxu0 %v2250
    %3054 = vmatprep.subr.bf16.mxu0 %v2255
    %3055 = vmatpush1.bf16.msra.mxu0 %v2254
    %3056 = vmatprep.subr.bf16.mxu0 %v2259
    %3057 = vmatpush1.bf16.msra.mxu0 %v2258
    %3058 = vmatprep.subr.bf16.mxu0 %v2263
    %3059 = vmatpush1.bf16.msra.mxu0 %v2262
    %3060 = vmatprep.subr.bf16.mxu0 %v2267
    %3061 = vmatpush1.bf16.msra.mxu0 %v2266
    %3062 = vmatprep.subr.bf16.mxu0 0
    %3063 = vmatpush1.bf16.msra.mxu0 0
    %3064 = vmatprep.subr.bf16.mxu0 0
    %3065 = vmatpush1.bf16.msra.mxu0 0
    %3066 = vmatprep.subr.bf16.mxu0 0
    %3067 = vmatpush1.bf16.msra.mxu0 0
    %3068 = vmatprep.subr.bf16.mxu0 0
    %3069 = vmatpush1.bf16.msra.mxu0 0
    %3070 = vmatprep.subr.bf16.mxu0 0
    %3071 = vmatpush1.bf16.msra.mxu0 0
    %3072 = vmatprep.subr.bf16.mxu0 0
    %3073 = vmatpush1.bf16.msra.mxu0 0
    %3074 = vmatprep.subr.bf16.mxu0 0
    %3075 = vmatpush1.bf16.msra.mxu0 0
    %3076 = vmatprep.subr.bf16.mxu0 0
    %3077 = vmatpush1.bf16.msra.mxu0 0
    %3078 = vmatprep.mubr.bf16.mxu0 0
    %3079 = vmatmul.mubr.bf16.gmra.mrb[0].mxu0 %v3045
    %v3080 = vpop.f32.mrb[0].mxu0
    %v3081 = vadd.f32 0.0, %v3080
    %v3082 = vpop.f32.mrb[0].mxu0
    %v3083 = vadd.f32 0.0, %v3082
    %v3084 = vpop.f32.mrb[0].mxu0
    %v3085 = vpop.f32.mrb[0].mxu0
    %3086 = vdwg.mxu0
    %3087 = vmatprep.subr.bf16.mxu0 %v2241
    %3088 = vmatpush1.bf16.msra.mxu0 %v2240
    %3089 = vmatprep.subr.bf16.mxu0 %v2245
    %3090 = vmatpush1.bf16.msra.mxu0 %v2244
    %3091 = vmatprep.subr.bf16.mxu0 %v2249
    %3092 = vmatpush1.bf16.msra.mxu0 %v2248
    %3093 = vmatprep.subr.bf16.mxu0 %v2253
    %3094 = vmatpush1.bf16.msra.mxu0 %v2252
    %3095 = vmatprep.subr.bf16.mxu0 %v2257
    %3096 = vmatpush1.bf16.msra.mxu0 %v2256
    %3097 = vmatprep.subr.bf16.mxu0 %v2261
    %3098 = vmatpush1.bf16.msra.mxu0 %v2260
    %3099 = vmatprep.subr.bf16.mxu0 %v2265
    %3100 = vmatpush1.bf16.msra.mxu0 %v2264
    %3101 = vmatprep.subr.bf16.mxu0 %v2269
    %3102 = vmatpush1.bf16.msra.mxu0 %v2268
    %3103 = vmatprep.subr.bf16.mxu0 0
    %3104 = vmatpush1.bf16.msra.mxu0 0
    %3105 = vmatprep.subr.bf16.mxu0 0
    %3106 = vmatpush1.bf16.msra.mxu0 0
    %3107 = vmatprep.subr.bf16.mxu0 0
    %3108 = vmatpush1.bf16.msra.mxu0 0
    %3109 = vmatprep.subr.bf16.mxu0 0
    %3110 = vmatpush1.bf16.msra.mxu0 0
    %3111 = vmatprep.subr.bf16.mxu0 0
    %3112 = vmatpush1.bf16.msra.mxu0 0
    %3113 = vmatprep.subr.bf16.mxu0 0
    %3114 = vmatpush1.bf16.msra.mxu0 0
    %3115 = vmatprep.subr.bf16.mxu0 0
    %3116 = vmatpush1.bf16.msra.mxu0 0
    %3117 = vmatprep.subr.bf16.mxu0 0
    %3118 = vmatpush1.bf16.msra.mxu0 0
    %3119 = vmatprep.mubr.bf16.mxu0 0
    %3120 = vmatmul.mubr.bf16.gmra.mrb[0].mxu0 %v3045
    %v3121 = vpop.f32.mrb[0].mxu0
    %v3122 = vadd.f32 0.0, %v3121
    %v3123 = vpop.f32.mrb[0].mxu0
    %v3124 = vadd.f32 0.0, %v3123
    %v3125 = vpop.f32.mrb[0].mxu0
    %v3126 = vpop.f32.mrb[0].mxu0
    %3127 = vdwg.mxu0
    %v3128 = vadd.f32 %v3041, %v3081
    %v3129 = vadd.f32 %v3042, %v3083
    %v3130 = vadd.f32 %v3043, %v3122
    %v3131 = vadd.f32 %v3044, %v3124
    %v3132 = vxor.u32 %v3128, 2147483648
    %v3133 = vmul.f32 %v3132, 1.442695
    %v3134 = vpow.pop %v3133
    %v3135 = vadd.f32 %v3134, 1.0
    %v3136 = vrcp.pop %v3135
    %v3137 = vmul.f32 1.0, %v3136
    %v3138 = vxor.u32 %v3129, 2147483648
    %v3139 = vmul.f32 %v3138, 1.442695
    %v3140 = vpow.pop %v3139
    %v3141 = vadd.f32 %v3140, 1.0
    %v3142 = vrcp.pop %v3141
    %v3143 = vmul.f32 1.0, %v3142
    %v3144 = vtanh.pop %v3130
    %v3145 = vxor.u32 %v3131, 2147483648
    %v3146 = vmul.f32 %v3145, 1.442695
    %v3147 = vpow.pop %v3146
    %v3148 = vadd.f32 %v3147, 1.0
    %v3149 = vrcp.pop %v3148
    %v3150 = vmul.f32 1.0, %v3149
    %v3151 = vmul.f32 %v3143, %v3029
    %v3152 = vmul.f32 %v3137, %v3144
    %v3153 = vadd.f32 %v3151, %v3152
    %v3154 = vtanh.pop %v3153
    %v3155 = vmul.f32 %v3150, %v3154
    %3156 = vst [vmem:[#allocation3 + $0x30] sm:$0xff] %v3155
    %v3157 = vld [vmem:[#allocation2 + $0xe0] sm:$0xff]
    %v3158 = vld [vmem:[#allocation2 + $0xe8] sm:$0xff]
    %v3159 = vld [vmem:[#allocation2 + $0xf0] sm:$0xff]
    %v3160 = vld [vmem:[#allocation2 + $0xf8] sm:$0xff]
    %v3161 = vld [vmem:[#allocation2] sm:$0xff]
    %v3162 = vld [vmem:[#allocation2 + $0x8] sm:$0xff]
    %v3163 = vld [vmem:[#allocation2 + $0x10] sm:$0xff]
    %v3164 = vld [vmem:[#allocation2 + $0x18] sm:$0xff]
    %v3165 = vsel %vm534, %v3157, %v3161
    %v3166 = vsel %vm535, %v3158, %v3162
    %v3167 = vsel %vm536, %v3159, %v3163
    %v3168 = vsel %vm537, %v3160, %v3164
    %v3169 = vpack.c.bf16 %v3155, %v3155
    %3170 = vmatprep.subr.bf16.mxu0 %v2239
    %3171 = vmatpush1.bf16.msra.mxu0 %v2238
    %3172 = vmatprep.subr.bf16.mxu0 %v2243
    %3173 = vmatpush1.bf16.msra.mxu0 %v2242
    %3174 = vmatprep.subr.bf16.mxu0 %v2247
    %3175 = vmatpush1.bf16.msra.mxu0 %v2246
    %3176 = vmatprep.subr.bf16.mxu0 %v2251
    %3177 = vmatpush1.bf16.msra.mxu0 %v2250
    %3178 = vmatprep.subr.bf16.mxu0 %v2255
    %3179 = vmatpush1.bf16.msra.mxu0 %v2254
    %3180 = vmatprep.subr.bf16.mxu0 %v2259
    %3181 = vmatpush1.bf16.msra.mxu0 %v2258
    %3182 = vmatprep.subr.bf16.mxu0 %v2263
    %3183 = vmatpush1.bf16.msra.mxu0 %v2262
    %3184 = vmatprep.subr.bf16.mxu0 %v2267
    %3185 = vmatpush1.bf16.msra.mxu0 %v2266
    %3186 = vmatprep.subr.bf16.mxu0 0
    %3187 = vmatpush1.bf16.msra.mxu0 0
    %3188 = vmatprep.subr.bf16.mxu0 0
    %3189 = vmatpush1.bf16.msra.mxu0 0
    %3190 = vmatprep.subr.bf16.mxu0 0
    %3191 = vmatpush1.bf16.msra.mxu0 0
    %3192 = vmatprep.subr.bf16.mxu0 0
    %3193 = vmatpush1.bf16.msra.mxu0 0
    %3194 = vmatprep.subr.bf16.mxu0 0
    %3195 = vmatpush1.bf16.msra.mxu0 0
    %3196 = vmatprep.subr.bf16.mxu0 0
    %3197 = vmatpush1.bf16.msra.mxu0 0
    %3198 = vmatprep.subr.bf16.mxu0 0
    %3199 = vmatpush1.bf16.msra.mxu0 0
    %3200 = vmatprep.subr.bf16.mxu0 0
    %3201 = vmatpush1.bf16.msra.mxu0 0
    %3202 = vmatprep.mubr.bf16.mxu0 0
    %3203 = vmatmul.mubr.bf16.gmra.mrb[0].mxu0 %v3169
    %v3204 = vpop.f32.mrb[0].mxu0
    %v3205 = vadd.f32 0.0, %v3204
    %v3206 = vpop.f32.mrb[0].mxu0
    %v3207 = vadd.f32 0.0, %v3206
    %v3208 = vpop.f32.mrb[0].mxu0
    %v3209 = vpop.f32.mrb[0].mxu0
    %3210 = vdwg.mxu0
    %3211 = vmatprep.subr.bf16.mxu0 %v2241
    %3212 = vmatpush1.bf16.msra.mxu0 %v2240
    %3213 = vmatprep.subr.bf16.mxu0 %v2245
    %3214 = vmatpush1.bf16.msra.mxu0 %v2244
    %3215 = vmatprep.subr.bf16.mxu0 %v2249
    %3216 = vmatpush1.bf16.msra.mxu0 %v2248
    %3217 = vmatprep.subr.bf16.mxu0 %v2253
    %3218 = vmatpush1.bf16.msra.mxu0 %v2252
    %3219 = vmatprep.subr.bf16.mxu0 %v2257
    %3220 = vmatpush1.bf16.msra.mxu0 %v2256
    %3221 = vmatprep.subr.bf16.mxu0 %v2261
    %3222 = vmatpush1.bf16.msra.mxu0 %v2260
    %3223 = vmatprep.subr.bf16.mxu0 %v2265
    %3224 = vmatpush1.bf16.msra.mxu0 %v2264
    %3225 = vmatprep.subr.bf16.mxu0 %v2269
    %3226 = vmatpush1.bf16.msra.mxu0 %v2268
    %3227 = vmatprep.subr.bf16.mxu0 0
    %3228 = vmatpush1.bf16.msra.mxu0 0
    %3229 = vmatprep.subr.bf16.mxu0 0
    %3230 = vmatpush1.bf16.msra.mxu0 0
    %3231 = vmatprep.subr.bf16.mxu0 0
    %3232 = vmatpush1.bf16.msra.mxu0 0
    %3233 = vmatprep.subr.bf16.mxu0 0
    %3234 = vmatpush1.bf16.msra.mxu0 0
    %3235 = vmatprep.subr.bf16.mxu0 0
    %3236 = vmatpush1.bf16.msra.mxu0 0
    %3237 = vmatprep.subr.bf16.mxu0 0
    %3238 = vmatpush1.bf16.msra.mxu0 0
    %3239 = vmatprep.subr.bf16.mxu0 0
    %3240 = vmatpush1.bf16.msra.mxu0 0
    %3241 = vmatprep.subr.bf16.mxu0 0
    %3242 = vmatpush1.bf16.msra.mxu0 0
    %3243 = vmatprep.mubr.bf16.mxu0 0
    %3244 = vmatmul.mubr.bf16.gmra.mrb[0].mxu0 %v3169
    %v3245 = vpop.f32.mrb[0].mxu0
    %v3246 = vadd.f32 0.0, %v3245
    %v3247 = vpop.f32.mrb[0].mxu0
    %v3248 = vadd.f32 0.0, %v3247
    %v3249 = vpop.f32.mrb[0].mxu0
    %v3250 = vpop.f32.mrb[0].mxu0
    %3251 = vdwg.mxu0
    %v3252 = vadd.f32 %v3165, %v3205
    %v3253 = vadd.f32 %v3166, %v3207
    %v3254 = vadd.f32 %v3167, %v3246
    %v3255 = vadd.f32 %v3168, %v3248
    %v3256 = vxor.u32 %v3252, 2147483648
    %v3257 = vmul.f32 %v3256, 1.442695
    %v3258 = vpow.pop %v3257
    %v3259 = vadd.f32 %v3258, 1.0
    %v3260 = vrcp.pop %v3259
    %v3261 = vmul.f32 1.0, %v3260
    %v3262 = vxor.u32 %v3253, 2147483648
    %v3263 = vmul.f32 %v3262, 1.442695
    %v3264 = vpow.pop %v3263
    %v3265 = vadd.f32 %v3264, 1.0
    %v3266 = vrcp.pop %v3265
    %v3267 = vmul.f32 1.0, %v3266
    %v3268 = vtanh.pop %v3254
    %v3269 = vxor.u32 %v3255, 2147483648
    %v3270 = vmul.f32 %v3269, 1.442695
    %v3271 = vpow.pop %v3270
    %v3272 = vadd.f32 %v3271, 1.0
    %v3273 = vrcp.pop %v3272
    %v3274 = vmul.f32 1.0, %v3273
    %v3275 = vmul.f32 %v3267, %v3153
    %v3276 = vmul.f32 %v3261, %v3268
    %v3277 = vadd.f32 %v3275, %v3276
    %v3278 = vtanh.pop %v3277
    %v3279 = vmul.f32 %v3274, %v3278
    %3280 = vst [vmem:[#allocation3 + $0x38] sm:$0xff] %v3279
    %s3281 = scalar_lea.vmem [#allocation4], 512
    %v3282 = vld [vmem:[%s3281] sm:$0xff]
    %v3283 = vld [vmem:[%s3281 + $0x8] sm:$0xff]
    %v3284 = vld [vmem:[%s3281 + $0x10] sm:$0xff]
    %v3285 = vld [vmem:[%s3281 + $0x18] sm:$0xff]
    %v3286 = vld [vmem:[%s3281 + $0x20] sm:$0xff]
    %v3287 = vld [vmem:[%s3281 + $0x28] sm:$0xff]
    %v3288 = vld [vmem:[%s3281 + $0x30] sm:$0xff]
    %v3289 = vld [vmem:[%s3281 + $0x38] sm:$0xff]
    %v3290 = vld [vmem:[%s3281 + $0x40] sm:$0xff]
    %v3291 = vld [vmem:[%s3281 + $0x48] sm:$0xff]
    %v3292 = vld [vmem:[%s3281 + $0x50] sm:$0xff]
    %v3293 = vld [vmem:[%s3281 + $0x58] sm:$0xff]
    %v3294 = vld [vmem:[%s3281 + $0x60] sm:$0xff]
    %v3295 = vld [vmem:[%s3281 + $0x68] sm:$0xff]
    %v3296 = vld [vmem:[%s3281 + $0x70] sm:$0xff]
    %v3297 = vld [vmem:[%s3281 + $0x78] sm:$0xff]
    %v3298 = vld [vmem:[%s3281 + $0x80] sm:$0xff]
    %v3299 = vld [vmem:[%s3281 + $0x88] sm:$0xff]
    %v3300 = vld [vmem:[%s3281 + $0x90] sm:$0xff]
    %v3301 = vld [vmem:[%s3281 + $0x98] sm:$0xff]
    %v3302 = vld [vmem:[%s3281 + $0xa0] sm:$0xff]
    %v3303 = vld [vmem:[%s3281 + $0xa8] sm:$0xff]
    %v3304 = vld [vmem:[%s3281 + $0xb0] sm:$0xff]
    %v3305 = vld [vmem:[%s3281 + $0xb8] sm:$0xff]
    %v3306 = vld [vmem:[%s3281 + $0xc0] sm:$0xff]
    %v3307 = vld [vmem:[%s3281 + $0xc8] sm:$0xff]
    %v3308 = vld [vmem:[%s3281 + $0xd0] sm:$0xff]
    %v3309 = vld [vmem:[%s3281 + $0xd8] sm:$0xff]
    %v3310 = vld [vmem:[%s3281 + $0xe0] sm:$0xff]
    %v3311 = vld [vmem:[%s3281 + $0xe8] sm:$0xff]
    %v3312 = vld [vmem:[%s3281 + $0xf0] sm:$0xff]
    %v3313 = vld [vmem:[%s3281 + $0xf8] sm:$0xff]
    %s3314 = scalar_lea.vmem %s3, 8
    %v3315 = vld [vmem:[%s3314] sm:$0xf]
    %v3316 = vld [vmem:[#allocation3] sm:$0xff]
    %v3317 = vld [vmem:[#allocation3 + $0x38] sm:$0xff]
    %v3318 = vsel %vm1719, %v3316, %v3317
    %v3319 = vld [vmem:[#allocation3 + $0x8] sm:$0xff]
    %v3320 = vld [vmem:[#allocation3 + $0x30] sm:$0xff]
    %v3321 = vsel %vm1719, %v3319, %v3320
    %v3322 = vld [vmem:[#allocation3 + $0x10] sm:$0xff]
    %v3323 = vld [vmem:[#allocation3 + $0x28] sm:$0xff]
    %v3324 = vsel %vm1719, %v3322, %v3323
    %v3325 = vld [vmem:[#allocation3 + $0x18] sm:$0xff]
    %v3326 = vld [vmem:[#allocation3 + $0x20] sm:$0xff]
    %v3327 = vsel %vm1719, %v3325, %v3326
    %v3328 = vsel %vm1719, %v3326, %v3325
    %v3329 = vsel %vm1719, %v3323, %v3322
    %v3330 = vsel %vm1719, %v3320, %v3319
    %v3331 = vsel %vm1719, %v3317, %v3316
    %v3332 = vpack.c.bf16 %v3321, %v3318
    %v3333 = vpack.c.bf16 %v3327, %v3324
    %v3334 = vpack.c.bf16 %v3329, %v3328
    %v3335 = vpack.c.bf16 %v3331, %v3330
    %v3337 = vlaneseq
    %v3338 = vshrl.u32 %v3337, 7
    %v3339 = vsub.s32 0, %v3338
    %v3340 = vrot.slane %v3315, %v3339
    %v3341 = vlaneseq
    %v3342 = vshrl.u32 %v3341, 7
    %v3343 = vsub.s32 1, %v3342
    %v3344 = vrot.slane %v3315, %v3343
    %v3345 = vlaneseq
    %v3346 = vshrl.u32 %v3345, 7
    %v3347 = vsub.s32 2, %v3346
    %v3348 = vrot.slane %v3315, %v3347
    %v3349 = vlaneseq
    %v3350 = vshrl.u32 %v3349, 7
    %v3351 = vsub.s32 3, %v3350
    %v3352 = vrot.slane %v3315, %v3351
    %v3389 = vunpack.c.l.b16 %v3282
    %v3390 = vunpack.c.h.b16 %v3282
    %v3391 = vunpack.c.l.b16 %v3283
    %v3392 = vunpack.c.h.b16 %v3283
    %v3393 = vunpack.c.l.b16 %v3284
    %v3394 = vunpack.c.h.b16 %v3284
    %v3395 = vunpack.c.l.b16 %v3285
    %v3396 = vunpack.c.h.b16 %v3285
    %v3397 = vunpack.c.l.b16 %v3286
    %v3398 = vunpack.c.h.b16 %v3286
    %v3399 = vunpack.c.l.b16 %v3287
    %v3400 = vunpack.c.h.b16 %v3287
    %v3401 = vunpack.c.l.b16 %v3288
    %v3402 = vunpack.c.h.b16 %v3288
    %v3403 = vunpack.c.l.b16 %v3289
    %v3404 = vunpack.c.h.b16 %v3289
    %v3405 = vunpack.c.l.b16 %v3290
    %v3406 = vunpack.c.h.b16 %v3290
    %v3407 = vunpack.c.l.b16 %v3291
    %v3408 = vunpack.c.h.b16 %v3291
    %v3409 = vunpack.c.l.b16 %v3292
    %v3410 = vunpack.c.h.b16 %v3292
    %v3411 = vunpack.c.l.b16 %v3293
    %v3412 = vunpack.c.h.b16 %v3293
    %v3413 = vunpack.c.l.b16 %v3294
    %v3414 = vunpack.c.h.b16 %v3294
    %v3415 = vunpack.c.l.b16 %v3295
    %v3416 = vunpack.c.h.b16 %v3295
    %v3417 = vunpack.c.l.b16 %v3296
    %v3418 = vunpack.c.h.b16 %v3296
    %v3419 = vunpack.c.l.b16 %v3297
    %v3420 = vunpack.c.h.b16 %v3297
    %v3421 = vunpack.c.l.b16 %v3298
    %v3422 = vunpack.c.h.b16 %v3298
    %v3423 = vunpack.c.l.b16 %v3299
    %v3424 = vunpack.c.h.b16 %v3299
    %v3425 = vunpack.c.l.b16 %v3300
    %v3426 = vunpack.c.h.b16 %v3300
    %v3427 = vunpack.c.l.b16 %v3301
    %v3428 = vunpack.c.h.b16 %v3301
    %v3429 = vunpack.c.l.b16 %v3302
    %v3430 = vunpack.c.h.b16 %v3302
    %v3431 = vunpack.c.l.b16 %v3303
    %v3432 = vunpack.c.h.b16 %v3303
    %v3433 = vunpack.c.l.b16 %v3304
    %v3434 = vunpack.c.h.b16 %v3304
    %v3435 = vunpack.c.l.b16 %v3305
    %v3436 = vunpack.c.h.b16 %v3305
    %v3437 = vunpack.c.l.b16 %v3306
    %v3438 = vunpack.c.h.b16 %v3306
    %v3439 = vunpack.c.l.b16 %v3307
    %v3440 = vunpack.c.h.b16 %v3307
    %v3441 = vunpack.c.l.b16 %v3308
    %v3442 = vunpack.c.h.b16 %v3308
    %v3443 = vunpack.c.l.b16 %v3309
    %v3444 = vunpack.c.h.b16 %v3309
    %v3445 = vunpack.c.l.b16 %v3310
    %v3446 = vunpack.c.h.b16 %v3310
    %v3447 = vunpack.c.l.b16 %v3311
    %v3448 = vunpack.c.h.b16 %v3311
    %v3449 = vunpack.c.l.b16 %v3312
    %v3450 = vunpack.c.h.b16 %v3312
    %v3451 = vunpack.c.l.b16 %v3313
    %v3452 = vunpack.c.h.b16 %v3313
    %v3453 = vpack.c.b16 %v3393, %v3389
    %v3454 = vpack.c.b16 %v3394, %v3390
    %v3455 = vpack.c.b16 %v3395, %v3391
    %v3456 = vpack.c.b16 %v3396, %v3392
    %v3457 = vpack.c.b16 %v3401, %v3397
    %v3458 = vpack.c.b16 %v3402, %v3398
    %v3459 = vpack.c.b16 %v3403, %v3399
    %v3460 = vpack.c.b16 %v3404, %v3400
    %v3461 = vpack.c.b16 %v3409, %v3405
    %v3462 = vpack.c.b16 %v3410, %v3406
    %v3463 = vpack.c.b16 %v3411, %v3407
    %v3464 = vpack.c.b16 %v3412, %v3408
    %v3465 = vpack.c.b16 %v3417, %v3413
    %v3466 = vpack.c.b16 %v3418, %v3414
    %v3467 = vpack.c.b16 %v3419, %v3415
    %v3468 = vpack.c.b16 %v3420, %v3416
    %v3469 = vpack.c.b16 %v3425, %v3421
    %v3470 = vpack.c.b16 %v3426, %v3422
    %v3471 = vpack.c.b16 %v3427, %v3423
    %v3472 = vpack.c.b16 %v3428, %v3424
    %v3473 = vpack.c.b16 %v3433, %v3429
    %v3474 = vpack.c.b16 %v3434, %v3430
    %v3475 = vpack.c.b16 %v3435, %v3431
    %v3476 = vpack.c.b16 %v3436, %v3432
    %v3477 = vpack.c.b16 %v3441, %v3437
    %v3478 = vpack.c.b16 %v3442, %v3438
    %v3479 = vpack.c.b16 %v3443, %v3439
    %v3480 = vpack.c.b16 %v3444, %v3440
    %v3481 = vpack.c.b16 %v3449, %v3445
    %v3482 = vpack.c.b16 %v3450, %v3446
    %v3483 = vpack.c.b16 %v3451, %v3447
    %v3484 = vpack.c.b16 %v3452, %v3448
    %3517 = vmatprep.subr.bf16.mxu0 %v3454
    %3518 = vmatpush1.bf16.msra.mxu0 %v3453
    %3519 = vmatprep.subr.bf16.mxu0 %v3458
    %3520 = vmatpush1.bf16.msra.mxu0 %v3457
    %3521 = vmatprep.subr.bf16.mxu0 %v3462
    %3522 = vmatpush1.bf16.msra.mxu0 %v3461
    %3523 = vmatprep.subr.bf16.mxu0 %v3466
    %3524 = vmatpush1.bf16.msra.mxu0 %v3465
    %3525 = vmatprep.subr.bf16.mxu0 %v3470
    %3526 = vmatpush1.bf16.msra.mxu0 %v3469
    %3527 = vmatprep.subr.bf16.mxu0 %v3474
    %3528 = vmatpush1.bf16.msra.mxu0 %v3473
    %3529 = vmatprep.subr.bf16.mxu0 %v3478
    %3530 = vmatpush1.bf16.msra.mxu0 %v3477
    %3531 = vmatprep.subr.bf16.mxu0 %v3482
    %3532 = vmatpush1.bf16.msra.mxu0 %v3481
    %3533 = vmatprep.subr.bf16.mxu0 0
    %3534 = vmatpush1.bf16.msra.mxu0 0
    %3535 = vmatprep.subr.bf16.mxu0 0
    %3536 = vmatpush1.bf16.msra.mxu0 0
    %3537 = vmatprep.subr.bf16.mxu0 0
    %3538 = vmatpush1.bf16.msra.mxu0 0
    %3539 = vmatprep.subr.bf16.mxu0 0
    %3540 = vmatpush1.bf16.msra.mxu0 0
    %3541 = vmatprep.subr.bf16.mxu0 0
    %3542 = vmatpush1.bf16.msra.mxu0 0
    %3543 = vmatprep.subr.bf16.mxu0 0
    %3544 = vmatpush1.bf16.msra.mxu0 0
    %3545 = vmatprep.subr.bf16.mxu0 0
    %3546 = vmatpush1.bf16.msra.mxu0 0
    %3547 = vmatprep.subr.bf16.mxu0 0
    %3548 = vmatpush1.bf16.msra.mxu0 0
    %3549 = vmatprep.mubr.bf16.mxu0 0
    %3550 = vmatmul.mubr.bf16.gmra.mrb[0].mxu0 %v3332
    %v3551 = vpop.f32.mrb[0].mxu0
    %v3552 = vadd.f32 %v3340, %v3551
    %v3553 = vpop.f32.mrb[0].mxu0
    %v3554 = vadd.f32 %v3344, %v3553
    %v3555 = vpop.f32.mrb[0].mxu0
    %v3556 = vadd.f32 %v3340, %v3555
    %v3557 = vpop.f32.mrb[0].mxu0
    %v3558 = vadd.f32 %v3344, %v3557
    %3559 = vmatprep.mubr.bf16.mxu0 0
    %3560 = vmatmul.mubr.bf16.gmra.mrb[0].mxu0 %v3333
    %v3561 = vpop.f32.mrb[0].mxu0
    %v3562 = vadd.f32 %v3340, %v3561
    %v3563 = vpop.f32.mrb[0].mxu0
    %v3564 = vadd.f32 %v3344, %v3563
    %v3565 = vpop.f32.mrb[0].mxu0
    %v3566 = vadd.f32 %v3340, %v3565
    %v3567 = vpop.f32.mrb[0].mxu0
    %v3568 = vadd.f32 %v3344, %v3567
    %3569 = vmatprep.mubr.bf16.mxu0 0
    %3570 = vmatmul.mubr.bf16.gmra.mrb[0].mxu0 %v3334
    %v3571 = vpop.f32.mrb[0].mxu0
    %v3572 = vadd.f32 %v3340, %v3571
    %v3573 = vpop.f32.mrb[0].mxu0
    %v3574 = vadd.f32 %v3344, %v3573
    %v3575 = vpop.f32.mrb[0].mxu0
    %v3576 = vadd.f32 %v3340, %v3575
    %v3577 = vpop.f32.mrb[0].mxu0
    %v3578 = vadd.f32 %v3344, %v3577
    %3579 = vmatprep.mubr.bf16.mxu0 0
    %3580 = vmatmul.mubr.bf16.gmra.mrb[0].mxu0 %v3335
    %v3581 = vpop.f32.mrb[0].mxu0
    %v3582 = vadd.f32 %v3340, %v3581
    %v3583 = vpop.f32.mrb[0].mxu0
    %v3584 = vadd.f32 %v3344, %v3583
    %v3585 = vpop.f32.mrb[0].mxu0
    %v3586 = vadd.f32 %v3340, %v3585
    %v3587 = vpop.f32.mrb[0].mxu0
    %v3588 = vadd.f32 %v3344, %v3587
    %3589 = vdwg.mxu0
    %3590 = vmatprep.subr.bf16.mxu0 %v3456
    %3591 = vmatpush1.bf16.msra.mxu0 %v3455
    %3592 = vmatprep.subr.bf16.mxu0 %v3460
    %3593 = vmatpush1.bf16.msra.mxu0 %v3459
    %3594 = vmatprep.subr.bf16.mxu0 %v3464
    %3595 = vmatpush1.bf16.msra.mxu0 %v3463
    %3596 = vmatprep.subr.bf16.mxu0 %v3468
    %3597 = vmatpush1.bf16.msra.mxu0 %v3467
    %3598 = vmatprep.subr.bf16.mxu0 %v3472
    %3599 = vmatpush1.bf16.msra.mxu0 %v3471
    %3600 = vmatprep.subr.bf16.mxu0 %v3476
    %3601 = vmatpush1.bf16.msra.mxu0 %v3475
    %3602 = vmatprep.subr.bf16.mxu0 %v3480
    %3603 = vmatpush1.bf16.msra.mxu0 %v3479
    %3604 = vmatprep.subr.bf16.mxu0 %v3484
    %3605 = vmatpush1.bf16.msra.mxu0 %v3483
    %3606 = vmatprep.subr.bf16.mxu0 0
    %3607 = vmatpush1.bf16.msra.mxu0 0
    %3608 = vmatprep.subr.bf16.mxu0 0
    %3609 = vmatpush1.bf16.msra.mxu0 0
    %3610 = vmatprep.subr.bf16.mxu0 0
    %3611 = vmatpush1.bf16.msra.mxu0 0
    %3612 = vmatprep.subr.bf16.mxu0 0
    %3613 = vmatpush1.bf16.msra.mxu0 0
    %3614 = vmatprep.subr.bf16.mxu0 0
    %3615 = vmatpush1.bf16.msra.mxu0 0
    %3616 = vmatprep.subr.bf16.mxu0 0
    %3617 = vmatpush1.bf16.msra.mxu0 0
    %3618 = vmatprep.subr.bf16.mxu0 0
    %3619 = vmatpush1.bf16.msra.mxu0 0
    %3620 = vmatprep.subr.bf16.mxu0 0
    %3621 = vmatpush1.bf16.msra.mxu0 0
    %3622 = vmatprep.mubr.bf16.mxu0 0
    %3623 = vmatmul.mubr.bf16.gmra.mrb[0].mxu0 %v3332
    %v3624 = vpop.f32.mrb[0].mxu0
    %v3625 = vadd.f32 %v3348, %v3624
    %v3626 = vpop.f32.mrb[0].mxu0
    %v3627 = vadd.f32 %v3352, %v3626
    %v3628 = vpop.f32.mrb[0].mxu0
    %v3629 = vadd.f32 %v3348, %v3628
    %v3630 = vpop.f32.mrb[0].mxu0
    %v3631 = vadd.f32 %v3352, %v3630
    %3632 = vmatprep.mubr.bf16.mxu0 0
    %3633 = vmatmul.mubr.bf16.gmra.mrb[0].mxu0 %v3333
    %v3634 = vpop.f32.mrb[0].mxu0
    %v3635 = vadd.f32 %v3348, %v3634
    %v3636 = vpop.f32.mrb[0].mxu0
    %v3637 = vadd.f32 %v3352, %v3636
    %v3638 = vpop.f32.mrb[0].mxu0
    %v3639 = vadd.f32 %v3348, %v3638
    %v3640 = vpop.f32.mrb[0].mxu0
    %v3641 = vadd.f32 %v3352, %v3640
    %3642 = vmatprep.mubr.bf16.mxu0 0
    %3643 = vmatmul.mubr.bf16.gmra.mrb[0].mxu0 %v3334
    %v3644 = vpop.f32.mrb[0].mxu0
    %v3645 = vadd.f32 %v3348, %v3644
    %v3646 = vpop.f32.mrb[0].mxu0
    %v3647 = vadd.f32 %v3352, %v3646
    %v3648 = vpop.f32.mrb[0].mxu0
    %v3649 = vadd.f32 %v3348, %v3648
    %v3650 = vpop.f32.mrb[0].mxu0
    %v3651 = vadd.f32 %v3352, %v3650
    %3652 = vmatprep.mubr.bf16.mxu0 0
    %3653 = vmatmul.mubr.bf16.gmra.mrb[0].mxu0 %v3335
    %v3654 = vpop.f32.mrb[0].mxu0
    %v3655 = vadd.f32 %v3348, %v3654
    %v3656 = vpop.f32.mrb[0].mxu0
    %v3657 = vadd.f32 %v3352, %v3656
    %v3658 = vpop.f32.mrb[0].mxu0
    %v3659 = vadd.f32 %v3348, %v3658
    %v3660 = vpop.f32.mrb[0].mxu0
    %v3661 = vadd.f32 %v3352, %v3660
    %3662 = vdwg.mxu0
    %3663 = vst [vmem:[#allocation2] sm:$0xff] %v3552
    %3664 = vst [vmem:[#allocation2 + $0x8] sm:$0xff] %v3554
    %3665 = vst [vmem:[#allocation2 + $0x10] sm:$0xff] %v3625
    %3666 = vst [vmem:[#allocation2 + $0x18] sm:$0xff] %v3627
    %3667 = vst [vmem:[#allocation2 + $0x20] sm:$0xff] %v3556
    %3668 = vst [vmem:[#allocation2 + $0x28] sm:$0xff] %v3558
    %3669 = vst [vmem:[#allocation2 + $0x30] sm:$0xff] %v3629
    %3670 = vst [vmem:[#allocation2 + $0x38] sm:$0xff] %v3631
    %3671 = vst [vmem:[#allocation2 + $0x40] sm:$0xff] %v3562
    %3672 = vst [vmem:[#allocation2 + $0x48] sm:$0xff] %v3564
    %3673 = vst [vmem:[#allocation2 + $0x50] sm:$0xff] %v3635
    %3674 = vst [vmem:[#allocation2 + $0x58] sm:$0xff] %v3637
    %3675 = vst [vmem:[#allocation2 + $0x60] sm:$0xff] %v3566
    %3676 = vst [vmem:[#allocation2 + $0x68] sm:$0xff] %v3568
    %3677 = vst [vmem:[#allocation2 + $0x70] sm:$0xff] %v3639
    %3678 = vst [vmem:[#allocation2 + $0x78] sm:$0xff] %v3641
    %3679 = vst [vmem:[#allocation2 + $0x80] sm:$0xff] %v3572
    %3680 = vst [vmem:[#allocation2 + $0x88] sm:$0xff] %v3574
    %3681 = vst [vmem:[#allocation2 + $0x90] sm:$0xff] %v3645
    %3682 = vst [vmem:[#allocation2 + $0x98] sm:$0xff] %v3647
    %3683 = vst [vmem:[#allocation2 + $0xa0] sm:$0xff] %v3576
    %3684 = vst [vmem:[#allocation2 + $0xa8] sm:$0xff] %v3578
    %3685 = vst [vmem:[#allocation2 + $0xb0] sm:$0xff] %v3649
    %3686 = vst [vmem:[#allocation2 + $0xb8] sm:$0xff] %v3651
    %3687 = vst [vmem:[#allocation2 + $0xc0] sm:$0xff] %v3582
    %3688 = vst [vmem:[#allocation2 + $0xc8] sm:$0xff] %v3584
    %3689 = vst [vmem:[#allocation2 + $0xd0] sm:$0xff] %v3655
    %3690 = vst [vmem:[#allocation2 + $0xd8] sm:$0xff] %v3657
    %3691 = vst [vmem:[#allocation2 + $0xe0] sm:$0xff] %v3586
    %3692 = vst [vmem:[#allocation2 + $0xe8] sm:$0xff] %v3588
    %3693 = vst [vmem:[#allocation2 + $0xf0] sm:$0xff] %v3659
    %3694 = vst [vmem:[#allocation2 + $0xf8] sm:$0xff] %v3661
    %s3695 = scalar_lea.vmem [#allocation6], 512
    %v3696 = vld [vmem:[%s3695] sm:$0xff]
    %v3697 = vld [vmem:[%s3695 + $0x8] sm:$0xff]
    %v3698 = vld [vmem:[%s3695 + $0x10] sm:$0xff]
    %v3699 = vld [vmem:[%s3695 + $0x18] sm:$0xff]
    %v3700 = vld [vmem:[%s3695 + $0x20] sm:$0xff]
    %v3701 = vld [vmem:[%s3695 + $0x28] sm:$0xff]
    %v3702 = vld [vmem:[%s3695 + $0x30] sm:$0xff]
    %v3703 = vld [vmem:[%s3695 + $0x38] sm:$0xff]
    %v3704 = vld [vmem:[%s3695 + $0x40] sm:$0xff]
    %v3705 = vld [vmem:[%s3695 + $0x48] sm:$0xff]
    %v3706 = vld [vmem:[%s3695 + $0x50] sm:$0xff]
    %v3707 = vld [vmem:[%s3695 + $0x58] sm:$0xff]
    %v3708 = vld [vmem:[%s3695 + $0x60] sm:$0xff]
    %v3709 = vld [vmem:[%s3695 + $0x68] sm:$0xff]
    %v3710 = vld [vmem:[%s3695 + $0x70] sm:$0xff]
    %v3711 = vld [vmem:[%s3695 + $0x78] sm:$0xff]
    %v3712 = vld [vmem:[%s3695 + $0x80] sm:$0xff]
    %v3713 = vld [vmem:[%s3695 + $0x88] sm:$0xff]
    %v3714 = vld [vmem:[%s3695 + $0x90] sm:$0xff]
    %v3715 = vld [vmem:[%s3695 + $0x98] sm:$0xff]
    %v3716 = vld [vmem:[%s3695 + $0xa0] sm:$0xff]
    %v3717 = vld [vmem:[%s3695 + $0xa8] sm:$0xff]
    %v3718 = vld [vmem:[%s3695 + $0xb0] sm:$0xff]
    %v3719 = vld [vmem:[%s3695 + $0xb8] sm:$0xff]
    %v3720 = vld [vmem:[%s3695 + $0xc0] sm:$0xff]
    %v3721 = vld [vmem:[%s3695 + $0xc8] sm:$0xff]
    %v3722 = vld [vmem:[%s3695 + $0xd0] sm:$0xff]
    %v3723 = vld [vmem:[%s3695 + $0xd8] sm:$0xff]
    %v3724 = vld [vmem:[%s3695 + $0xe0] sm:$0xff]
    %v3725 = vld [vmem:[%s3695 + $0xe8] sm:$0xff]
    %v3726 = vld [vmem:[%s3695 + $0xf0] sm:$0xff]
    %v3727 = vld [vmem:[%s3695 + $0xf8] sm:$0xff]
    %v3728 = vld [vmem:[#allocation2] sm:$0xff]
    %v3729 = vld [vmem:[#allocation2 + $0x8] sm:$0xff]
    %v3730 = vld [vmem:[#allocation2 + $0x10] sm:$0xff]
    %v3731 = vld [vmem:[#allocation2 + $0x18] sm:$0xff]
    %v3732 = vld [vmem:[#allocation2 + $0xe0] sm:$0xff]
    %v3733 = vld [vmem:[#allocation2 + $0xe8] sm:$0xff]
    %v3734 = vld [vmem:[#allocation2 + $0xf0] sm:$0xff]
    %v3735 = vld [vmem:[#allocation2 + $0xf8] sm:$0xff]
    %v3736 = vsel %vm534, %v3728, %v3732
    %v3737 = vsel %vm535, %v3729, %v3733
    %v3738 = vsel %vm536, %v3730, %v3734
    %v3739 = vsel %vm537, %v3731, %v3735
    %v3772 = vunpack.c.l.b16 %v3696
    %v3773 = vunpack.c.h.b16 %v3696
    %v3774 = vunpack.c.l.b16 %v3697
    %v3775 = vunpack.c.h.b16 %v3697
    %v3776 = vunpack.c.l.b16 %v3698
    %v3777 = vunpack.c.h.b16 %v3698
    %v3778 = vunpack.c.l.b16 %v3699
    %v3779 = vunpack.c.h.b16 %v3699
    %v3780 = vunpack.c.l.b16 %v3700
    %v3781 = vunpack.c.h.b16 %v3700
    %v3782 = vunpack.c.l.b16 %v3701
    %v3783 = vunpack.c.h.b16 %v3701
    %v3784 = vunpack.c.l.b16 %v3702
    %v3785 = vunpack.c.h.b16 %v3702
    %v3786 = vunpack.c.l.b16 %v3703
    %v3787 = vunpack.c.h.b16 %v3703
    %v3788 = vunpack.c.l.b16 %v3704
    %v3789 = vunpack.c.h.b16 %v3704
    %v3790 = vunpack.c.l.b16 %v3705
    %v3791 = vunpack.c.h.b16 %v3705
    %v3792 = vunpack.c.l.b16 %v3706
    %v3793 = vunpack.c.h.b16 %v3706
    %v3794 = vunpack.c.l.b16 %v3707
    %v3795 = vunpack.c.h.b16 %v3707
    %v3796 = vunpack.c.l.b16 %v3708
    %v3797 = vunpack.c.h.b16 %v3708
    %v3798 = vunpack.c.l.b16 %v3709
    %v3799 = vunpack.c.h.b16 %v3709
    %v3800 = vunpack.c.l.b16 %v3710
    %v3801 = vunpack.c.h.b16 %v3710
    %v3802 = vunpack.c.l.b16 %v3711
    %v3803 = vunpack.c.h.b16 %v3711
    %v3804 = vunpack.c.l.b16 %v3712
    %v3805 = vunpack.c.h.b16 %v3712
    %v3806 = vunpack.c.l.b16 %v3713
    %v3807 = vunpack.c.h.b16 %v3713
    %v3808 = vunpack.c.l.b16 %v3714
    %v3809 = vunpack.c.h.b16 %v3714
    %v3810 = vunpack.c.l.b16 %v3715
    %v3811 = vunpack.c.h.b16 %v3715
    %v3812 = vunpack.c.l.b16 %v3716
    %v3813 = vunpack.c.h.b16 %v3716
    %v3814 = vunpack.c.l.b16 %v3717
    %v3815 = vunpack.c.h.b16 %v3717
    %v3816 = vunpack.c.l.b16 %v3718
    %v3817 = vunpack.c.h.b16 %v3718
    %v3818 = vunpack.c.l.b16 %v3719
    %v3819 = vunpack.c.h.b16 %v3719
    %v3820 = vunpack.c.l.b16 %v3720
    %v3821 = vunpack.c.h.b16 %v3720
    %v3822 = vunpack.c.l.b16 %v3721
    %v3823 = vunpack.c.h.b16 %v3721
    %v3824 = vunpack.c.l.b16 %v3722
    %v3825 = vunpack.c.h.b16 %v3722
    %v3826 = vunpack.c.l.b16 %v3723
    %v3827 = vunpack.c.h.b16 %v3723
    %v3828 = vunpack.c.l.b16 %v3724
    %v3829 = vunpack.c.h.b16 %v3724
    %v3830 = vunpack.c.l.b16 %v3725
    %v3831 = vunpack.c.h.b16 %v3725
    %v3832 = vunpack.c.l.b16 %v3726
    %v3833 = vunpack.c.h.b16 %v3726
    %v3834 = vunpack.c.l.b16 %v3727
    %v3835 = vunpack.c.h.b16 %v3727
    %v3836 = vpack.c.b16 %v3776, %v3772
    %v3837 = vpack.c.b16 %v3777, %v3773
    %v3838 = vpack.c.b16 %v3778, %v3774
    %v3839 = vpack.c.b16 %v3779, %v3775
    %v3840 = vpack.c.b16 %v3784, %v3780
    %v3841 = vpack.c.b16 %v3785, %v3781
    %v3842 = vpack.c.b16 %v3786, %v3782
    %v3843 = vpack.c.b16 %v3787, %v3783
    %v3844 = vpack.c.b16 %v3792, %v3788
    %v3845 = vpack.c.b16 %v3793, %v3789
    %v3846 = vpack.c.b16 %v3794, %v3790
    %v3847 = vpack.c.b16 %v3795, %v3791
    %v3848 = vpack.c.b16 %v3800, %v3796
    %v3849 = vpack.c.b16 %v3801, %v3797
    %v3850 = vpack.c.b16 %v3802, %v3798
    %v3851 = vpack.c.b16 %v3803, %v3799
    %v3852 = vpack.c.b16 %v3808, %v3804
    %v3853 = vpack.c.b16 %v3809, %v3805
    %v3854 = vpack.c.b16 %v3810, %v3806
    %v3855 = vpack.c.b16 %v3811, %v3807
    %v3856 = vpack.c.b16 %v3816, %v3812
    %v3857 = vpack.c.b16 %v3817, %v3813
    %v3858 = vpack.c.b16 %v3818, %v3814
    %v3859 = vpack.c.b16 %v3819, %v3815
    %v3860 = vpack.c.b16 %v3824, %v3820
    %v3861 = vpack.c.b16 %v3825, %v3821
    %v3862 = vpack.c.b16 %v3826, %v3822
    %v3863 = vpack.c.b16 %v3827, %v3823
    %v3864 = vpack.c.b16 %v3832, %v3828
    %v3865 = vpack.c.b16 %v3833, %v3829
    %v3866 = vpack.c.b16 %v3834, %v3830
    %v3867 = vpack.c.b16 %v3835, %v3831
    %3900 = vmatprep.subr.bf16.mxu0 %v3837
    %3901 = vmatpush1.bf16.msra.mxu0 %v3836
    %3902 = vmatprep.subr.bf16.mxu0 %v3841
    %3903 = vmatpush1.bf16.msra.mxu0 %v3840
    %3904 = vmatprep.subr.bf16.mxu0 %v3845
    %3905 = vmatpush1.bf16.msra.mxu0 %v3844
    %3906 = vmatprep.subr.bf16.mxu0 %v3849
    %3907 = vmatpush1.bf16.msra.mxu0 %v3848
    %3908 = vmatprep.subr.bf16.mxu0 %v3853
    %3909 = vmatpush1.bf16.msra.mxu0 %v3852
    %3910 = vmatprep.subr.bf16.mxu0 %v3857
    %3911 = vmatpush1.bf16.msra.mxu0 %v3856
    %3912 = vmatprep.subr.bf16.mxu0 %v3861
    %3913 = vmatpush1.bf16.msra.mxu0 %v3860
    %3914 = vmatprep.subr.bf16.mxu0 %v3865
    %3915 = vmatpush1.bf16.msra.mxu0 %v3864
    %3916 = vmatprep.subr.bf16.mxu0 0
    %3917 = vmatpush1.bf16.msra.mxu0 0
    %3918 = vmatprep.subr.bf16.mxu0 0
    %3919 = vmatpush1.bf16.msra.mxu0 0
    %3920 = vmatprep.subr.bf16.mxu0 0
    %3921 = vmatpush1.bf16.msra.mxu0 0
    %3922 = vmatprep.subr.bf16.mxu0 0
    %3923 = vmatpush1.bf16.msra.mxu0 0
    %3924 = vmatprep.subr.bf16.mxu0 0
    %3925 = vmatpush1.bf16.msra.mxu0 0
    %3926 = vmatprep.subr.bf16.mxu0 0
    %3927 = vmatpush1.bf16.msra.mxu0 0
    %3928 = vmatprep.subr.bf16.mxu0 0
    %3929 = vmatpush1.bf16.msra.mxu0 0
    %3930 = vmatprep.subr.bf16.mxu0 0
    %3931 = vmatpush1.bf16.msra.mxu0 0
    %3932 = vmatprep.mubr.bf16.mxu0 0
    %3933 = vmatmul.mubr.bf16.gmra.mrb[0].mxu0 0
    %v3934 = vpop.f32.mrb[0].mxu0
    %v3935 = vadd.f32 0.0, %v3934
    %v3936 = vpop.f32.mrb[0].mxu0
    %v3937 = vadd.f32 0.0, %v3936
    %v3938 = vpop.f32.mrb[0].mxu0
    %v3939 = vpop.f32.mrb[0].mxu0
    %3940 = vdwg.mxu0
    %3941 = vmatprep.subr.bf16.mxu0 %v3839
    %3942 = vmatpush1.bf16.msra.mxu0 %v3838
    %3943 = vmatprep.subr.bf16.mxu0 %v3843
    %3944 = vmatpush1.bf16.msra.mxu0 %v3842
    %3945 = vmatprep.subr.bf16.mxu0 %v3847
    %3946 = vmatpush1.bf16.msra.mxu0 %v3846
    %3947 = vmatprep.subr.bf16.mxu0 %v3851
    %3948 = vmatpush1.bf16.msra.mxu0 %v3850
    %3949 = vmatprep.subr.bf16.mxu0 %v3855
    %3950 = vmatpush1.bf16.msra.mxu0 %v3854
    %3951 = vmatprep.subr.bf16.mxu0 %v3859
    %3952 = vmatpush1.bf16.msra.mxu0 %v3858
    %3953 = vmatprep.subr.bf16.mxu0 %v3863
    %3954 = vmatpush1.bf16.msra.mxu0 %v3862
    %3955 = vmatprep.subr.bf16.mxu0 %v3867
    %3956 = vmatpush1.bf16.msra.mxu0 %v3866
    %3957 = vmatprep.subr.bf16.mxu0 0
    %3958 = vmatpush1.bf16.msra.mxu0 0
    %3959 = vmatprep.subr.bf16.mxu0 0
    %3960 = vmatpush1.bf16.msra.mxu0 0
    %3961 = vmatprep.subr.bf16.mxu0 0
    %3962 = vmatpush1.bf16.msra.mxu0 0
    %3963 = vmatprep.subr.bf16.mxu0 0
    %3964 = vmatpush1.bf16.msra.mxu0 0
    %3965 = vmatprep.subr.bf16.mxu0 0
    %3966 = vmatpush1.bf16.msra.mxu0 0
    %3967 = vmatprep.subr.bf16.mxu0 0
    %3968 = vmatpush1.bf16.msra.mxu0 0
    %3969 = vmatprep.subr.bf16.mxu0 0
    %3970 = vmatpush1.bf16.msra.mxu0 0
    %3971 = vmatprep.subr.bf16.mxu0 0
    %3972 = vmatpush1.bf16.msra.mxu0 0
    %3973 = vmatprep.mubr.bf16.mxu0 0
    %3974 = vmatmul.mubr.bf16.gmra.mrb[0].mxu0 0
    %v3975 = vpop.f32.mrb[0].mxu0
    %v3976 = vadd.f32 0.0, %v3975
    %v3977 = vpop.f32.mrb[0].mxu0
    %v3978 = vadd.f32 0.0, %v3977
    %v3979 = vpop.f32.mrb[0].mxu0
    %v3980 = vpop.f32.mrb[0].mxu0
    %3981 = vdwg.mxu0
    %v3982 = vadd.f32 %v3736, %v3935
    %v3983 = vadd.f32 %v3737, %v3937
    %v3984 = vadd.f32 %v3738, %v3976
    %v3985 = vadd.f32 %v3739, %v3978
    %v3986 = vxor.u32 %v3982, 2147483648
    %v3987 = vmul.f32 %v3986, 1.442695
    %v3988 = vpow.pop %v3987
    %v3989 = vadd.f32 %v3988, 1.0
    %v3990 = vrcp.pop %v3989
    %v3991 = vmul.f32 1.0, %v3990
    %v3992 = vxor.u32 %v3983, 2147483648
    %v3993 = vmul.f32 %v3992, 1.442695
    %v3994 = vpow.pop %v3993
    %v3995 = vadd.f32 %v3994, 1.0
    %v3996 = vrcp.pop %v3995
    %v3997 = vmul.f32 1.0, %v3996
    %v3998 = vtanh.pop %v3984
    %v3999 = vxor.u32 %v3985, 2147483648
    %v4000 = vmul.f32 %v3999, 1.442695
    %v4001 = vpow.pop %v4000
    %v4002 = vadd.f32 %v4001, 1.0
    %v4003 = vrcp.pop %v4002
    %v4004 = vmul.f32 1.0, %v4003
    %v4005 = vmul.f32 %v3997, 0.0
    %v4006 = vmul.f32 %v3991, %v3998
    %v4007 = vadd.f32 %v4005, %v4006
    %v4008 = vtanh.pop %v4007
    %v4009 = vmul.f32 %v4004, %v4008
    %v4010 = vld [vmem:[#allocation2 + $0x20] sm:$0xff]
    %v4011 = vld [vmem:[#allocation2 + $0x28] sm:$0xff]
    %v4012 = vld [vmem:[#allocation2 + $0x30] sm:$0xff]
    %v4013 = vld [vmem:[#allocation2 + $0x38] sm:$0xff]
    %v4014 = vld [vmem:[#allocation2 + $0xc0] sm:$0xff]
    %v4015 = vld [vmem:[#allocation2 + $0xc8] sm:$0xff]
    %v4016 = vld [vmem:[#allocation2 + $0xd0] sm:$0xff]
    %v4017 = vld [vmem:[#allocation2 + $0xd8] sm:$0xff]
    %v4018 = vsel %vm534, %v4010, %v4014
    %v4019 = vsel %vm535, %v4011, %v4015
    %v4020 = vsel %vm536, %v4012, %v4016
    %v4021 = vsel %vm537, %v4013, %v4017
    %v4022 = vpack.c.bf16 %v4009, %v4009
    %4023 = vmatprep.subr.bf16.mxu0 %v3837
    %4024 = vmatpush1.bf16.msra.mxu0 %v3836
    %4025 = vmatprep.subr.bf16.mxu0 %v3841
    %4026 = vmatpush1.bf16.msra.mxu0 %v3840
    %4027 = vmatprep.subr.bf16.mxu0 %v3845
    %4028 = vmatpush1.bf16.msra.mxu0 %v3844
    %4029 = vmatprep.subr.bf16.mxu0 %v3849
    %4030 = vmatpush1.bf16.msra.mxu0 %v3848
    %4031 = vmatprep.subr.bf16.mxu0 %v3853
    %4032 = vmatpush1.bf16.msra.mxu0 %v3852
    %4033 = vmatprep.subr.bf16.mxu0 %v3857
    %4034 = vmatpush1.bf16.msra.mxu0 %v3856
    %4035 = vmatprep.subr.bf16.mxu0 %v3861
    %4036 = vmatpush1.bf16.msra.mxu0 %v3860
    %4037 = vmatprep.subr.bf16.mxu0 %v3865
    %4038 = vmatpush1.bf16.msra.mxu0 %v3864
    %4039 = vmatprep.subr.bf16.mxu0 0
    %4040 = vmatpush1.bf16.msra.mxu0 0
    %4041 = vmatprep.subr.bf16.mxu0 0
    %4042 = vmatpush1.bf16.msra.mxu0 0
    %4043 = vmatprep.subr.bf16.mxu0 0
    %4044 = vmatpush1.bf16.msra.mxu0 0
    %4045 = vmatprep.subr.bf16.mxu0 0
    %4046 = vmatpush1.bf16.msra.mxu0 0
    %4047 = vmatprep.subr.bf16.mxu0 0
    %4048 = vmatpush1.bf16.msra.mxu0 0
    %4049 = vmatprep.subr.bf16.mxu0 0
    %4050 = vmatpush1.bf16.msra.mxu0 0
    %4051 = vmatprep.subr.bf16.mxu0 0
    %4052 = vmatpush1.bf16.msra.mxu0 0
    %4053 = vmatprep.subr.bf16.mxu0 0
    %4054 = vmatpush1.bf16.msra.mxu0 0
    %4055 = vmatprep.mubr.bf16.mxu0 0
    %4056 = vmatmul.mubr.bf16.gmra.mrb[0].mxu0 %v4022
    %v4057 = vpop.f32.mrb[0].mxu0
    %v4058 = vadd.f32 0.0, %v4057
    %v4059 = vpop.f32.mrb[0].mxu0
    %v4060 = vadd.f32 0.0, %v4059
    %v4061 = vpop.f32.mrb[0].mxu0
    %v4062 = vpop.f32.mrb[0].mxu0
    %4063 = vdwg.mxu0
    %4064 = vmatprep.subr.bf16.mxu0 %v3839
    %4065 = vmatpush1.bf16.msra.mxu0 %v3838
    %4066 = vmatprep.subr.bf16.mxu0 %v3843
    %4067 = vmatpush1.bf16.msra.mxu0 %v3842
    %4068 = vmatprep.subr.bf16.mxu0 %v3847
    %4069 = vmatpush1.bf16.msra.mxu0 %v3846
    %4070 = vmatprep.subr.bf16.mxu0 %v3851
    %4071 = vmatpush1.bf16.msra.mxu0 %v3850
    %4072 = vmatprep.subr.bf16.mxu0 %v3855
    %4073 = vmatpush1.bf16.msra.mxu0 %v3854
    %4074 = vmatprep.subr.bf16.mxu0 %v3859
    %4075 = vmatpush1.bf16.msra.mxu0 %v3858
    %4076 = vmatprep.subr.bf16.mxu0 %v3863
    %4077 = vmatpush1.bf16.msra.mxu0 %v3862
    %4078 = vmatprep.subr.bf16.mxu0 %v3867
    %4079 = vmatpush1.bf16.msra.mxu0 %v3866
    %4080 = vmatprep.subr.bf16.mxu0 0
    %4081 = vmatpush1.bf16.msra.mxu0 0
    %4082 = vmatprep.subr.bf16.mxu0 0
    %4083 = vmatpush1.bf16.msra.mxu0 0
    %4084 = vmatprep.subr.bf16.mxu0 0
    %4085 = vmatpush1.bf16.msra.mxu0 0
    %4086 = vmatprep.subr.bf16.mxu0 0
    %4087 = vmatpush1.bf16.msra.mxu0 0
    %4088 = vmatprep.subr.bf16.mxu0 0
    %4089 = vmatpush1.bf16.msra.mxu0 0
    %4090 = vmatprep.subr.bf16.mxu0 0
    %4091 = vmatpush1.bf16.msra.mxu0 0
    %4092 = vmatprep.subr.bf16.mxu0 0
    %4093 = vmatpush1.bf16.msra.mxu0 0
    %4094 = vmatprep.subr.bf16.mxu0 0
    %4095 = vmatpush1.bf16.msra.mxu0 0
    %4096 = vmatprep.mubr.bf16.mxu0 0
    %4097 = vmatmul.mubr.bf16.gmra.mrb[0].mxu0 %v4022
    %v4098 = vpop.f32.mrb[0].mxu0
    %v4099 = vadd.f32 0.0, %v4098
    %v4100 = vpop.f32.mrb[0].mxu0
    %v4101 = vadd.f32 0.0, %v4100
    %v4102 = vpop.f32.mrb[0].mxu0
    %v4103 = vpop.f32.mrb[0].mxu0
    %4104 = vdwg.mxu0
    %v4105 = vadd.f32 %v4018, %v4058
    %v4106 = vadd.f32 %v4019, %v4060
    %v4107 = vadd.f32 %v4020, %v4099
    %v4108 = vadd.f32 %v4021, %v4101
    %v4109 = vxor.u32 %v4105, 2147483648
    %v4110 = vmul.f32 %v4109, 1.442695
    %v4111 = vpow.pop %v4110
    %v4112 = vadd.f32 %v4111, 1.0
    %v4113 = vrcp.pop %v4112
    %v4114 = vmul.f32 1.0, %v4113
    %v4115 = vxor.u32 %v4106, 2147483648
    %v4116 = vmul.f32 %v4115, 1.442695
    %v4117 = vpow.pop %v4116
    %v4118 = vadd.f32 %v4117, 1.0
    %v4119 = vrcp.pop %v4118
    %v4120 = vmul.f32 1.0, %v4119
    %v4121 = vtanh.pop %v4107
    %v4122 = vxor.u32 %v4108, 2147483648
    %v4123 = vmul.f32 %v4122, 1.442695
    %v4124 = vpow.pop %v4123
    %v4125 = vadd.f32 %v4124, 1.0
    %v4126 = vrcp.pop %v4125
    %v4127 = vmul.f32 1.0, %v4126
    %v4128 = vmul.f32 %v4120, %v4007
    %v4129 = vmul.f32 %v4114, %v4121
    %v4130 = vadd.f32 %v4128, %v4129
    %v4131 = vtanh.pop %v4130
    %v4132 = vmul.f32 %v4127, %v4131
    %v4133 = vld [vmem:[#allocation2 + $0x40] sm:$0xff]
    %v4134 = vld [vmem:[#allocation2 + $0x48] sm:$0xff]
    %v4135 = vld [vmem:[#allocation2 + $0x50] sm:$0xff]
    %v4136 = vld [vmem:[#allocation2 + $0x58] sm:$0xff]
    %v4137 = vld [vmem:[#allocation2 + $0xa0] sm:$0xff]
    %v4138 = vld [vmem:[#allocation2 + $0xa8] sm:$0xff]
    %v4139 = vld [vmem:[#allocation2 + $0xb0] sm:$0xff]
    %v4140 = vld [vmem:[#allocation2 + $0xb8] sm:$0xff]
    %v4141 = vsel %vm534, %v4133, %v4137
    %v4142 = vsel %vm535, %v4134, %v4138
    %v4143 = vsel %vm536, %v4135, %v4139
    %v4144 = vsel %vm537, %v4136, %v4140
    %v4145 = vpack.c.bf16 %v4132, %v4132
    %4146 = vmatprep.subr.bf16.mxu0 %v3837
    %4147 = vmatpush1.bf16.msra.mxu0 %v3836
    %4148 = vmatprep.subr.bf16.mxu0 %v3841
    %4149 = vmatpush1.bf16.msra.mxu0 %v3840
    %4150 = vmatprep.subr.bf16.mxu0 %v3845
    %4151 = vmatpush1.bf16.msra.mxu0 %v3844
    %4152 = vmatprep.subr.bf16.mxu0 %v3849
    %4153 = vmatpush1.bf16.msra.mxu0 %v3848
    %4154 = vmatprep.subr.bf16.mxu0 %v3853
    %4155 = vmatpush1.bf16.msra.mxu0 %v3852
    %4156 = vmatprep.subr.bf16.mxu0 %v3857
    %4157 = vmatpush1.bf16.msra.mxu0 %v3856
    %4158 = vmatprep.subr.bf16.mxu0 %v3861
    %4159 = vmatpush1.bf16.msra.mxu0 %v3860
    %4160 = vmatprep.subr.bf16.mxu0 %v3865
    %4161 = vmatpush1.bf16.msra.mxu0 %v3864
    %4162 = vmatprep.subr.bf16.mxu0 0
    %4163 = vmatpush1.bf16.msra.mxu0 0
    %4164 = vmatprep.subr.bf16.mxu0 0
    %4165 = vmatpush1.bf16.msra.mxu0 0
    %4166 = vmatprep.subr.bf16.mxu0 0
    %4167 = vmatpush1.bf16.msra.mxu0 0
    %4168 = vmatprep.subr.bf16.mxu0 0
    %4169 = vmatpush1.bf16.msra.mxu0 0
    %4170 = vmatprep.subr.bf16.mxu0 0
    %4171 = vmatpush1.bf16.msra.mxu0 0
    %4172 = vmatprep.subr.bf16.mxu0 0
    %4173 = vmatpush1.bf16.msra.mxu0 0
    %4174 = vmatprep.subr.bf16.mxu0 0
    %4175 = vmatpush1.bf16.msra.mxu0 0
    %4176 = vmatprep.subr.bf16.mxu0 0
    %4177 = vmatpush1.bf16.msra.mxu0 0
    %4178 = vmatprep.mubr.bf16.mxu0 0
    %4179 = vmatmul.mubr.bf16.gmra.mrb[0].mxu0 %v4145
    %v4180 = vpop.f32.mrb[0].mxu0
    %v4181 = vadd.f32 0.0, %v4180
    %v4182 = vpop.f32.mrb[0].mxu0
    %v4183 = vadd.f32 0.0, %v4182
    %v4184 = vpop.f32.mrb[0].mxu0
    %v4185 = vpop.f32.mrb[0].mxu0
    %4186 = vdwg.mxu0
    %4187 = vmatprep.subr.bf16.mxu0 %v3839
    %4188 = vmatpush1.bf16.msra.mxu0 %v3838
    %4189 = vmatprep.subr.bf16.mxu0 %v3843
    %4190 = vmatpush1.bf16.msra.mxu0 %v3842
    %4191 = vmatprep.subr.bf16.mxu0 %v3847
    %4192 = vmatpush1.bf16.msra.mxu0 %v3846
    %4193 = vmatprep.subr.bf16.mxu0 %v3851
    %4194 = vmatpush1.bf16.msra.mxu0 %v3850
    %4195 = vmatprep.subr.bf16.mxu0 %v3855
    %4196 = vmatpush1.bf16.msra.mxu0 %v3854
    %4197 = vmatprep.subr.bf16.mxu0 %v3859
    %4198 = vmatpush1.bf16.msra.mxu0 %v3858
    %4199 = vmatprep.subr.bf16.mxu0 %v3863
    %4200 = vmatpush1.bf16.msra.mxu0 %v3862
    %4201 = vmatprep.subr.bf16.mxu0 %v3867
    %4202 = vmatpush1.bf16.msra.mxu0 %v3866
    %4203 = vmatprep.subr.bf16.mxu0 0
    %4204 = vmatpush1.bf16.msra.mxu0 0
    %4205 = vmatprep.subr.bf16.mxu0 0
    %4206 = vmatpush1.bf16.msra.mxu0 0
    %4207 = vmatprep.subr.bf16.mxu0 0
    %4208 = vmatpush1.bf16.msra.mxu0 0
    %4209 = vmatprep.subr.bf16.mxu0 0
    %4210 = vmatpush1.bf16.msra.mxu0 0
    %4211 = vmatprep.subr.bf16.mxu0 0
    %4212 = vmatpush1.bf16.msra.mxu0 0
    %4213 = vmatprep.subr.bf16.mxu0 0
    %4214 = vmatpush1.bf16.msra.mxu0 0
    %4215 = vmatprep.subr.bf16.mxu0 0
    %4216 = vmatpush1.bf16.msra.mxu0 0
    %4217 = vmatprep.subr.bf16.mxu0 0
    %4218 = vmatpush1.bf16.msra.mxu0 0
    %4219 = vmatprep.mubr.bf16.mxu0 0
    %4220 = vmatmul.mubr.bf16.gmra.mrb[0].mxu0 %v4145
    %v4221 = vpop.f32.mrb[0].mxu0
    %v4222 = vadd.f32 0.0, %v4221
    %v4223 = vpop.f32.mrb[0].mxu0
    %v4224 = vadd.f32 0.0, %v4223
    %v4225 = vpop.f32.mrb[0].mxu0
    %v4226 = vpop.f32.mrb[0].mxu0
    %4227 = vdwg.mxu0
    %v4228 = vadd.f32 %v4141, %v4181
    %v4229 = vadd.f32 %v4142, %v4183
    %v4230 = vadd.f32 %v4143, %v4222
    %v4231 = vadd.f32 %v4144, %v4224
    %v4232 = vxor.u32 %v4228, 2147483648
    %v4233 = vmul.f32 %v4232, 1.442695
    %v4234 = vpow.pop %v4233
    %v4235 = vadd.f32 %v4234, 1.0
    %v4236 = vrcp.pop %v4235
    %v4237 = vmul.f32 1.0, %v4236
    %v4238 = vxor.u32 %v4229, 2147483648
    %v4239 = vmul.f32 %v4238, 1.442695
    %v4240 = vpow.pop %v4239
    %v4241 = vadd.f32 %v4240, 1.0
    %v4242 = vrcp.pop %v4241
    %v4243 = vmul.f32 1.0, %v4242
    %v4244 = vtanh.pop %v4230
    %v4245 = vxor.u32 %v4231, 2147483648
    %v4246 = vmul.f32 %v4245, 1.442695
    %v4247 = vpow.pop %v4246
    %v4248 = vadd.f32 %v4247, 1.0
    %v4249 = vrcp.pop %v4248
    %v4250 = vmul.f32 1.0, %v4249
    %v4251 = vmul.f32 %v4243, %v4130
    %v4252 = vmul.f32 %v4237, %v4244
    %v4253 = vadd.f32 %v4251, %v4252
    %v4254 = vtanh.pop %v4253
    %v4255 = vmul.f32 %v4250, %v4254
    %v4256 = vld [vmem:[#allocation2 + $0x60] sm:$0xff]
    %v4257 = vld [vmem:[#allocation2 + $0x68] sm:$0xff]
    %v4258 = vld [vmem:[#allocation2 + $0x70] sm:$0xff]
    %v4259 = vld [vmem:[#allocation2 + $0x78] sm:$0xff]
    %v4260 = vld [vmem:[#allocation2 + $0x80] sm:$0xff]
    %v4261 = vld [vmem:[#allocation2 + $0x88] sm:$0xff]
    %v4262 = vld [vmem:[#allocation2 + $0x90] sm:$0xff]
    %v4263 = vld [vmem:[#allocation2 + $0x98] sm:$0xff]
    %v4264 = vsel %vm534, %v4256, %v4260
    %v4265 = vsel %vm535, %v4257, %v4261
    %v4266 = vsel %vm536, %v4258, %v4262
    %v4267 = vsel %vm537, %v4259, %v4263
    %v4268 = vpack.c.bf16 %v4255, %v4255
    %4269 = vmatprep.subr.bf16.mxu0 %v3837
    %4270 = vmatpush1.bf16.msra.mxu0 %v3836
    %4271 = vmatprep.subr.bf16.mxu0 %v3841
    %4272 = vmatpush1.bf16.msra.mxu0 %v3840
    %4273 = vmatprep.subr.bf16.mxu0 %v3845
    %4274 = vmatpush1.bf16.msra.mxu0 %v3844
    %4275 = vmatprep.subr.bf16.mxu0 %v3849
    %4276 = vmatpush1.bf16.msra.mxu0 %v3848
    %4277 = vmatprep.subr.bf16.mxu0 %v3853
    %4278 = vmatpush1.bf16.msra.mxu0 %v3852
    %4279 = vmatprep.subr.bf16.mxu0 %v3857
    %4280 = vmatpush1.bf16.msra.mxu0 %v3856
    %4281 = vmatprep.subr.bf16.mxu0 %v3861
    %4282 = vmatpush1.bf16.msra.mxu0 %v3860
    %4283 = vmatprep.subr.bf16.mxu0 %v3865
    %4284 = vmatpush1.bf16.msra.mxu0 %v3864
    %4285 = vmatprep.subr.bf16.mxu0 0
    %4286 = vmatpush1.bf16.msra.mxu0 0
    %4287 = vmatprep.subr.bf16.mxu0 0
    %4288 = vmatpush1.bf16.msra.mxu0 0
    %4289 = vmatprep.subr.bf16.mxu0 0
    %4290 = vmatpush1.bf16.msra.mxu0 0
    %4291 = vmatprep.subr.bf16.mxu0 0
    %4292 = vmatpush1.bf16.msra.mxu0 0
    %4293 = vmatprep.subr.bf16.mxu0 0
    %4294 = vmatpush1.bf16.msra.mxu0 0
    %4295 = vmatprep.subr.bf16.mxu0 0
    %4296 = vmatpush1.bf16.msra.mxu0 0
    %4297 = vmatprep.subr.bf16.mxu0 0
    %4298 = vmatpush1.bf16.msra.mxu0 0
    %4299 = vmatprep.subr.bf16.mxu0 0
    %4300 = vmatpush1.bf16.msra.mxu0 0
    %4301 = vmatprep.mubr.bf16.mxu0 0
    %4302 = vmatmul.mubr.bf16.gmra.mrb[0].mxu0 %v4268
    %v4303 = vpop.f32.mrb[0].mxu0
    %v4304 = vadd.f32 0.0, %v4303
    %v4305 = vpop.f32.mrb[0].mxu0
    %v4306 = vadd.f32 0.0, %v4305
    %v4307 = vpop.f32.mrb[0].mxu0
    %v4308 = vpop.f32.mrb[0].mxu0
    %4309 = vdwg.mxu0
    %4310 = vmatprep.subr.bf16.mxu0 %v3839
    %4311 = vmatpush1.bf16.msra.mxu0 %v3838
    %4312 = vmatprep.subr.bf16.mxu0 %v3843
    %4313 = vmatpush1.bf16.msra.mxu0 %v3842
    %4314 = vmatprep.subr.bf16.mxu0 %v3847
    %4315 = vmatpush1.bf16.msra.mxu0 %v3846
    %4316 = vmatprep.subr.bf16.mxu0 %v3851
    %4317 = vmatpush1.bf16.msra.mxu0 %v3850
    %4318 = vmatprep.subr.bf16.mxu0 %v3855
    %4319 = vmatpush1.bf16.msra.mxu0 %v3854
    %4320 = vmatprep.subr.bf16.mxu0 %v3859
    %4321 = vmatpush1.bf16.msra.mxu0 %v3858
    %4322 = vmatprep.subr.bf16.mxu0 %v3863
    %4323 = vmatpush1.bf16.msra.mxu0 %v3862
    %4324 = vmatprep.subr.bf16.mxu0 %v3867
    %4325 = vmatpush1.bf16.msra.mxu0 %v3866
    %4326 = vmatprep.subr.bf16.mxu0 0
    %4327 = vmatpush1.bf16.msra.mxu0 0
    %4328 = vmatprep.subr.bf16.mxu0 0
    %4329 = vmatpush1.bf16.msra.mxu0 0
    %4330 = vmatprep.subr.bf16.mxu0 0
    %4331 = vmatpush1.bf16.msra.mxu0 0
    %4332 = vmatprep.subr.bf16.mxu0 0
    %4333 = vmatpush1.bf16.msra.mxu0 0
    %4334 = vmatprep.subr.bf16.mxu0 0
    %4335 = vmatpush1.bf16.msra.mxu0 0
    %4336 = vmatprep.subr.bf16.mxu0 0
    %4337 = vmatpush1.bf16.msra.mxu0 0
    %4338 = vmatprep.subr.bf16.mxu0 0
    %4339 = vmatpush1.bf16.msra.mxu0 0
    %4340 = vmatprep.subr.bf16.mxu0 0
    %4341 = vmatpush1.bf16.msra.mxu0 0
    %4342 = vmatprep.mubr.bf16.mxu0 0
    %4343 = vmatmul.mubr.bf16.gmra.mrb[0].mxu0 %v4268
    %v4344 = vpop.f32.mrb[0].mxu0
    %v4345 = vadd.f32 0.0, %v4344
    %v4346 = vpop.f32.mrb[0].mxu0
    %v4347 = vadd.f32 0.0, %v4346
    %v4348 = vpop.f32.mrb[0].mxu0
    %v4349 = vpop.f32.mrb[0].mxu0
    %4350 = vdwg.mxu0
    %v4351 = vadd.f32 %v4264, %v4304
    %v4352 = vadd.f32 %v4265, %v4306
    %v4353 = vadd.f32 %v4266, %v4345
    %v4354 = vadd.f32 %v4267, %v4347
    %v4355 = vxor.u32 %v4351, 2147483648
    %v4356 = vmul.f32 %v4355, 1.442695
    %v4357 = vpow.pop %v4356
    %v4358 = vadd.f32 %v4357, 1.0
    %v4359 = vrcp.pop %v4358
    %v4360 = vmul.f32 1.0, %v4359
    %v4361 = vxor.u32 %v4352, 2147483648
    %v4362 = vmul.f32 %v4361, 1.442695
    %v4363 = vpow.pop %v4362
    %v4364 = vadd.f32 %v4363, 1.0
    %v4365 = vrcp.pop %v4364
    %v4366 = vmul.f32 1.0, %v4365
    %v4367 = vtanh.pop %v4353
    %v4368 = vxor.u32 %v4354, 2147483648
    %v4369 = vmul.f32 %v4368, 1.442695
    %v4370 = vpow.pop %v4369
    %v4371 = vadd.f32 %v4370, 1.0
    %v4372 = vrcp.pop %v4371
    %v4373 = vmul.f32 1.0, %v4372
    %v4374 = vmul.f32 %v4366, %v4253
    %v4375 = vmul.f32 %v4360, %v4367
    %v4376 = vadd.f32 %v4374, %v4375
    %v4377 = vtanh.pop %v4376
    %v4378 = vmul.f32 %v4373, %v4377
    %v4379 = vsel %vm534, %v4260, %v4256
    %v4380 = vsel %vm535, %v4261, %v4257
    %v4381 = vsel %vm536, %v4262, %v4258
    %v4382 = vsel %vm537, %v4263, %v4259
    %v4383 = vpack.c.bf16 %v4378, %v4378
    %4384 = vmatprep.subr.bf16.mxu0 %v3837
    %4385 = vmatpush1.bf16.msra.mxu0 %v3836
    %4386 = vmatprep.subr.bf16.mxu0 %v3841
    %4387 = vmatpush1.bf16.msra.mxu0 %v3840
    %4388 = vmatprep.subr.bf16.mxu0 %v3845
    %4389 = vmatpush1.bf16.msra.mxu0 %v3844
    %4390 = vmatprep.subr.bf16.mxu0 %v3849
    %4391 = vmatpush1.bf16.msra.mxu0 %v3848
    %4392 = vmatprep.subr.bf16.mxu0 %v3853
    %4393 = vmatpush1.bf16.msra.mxu0 %v3852
    %4394 = vmatprep.subr.bf16.mxu0 %v3857
    %4395 = vmatpush1.bf16.msra.mxu0 %v3856
    %4396 = vmatprep.subr.bf16.mxu0 %v3861
    %4397 = vmatpush1.bf16.msra.mxu0 %v3860
    %4398 = vmatprep.subr.bf16.mxu0 %v3865
    %4399 = vmatpush1.bf16.msra.mxu0 %v3864
    %4400 = vmatprep.subr.bf16.mxu0 0
    %4401 = vmatpush1.bf16.msra.mxu0 0
    %4402 = vmatprep.subr.bf16.mxu0 0
    %4403 = vmatpush1.bf16.msra.mxu0 0
    %4404 = vmatprep.subr.bf16.mxu0 0
    %4405 = vmatpush1.bf16.msra.mxu0 0
    %4406 = vmatprep.subr.bf16.mxu0 0
    %4407 = vmatpush1.bf16.msra.mxu0 0
    %4408 = vmatprep.subr.bf16.mxu0 0
    %4409 = vmatpush1.bf16.msra.mxu0 0
    %4410 = vmatprep.subr.bf16.mxu0 0
    %4411 = vmatpush1.bf16.msra.mxu0 0
    %4412 = vmatprep.subr.bf16.mxu0 0
    %4413 = vmatpush1.bf16.msra.mxu0 0
    %4414 = vmatprep.subr.bf16.mxu0 0
    %4415 = vmatpush1.bf16.msra.mxu0 0
    %4416 = vmatprep.mubr.bf16.mxu0 0
    %4417 = vmatmul.mubr.bf16.gmra.mrb[0].mxu0 %v4383
    %v4418 = vpop.f32.mrb[0].mxu0
    %v4419 = vadd.f32 0.0, %v4418
    %v4420 = vpop.f32.mrb[0].mxu0
    %v4421 = vadd.f32 0.0, %v4420
    %v4422 = vpop.f32.mrb[0].mxu0
    %v4423 = vpop.f32.mrb[0].mxu0
    %4424 = vdwg.mxu0
    %4425 = vmatprep.subr.bf16.mxu0 %v3839
    %4426 = vmatpush1.bf16.msra.mxu0 %v3838
    %4427 = vmatprep.subr.bf16.mxu0 %v3843
    %4428 = vmatpush1.bf16.msra.mxu0 %v3842
    %4429 = vmatprep.subr.bf16.mxu0 %v3847
    %4430 = vmatpush1.bf16.msra.mxu0 %v3846
    %4431 = vmatprep.subr.bf16.mxu0 %v3851
    %4432 = vmatpush1.bf16.msra.mxu0 %v3850
    %4433 = vmatprep.subr.bf16.mxu0 %v3855
    %4434 = vmatpush1.bf16.msra.mxu0 %v3854
    %4435 = vmatprep.subr.bf16.mxu0 %v3859
    %4436 = vmatpush1.bf16.msra.mxu0 %v3858
    %4437 = vmatprep.subr.bf16.mxu0 %v3863
    %4438 = vmatpush1.bf16.msra.mxu0 %v3862
    %4439 = vmatprep.subr.bf16.mxu0 %v3867
    %4440 = vmatpush1.bf16.msra.mxu0 %v3866
    %4441 = vmatprep.subr.bf16.mxu0 0
    %4442 = vmatpush1.bf16.msra.mxu0 0
    %4443 = vmatprep.subr.bf16.mxu0 0
    %4444 = vmatpush1.bf16.msra.mxu0 0
    %4445 = vmatprep.subr.bf16.mxu0 0
    %4446 = vmatpush1.bf16.msra.mxu0 0
    %4447 = vmatprep.subr.bf16.mxu0 0
    %4448 = vmatpush1.bf16.msra.mxu0 0
    %4449 = vmatprep.subr.bf16.mxu0 0
    %4450 = vmatpush1.bf16.msra.mxu0 0
    %4451 = vmatprep.subr.bf16.mxu0 0
    %4452 = vmatpush1.bf16.msra.mxu0 0
    %4453 = vmatprep.subr.bf16.mxu0 0
    %4454 = vmatpush1.bf16.msra.mxu0 0
    %4455 = vmatprep.subr.bf16.mxu0 0
    %4456 = vmatpush1.bf16.msra.mxu0 0
    %4457 = vmatprep.mubr.bf16.mxu0 0
    %4458 = vmatmul.mubr.bf16.gmra.mrb[0].mxu0 %v4383
    %v4459 = vpop.f32.mrb[0].mxu0
    %v4460 = vadd.f32 0.0, %v4459
    %v4461 = vpop.f32.mrb[0].mxu0
    %v4462 = vadd.f32 0.0, %v4461
    %v4463 = vpop.f32.mrb[0].mxu0
    %v4464 = vpop.f32.mrb[0].mxu0
    %4465 = vdwg.mxu0
    %v4466 = vadd.f32 %v4379, %v4419
    %v4467 = vadd.f32 %v4380, %v4421
    %v4468 = vadd.f32 %v4381, %v4460
    %v4469 = vadd.f32 %v4382, %v4462
    %v4470 = vxor.u32 %v4466, 2147483648
    %v4471 = vmul.f32 %v4470, 1.442695
    %v4472 = vpow.pop %v4471
    %v4473 = vadd.f32 %v4472, 1.0
    %v4474 = vrcp.pop %v4473
    %v4475 = vmul.f32 1.0, %v4474
    %v4476 = vxor.u32 %v4467, 2147483648
    %v4477 = vmul.f32 %v4476, 1.442695
    %v4478 = vpow.pop %v4477
    %v4479 = vadd.f32 %v4478, 1.0
    %v4480 = vrcp.pop %v4479
    %v4481 = vmul.f32 1.0, %v4480
    %v4482 = vtanh.pop %v4468
    %v4483 = vxor.u32 %v4469, 2147483648
    %v4484 = vmul.f32 %v4483, 1.442695
    %v4485 = vpow.pop %v4484
    %v4486 = vadd.f32 %v4485, 1.0
    %v4487 = vrcp.pop %v4486
    %v4488 = vmul.f32 1.0, %v4487
    %v4489 = vmul.f32 %v4481, %v4376
    %v4490 = vmul.f32 %v4475, %v4482
    %v4491 = vadd.f32 %v4489, %v4490
    %v4492 = vtanh.pop %v4491
    %v4493 = vmul.f32 %v4488, %v4492
    %v4494 = vsel %vm534, %v4137, %v4133
    %v4495 = vsel %vm535, %v4138, %v4134
    %v4496 = vsel %vm536, %v4139, %v4135
    %v4497 = vsel %vm537, %v4140, %v4136
    %v4498 = vpack.c.bf16 %v4493, %v4493
    %4499 = vmatprep.subr.bf16.mxu0 %v3837
    %4500 = vmatpush1.bf16.msra.mxu0 %v3836
    %4501 = vmatprep.subr.bf16.mxu0 %v3841
    %4502 = vmatpush1.bf16.msra.mxu0 %v3840
    %4503 = vmatprep.subr.bf16.mxu0 %v3845
    %4504 = vmatpush1.bf16.msra.mxu0 %v3844
    %4505 = vmatprep.subr.bf16.mxu0 %v3849
    %4506 = vmatpush1.bf16.msra.mxu0 %v3848
    %4507 = vmatprep.subr.bf16.mxu0 %v3853
    %4508 = vmatpush1.bf16.msra.mxu0 %v3852
    %4509 = vmatprep.subr.bf16.mxu0 %v3857
    %4510 = vmatpush1.bf16.msra.mxu0 %v3856
    %4511 = vmatprep.subr.bf16.mxu0 %v3861
    %4512 = vmatpush1.bf16.msra.mxu0 %v3860
    %4513 = vmatprep.subr.bf16.mxu0 %v3865
    %4514 = vmatpush1.bf16.msra.mxu0 %v3864
    %4515 = vmatprep.subr.bf16.mxu0 0
    %4516 = vmatpush1.bf16.msra.mxu0 0
    %4517 = vmatprep.subr.bf16.mxu0 0
    %4518 = vmatpush1.bf16.msra.mxu0 0
    %4519 = vmatprep.subr.bf16.mxu0 0
    %4520 = vmatpush1.bf16.msra.mxu0 0
    %4521 = vmatprep.subr.bf16.mxu0 0
    %4522 = vmatpush1.bf16.msra.mxu0 0
    %4523 = vmatprep.subr.bf16.mxu0 0
    %4524 = vmatpush1.bf16.msra.mxu0 0
    %4525 = vmatprep.subr.bf16.mxu0 0
    %4526 = vmatpush1.bf16.msra.mxu0 0
    %4527 = vmatprep.subr.bf16.mxu0 0
    %4528 = vmatpush1.bf16.msra.mxu0 0
    %4529 = vmatprep.subr.bf16.mxu0 0
    %4530 = vmatpush1.bf16.msra.mxu0 0
    %4531 = vmatprep.mubr.bf16.mxu0 0
    %4532 = vmatmul.mubr.bf16.gmra.mrb[0].mxu0 %v4498
    %v4533 = vpop.f32.mrb[0].mxu0
    %v4534 = vadd.f32 0.0, %v4533
    %v4535 = vpop.f32.mrb[0].mxu0
    %v4536 = vadd.f32 0.0, %v4535
    %v4537 = vpop.f32.mrb[0].mxu0
    %v4538 = vpop.f32.mrb[0].mxu0
    %4539 = vdwg.mxu0
    %4540 = vmatprep.subr.bf16.mxu0 %v3839
    %4541 = vmatpush1.bf16.msra.mxu0 %v3838
    %4542 = vmatprep.subr.bf16.mxu0 %v3843
    %4543 = vmatpush1.bf16.msra.mxu0 %v3842
    %4544 = vmatprep.subr.bf16.mxu0 %v3847
    %4545 = vmatpush1.bf16.msra.mxu0 %v3846
    %4546 = vmatprep.subr.bf16.mxu0 %v3851
    %4547 = vmatpush1.bf16.msra.mxu0 %v3850
    %4548 = vmatprep.subr.bf16.mxu0 %v3855
    %4549 = vmatpush1.bf16.msra.mxu0 %v3854
    %4550 = vmatprep.subr.bf16.mxu0 %v3859
    %4551 = vmatpush1.bf16.msra.mxu0 %v3858
    %4552 = vmatprep.subr.bf16.mxu0 %v3863
    %4553 = vmatpush1.bf16.msra.mxu0 %v3862
    %4554 = vmatprep.subr.bf16.mxu0 %v3867
    %4555 = vmatpush1.bf16.msra.mxu0 %v3866
    %4556 = vmatprep.subr.bf16.mxu0 0
    %4557 = vmatpush1.bf16.msra.mxu0 0
    %4558 = vmatprep.subr.bf16.mxu0 0
    %4559 = vmatpush1.bf16.msra.mxu0 0
    %4560 = vmatprep.subr.bf16.mxu0 0
    %4561 = vmatpush1.bf16.msra.mxu0 0
    %4562 = vmatprep.subr.bf16.mxu0 0
    %4563 = vmatpush1.bf16.msra.mxu0 0
    %4564 = vmatprep.subr.bf16.mxu0 0
    %4565 = vmatpush1.bf16.msra.mxu0 0
    %4566 = vmatprep.subr.bf16.mxu0 0
    %4567 = vmatpush1.bf16.msra.mxu0 0
    %4568 = vmatprep.subr.bf16.mxu0 0
    %4569 = vmatpush1.bf16.msra.mxu0 0
    %4570 = vmatprep.subr.bf16.mxu0 0
    %4571 = vmatpush1.bf16.msra.mxu0 0
    %4572 = vmatprep.mubr.bf16.mxu0 0
    %4573 = vmatmul.mubr.bf16.gmra.mrb[0].mxu0 %v4498
    %v4574 = vpop.f32.mrb[0].mxu0
    %v4575 = vadd.f32 0.0, %v4574
    %v4576 = vpop.f32.mrb[0].mxu0
    %v4577 = vadd.f32 0.0, %v4576
    %v4578 = vpop.f32.mrb[0].mxu0
    %v4579 = vpop.f32.mrb[0].mxu0
    %4580 = vdwg.mxu0
    %v4581 = vadd.f32 %v4494, %v4534
    %v4582 = vadd.f32 %v4495, %v4536
    %v4583 = vadd.f32 %v4496, %v4575
    %v4584 = vadd.f32 %v4497, %v4577
    %v4585 = vxor.u32 %v4581, 2147483648
    %v4586 = vmul.f32 %v4585, 1.442695
    %v4587 = vpow.pop %v4586
    %v4588 = vadd.f32 %v4587, 1.0
    %v4589 = vrcp.pop %v4588
    %v4590 = vmul.f32 1.0, %v4589
    %v4591 = vxor.u32 %v4582, 2147483648
    %v4592 = vmul.f32 %v4591, 1.442695
    %v4593 = vpow.pop %v4592
    %v4594 = vadd.f32 %v4593, 1.0
    %v4595 = vrcp.pop %v4594
    %v4596 = vmul.f32 1.0, %v4595
    %v4597 = vtanh.pop %v4583
    %v4598 = vxor.u32 %v4584, 2147483648
    %v4599 = vmul.f32 %v4598, 1.442695
    %v4600 = vpow.pop %v4599
    %v4601 = vadd.f32 %v4600, 1.0
    %v4602 = vrcp.pop %v4601
    %v4603 = vmul.f32 1.0, %v4602
    %v4604 = vmul.f32 %v4596, %v4491
    %v4605 = vmul.f32 %v4590, %v4597
    %v4606 = vadd.f32 %v4604, %v4605
    %v4607 = vtanh.pop %v4606
    %v4608 = vmul.f32 %v4603, %v4607
    %v4609 = vsel %vm534, %v4014, %v4010
    %v4610 = vsel %vm535, %v4015, %v4011
    %v4611 = vsel %vm536, %v4016, %v4012
    %v4612 = vsel %vm537, %v4017, %v4013
    %v4613 = vpack.c.bf16 %v4608, %v4608
    %4614 = vmatprep.subr.bf16.mxu0 %v3837
    %4615 = vmatpush1.bf16.msra.mxu0 %v3836
    %4616 = vmatprep.subr.bf16.mxu0 %v3841
    %4617 = vmatpush1.bf16.msra.mxu0 %v3840
    %4618 = vmatprep.subr.bf16.mxu0 %v3845
    %4619 = vmatpush1.bf16.msra.mxu0 %v3844
    %4620 = vmatprep.subr.bf16.mxu0 %v3849
    %4621 = vmatpush1.bf16.msra.mxu0 %v3848
    %4622 = vmatprep.subr.bf16.mxu0 %v3853
    %4623 = vmatpush1.bf16.msra.mxu0 %v3852
    %4624 = vmatprep.subr.bf16.mxu0 %v3857
    %4625 = vmatpush1.bf16.msra.mxu0 %v3856
    %4626 = vmatprep.subr.bf16.mxu0 %v3861
    %4627 = vmatpush1.bf16.msra.mxu0 %v3860
    %4628 = vmatprep.subr.bf16.mxu0 %v3865
    %4629 = vmatpush1.bf16.msra.mxu0 %v3864
    %4630 = vmatprep.subr.bf16.mxu0 0
    %4631 = vmatpush1.bf16.msra.mxu0 0
    %4632 = vmatprep.subr.bf16.mxu0 0
    %4633 = vmatpush1.bf16.msra.mxu0 0
    %4634 = vmatprep.subr.bf16.mxu0 0
    %4635 = vmatpush1.bf16.msra.mxu0 0
    %4636 = vmatprep.subr.bf16.mxu0 0
    %4637 = vmatpush1.bf16.msra.mxu0 0
    %4638 = vmatprep.subr.bf16.mxu0 0
    %4639 = vmatpush1.bf16.msra.mxu0 0
    %4640 = vmatprep.subr.bf16.mxu0 0
    %4641 = vmatpush1.bf16.msra.mxu0 0
    %4642 = vmatprep.subr.bf16.mxu0 0
    %4643 = vmatpush1.bf16.msra.mxu0 0
    %4644 = vmatprep.subr.bf16.mxu0 0
    %4645 = vmatpush1.bf16.msra.mxu0 0
    %4646 = vmatprep.mubr.bf16.mxu0 0
    %4647 = vmatmul.mubr.bf16.gmra.mrb[0].mxu0 %v4613
    %v4648 = vpop.f32.mrb[0].mxu0
    %v4649 = vadd.f32 0.0, %v4648
    %v4650 = vpop.f32.mrb[0].mxu0
    %v4651 = vadd.f32 0.0, %v4650
    %v4652 = vpop.f32.mrb[0].mxu0
    %v4653 = vpop.f32.mrb[0].mxu0
    %4654 = vdwg.mxu0
    %4655 = vmatprep.subr.bf16.mxu0 %v3839
    %4656 = vmatpush1.bf16.msra.mxu0 %v3838
    %4657 = vmatprep.subr.bf16.mxu0 %v3843
    %4658 = vmatpush1.bf16.msra.mxu0 %v3842
    %4659 = vmatprep.subr.bf16.mxu0 %v3847
    %4660 = vmatpush1.bf16.msra.mxu0 %v3846
    %4661 = vmatprep.subr.bf16.mxu0 %v3851
    %4662 = vmatpush1.bf16.msra.mxu0 %v3850
    %4663 = vmatprep.subr.bf16.mxu0 %v3855
    %4664 = vmatpush1.bf16.msra.mxu0 %v3854
    %4665 = vmatprep.subr.bf16.mxu0 %v3859
    %4666 = vmatpush1.bf16.msra.mxu0 %v3858
    %4667 = vmatprep.subr.bf16.mxu0 %v3863
    %4668 = vmatpush1.bf16.msra.mxu0 %v3862
    %4669 = vmatprep.subr.bf16.mxu0 %v3867
    %4670 = vmatpush1.bf16.msra.mxu0 %v3866
    %4671 = vmatprep.subr.bf16.mxu0 0
    %4672 = vmatpush1.bf16.msra.mxu0 0
    %4673 = vmatprep.subr.bf16.mxu0 0
    %4674 = vmatpush1.bf16.msra.mxu0 0
    %4675 = vmatprep.subr.bf16.mxu0 0
    %4676 = vmatpush1.bf16.msra.mxu0 0
    %4677 = vmatprep.subr.bf16.mxu0 0
    %4678 = vmatpush1.bf16.msra.mxu0 0
    %4679 = vmatprep.subr.bf16.mxu0 0
    %4680 = vmatpush1.bf16.msra.mxu0 0
    %4681 = vmatprep.subr.bf16.mxu0 0
    %4682 = vmatpush1.bf16.msra.mxu0 0
    %4683 = vmatprep.subr.bf16.mxu0 0
    %4684 = vmatpush1.bf16.msra.mxu0 0
    %4685 = vmatprep.subr.bf16.mxu0 0
    %4686 = vmatpush1.bf16.msra.mxu0 0
    %4687 = vmatprep.mubr.bf16.mxu0 0
    %4688 = vmatmul.mubr.bf16.gmra.mrb[0].mxu0 %v4613
    %v4689 = vpop.f32.mrb[0].mxu0
    %v4690 = vadd.f32 0.0, %v4689
    %v4691 = vpop.f32.mrb[0].mxu0
    %v4692 = vadd.f32 0.0, %v4691
    %v4693 = vpop.f32.mrb[0].mxu0
    %v4694 = vpop.f32.mrb[0].mxu0
    %4695 = vdwg.mxu0
    %v4696 = vadd.f32 %v4609, %v4649
    %v4697 = vadd.f32 %v4610, %v4651
    %v4698 = vadd.f32 %v4611, %v4690
    %v4699 = vadd.f32 %v4612, %v4692
    %v4700 = vxor.u32 %v4696, 2147483648
    %v4701 = vmul.f32 %v4700, 1.442695
    %v4702 = vpow.pop %v4701
    %v4703 = vadd.f32 %v4702, 1.0
    %v4704 = vrcp.pop %v4703
    %v4705 = vmul.f32 1.0, %v4704
    %v4706 = vxor.u32 %v4697, 2147483648
    %v4707 = vmul.f32 %v4706, 1.442695
    %v4708 = vpow.pop %v4707
    %v4709 = vadd.f32 %v4708, 1.0
    %v4710 = vrcp.pop %v4709
    %v4711 = vmul.f32 1.0, %v4710
    %v4712 = vtanh.pop %v4698
    %v4713 = vxor.u32 %v4699, 2147483648
    %v4714 = vmul.f32 %v4713, 1.442695
    %v4715 = vpow.pop %v4714
    %v4716 = vadd.f32 %v4715, 1.0
    %v4717 = vrcp.pop %v4716
    %v4718 = vmul.f32 1.0, %v4717
    %v4719 = vmul.f32 %v4711, %v4606
    %v4720 = vmul.f32 %v4705, %v4712
    %v4721 = vadd.f32 %v4719, %v4720
    %v4722 = vtanh.pop %v4721
    %v4723 = vmul.f32 %v4718, %v4722
    %v4724 = vsel %vm534, %v3732, %v3728
    %v4725 = vsel %vm535, %v3733, %v3729
    %v4726 = vsel %vm536, %v3734, %v3730
    %v4727 = vsel %vm537, %v3735, %v3731
    %v4728 = vpack.c.bf16 %v4723, %v4723
    %4729 = vmatprep.subr.bf16.mxu0 %v3837
    %4730 = vmatpush1.bf16.msra.mxu0 %v3836
    %4731 = vmatprep.subr.bf16.mxu0 %v3841
    %4732 = vmatpush1.bf16.msra.mxu0 %v3840
    %4733 = vmatprep.subr.bf16.mxu0 %v3845
    %4734 = vmatpush1.bf16.msra.mxu0 %v3844
    %4735 = vmatprep.subr.bf16.mxu0 %v3849
    %4736 = vmatpush1.bf16.msra.mxu0 %v3848
    %4737 = vmatprep.subr.bf16.mxu0 %v3853
    %4738 = vmatpush1.bf16.msra.mxu0 %v3852
    %4739 = vmatprep.subr.bf16.mxu0 %v3857
    %4740 = vmatpush1.bf16.msra.mxu0 %v3856
    %4741 = vmatprep.subr.bf16.mxu0 %v3861
    %4742 = vmatpush1.bf16.msra.mxu0 %v3860
    %4743 = vmatprep.subr.bf16.mxu0 %v3865
    %4744 = vmatpush1.bf16.msra.mxu0 %v3864
    %4745 = vmatprep.subr.bf16.mxu0 0
    %4746 = vmatpush1.bf16.msra.mxu0 0
    %4747 = vmatprep.subr.bf16.mxu0 0
    %4748 = vmatpush1.bf16.msra.mxu0 0
    %4749 = vmatprep.subr.bf16.mxu0 0
    %4750 = vmatpush1.bf16.msra.mxu0 0
    %4751 = vmatprep.subr.bf16.mxu0 0
    %4752 = vmatpush1.bf16.msra.mxu0 0
    %4753 = vmatprep.subr.bf16.mxu0 0
    %4754 = vmatpush1.bf16.msra.mxu0 0
    %4755 = vmatprep.subr.bf16.mxu0 0
    %4756 = vmatpush1.bf16.msra.mxu0 0
    %4757 = vmatprep.subr.bf16.mxu0 0
    %4758 = vmatpush1.bf16.msra.mxu0 0
    %4759 = vmatprep.subr.bf16.mxu0 0
    %4760 = vmatpush1.bf16.msra.mxu0 0
    %4761 = vmatprep.mubr.bf16.mxu0 0
    %4762 = vmatmul.mubr.bf16.gmra.mrb[0].mxu0 %v4728
    %v4763 = vpop.f32.mrb[0].mxu0
    %v4764 = vadd.f32 0.0, %v4763
    %v4765 = vpop.f32.mrb[0].mxu0
    %v4766 = vadd.f32 0.0, %v4765
    %v4767 = vpop.f32.mrb[0].mxu0
    %v4768 = vpop.f32.mrb[0].mxu0
    %4769 = vdwg.mxu0
    %4770 = vmatprep.subr.bf16.mxu0 %v3839
    %4771 = vmatpush1.bf16.msra.mxu0 %v3838
    %4772 = vmatprep.subr.bf16.mxu0 %v3843
    %4773 = vmatpush1.bf16.msra.mxu0 %v3842
    %4774 = vmatprep.subr.bf16.mxu0 %v3847
    %4775 = vmatpush1.bf16.msra.mxu0 %v3846
    %4776 = vmatprep.subr.bf16.mxu0 %v3851
    %4777 = vmatpush1.bf16.msra.mxu0 %v3850
    %4778 = vmatprep.subr.bf16.mxu0 %v3855
    %4779 = vmatpush1.bf16.msra.mxu0 %v3854
    %4780 = vmatprep.subr.bf16.mxu0 %v3859
    %4781 = vmatpush1.bf16.msra.mxu0 %v3858
    %4782 = vmatprep.subr.bf16.mxu0 %v3863
    %4783 = vmatpush1.bf16.msra.mxu0 %v3862
    %4784 = vmatprep.subr.bf16.mxu0 %v3867
    %4785 = vmatpush1.bf16.msra.mxu0 %v3866
    %4786 = vmatprep.subr.bf16.mxu0 0
    %4787 = vmatpush1.bf16.msra.mxu0 0
    %4788 = vmatprep.subr.bf16.mxu0 0
    %4789 = vmatpush1.bf16.msra.mxu0 0
    %4790 = vmatprep.subr.bf16.mxu0 0
    %4791 = vmatpush1.bf16.msra.mxu0 0
    %4792 = vmatprep.subr.bf16.mxu0 0
    %4793 = vmatpush1.bf16.msra.mxu0 0
    %4794 = vmatprep.subr.bf16.mxu0 0
    %4795 = vmatpush1.bf16.msra.mxu0 0
    %4796 = vmatprep.subr.bf16.mxu0 0
    %4797 = vmatpush1.bf16.msra.mxu0 0
    %4798 = vmatprep.subr.bf16.mxu0 0
    %4799 = vmatpush1.bf16.msra.mxu0 0
    %4800 = vmatprep.subr.bf16.mxu0 0
    %4801 = vmatpush1.bf16.msra.mxu0 0
    %4802 = vmatprep.mubr.bf16.mxu0 0
    %4803 = vmatmul.mubr.bf16.gmra.mrb[0].mxu0 %v4728
    %v4804 = vpop.f32.mrb[0].mxu0
    %v4805 = vadd.f32 0.0, %v4804
    %v4806 = vpop.f32.mrb[0].mxu0
    %v4807 = vadd.f32 0.0, %v4806
    %v4808 = vpop.f32.mrb[0].mxu0
    %v4809 = vpop.f32.mrb[0].mxu0
    %4810 = vdwg.mxu0
    %v4811 = vadd.f32 %v4724, %v4764
    %v4812 = vadd.f32 %v4725, %v4766
    %v4813 = vadd.f32 %v4726, %v4805
    %v4814 = vadd.f32 %v4727, %v4807
    %v4815 = vxor.u32 %v4811, 2147483648
    %v4816 = vmul.f32 %v4815, 1.442695
    %v4817 = vpow.pop %v4816
    %v4818 = vadd.f32 %v4817, 1.0
    %v4819 = vrcp.pop %v4818
    %v4820 = vmul.f32 1.0, %v4819
    %v4821 = vxor.u32 %v4812, 2147483648
    %v4822 = vmul.f32 %v4821, 1.442695
    %v4823 = vpow.pop %v4822
    %v4824 = vadd.f32 %v4823, 1.0
    %v4825 = vrcp.pop %v4824
    %v4826 = vmul.f32 1.0, %v4825
    %v4827 = vtanh.pop %v4813
    %v4828 = vxor.u32 %v4814, 2147483648
    %v4829 = vmul.f32 %v4828, 1.442695
    %v4830 = vpow.pop %v4829
    %v4831 = vadd.f32 %v4830, 1.0
    %v4832 = vrcp.pop %v4831
    %v4833 = vmul.f32 1.0, %v4832
    %v4834 = vmul.f32 %v4826, %v4721
    %v4835 = vmul.f32 %v4820, %v4827
    %v4836 = vadd.f32 %v4834, %v4835
    %v4837 = vtanh.pop %v4836
    %v4838 = vmul.f32 %v4833, %v4837
    %v4839 = vsel %vm1719, %v4838, %v4009
    %v4840 = vpack.c.bf16 %v4839, %v4839
    %v4841 = vld [vmem:[%s4] sm:$0xff]
    %v4842 = vld [vmem:[%s4 + $0x8] sm:$0xff]
    %v4843 = vld [vmem:[%s4 + $0x10] sm:$0xff]
    %v4844 = vld [vmem:[%s4 + $0x18] sm:$0xff]
    %v4845 = vld [vmem:[%s4 + $0x20] sm:$0xff]
    %v4846 = vld [vmem:[%s4 + $0x28] sm:$0xff]
    %v4847 = vld [vmem:[%s4 + $0x30] sm:$0xff]
    %v4848 = vld [vmem:[%s4 + $0x38] sm:$0xff]
    %v4849 = vld [vmem:[%s4 + $0x40] sm:$0xff]
    %v4850 = vld [vmem:[%s4 + $0x48] sm:$0xff]
    %v4851 = vld [vmem:[%s4 + $0x50] sm:$0xff]
    %v4852 = vld [vmem:[%s4 + $0x58] sm:$0xff]
    %v4853 = vld [vmem:[%s4 + $0x60] sm:$0xff]
    %v4854 = vld [vmem:[%s4 + $0x68] sm:$0xff]
    %v4855 = vld [vmem:[%s4 + $0x70] sm:$0xff]
    %v4856 = vld [vmem:[%s4 + $0x78] sm:$0xff]
    %v4857 = vld [vmem:[%s5] sm:$0x3]
    %v4859 = vlaneseq
    %v4860 = vshrl.u32 %v4859, 7
    %v4861 = vsub.s32 0, %v4860
    %v4862 = vrot.slane %v4857, %v4861
    %v4863 = vlaneseq
    %v4864 = vshrl.u32 %v4863, 7
    %v4865 = vsub.s32 1, %v4864
    %v4866 = vrot.slane %v4857, %v4865
    %v4885 = vunpack.c.l.b16 %v4841
    %v4886 = vunpack.c.h.b16 %v4841
    %v4887 = vunpack.c.l.b16 %v4842
    %v4888 = vunpack.c.h.b16 %v4842
    %v4889 = vunpack.c.l.b16 %v4843
    %v4890 = vunpack.c.h.b16 %v4843
    %v4891 = vunpack.c.l.b16 %v4844
    %v4892 = vunpack.c.h.b16 %v4844
    %v4893 = vunpack.c.l.b16 %v4845
    %v4894 = vunpack.c.h.b16 %v4845
    %v4895 = vunpack.c.l.b16 %v4846
    %v4896 = vunpack.c.h.b16 %v4846
    %v4897 = vunpack.c.l.b16 %v4847
    %v4898 = vunpack.c.h.b16 %v4847
    %v4899 = vunpack.c.l.b16 %v4848
    %v4900 = vunpack.c.h.b16 %v4848
    %v4901 = vunpack.c.l.b16 %v4849
    %v4902 = vunpack.c.h.b16 %v4849
    %v4903 = vunpack.c.l.b16 %v4850
    %v4904 = vunpack.c.h.b16 %v4850
    %v4905 = vunpack.c.l.b16 %v4851
    %v4906 = vunpack.c.h.b16 %v4851
    %v4907 = vunpack.c.l.b16 %v4852
    %v4908 = vunpack.c.h.b16 %v4852
    %v4909 = vunpack.c.l.b16 %v4853
    %v4910 = vunpack.c.h.b16 %v4853
    %v4911 = vunpack.c.l.b16 %v4854
    %v4912 = vunpack.c.h.b16 %v4854
    %v4913 = vunpack.c.l.b16 %v4855
    %v4914 = vunpack.c.h.b16 %v4855
    %v4915 = vunpack.c.l.b16 %v4856
    %v4916 = vunpack.c.h.b16 %v4856
    %v4917 = vpack.c.b16 %v4887, %v4885
    %v4918 = vpack.c.b16 %v4888, %v4886
    %v4919 = vpack.c.b16 %v4891, %v4889
    %v4920 = vpack.c.b16 %v4892, %v4890
    %v4921 = vpack.c.b16 %v4895, %v4893
    %v4922 = vpack.c.b16 %v4896, %v4894
    %v4923 = vpack.c.b16 %v4899, %v4897
    %v4924 = vpack.c.b16 %v4900, %v4898
    %v4925 = vpack.c.b16 %v4903, %v4901
    %v4926 = vpack.c.b16 %v4904, %v4902
    %v4927 = vpack.c.b16 %v4907, %v4905
    %v4928 = vpack.c.b16 %v4908, %v4906
    %v4929 = vpack.c.b16 %v4911, %v4909
    %v4930 = vpack.c.b16 %v4912, %v4910
    %v4931 = vpack.c.b16 %v4915, %v4913
    %v4932 = vpack.c.b16 %v4916, %v4914
    %4949 = vmatprep.subr.bf16.mxu0 %v4918
    %4950 = vmatpush1.bf16.msra.mxu0 %v4917
    %4951 = vmatprep.subr.bf16.mxu0 %v4920
    %4952 = vmatpush1.bf16.msra.mxu0 %v4919
    %4953 = vmatprep.subr.bf16.mxu0 %v4922
    %4954 = vmatpush1.bf16.msra.mxu0 %v4921
    %4955 = vmatprep.subr.bf16.mxu0 %v4924
    %4956 = vmatpush1.bf16.msra.mxu0 %v4923
    %4957 = vmatprep.subr.bf16.mxu0 %v4926
    %4958 = vmatpush1.bf16.msra.mxu0 %v4925
    %4959 = vmatprep.subr.bf16.mxu0 %v4928
    %4960 = vmatpush1.bf16.msra.mxu0 %v4927
    %4961 = vmatprep.subr.bf16.mxu0 %v4930
    %4962 = vmatpush1.bf16.msra.mxu0 %v4929
    %4963 = vmatprep.subr.bf16.mxu0 %v4932
    %4964 = vmatpush1.bf16.msra.mxu0 %v4931
    %4965 = vmatprep.subr.bf16.mxu0 0
    %4966 = vmatpush1.bf16.msra.mxu0 0
    %4967 = vmatprep.subr.bf16.mxu0 0
    %4968 = vmatpush1.bf16.msra.mxu0 0
    %4969 = vmatprep.subr.bf16.mxu0 0
    %4970 = vmatpush1.bf16.msra.mxu0 0
    %4971 = vmatprep.subr.bf16.mxu0 0
    %4972 = vmatpush1.bf16.msra.mxu0 0
    %4973 = vmatprep.subr.bf16.mxu0 0
    %4974 = vmatpush1.bf16.msra.mxu0 0
    %4975 = vmatprep.subr.bf16.mxu0 0
    %4976 = vmatpush1.bf16.msra.mxu0 0
    %4977 = vmatprep.subr.bf16.mxu0 0
    %4978 = vmatpush1.bf16.msra.mxu0 0
    %4979 = vmatprep.subr.bf16.mxu0 0
    %4980 = vmatpush1.bf16.msra.mxu0 0
    %4981 = vmatprep.mubr.bf16.mxu0 0
    %4982 = vmatmul.mubr.bf16.gmra.mrb[0].mxu0 %v4840
    %v4983 = vpop.f32.mrb[0].mxu0
    %v4984 = vadd.f32 %v4862, %v4983
    %v4985 = vpop.f32.mrb[0].mxu0
    %v4986 = vadd.f32 %v4866, %v4985
    %v4987 = vpop.f32.mrb[0].mxu0
    %v4988 = vpop.f32.mrb[0].mxu0
    %4989 = vdwg.mxu0
    %4990 = vst [vmem:[%s6] sm:$0xff] %v4984
    %vm4991 = vcmask 719872
    %4992 = vst.msk [vmem:[%s6 + $0x8] sm:$0xff] %vm4991, %v4986
    // Predicated region
    $region34: #{blstm_forward.1} parent=1 // pred_check
      _
    $region35: #{blstm_forward.1} parent=1 // pred_check_branch
      %4994 = sbr.rel (0) target = $region37
    $region36: #{blstm_forward.1} parent=1 // pred_region
      _
    $region37: #{blstm_forward.1} parent=1 // pred_fallthru
      _
    // Predicated region
    $region38: #{blstm_forward.1} parent=1 // pred_check
      _
    $region39: #{blstm_forward.1} parent=1 // pred_check_branch
      %4996 = sbr.rel (0) target = $region41
    $region40: #{blstm_forward.1} parent=1 // pred_region
      _
    $region41: #{blstm_forward.1} parent=1 // pred_fallthru
      _
    %4997 = vsyncpa [#allocation5], 1
    %4998 = vsyncpa [#allocation7], 1

</llo_original>
